<compile_context>
chip_gen: v5e
topology: v5e:2x2
jax: 0.10.0
libtpu: 0.0.40
codegen_flags: <defaults>
</compile_context>

<pallas_src>
import math

import jax
import jax.numpy as jnp
from jax.experimental import pallas as pl
from jax.experimental.pallas import tpu as pltpu

COMPUTE_DTYPE = jnp.bfloat16   # MXU input dtype; accumulation stays f32


# ------------------------------ kernel helpers -------------------------------

def _accum_conv3x3(x, w_ref, xp_ref, zero_fill=True):
    """3x3 / stride 1 / pad 1 conv as 9 shifted MXU matmuls accumulated in f32.

    x      : (H, W, C) array (any float dtype; cast to xp_ref.dtype on store)
    w_ref  : (9*C, N) tap-major lane-dense weight slab (bf16)
    xp_ref : (H+2, W+2, C) VMEM scratch for the zero-padded tile (bf16)
    zero_fill: skip the halo zero-fill when the halo is already zero and the
               interior is fully overwritten (scratch reuse between stages).
    returns (H*W, N) float32 accumulator.
    """
    H, W, C = x.shape
    N = w_ref.shape[1]

    if zero_fill:
        xp_ref[...] = jnp.zeros_like(xp_ref)       # in-VMEM halo, no HBM pad copy
    xp_ref[1:H + 1, 1:W + 1, :] = x.astype(xp_ref.dtype)

    acc = jnp.zeros((H * W, N), jnp.float32)
    for dx in range(3):                             # hoist the 3 dx (lane-row) shifts
        xs = xp_ref[:, dx:dx + W, :]                # (H+2, W, C)
        for dy in range(3):                         # leading-dim slice: cheap
            tap = dy * 3 + dx
            win = xs[dy:dy + H].reshape(H * W, C)
            w_tap = w_ref[tap * C:(tap + 1) * C, :]
            acc = acc + jnp.dot(win, w_tap, preferred_element_type=jnp.float32)
    return acc


def _ssh_fused_kernel(x_ref,
                      wA_ref, sA_ref, bA_ref, slA_ref,
                      wB_ref, sB_ref, bB_ref, slB_ref,
                      wC_ref, sC_ref, bC_ref,
                      o_ref,
                      xpA_ref, xpB_ref):
    """Entire SSH forward for one batch element; intermediates never hit HBM."""
    H, W = x_ref.shape[1], x_ref.shape[2]
    out_dim = o_ref.shape[3]
    od2, od4 = out_dim // 2, out_dim // 4

    # ---- stage A: conv3X3 (ReLU distributed from final F.relu) + conv5X5_1
    #      (leaky), both reading x; one matmul per tap with fused N = od2+od4.
    accA = _accum_conv3x3(x_ref[0], wA_ref, xpA_ref)
    yA = accA * sA_ref[...] + bA_ref[...]                   # folded eval-mode BN
    yA = jnp.where(yA >= 0.0, yA, yA * slA_ref[...])        # per-channel (leaky)ReLU
    c3 = yA[:, :od2]                                         # f32, stays in-kernel
    c5_1 = yA[:, od2:].astype(COMPUTE_DTYPE).reshape(H, W, od4)

    # ---- stage B: conv5X5_2 (ReLU) + conv7X7_2 (leaky), both reading c5_1.
    accB = _accum_conv3x3(c5_1, wB_ref, xpB_ref)
    yB = accB * sB_ref[...] + bB_ref[...]
    yB = jnp.where(yB >= 0.0, yB, yB * slB_ref[...])
    c5 = yB[:, :od4]                                         # f32
    c7_2 = yB[:, od4:].astype(COMPUTE_DTYPE).reshape(H, W, od4)

    # ---- stage C: conv7x7_3 + BN + ReLU.  Reuse xpB: its halo is still zero
    #      and the interior is fully overwritten, so skip the zero-fill.
    accC = _accum_conv3x3(c7_2, wC_ref, xpB_ref, zero_fill=False)
    c7 = jnp.maximum(accC * sC_ref[...] + bC_ref[...], 0.0)

    # ---- final concat + store: single lane-dense write of the whole slab.
    out = jnp.concatenate([c3, c5, c7], axis=-1)             # (H*W, out_dim) f32
    o_ref[0] = out.reshape(H, W, out_dim).astype(o_ref.dtype)


# ------------------------------ pallas wrapper -------------------------------

def ssh_forward_pallas(x, params, out_dim):
    """x: (B, H, W, in_dim) float32 NHWC.  Returns (B, H, W, out_dim) x.dtype."""
    B, H, W, Cin = x.shape
    leaky = 0.1 if out_dim <= 64 else 0.0
    od2, od4 = out_dim // 2, out_dim // 4

    # stage A weights: conv3X3 | conv5X5_1  (ReLU distributed | leaky)
    wA, sA, bA, slA = _fuse_branch_params(
        [params["conv3X3"], params["conv5X5_1"]], [0.0, leaky])
    # stage B weights: conv5X5_2 | conv7X7_2  (ReLU distributed | leaky)
    wB, sB, bB, slB = _fuse_branch_params(
        [params["conv5X5_2"], params["conv7X7_2"]], [0.0, leaky])
    pC = params["conv7x7_3"]
    wC = pC["w"].astype(COMPUTE_DTYPE)
    sC = pC["scale"].reshape(1, -1).astype(jnp.float32)
    bC = pC["bias"].reshape(1, -1).astype(jnp.float32)

    NA, NB, NC = od2 + od4, 2 * od4, od4

    return pl.pallas_call(
        _ssh_fused_kernel,
        out_shape=jax.ShapeDtypeStruct((B, H, W, out_dim), x.dtype),
        grid_spec=pltpu.PrefetchScalarGridSpec(
            num_scalar_prefetch=0,
            grid=(B,),
            in_specs=[
                pl.BlockSpec((1, H, W, Cin), lambda b: (b, 0, 0, 0)),
                # stage A
                pl.BlockSpec((9 * Cin, NA), lambda b: (0, 0)),
                pl.BlockSpec((1, NA), lambda b: (0, 0)),
                pl.BlockSpec((1, NA), lambda b: (0, 0)),
                pl.BlockSpec((1, NA), lambda b: (0, 0)),
                # stage B
                pl.BlockSpec((9 * od4, NB), lambda b: (0, 0)),
                pl.BlockSpec((1, NB), lambda b: (0, 0)),
                pl.BlockSpec((1, NB), lambda b: (0, 0)),
                pl.BlockSpec((1, NB), lambda b: (0, 0)),
                # stage C
                pl.BlockSpec((9 * od4, NC), lambda b: (0, 0)),
                pl.BlockSpec((1, NC), lambda b: (0, 0)),
                pl.BlockSpec((1, NC), lambda b: (0, 0)),
            ],
            out_specs=pl.BlockSpec((1, H, W, out_dim), lambda b: (b, 0, 0, 0)),
            scratch_shapes=[
                pltpu.VMEM((H + 2, W + 2, Cin), COMPUTE_DTYPE),   # padded x
                pltpu.VMEM((H + 2, W + 2, od4), COMPUTE_DTYPE),   # padded mid acts
            ],
        ),
        compiler_params=pltpu.CompilerParams(
            dimension_semantics=("parallel",)),
    )(x, wA, sA, bA, slA, wB, sB, bB, slB, wC, sC, bC)


# --------------------------- parameter construction --------------------------

def init_conv_bn_params(key, cin, cout):
    """Deterministic synthetic params for Conv2d(3x3, no bias) + BatchNorm2d."""
    kw, kg, kb, km, kv = jax.random.split(key, 5)
    w_torch = jax.random.normal(kw, (cout, cin, 3, 3), jnp.float32) \
        * (1.0 / math.sqrt(cin * 9))
    gamma = 1.0 + 0.1 * jax.random.normal(kg, (cout,), jnp.float32)
    beta = 0.1 * jax.random.normal(kb, (cout,), jnp.float32)
    r_mean = 0.1 * jax.random.normal(km, (cout,), jnp.float32)
    r_var = jnp.abs(jax.random.normal(kv, (cout,), jnp.float32)) + 0.5
    eps = 1e-5
    scale = gamma / jnp.sqrt(r_var + eps)        # BN folded (eval mode)
    bias = beta - r_mean * scale
    # (Cout,Cin,3,3) -> (kh,kw,Cin,Cout) -> lane-dense (9*Cin, Cout), tap-major
    w_packed = jnp.transpose(w_torch, (2, 3, 1, 0)).reshape(9 * cin, cout)
    return {"w_torch": w_torch, "w": w_packed, "scale": scale, "bias": bias}


def init_ssh_params(key, in_dim, out_dim):
    assert out_dim % 4 == 0
    keys = jax.random.split(key, 5)
    return {
        "conv3X3":   init_conv_bn_params(keys[0], in_dim, out_dim // 2),
        "conv5X5_1": init_conv_bn_params(keys[1], in_dim, out_dim // 4),
        "conv5X5_2": init_conv_bn_params(keys[2], out_dim // 4, out_dim // 4),
        "conv7X7_2": init_conv_bn_params(keys[3], out_dim // 4, out_dim // 4),
        "conv7x7_3": init_conv_bn_params(keys[4], out_dim // 4, out_dim // 4),
    }


def _fuse_branch_params(p_list, slopes):
    """Concatenate sibling convs along Cout for the fused dual-conv stages."""
    w = jnp.concatenate([p["w"] for p in p_list], axis=1).astype(COMPUTE_DTYPE)
    scale = jnp.concatenate([p["scale"] for p in p_list]).reshape(1, -1)
    bias = jnp.concatenate([p["bias"] for p in p_list]).reshape(1, -1)
    slope = jnp.concatenate(
        [jnp.full((p["scale"].shape[0],), s, jnp.float32)
         for p, s in zip(p_list, slopes)]).reshape(1, -1)
    return w, scale.astype(jnp.float32), bias.astype(jnp.float32), slope


# ----------------------------- pure-JAX reference -----------------------------
# Emulates the same bf16 quantization points as the kernel (bf16 conv operands,
# f32 accumulation, bf16 mid activations feeding the next conv; c3/c5/c7 stay
# f32 until the final cast) so the comparison is tight.

def _ref_conv_bn(v, p):
    w = jnp.transpose(p["w_torch"], (2, 3, 1, 0)).astype(COMPUTE_DTYPE)  # HWIO
    y = jax.lax.conv_general_dilated(
        v.astype(COMPUTE_DTYPE), w, (1, 1), ((1, 1), (1, 1)),
        dimension_numbers=("NHWC", "HWIO", "NHWC"),
        preferred_element_type=jnp.float32)
    return y * p["scale"].reshape(1, 1, 1, -1) + p["bias"].reshape(1, 1, 1, -1)


def ssh_forward_ref(x, params, out_dim):
    leaky = 0.1 if out_dim <= 64 else 0.0
    lrelu = lambda v: jnp.where(v >= 0, v, v * leaky)

    c3 = jnp.maximum(_ref_conv_bn(x, params["conv3X3"]), 0.0)
    c5_1 = lrelu(_ref_conv_bn(x, params["conv5X5_1"])).astype(COMPUTE_DTYPE)
    c5 = jnp.maximum(_ref_conv_bn(c5_1, params["conv5X5_2"]), 0.0)
    c7_2 = lrelu(_ref_conv_bn(c5_1, params["conv7X7_2"])).astype(COMPUTE_DTYPE)
    c7 = jnp.maximum(_ref_conv_bn(c7_2, params["conv7x7_3"]), 0.0)
    out = jnp.concatenate([c3, c5, c7], axis=-1)
    return out.astype(x.dtype)


# ------------------------------------ main ------------------------------------

if __name__ == "__main__":
    B, H, W = 2, 16, 16
    in_dim, out_dim = 8, 16        # leaky = 0.1 branch (out_dim <= 64)

    key = jax.random.PRNGKey(0)
    kx, kp = jax.random.split(key)
    x = jax.random.normal(kx, (B, H, W, in_dim), jnp.float32)   # NHWC
    params = init_ssh_params(kp, in_dim, out_dim)

    out = jax.block_until_ready(ssh_forward_pallas(x, params, out_dim))
    ref = jax.block_until_ready(ssh_forward_ref(x, params, out_dim))

    assert out.shape == (B, H, W, out_dim), out.shape
    max_err = float(jnp.max(jnp.abs(out - ref)))
    assert jnp.allclose(out, ref, atol=2e-2, rtol=2e-2), max_err

    print("KERNEL_OK")
</pallas_src>

<mosaic_0001>
module attributes {stable_mosaic.version = 11 : i64} {
  func.func @_ssh_fused_kernel(%arg0: i32, %arg1: memref<1x16x16x8xf32, #tpu.memory_space<vmem>>, %arg2: memref<72x12xbf16, #tpu.memory_space<vmem>>, %arg3: memref<1x12xf32, #tpu.memory_space<vmem>>, %arg4: memref<1x12xf32, #tpu.memory_space<vmem>>, %arg5: memref<1x12xf32, #tpu.memory_space<vmem>>, %arg6: memref<36x8xbf16, #tpu.memory_space<vmem>>, %arg7: memref<1x8xf32, #tpu.memory_space<vmem>>, %arg8: memref<1x8xf32, #tpu.memory_space<vmem>>, %arg9: memref<1x8xf32, #tpu.memory_space<vmem>>, %arg10: memref<36x4xbf16, #tpu.memory_space<vmem>>, %arg11: memref<1x4xf32, #tpu.memory_space<vmem>>, %arg12: memref<1x4xf32, #tpu.memory_space<vmem>>, %arg13: memref<1x16x16x16xf32, #tpu.memory_space<vmem>>, %arg14: memref<18x18x8xbf16, #tpu.memory_space<vmem>>, %arg15: memref<18x18x4xbf16, #tpu.memory_space<vmem>>) attributes {dimension_semantics = [#tpu.dimension_semantics<parallel>], iteration_bounds = array<i64: 2>, scalar_prefetch = 0 : i64, scratch_operands = 2 : i64, tpu.core_type = #tpu.core_type<tc>, window_params = [{transform_indices = @transform_0, window_bounds = array<i64: 1, 16, 16, 8>}, {pipeline_mode = #tpu.pipeline_mode<synchronous>, transform_indices = @transform_1, window_bounds = array<i64: 72, 12>}, {pipeline_mode = #tpu.pipeline_mode<synchronous>, transform_indices = @transform_2, window_bounds = array<i64: 1, 12>}, {pipeline_mode = #tpu.pipeline_mode<synchronous>, transform_indices = @transform_3, window_bounds = array<i64: 1, 12>}, {pipeline_mode = #tpu.pipeline_mode<synchronous>, transform_indices = @transform_4, window_bounds = array<i64: 1, 12>}, {pipeline_mode = #tpu.pipeline_mode<synchronous>, transform_indices = @transform_5, window_bounds = array<i64: 36, 8>}, {pipeline_mode = #tpu.pipeline_mode<synchronous>, transform_indices = @transform_6, window_bounds = array<i64: 1, 8>}, {pipeline_mode = #tpu.pipeline_mode<synchronous>, transform_indices = @transform_7, window_bounds = array<i64: 1, 8>}, {pipeline_mode = #tpu.pipeline_mode<synchronous>, transform_indices = @transform_8, window_bounds = array<i64: 1, 8>}, {pipeline_mode = #tpu.pipeline_mode<synchronous>, transform_indices = @transform_9, window_bounds = array<i64: 36, 4>}, {pipeline_mode = #tpu.pipeline_mode<synchronous>, transform_indices = @transform_10, window_bounds = array<i64: 1, 4>}, {pipeline_mode = #tpu.pipeline_mode<synchronous>, transform_indices = @transform_11, window_bounds = array<i64: 1, 4>}, {transform_indices = @transform_12, window_bounds = array<i64: 1, 16, 16, 16>}]} {
    %c0 = arith.constant 0 : index
    %c0_0 = arith.constant 0 : index
    %c0_1 = arith.constant 0 : index
    %c0_2 = arith.constant 0 : index
    %0 = vector.load %arg1[%c0, %c0_0, %c0_1, %c0_2] : memref<1x16x16x8xf32, #tpu.memory_space<vmem>>, vector<1x16x16x8xf32>
    %1 = vector.shape_cast %0 : vector<1x16x16x8xf32> to vector<16x16x8xf32>
    %cst = arith.constant 0.000000e+00 : bf16
    %2 = vector.broadcast %cst : bf16 to vector<18x18x8xbf16>
    %c0_3 = arith.constant 0 : index
    %c0_4 = arith.constant 0 : index
    %c0_5 = arith.constant 0 : index
    %3 = vector.load %arg14[%c0_3, %c0_4, %c0_5] : memref<18x18x8xbf16, #tpu.memory_space<vmem>>, vector<18x18x8xbf16>
    tpu.vector_store %arg14[%c0_3, %c0_4, %c0_5], %2 {strides = array<i32>} : memref<18x18x8xbf16, #tpu.memory_space<vmem>>, vector<18x18x8xbf16>,
    %4 = arith.truncf %1 : vector<16x16x8xf32> to vector<16x16x8xbf16>
    %c1 = arith.constant 1 : index
    %c1_6 = arith.constant 1 : index
    %c0_7 = arith.constant 0 : index
    %5 = vector.load %arg14[%c1, %c1_6, %c0_7] : memref<18x18x8xbf16, #tpu.memory_space<vmem>>, vector<16x16x8xbf16>
    tpu.vector_store %arg14[%c1, %c1_6, %c0_7], %4 {strides = array<i32>} : memref<18x18x8xbf16, #tpu.memory_space<vmem>>, vector<16x16x8xbf16>,
    %cst_8 = arith.constant 0.000000e+00 : f32
    %6 = vector.broadcast %cst_8 : f32 to vector<256x12xf32>
    %c0_9 = arith.constant 0 : index
    %c0_10 = arith.constant 0 : index
    %c0_11 = arith.constant 0 : index
    %7 = vector.load %arg14[%c0_9, %c0_10, %c0_11] : memref<18x18x8xbf16, #tpu.memory_space<vmem>>, vector<18x16x8xbf16>
    %8 = vector.extract_strided_slice %7 {offsets = [0, 0, 0], sizes = [16, 16, 8], strides = [1, 1, 1]} : vector<18x16x8xbf16> to vector<16x16x8xbf16>
    %9 = vector.shape_cast %8 : vector<16x16x8xbf16> to vector<256x8xbf16>
    %c0_12 = arith.constant 0 : index
    %c0_13 = arith.constant 0 : index
    %10 = vector.load %arg2[%c0_12, %c0_13] : memref<72x12xbf16, #tpu.memory_space<vmem>>, vector<8x12xbf16>
    %cst_14 = arith.constant dense<0.000000e+00> : vector<256x12xf32>
    %11 = tpu.matmul %9, %10, %cst_14 {dimension_numbers = #tpu.dot_dimension_numbers<[1], [0], [0], [1], [0, 0, 1, 1], [], []>} : vector<256x8xbf16>, vector<8x12xbf16>, vector<256x12xf32> -> vector<256x12xf32>
    %12 = arith.addf %6, %11 : vector<256x12xf32>
    %13 = vector.extract_strided_slice %7 {offsets = [1, 0, 0], sizes = [16, 16, 8], strides = [1, 1, 1]} : vector<18x16x8xbf16> to vector<16x16x8xbf16>
    %14 = vector.shape_cast %13 : vector<16x16x8xbf16> to vector<256x8xbf16>
    %c24 = arith.constant 24 : index
    %c0_15 = arith.constant 0 : index
    %15 = vector.load %arg2[%c24, %c0_15] : memref<72x12xbf16, #tpu.memory_space<vmem>>, vector<8x12xbf16>
    %cst_16 = arith.constant dense<0.000000e+00> : vector<256x12xf32>
    %16 = tpu.matmul %14, %15, %cst_16 {dimension_numbers = #tpu.dot_dimension_numbers<[1], [0], [0], [1], [0, 0, 1, 1], [], []>} : vector<256x8xbf16>, vector<8x12xbf16>, vector<256x12xf32> -> vector<256x12xf32>
    %17 = arith.addf %12, %16 : vector<256x12xf32>
    %18 = vector.extract_strided_slice %7 {offsets = [2, 0, 0], sizes = [16, 16, 8], strides = [1, 1, 1]} : vector<18x16x8xbf16> to vector<16x16x8xbf16>
    %19 = vector.shape_cast %18 : vector<16x16x8xbf16> to vector<256x8xbf16>
    %c48 = arith.constant 48 : index
    %c0_17 = arith.constant 0 : index
    %20 = vector.load %arg2[%c48, %c0_17] : memref<72x12xbf16, #tpu.memory_space<vmem>>, vector<8x12xbf16>
    %cst_18 = arith.constant dense<0.000000e+00> : vector<256x12xf32>
    %21 = tpu.matmul %19, %20, %cst_18 {dimension_numbers = #tpu.dot_dimension_numbers<[1], [0], [0], [1], [0, 0, 1, 1], [], []>} : vector<256x8xbf16>, vector<8x12xbf16>, vector<256x12xf32> -> vector<256x12xf32>
    %22 = arith.addf %17, %21 : vector<256x12xf32>
    %c0_19 = arith.constant 0 : index
    %c1_20 = arith.constant 1 : index
    %c0_21 = arith.constant 0 : index
    %23 = vector.load %arg14[%c0_19, %c1_20, %c0_21] : memref<18x18x8xbf16, #tpu.memory_space<vmem>>, vector<18x16x8xbf16>
    %24 = vector.extract_strided_slice %23 {offsets = [0, 0, 0], sizes = [16, 16, 8], strides = [1, 1, 1]} : vector<18x16x8xbf16> to vector<16x16x8xbf16>
    %25 = vector.shape_cast %24 : vector<16x16x8xbf16> to vector<256x8xbf16>
    %c8 = arith.constant 8 : index
    %c0_22 = arith.constant 0 : index
    %26 = vector.load %arg2[%c8, %c0_22] : memref<72x12xbf16, #tpu.memory_space<vmem>>, vector<8x12xbf16>
    %cst_23 = arith.constant dense<0.000000e+00> : vector<256x12xf32>
    %27 = tpu.matmul %25, %26, %cst_23 {dimension_numbers = #tpu.dot_dimension_numbers<[1], [0], [0], [1], [0, 0, 1, 1], [], []>} : vector<256x8xbf16>, vector<8x12xbf16>, vector<256x12xf32> -> vector<256x12xf32>
    %28 = arith.addf %22, %27 : vector<256x12xf32>
    %29 = vector.extract_strided_slice %23 {offsets = [1, 0, 0], sizes = [16, 16, 8], strides = [1, 1, 1]} : vector<18x16x8xbf16> to vector<16x16x8xbf16>
    %30 = vector.shape_cast %29 : vector<16x16x8xbf16> to vector<256x8xbf16>
    %c32 = arith.constant 32 : index
    %c0_24 = arith.constant 0 : index
    %31 = vector.load %arg2[%c32, %c0_24] : memref<72x12xbf16, #tpu.memory_space<vmem>>, vector<8x12xbf16>
    %cst_25 = arith.constant dense<0.000000e+00> : vector<256x12xf32>
    %32 = tpu.matmul %30, %31, %cst_25 {dimension_numbers = #tpu.dot_dimension_numbers<[1], [0], [0], [1], [0, 0, 1, 1], [], []>} : vector<256x8xbf16>, vector<8x12xbf16>, vector<256x12xf32> -> vector<256x12xf32>
    %33 = arith.addf %28, %32 : vector<256x12xf32>
    %34 = vector.extract_strided_slice %23 {offsets = [2, 0, 0], sizes = [16, 16, 8], strides = [1, 1, 1]} : vector<18x16x8xbf16> to vector<16x16x8xbf16>
    %35 = vector.shape_cast %34 : vector<16x16x8xbf16> to vector<256x8xbf16>
    %c56 = arith.constant 56 : index
    %c0_26 = arith.constant 0 : index
    %36 = vector.load %arg2[%c56, %c0_26] : memref<72x12xbf16, #tpu.memory_space<vmem>>, vector<8x12xbf16>
    %cst_27 = arith.constant dense<0.000000e+00> : vector<256x12xf32>
    %37 = tpu.matmul %35, %36, %cst_27 {dimension_numbers = #tpu.dot_dimension_numbers<[1], [0], [0], [1], [0, 0, 1, 1], [], []>} : vector<256x8xbf16>, vector<8x12xbf16>, vector<256x12xf32> -> vector<256x12xf32>
    %38 = arith.addf %33, %37 : vector<256x12xf32>
    %c0_28 = arith.constant 0 : index
    %c2 = arith.constant 2 : index
    %c0_29 = arith.constant 0 : index
    %39 = vector.load %arg14[%c0_28, %c2, %c0_29] : memref<18x18x8xbf16, #tpu.memory_space<vmem>>, vector<18x16x8xbf16>
    %40 = vector.extract_strided_slice %39 {offsets = [0, 0, 0], sizes = [16, 16, 8], strides = [1, 1, 1]} : vector<18x16x8xbf16> to vector<16x16x8xbf16>
    %41 = vector.shape_cast %40 : vector<16x16x8xbf16> to vector<256x8xbf16>
    %c16 = arith.constant 16 : index
    %c0_30 = arith.constant 0 : index
    %42 = vector.load %arg2[%c16, %c0_30] : memref<72x12xbf16, #tpu.memory_space<vmem>>, vector<8x12xbf16>
    %cst_31 = arith.constant dense<0.000000e+00> : vector<256x12xf32>
    %43 = tpu.matmul %41, %42, %cst_31 {dimension_numbers = #tpu.dot_dimension_numbers<[1], [0], [0], [1], [0, 0, 1, 1], [], []>} : vector<256x8xbf16>, vector<8x12xbf16>, vector<256x12xf32> -> vector<256x12xf32>
    %44 = arith.addf %38, %43 : vector<256x12xf32>
    %45 = vector.extract_strided_slice %39 {offsets = [1, 0, 0], sizes = [16, 16, 8], strides = [1, 1, 1]} : vector<18x16x8xbf16> to vector<16x16x8xbf16>
    %46 = vector.shape_cast %45 : vector<16x16x8xbf16> to vector<256x8xbf16>
    %c40 = arith.constant 40 : index
    %c0_32 = arith.constant 0 : index
    %47 = vector.load %arg2[%c40, %c0_32] : memref<72x12xbf16, #tpu.memory_space<vmem>>, vector<8x12xbf16>
    %cst_33 = arith.constant dense<0.000000e+00> : vector<256x12xf32>
    %48 = tpu.matmul %46, %47, %cst_33 {dimension_numbers = #tpu.dot_dimension_numbers<[1], [0], [0], [1], [0, 0, 1, 1], [], []>} : vector<256x8xbf16>, vector<8x12xbf16>, vector<256x12xf32> -> vector<256x12xf32>
    %49 = arith.addf %44, %48 : vector<256x12xf32>
    %50 = vector.extract_strided_slice %39 {offsets = [2, 0, 0], sizes = [16, 16, 8], strides = [1, 1, 1]} : vector<18x16x8xbf16> to vector<16x16x8xbf16>
    %51 = vector.shape_cast %50 : vector<16x16x8xbf16> to vector<256x8xbf16>
    %c64 = arith.constant 64 : index
    %c0_34 = arith.constant 0 : index
    %52 = vector.load %arg2[%c64, %c0_34] : memref<72x12xbf16, #tpu.memory_space<vmem>>, vector<8x12xbf16>
    %cst_35 = arith.constant dense<0.000000e+00> : vector<256x12xf32>
    %53 = tpu.matmul %51, %52, %cst_35 {dimension_numbers = #tpu.dot_dimension_numbers<[1], [0], [0], [1], [0, 0, 1, 1], [], []>} : vector<256x8xbf16>, vector<8x12xbf16>, vector<256x12xf32> -> vector<256x12xf32>
    %54 = arith.addf %49, %53 : vector<256x12xf32>
    %c0_36 = arith.constant 0 : index
    %c0_37 = arith.constant 0 : index
    %55 = vector.load %arg3[%c0_36, %c0_37] : memref<1x12xf32, #tpu.memory_space<vmem>>, vector<1x12xf32>
    %56 = vector.broadcast %55 : vector<1x12xf32> to vector<256x12xf32>
    %57 = arith.mulf %54, %56 : vector<256x12xf32>
    %c0_38 = arith.constant 0 : index
    %c0_39 = arith.constant 0 : index
    %58 = vector.load %arg4[%c0_38, %c0_39] : memref<1x12xf32, #tpu.memory_space<vmem>>, vector<1x12xf32>
    %59 = vector.broadcast %58 : vector<1x12xf32> to vector<256x12xf32>
    %60 = arith.addf %57, %59 : vector<256x12xf32>
    %cst_40 = arith.constant 0.000000e+00 : f32
    %61 = vector.broadcast %cst_40 : f32 to vector<256x12xf32>
    %62 = arith.cmpf oge, %60, %61 : vector<256x12xf32>
    %c0_41 = arith.constant 0 : index
    %c0_42 = arith.constant 0 : index
    %63 = vector.load %arg5[%c0_41, %c0_42] : memref<1x12xf32, #tpu.memory_space<vmem>>, vector<1x12xf32>
    %64 = vector.broadcast %63 : vector<1x12xf32> to vector<256x12xf32>
    %65 = arith.mulf %60, %64 : vector<256x12xf32>
    %66 = arith.select %62, %60, %65 : vector<256x12xi1>, vector<256x12xf32>
    %67 = vector.extract_strided_slice %66 {offsets = [0, 0], sizes = [256, 8], strides = [1, 1]} : vector<256x12xf32> to vector<256x8xf32>
    %68 = vector.extract_strided_slice %66 {offsets = [0, 8], sizes = [256, 4], strides = [1, 1]} : vector<256x12xf32> to vector<256x4xf32>
    %69 = arith.truncf %68 : vector<256x4xf32> to vector<256x4xbf16>
    %70 = vector.shape_cast %69 : vector<256x4xbf16> to vector<16x16x4xbf16>
    %cst_43 = arith.constant 0.000000e+00 : bf16
    %71 = vector.broadcast %cst_43 : bf16 to vector<18x18x4xbf16>
    %c0_44 = arith.constant 0 : index
    %c0_45 = arith.constant 0 : index
    %c0_46 = arith.constant 0 : index
    %72 = vector.load %arg15[%c0_44, %c0_45, %c0_46] : memref<18x18x4xbf16, #tpu.memory_space<vmem>>, vector<18x18x4xbf16>
    tpu.vector_store %arg15[%c0_44, %c0_45, %c0_46], %71 {strides = array<i32>} : memref<18x18x4xbf16, #tpu.memory_space<vmem>>, vector<18x18x4xbf16>,
    %c1_47 = arith.constant 1 : index
    %c1_48 = arith.constant 1 : index
    %c0_49 = arith.constant 0 : index
    %73 = vector.load %arg15[%c1_47, %c1_48, %c0_49] : memref<18x18x4xbf16, #tpu.memory_space<vmem>>, vector<16x16x4xbf16>
    tpu.vector_store %arg15[%c1_47, %c1_48, %c0_49], %70 {strides = array<i32>} : memref<18x18x4xbf16, #tpu.memory_space<vmem>>, vector<16x16x4xbf16>,
    %cst_50 = arith.constant 0.000000e+00 : f32
    %74 = vector.broadcast %cst_50 : f32 to vector<256x8xf32>
    %c0_51 = arith.constant 0 : index
    %c0_52 = arith.constant 0 : index
    %c0_53 = arith.constant 0 : index
    %75 = vector.load %arg15[%c0_51, %c0_52, %c0_53] : memref<18x18x4xbf16, #tpu.memory_space<vmem>>, vector<18x16x4xbf16>
    %76 = vector.extract_strided_slice %75 {offsets = [0, 0, 0], sizes = [16, 16, 4], strides = [1, 1, 1]} : vector<18x16x4xbf16> to vector<16x16x4xbf16>
    %77 = vector.shape_cast %76 : vector<16x16x4xbf16> to vector<256x4xbf16>
    %c0_54 = arith.constant 0 : index
    %c0_55 = arith.constant 0 : index
    %78 = vector.load %arg6[%c0_54, %c0_55] : memref<36x8xbf16, #tpu.memory_space<vmem>>, vector<4x8xbf16>
    %cst_56 = arith.constant dense<0.000000e+00> : vector<256x8xf32>
    %79 = tpu.matmul %77, %78, %cst_56 {dimension_numbers = #tpu.dot_dimension_numbers<[1], [0], [0], [1], [0, 0, 1, 1], [], []>} : vector<256x4xbf16>, vector<4x8xbf16>, vector<256x8xf32> -> vector<256x8xf32>
    %80 = arith.addf %74, %79 : vector<256x8xf32>
    %81 = vector.extract_strided_slice %75 {offsets = [1, 0, 0], sizes = [16, 16, 4], strides = [1, 1, 1]} : vector<18x16x4xbf16> to vector<16x16x4xbf16>
    %82 = vector.shape_cast %81 : vector<16x16x4xbf16> to vector<256x4xbf16>
    %c12 = arith.constant 12 : index
    %c0_57 = arith.constant 0 : index
    %83 = vector.load %arg6[%c12, %c0_57] : memref<36x8xbf16, #tpu.memory_space<vmem>>, vector<4x8xbf16>
    %cst_58 = arith.constant dense<0.000000e+00> : vector<256x8xf32>
    %84 = tpu.matmul %82, %83, %cst_58 {dimension_numbers = #tpu.dot_dimension_numbers<[1], [0], [0], [1], [0, 0, 1, 1], [], []>} : vector<256x4xbf16>, vector<4x8xbf16>, vector<256x8xf32> -> vector<256x8xf32>
    %85 = arith.addf %80, %84 : vector<256x8xf32>
    %86 = vector.extract_strided_slice %75 {offsets = [2, 0, 0], sizes = [16, 16, 4], strides = [1, 1, 1]} : vector<18x16x4xbf16> to vector<16x16x4xbf16>
    %87 = vector.shape_cast %86 : vector<16x16x4xbf16> to vector<256x4xbf16>
    %c24_59 = arith.constant 24 : index
    %c0_60 = arith.constant 0 : index
    %88 = vector.load %arg6[%c24_59, %c0_60] : memref<36x8xbf16, #tpu.memory_space<vmem>>, vector<4x8xbf16>
    %cst_61 = arith.constant dense<0.000000e+00> : vector<256x8xf32>
    %89 = tpu.matmul %87, %88, %cst_61 {dimension_numbers = #tpu.dot_dimension_numbers<[1], [0], [0], [1], [0, 0, 1, 1], [], []>} : vector<256x4xbf16>, vector<4x8xbf16>, vector<256x8xf32> -> vector<256x8xf32>
    %90 = arith.addf %85, %89 : vector<256x8xf32>
    %c0_62 = arith.constant 0 : index
    %c1_63 = arith.constant 1 : index
    %c0_64 = arith.constant 0 : index
    %91 = vector.load %arg15[%c0_62, %c1_63, %c0_64] : memref<18x18x4xbf16, #tpu.memory_space<vmem>>, vector<18x16x4xbf16>
    %92 = vector.extract_strided_slice %91 {offsets = [0, 0, 0], sizes = [16, 16, 4], strides = [1, 1, 1]} : vector<18x16x4xbf16> to vector<16x16x4xbf16>
    %93 = vector.shape_cast %92 : vector<16x16x4xbf16> to vector<256x4xbf16>
    %c4 = arith.constant 4 : index
    %c0_65 = arith.constant 0 : index
    %94 = vector.load %arg6[%c4, %c0_65] : memref<36x8xbf16, #tpu.memory_space<vmem>>, vector<4x8xbf16>
    %cst_66 = arith.constant dense<0.000000e+00> : vector<256x8xf32>
    %95 = tpu.matmul %93, %94, %cst_66 {dimension_numbers = #tpu.dot_dimension_numbers<[1], [0], [0], [1], [0, 0, 1, 1], [], []>} : vector<256x4xbf16>, vector<4x8xbf16>, vector<256x8xf32> -> vector<256x8xf32>
    %96 = arith.addf %90, %95 : vector<256x8xf32>
    %97 = vector.extract_strided_slice %91 {offsets = [1, 0, 0], sizes = [16, 16, 4], strides = [1, 1, 1]} : vector<18x16x4xbf16> to vector<16x16x4xbf16>
    %98 = vector.shape_cast %97 : vector<16x16x4xbf16> to vector<256x4xbf16>
    %c16_67 = arith.constant 16 : index
    %c0_68 = arith.constant 0 : index
    %99 = vector.load %arg6[%c16_67, %c0_68] : memref<36x8xbf16, #tpu.memory_space<vmem>>, vector<4x8xbf16>
    %cst_69 = arith.constant dense<0.000000e+00> : vector<256x8xf32>
    %100 = tpu.matmul %98, %99, %cst_69 {dimension_numbers = #tpu.dot_dimension_numbers<[1], [0], [0], [1], [0, 0, 1, 1], [], []>} : vector<256x4xbf16>, vector<4x8xbf16>, vector<256x8xf32> -> vector<256x8xf32>
    %101 = arith.addf %96, %100 : vector<256x8xf32>
    %102 = vector.extract_strided_slice %91 {offsets = [2, 0, 0], sizes = [16, 16, 4], strides = [1, 1, 1]} : vector<18x16x4xbf16> to vector<16x16x4xbf16>
    %103 = vector.shape_cast %102 : vector<16x16x4xbf16> to vector<256x4xbf16>
    %c28 = arith.constant 28 : index
    %c0_70 = arith.constant 0 : index
    %104 = vector.load %arg6[%c28, %c0_70] : memref<36x8xbf16, #tpu.memory_space<vmem>>, vector<4x8xbf16>
    %cst_71 = arith.constant dense<0.000000e+00> : vector<256x8xf32>
    %105 = tpu.matmul %103, %104, %cst_71 {dimension_numbers = #tpu.dot_dimension_numbers<[1], [0], [0], [1], [0, 0, 1, 1], [], []>} : vector<256x4xbf16>, vector<4x8xbf16>, vector<256x8xf32> -> vector<256x8xf32>
    %106 = arith.addf %101, %105 : vector<256x8xf32>
    %c0_72 = arith.constant 0 : index
    %c2_73 = arith.constant 2 : index
    %c0_74 = arith.constant 0 : index
    %107 = vector.load %arg15[%c0_72, %c2_73, %c0_74] : memref<18x18x4xbf16, #tpu.memory_space<vmem>>, vector<18x16x4xbf16>
    %108 = vector.extract_strided_slice %107 {offsets = [0, 0, 0], sizes = [16, 16, 4], strides = [1, 1, 1]} : vector<18x16x4xbf16> to vector<16x16x4xbf16>
    %109 = vector.shape_cast %108 : vector<16x16x4xbf16> to vector<256x4xbf16>
    %c8_75 = arith.constant 8 : index
    %c0_76 = arith.constant 0 : index
    %110 = vector.load %arg6[%c8_75, %c0_76] : memref<36x8xbf16, #tpu.memory_space<vmem>>, vector<4x8xbf16>
    %cst_77 = arith.constant dense<0.000000e+00> : vector<256x8xf32>
    %111 = tpu.matmul %109, %110, %cst_77 {dimension_numbers = #tpu.dot_dimension_numbers<[1], [0], [0], [1], [0, 0, 1, 1], [], []>} : vector<256x4xbf16>, vector<4x8xbf16>, vector<256x8xf32> -> vector<256x8xf32>
    %112 = arith.addf %106, %111 : vector<256x8xf32>
    %113 = vector.extract_strided_slice %107 {offsets = [1, 0, 0], sizes = [16, 16, 4], strides = [1, 1, 1]} : vector<18x16x4xbf16> to vector<16x16x4xbf16>
    %114 = vector.shape_cast %113 : vector<16x16x4xbf16> to vector<256x4xbf16>
    %c20 = arith.constant 20 : index
    %c0_78 = arith.constant 0 : index
    %115 = vector.load %arg6[%c20, %c0_78] : memref<36x8xbf16, #tpu.memory_space<vmem>>, vector<4x8xbf16>
    %cst_79 = arith.constant dense<0.000000e+00> : vector<256x8xf32>
    %116 = tpu.matmul %114, %115, %cst_79 {dimension_numbers = #tpu.dot_dimension_numbers<[1], [0], [0], [1], [0, 0, 1, 1], [], []>} : vector<256x4xbf16>, vector<4x8xbf16>, vector<256x8xf32> -> vector<256x8xf32>
    %117 = arith.addf %112, %116 : vector<256x8xf32>
    %118 = vector.extract_strided_slice %107 {offsets = [2, 0, 0], sizes = [16, 16, 4], strides = [1, 1, 1]} : vector<18x16x4xbf16> to vector<16x16x4xbf16>
    %119 = vector.shape_cast %118 : vector<16x16x4xbf16> to vector<256x4xbf16>
    %c32_80 = arith.constant 32 : index
    %c0_81 = arith.constant 0 : index
    %120 = vector.load %arg6[%c32_80, %c0_81] : memref<36x8xbf16, #tpu.memory_space<vmem>>, vector<4x8xbf16>
    %cst_82 = arith.constant dense<0.000000e+00> : vector<256x8xf32>
    %121 = tpu.matmul %119, %120, %cst_82 {dimension_numbers = #tpu.dot_dimension_numbers<[1], [0], [0], [1], [0, 0, 1, 1], [], []>} : vector<256x4xbf16>, vector<4x8xbf16>, vector<256x8xf32> -> vector<256x8xf32>
    %122 = arith.addf %117, %121 : vector<256x8xf32>
    %c0_83 = arith.constant 0 : index
    %c0_84 = arith.constant 0 : index
    %123 = vector.load %arg7[%c0_83, %c0_84] : memref<1x8xf32, #tpu.memory_space<vmem>>, vector<1x8xf32>
    %124 = vector.broadcast %123 : vector<1x8xf32> to vector<256x8xf32>
    %125 = arith.mulf %122, %124 : vector<256x8xf32>
    %c0_85 = arith.constant 0 : index
    %c0_86 = arith.constant 0 : index
    %126 = vector.load %arg8[%c0_85, %c0_86] : memref<1x8xf32, #tpu.memory_space<vmem>>, vector<1x8xf32>
    %127 = vector.broadcast %126 : vector<1x8xf32> to vector<256x8xf32>
    %128 = arith.addf %125, %127 : vector<256x8xf32>
    %cst_87 = arith.constant 0.000000e+00 : f32
    %129 = vector.broadcast %cst_87 : f32 to vector<256x8xf32>
    %130 = arith.cmpf oge, %128, %129 : vector<256x8xf32>
    %c0_88 = arith.constant 0 : index
    %c0_89 = arith.constant 0 : index
    %131 = vector.load %arg9[%c0_88, %c0_89] : memref<1x8xf32, #tpu.memory_space<vmem>>, vector<1x8xf32>
    %132 = vector.broadcast %131 : vector<1x8xf32> to vector<256x8xf32>
    %133 = arith.mulf %128, %132 : vector<256x8xf32>
    %134 = arith.select %130, %128, %133 : vector<256x8xi1>, vector<256x8xf32>
    %135 = vector.extract_strided_slice %134 {offsets = [0, 0], sizes = [256, 4], strides = [1, 1]} : vector<256x8xf32> to vector<256x4xf32>
    %136 = vector.extract_strided_slice %134 {offsets = [0, 4], sizes = [256, 4], strides = [1, 1]} : vector<256x8xf32> to vector<256x4xf32>
    %137 = arith.truncf %136 : vector<256x4xf32> to vector<256x4xbf16>
    %138 = vector.shape_cast %137 : vector<256x4xbf16> to vector<16x16x4xbf16>
    %c1_90 = arith.constant 1 : index
    %c1_91 = arith.constant 1 : index
    %c0_92 = arith.constant 0 : index
    %139 = vector.load %arg15[%c1_90, %c1_91, %c0_92] : memref<18x18x4xbf16, #tpu.memory_space<vmem>>, vector<16x16x4xbf16>
    tpu.vector_store %arg15[%c1_90, %c1_91, %c0_92], %138 {strides = array<i32>} : memref<18x18x4xbf16, #tpu.memory_space<vmem>>, vector<16x16x4xbf16>,
    %cst_93 = arith.constant 0.000000e+00 : f32
    %140 = vector.broadcast %cst_93 : f32 to vector<256x4xf32>
    %c0_94 = arith.constant 0 : index
    %c0_95 = arith.constant 0 : index
    %c0_96 = arith.constant 0 : index
    %141 = vector.load %arg15[%c0_94, %c0_95, %c0_96] : memref<18x18x4xbf16, #tpu.memory_space<vmem>>, vector<18x16x4xbf16>
    %142 = vector.extract_strided_slice %141 {offsets = [0, 0, 0], sizes = [16, 16, 4], strides = [1, 1, 1]} : vector<18x16x4xbf16> to vector<16x16x4xbf16>
    %143 = vector.shape_cast %142 : vector<16x16x4xbf16> to vector<256x4xbf16>
    %c0_97 = arith.constant 0 : index
    %c0_98 = arith.constant 0 : index
    %144 = vector.load %arg10[%c0_97, %c0_98] : memref<36x4xbf16, #tpu.memory_space<vmem>>, vector<4x4xbf16>
    %cst_99 = arith.constant dense<0.000000e+00> : vector<256x4xf32>
    %145 = tpu.matmul %143, %144, %cst_99 {dimension_numbers = #tpu.dot_dimension_numbers<[1], [0], [0], [1], [0, 0, 1, 1], [], []>} : vector<256x4xbf16>, vector<4x4xbf16>, vector<256x4xf32> -> vector<256x4xf32>
    %146 = arith.addf %140, %145 : vector<256x4xf32>
    %147 = vector.extract_strided_slice %141 {offsets = [1, 0, 0], sizes = [16, 16, 4], strides = [1, 1, 1]} : vector<18x16x4xbf16> to vector<16x16x4xbf16>
    %148 = vector.shape_cast %147 : vector<16x16x4xbf16> to vector<256x4xbf16>
    %c12_100 = arith.constant 12 : index
    %c0_101 = arith.constant 0 : index
    %149 = vector.load %arg10[%c12_100, %c0_101] : memref<36x4xbf16, #tpu.memory_space<vmem>>, vector<4x4xbf16>
    %cst_102 = arith.constant dense<0.000000e+00> : vector<256x4xf32>
    %150 = tpu.matmul %148, %149, %cst_102 {dimension_numbers = #tpu.dot_dimension_numbers<[1], [0], [0], [1], [0, 0, 1, 1], [], []>} : vector<256x4xbf16>, vector<4x4xbf16>, vector<256x4xf32> -> vector<256x4xf32>
    %151 = arith.addf %146, %150 : vector<256x4xf32>
    %152 = vector.extract_strided_slice %141 {offsets = [2, 0, 0], sizes = [16, 16, 4], strides = [1, 1, 1]} : vector<18x16x4xbf16> to vector<16x16x4xbf16>
    %153 = vector.shape_cast %152 : vector<16x16x4xbf16> to vector<256x4xbf16>
    %c24_103 = arith.constant 24 : index
    %c0_104 = arith.constant 0 : index
    %154 = vector.load %arg10[%c24_103, %c0_104] : memref<36x4xbf16, #tpu.memory_space<vmem>>, vector<4x4xbf16>
    %cst_105 = arith.constant dense<0.000000e+00> : vector<256x4xf32>
    %155 = tpu.matmul %153, %154, %cst_105 {dimension_numbers = #tpu.dot_dimension_numbers<[1], [0], [0], [1], [0, 0, 1, 1], [], []>} : vector<256x4xbf16>, vector<4x4xbf16>, vector<256x4xf32> -> vector<256x4xf32>
    %156 = arith.addf %151, %155 : vector<256x4xf32>
    %c0_106 = arith.constant 0 : index
    %c1_107 = arith.constant 1 : index
    %c0_108 = arith.constant 0 : index
    %157 = vector.load %arg15[%c0_106, %c1_107, %c0_108] : memref<18x18x4xbf16, #tpu.memory_space<vmem>>, vector<18x16x4xbf16>
    %158 = vector.extract_strided_slice %157 {offsets = [0, 0, 0], sizes = [16, 16, 4], strides = [1, 1, 1]} : vector<18x16x4xbf16> to vector<16x16x4xbf16>
    %159 = vector.shape_cast %158 : vector<16x16x4xbf16> to vector<256x4xbf16>
    %c4_109 = arith.constant 4 : index
    %c0_110 = arith.constant 0 : index
    %160 = vector.load %arg10[%c4_109, %c0_110] : memref<36x4xbf16, #tpu.memory_space<vmem>>, vector<4x4xbf16>
    %cst_111 = arith.constant dense<0.000000e+00> : vector<256x4xf32>
    %161 = tpu.matmul %159, %160, %cst_111 {dimension_numbers = #tpu.dot_dimension_numbers<[1], [0], [0], [1], [0, 0, 1, 1], [], []>} : vector<256x4xbf16>, vector<4x4xbf16>, vector<256x4xf32> -> vector<256x4xf32>
    %162 = arith.addf %156, %161 : vector<256x4xf32>
    %163 = vector.extract_strided_slice %157 {offsets = [1, 0, 0], sizes = [16, 16, 4], strides = [1, 1, 1]} : vector<18x16x4xbf16> to vector<16x16x4xbf16>
    %164 = vector.shape_cast %163 : vector<16x16x4xbf16> to vector<256x4xbf16>
    %c16_112 = arith.constant 16 : index
    %c0_113 = arith.constant 0 : index
    %165 = vector.load %arg10[%c16_112, %c0_113] : memref<36x4xbf16, #tpu.memory_space<vmem>>, vector<4x4xbf16>
    %cst_114 = arith.constant dense<0.000000e+00> : vector<256x4xf32>
    %166 = tpu.matmul %164, %165, %cst_114 {dimension_numbers = #tpu.dot_dimension_numbers<[1], [0], [0], [1], [0, 0, 1, 1], [], []>} : vector<256x4xbf16>, vector<4x4xbf16>, vector<256x4xf32> -> vector<256x4xf32>
    %167 = arith.addf %162, %166 : vector<256x4xf32>
    %168 = vector.extract_strided_slice %157 {offsets = [2, 0, 0], sizes = [16, 16, 4], strides = [1, 1, 1]} : vector<18x16x4xbf16> to vector<16x16x4xbf16>
    %169 = vector.shape_cast %168 : vector<16x16x4xbf16> to vector<256x4xbf16>
    %c28_115 = arith.constant 28 : index
    %c0_116 = arith.constant 0 : index
    %170 = vector.load %arg10[%c28_115, %c0_116] : memref<36x4xbf16, #tpu.memory_space<vmem>>, vector<4x4xbf16>
    %cst_117 = arith.constant dense<0.000000e+00> : vector<256x4xf32>
    %171 = tpu.matmul %169, %170, %cst_117 {dimension_numbers = #tpu.dot_dimension_numbers<[1], [0], [0], [1], [0, 0, 1, 1], [], []>} : vector<256x4xbf16>, vector<4x4xbf16>, vector<256x4xf32> -> vector<256x4xf32>
    %172 = arith.addf %167, %171 : vector<256x4xf32>
    %c0_118 = arith.constant 0 : index
    %c2_119 = arith.constant 2 : index
    %c0_120 = arith.constant 0 : index
    %173 = vector.load %arg15[%c0_118, %c2_119, %c0_120] : memref<18x18x4xbf16, #tpu.memory_space<vmem>>, vector<18x16x4xbf16>
    %174 = vector.extract_strided_slice %173 {offsets = [0, 0, 0], sizes = [16, 16, 4], strides = [1, 1, 1]} : vector<18x16x4xbf16> to vector<16x16x4xbf16>
    %175 = vector.shape_cast %174 : vector<16x16x4xbf16> to vector<256x4xbf16>
    %c8_121 = arith.constant 8 : index
    %c0_122 = arith.constant 0 : index
    %176 = vector.load %arg10[%c8_121, %c0_122] : memref<36x4xbf16, #tpu.memory_space<vmem>>, vector<4x4xbf16>
    %cst_123 = arith.constant dense<0.000000e+00> : vector<256x4xf32>
    %177 = tpu.matmul %175, %176, %cst_123 {dimension_numbers = #tpu.dot_dimension_numbers<[1], [0], [0], [1], [0, 0, 1, 1], [], []>} : vector<256x4xbf16>, vector<4x4xbf16>, vector<256x4xf32> -> vector<256x4xf32>
    %178 = arith.addf %172, %177 : vector<256x4xf32>
    %179 = vector.extract_strided_slice %173 {offsets = [1, 0, 0], sizes = [16, 16, 4], strides = [1, 1, 1]} : vector<18x16x4xbf16> to vector<16x16x4xbf16>
    %180 = vector.shape_cast %179 : vector<16x16x4xbf16> to vector<256x4xbf16>
    %c20_124 = arith.constant 20 : index
    %c0_125 = arith.constant 0 : index
    %181 = vector.load %arg10[%c20_124, %c0_125] : memref<36x4xbf16, #tpu.memory_space<vmem>>, vector<4x4xbf16>
    %cst_126 = arith.constant dense<0.000000e+00> : vector<256x4xf32>
    %182 = tpu.matmul %180, %181, %cst_126 {dimension_numbers = #tpu.dot_dimension_numbers<[1], [0], [0], [1], [0, 0, 1, 1], [], []>} : vector<256x4xbf16>, vector<4x4xbf16>, vector<256x4xf32> -> vector<256x4xf32>
    %183 = arith.addf %178, %182 : vector<256x4xf32>
    %184 = vector.extract_strided_slice %173 {offsets = [2, 0, 0], sizes = [16, 16, 4], strides = [1, 1, 1]} : vector<18x16x4xbf16> to vector<16x16x4xbf16>
    %185 = vector.shape_cast %184 : vector<16x16x4xbf16> to vector<256x4xbf16>
    %c32_127 = arith.constant 32 : index
    %c0_128 = arith.constant 0 : index
    %186 = vector.load %arg10[%c32_127, %c0_128] : memref<36x4xbf16, #tpu.memory_space<vmem>>, vector<4x4xbf16>
    %cst_129 = arith.constant dense<0.000000e+00> : vector<256x4xf32>
    %187 = tpu.matmul %185, %186, %cst_129 {dimension_numbers = #tpu.dot_dimension_numbers<[1], [0], [0], [1], [0, 0, 1, 1], [], []>} : vector<256x4xbf16>, vector<4x4xbf16>, vector<256x4xf32> -> vector<256x4xf32>
    %188 = arith.addf %183, %187 : vector<256x4xf32>
    %c0_130 = arith.constant 0 : index
    %c0_131 = arith.constant 0 : index
    %189 = vector.load %arg11[%c0_130, %c0_131] : memref<1x4xf32, #tpu.memory_space<vmem>>, vector<1x4xf32>
    %190 = vector.broadcast %189 : vector<1x4xf32> to vector<256x4xf32>
    %191 = arith.mulf %188, %190 : vector<256x4xf32>
    %c0_132 = arith.constant 0 : index
    %c0_133 = arith.constant 0 : index
    %192 = vector.load %arg12[%c0_132, %c0_133] : memref<1x4xf32, #tpu.memory_space<vmem>>, vector<1x4xf32>
    %193 = vector.broadcast %192 : vector<1x4xf32> to vector<256x4xf32>
    %194 = arith.addf %191, %193 : vector<256x4xf32>
    %cst_134 = arith.constant 0.000000e+00 : f32
    %195 = vector.broadcast %cst_134 : f32 to vector<256x4xf32>
    %196 = arith.maximumf %194, %195 : vector<256x4xf32>
    %197 = tpu.concatenate %67, %135, %196 in 1 : vector<256x8xf32>, vector<256x4xf32>, vector<256x4xf32> -> vector<256x16xf32>
    %198 = vector.shape_cast %197 : vector<256x16xf32> to vector<16x16x16xf32>
    %c0_135 = arith.constant 0 : index
    %c0_136 = arith.constant 0 : index
    %c0_137 = arith.constant 0 : index
    %c0_138 = arith.constant 0 : index
    %199 = vector.load %arg13[%c0_135, %c0_136, %c0_137, %c0_138] : memref<1x16x16x16xf32, #tpu.memory_space<vmem>>, vector<1x16x16x16xf32>
    %200 = vector.shape_cast %199 : vector<1x16x16x16xf32> to vector<16x16x16xf32>
    %201 = vector.shape_cast %198 : vector<16x16x16xf32> to vector<1x16x16x16xf32>
    tpu.vector_store %arg13[%c0_135, %c0_136, %c0_137, %c0_138], %201 {strides = array<i32>} : memref<1x16x16x16xf32, #tpu.memory_space<vmem>>, vector<1x16x16x16xf32>,
    return
  }
  func.func @transform_0(%arg0: i32) -> (i32, i32, i32, i32) {
    %c0_i32 = arith.constant 0 : i32
    %c0_i32_0 = arith.constant 0 : i32
    %c0_i32_1 = arith.constant 0 : i32
    %c0_i32_2 = arith.constant 0 : i32
    return %arg0, %c0_i32, %c0_i32_0, %c0_i32_1 : i32, i32, i32, i32
  }
  func.func @transform_1(%arg0: i32) -> (i32, i32) {
    %c0_i32 = arith.constant 0 : i32
    %c0_i32_0 = arith.constant 0 : i32
    %c0_i32_1 = arith.constant 0 : i32
    return %c0_i32, %c0_i32_0 : i32, i32
  }
  func.func @transform_2(%arg0: i32) -> (i32, i32) {
    %c0_i32 = arith.constant 0 : i32
    %c0_i32_0 = arith.constant 0 : i32
    %c0_i32_1 = arith.constant 0 : i32
    return %c0_i32, %c0_i32_0 : i32, i32
  }
  func.func @transform_3(%arg0: i32) -> (i32, i32) {
    %c0_i32 = arith.constant 0 : i32
    %c0_i32_0 = arith.constant 0 : i32
    %c0_i32_1 = arith.constant 0 : i32
    return %c0_i32, %c0_i32_0 : i32, i32
  }
  func.func @transform_4(%arg0: i32) -> (i32, i32) {
    %c0_i32 = arith.constant 0 : i32
    %c0_i32_0 = arith.constant 0 : i32
    %c0_i32_1 = arith.constant 0 : i32
    return %c0_i32, %c0_i32_0 : i32, i32
  }
  func.func @transform_5(%arg0: i32) -> (i32, i32) {
    %c0_i32 = arith.constant 0 : i32
    %c0_i32_0 = arith.constant 0 : i32
    %c0_i32_1 = arith.constant 0 : i32
    return %c0_i32, %c0_i32_0 : i32, i32
  }
  func.func @transform_6(%arg0: i32) -> (i32, i32) {
    %c0_i32 = arith.constant 0 : i32
    %c0_i32_0 = arith.constant 0 : i32
    %c0_i32_1 = arith.constant 0 : i32
    return %c0_i32, %c0_i32_0 : i32, i32
  }
  func.func @transform_7(%arg0: i32) -> (i32, i32) {
    %c0_i32 = arith.constant 0 : i32
    %c0_i32_0 = arith.constant 0 : i32
    %c0_i32_1 = arith.constant 0 : i32
    return %c0_i32, %c0_i32_0 : i32, i32
  }
  func.func @transform_8(%arg0: i32) -> (i32, i32) {
    %c0_i32 = arith.constant 0 : i32
    %c0_i32_0 = arith.constant 0 : i32
    %c0_i32_1 = arith.constant 0 : i32
    return %c0_i32, %c0_i32_0 : i32, i32
  }
  func.func @transform_9(%arg0: i32) -> (i32, i32) {
    %c0_i32 = arith.constant 0 : i32
    %c0_i32_0 = arith.constant 0 : i32
    %c0_i32_1 = arith.constant 0 : i32
    return %c0_i32, %c0_i32_0 : i32, i32
  }
  func.func @transform_10(%arg0: i32) -> (i32, i32) {
    %c0_i32 = arith.constant 0 : i32
    %c0_i32_0 = arith.constant 0 : i32
    %c0_i32_1 = arith.constant 0 : i32
    return %c0_i32, %c0_i32_0 : i32, i32
  }
  func.func @transform_11(%arg0: i32) -> (i32, i32) {
    %c0_i32 = arith.constant 0 : i32
    %c0_i32_0 = arith.constant 0 : i32
    %c0_i32_1 = arith.constant 0 : i32
    return %c0_i32, %c0_i32_0 : i32, i32
  }
  func.func @transform_12(%arg0: i32) -> (i32, i32, i32, i32) {
    %c0_i32 = arith.constant 0 : i32
    %c0_i32_0 = arith.constant 0 : i32
    %c0_i32_1 = arith.constant 0 : i32
    %c0_i32_2 = arith.constant 0 : i32
    return %arg0, %c0_i32, %c0_i32_0, %c0_i32_1 : i32, i32, i32, i32
  }
}

</mosaic_0001>

<llo_original>
// kernel: tpu_custom_call.1
$region0: #{tpu_custom_call.1}
  #allocation0 [shape = 'u32[]', space=smem, size = 0x4, offset = 0x4, fixed_abs, tag = 'smem constant byte address 0x4 - core index']
  #allocation1 [shape = 'u32[72,128]{1,0:T(1,128)}', space=vmem, size = 0x9000, scoped, tag = 'internal scratch']
  #allocation2 [shape = 'bf16[18,18,8]{2,1,0:T(8,128)(2,1)}', space=vmem, size = 0x1b000, scoped, tag = 'scratch operand']
  #allocation3 [shape = 'bf16[18,18,4]{2,1,0:T(8,128)(2,1)}', space=vmem, size = 0x1b000, scoped, tag = 'scratch operand']
  %s0 = inlined_call_operand.vmem [shape: f32[2,16,16,8], index: 0, kind: input, shape index: {}]
  %s1 = inlined_call_operand.vmem [shape: bf16[72,12], index: 1, kind: input, shape index: {}]
  %s2 = inlined_call_operand.vmem [shape: f32[1,12], index: 2, kind: input, shape index: {}]
  %s3 = inlined_call_operand.vmem [shape: f32[1,12], index: 3, kind: input, shape index: {}]
  %s4 = inlined_call_operand.vmem [shape: f32[1,12], index: 4, kind: input, shape index: {}]
  %s5 = inlined_call_operand.vmem [shape: bf16[36,8], index: 5, kind: input, shape index: {}]
  %s6 = inlined_call_operand.vmem [shape: f32[1,8], index: 6, kind: input, shape index: {}]
  %s7 = inlined_call_operand.vmem [shape: f32[1,8], index: 7, kind: input, shape index: {}]
  %s8 = inlined_call_operand.vmem [shape: f32[1,8], index: 8, kind: input, shape index: {}]
  %s9 = inlined_call_operand.vmem [shape: bf16[36,4], index: 9, kind: input, shape index: {}]
  %s10 = inlined_call_operand.vmem [shape: f32[1,4], index: 10, kind: input, shape index: {}]
  %s11 = inlined_call_operand.vmem [shape: f32[1,4], index: 11, kind: input, shape index: {}]
  %s12 = inlined_call_operand.hbm [shape: f32[2,16,16,16], index: 12, kind: output, shape index: {}]
  %s13 = sld [smem:[#allocation0]]
  $region81: #{tpu_custom_call.1} parent=0
    _
  %s15 = ssub.s32 1, %s13
  %s16 = scalar_select 0, %s15, %s13
  $region1: #{tpu_custom_call.1} parent=0
    #allocation4 [shape = 'u8[262144]{0}', space=vmem, size = 0x40000, scoped, tag = 'output window, operand 0']
    #allocation5 [shape = 's32[2]{0}', space=sflag, size = 0x8, scoped, tag = 'scoped memory for tpu_custom_call.1']
    %17 = vsyncpa [#allocation5], 0
    %s18 = scalar_lea.sflag [#allocation5], 1
    %19 = vsyncpa %s18, 0
    loop: start=0, step=1, limit=4
    $region2: #{tpu_custom_call.1} parent=1 // loop_pre_header
      _
    $region3: #{tpu_custom_call.1} parent=1 // loop_header
      %s21 = sphi 0, %s25
      %p22 = scmp.ge.s32.totalorder %s21, 4
      %s31 = sphi 0, %s33
      %s34 = sphi 0, %s31
      %s35 = sphi 0, %s34
      %s51 = sphi 0, %s35
      %s55 = sphi 0, %s55
      %s57 = sphi 0, %s55
      %s58 = sphi 0, %s57
      %s72 = sphi 0, %s58
      %s76 = sphi 0, %s76
      %s78 = sphi 0, %s76
      %s79 = sphi 0, %s78
      %s93 = sphi 0, %s79
      %s97 = sphi 0, %s97
      %s99 = sphi 0, %s97
      %s100 = sphi 0, %s99
      %s114 = sphi 0, %s100
      %s118 = sphi 0, %s118
      %s120 = sphi 0, %s118
      %s121 = sphi 0, %s120
      %s135 = sphi 0, %s121
      %s139 = sphi 0, %s139
      %s141 = sphi 0, %s139
      %s142 = sphi 0, %s141
      %s156 = sphi 0, %s142
      %s160 = sphi 0, %s160
      %s162 = sphi 0, %s160
      %s163 = sphi 0, %s162
      %s177 = sphi 0, %s163
      %s181 = sphi 0, %s181
      %s183 = sphi 0, %s181
      %s184 = sphi 0, %s183
      %s198 = sphi 0, %s184
      %s202 = sphi 0, %s202
      %s204 = sphi 0, %s202
      %s205 = sphi 0, %s204
      %s219 = sphi 0, %s205
      %s223 = sphi 0, %s223
      %s225 = sphi 0, %s223
      %s226 = sphi 0, %s225
      %s240 = sphi 0, %s226
      %s244 = sphi 0, %s244
      %s246 = sphi 0, %s244
      %s247 = sphi 0, %s246
      %s261 = sphi 0, %s247
      %s265 = sphi 0, %s265
      %s267 = sphi 0, %s265
      %s268 = sphi 0, %s267
      %s282 = sphi 0, %s268
      %s288 = sphi 0, %s290
      %s291 = sphi 0, %s288
      %s292 = sphi 0, %s291
      %s308 = sphi 0, %s292
    $region4: #{tpu_custom_call.1} parent=1 // loop_header_branch
      %24 = sbr.rel (%p22) target = $region8
    $region5: #{tpu_custom_call.1} parent=1 // loop_body
      %s26 = ssub.s32 %s21, 1
      %s27 = ssub.s32 %s21, 2
      %s28 = sadd.s32 %s21, 1
      %s29 = ssub.s32 %s21, %s28
      %p30 = scmp.eq.s32.totalorder %s29, 0
      %s32 = sadd.s32 %s31, 1
      %s33 = scalar_select %p30, %s31, %s32
      %p36 = pneg %p30
      %p37 = scmp.eq.s32.totalorder %s21, 1
      %p38 = por %p36, %p37
      %p39 = scmp.ne.s32.totalorder %s31, %s34
      %p40 = scmp.eq.s32.totalorder %s21, 0
      %p41 = por %p39, %p40
      %p42 = scmp.ne.s32.totalorder %s31, %s34
      %p43 = scmp.eq.s32.totalorder %s26, 1
      %p44 = por %p42, %p43
      %p45 = scmp.ne.s32.totalorder %s34, %s35
      %p46 = scmp.eq.s32.totalorder %s26, 0
      %p47 = por %p45, %p46
      %p48 = scmp.ne.s32.totalorder %s34, %s35
      %p49 = scmp.eq.s32.totalorder %s27, 1
      %p50 = por %p48, %p49
      %p52 = scmp.ne.s32.totalorder %s35, %s51
      %p53 = scmp.eq.s32.totalorder %s27, 0
      %p54 = por %p52, %p53
      %s56 = sadd.s32 %s55, 1
      %p59 = scmp.eq.s32.totalorder %s21, 1
      %p60 = scmp.ne.s32.totalorder %s55, %s57
      %p61 = scmp.eq.s32.totalorder %s21, 0
      %p62 = por %p60, %p61
      %p63 = scmp.ne.s32.totalorder %s55, %s57
      %p64 = scmp.eq.s32.totalorder %s26, 1
      %p65 = por %p63, %p64
      %p66 = scmp.ne.s32.totalorder %s57, %s58
      %p67 = scmp.eq.s32.totalorder %s26, 0
      %p68 = por %p66, %p67
      %p69 = scmp.ne.s32.totalorder %s57, %s58
      %p70 = scmp.eq.s32.totalorder %s27, 1
      %p71 = por %p69, %p70
      %p73 = scmp.ne.s32.totalorder %s58, %s72
      %p74 = scmp.eq.s32.totalorder %s27, 0
      %p75 = por %p73, %p74
      %s77 = sadd.s32 %s76, 1
      %p80 = scmp.eq.s32.totalorder %s21, 1
      %p81 = scmp.ne.s32.totalorder %s76, %s78
      %p82 = scmp.eq.s32.totalorder %s21, 0
      %p83 = por %p81, %p82
      %p84 = scmp.ne.s32.totalorder %s76, %s78
      %p85 = scmp.eq.s32.totalorder %s26, 1
      %p86 = por %p84, %p85
      %p87 = scmp.ne.s32.totalorder %s78, %s79
      %p88 = scmp.eq.s32.totalorder %s26, 0
      %p89 = por %p87, %p88
      %p90 = scmp.ne.s32.totalorder %s78, %s79
      %p91 = scmp.eq.s32.totalorder %s27, 1
      %p92 = por %p90, %p91
      %p94 = scmp.ne.s32.totalorder %s79, %s93
      %p95 = scmp.eq.s32.totalorder %s27, 0
      %p96 = por %p94, %p95
      %s98 = sadd.s32 %s97, 1
      %p101 = scmp.eq.s32.totalorder %s21, 1
      %p102 = scmp.ne.s32.totalorder %s97, %s99
      %p103 = scmp.eq.s32.totalorder %s21, 0
      %p104 = por %p102, %p103
      %p105 = scmp.ne.s32.totalorder %s97, %s99
      %p106 = scmp.eq.s32.totalorder %s26, 1
      %p107 = por %p105, %p106
      %p108 = scmp.ne.s32.totalorder %s99, %s100
      %p109 = scmp.eq.s32.totalorder %s26, 0
      %p110 = por %p108, %p109
      %p111 = scmp.ne.s32.totalorder %s99, %s100
      %p112 = scmp.eq.s32.totalorder %s27, 1
      %p113 = por %p111, %p112
      %p115 = scmp.ne.s32.totalorder %s100, %s114
      %p116 = scmp.eq.s32.totalorder %s27, 0
      %p117 = por %p115, %p116
      %s119 = sadd.s32 %s118, 1
      %p122 = scmp.eq.s32.totalorder %s21, 1
      %p123 = scmp.ne.s32.totalorder %s118, %s120
      %p124 = scmp.eq.s32.totalorder %s21, 0
      %p125 = por %p123, %p124
      %p126 = scmp.ne.s32.totalorder %s118, %s120
      %p127 = scmp.eq.s32.totalorder %s26, 1
      %p128 = por %p126, %p127
      %p129 = scmp.ne.s32.totalorder %s120, %s121
      %p130 = scmp.eq.s32.totalorder %s26, 0
      %p131 = por %p129, %p130
      %p132 = scmp.ne.s32.totalorder %s120, %s121
      %p133 = scmp.eq.s32.totalorder %s27, 1
      %p134 = por %p132, %p133
      %p136 = scmp.ne.s32.totalorder %s121, %s135
      %p137 = scmp.eq.s32.totalorder %s27, 0
      %p138 = por %p136, %p137
      %s140 = sadd.s32 %s139, 1
      %p143 = scmp.eq.s32.totalorder %s21, 1
      %p144 = scmp.ne.s32.totalorder %s139, %s141
      %p145 = scmp.eq.s32.totalorder %s21, 0
      %p146 = por %p144, %p145
      %p147 = scmp.ne.s32.totalorder %s139, %s141
      %p148 = scmp.eq.s32.totalorder %s26, 1
      %p149 = por %p147, %p148
      %p150 = scmp.ne.s32.totalorder %s141, %s142
      %p151 = scmp.eq.s32.totalorder %s26, 0
      %p152 = por %p150, %p151
      %p153 = scmp.ne.s32.totalorder %s141, %s142
      %p154 = scmp.eq.s32.totalorder %s27, 1
      %p155 = por %p153, %p154
      %p157 = scmp.ne.s32.totalorder %s142, %s156
      %p158 = scmp.eq.s32.totalorder %s27, 0
      %p159 = por %p157, %p158
      %s161 = sadd.s32 %s160, 1
      %p164 = scmp.eq.s32.totalorder %s21, 1
      %p165 = scmp.ne.s32.totalorder %s160, %s162
      %p166 = scmp.eq.s32.totalorder %s21, 0
      %p167 = por %p165, %p166
      %p168 = scmp.ne.s32.totalorder %s160, %s162
      %p169 = scmp.eq.s32.totalorder %s26, 1
      %p170 = por %p168, %p169
      %p171 = scmp.ne.s32.totalorder %s162, %s163
      %p172 = scmp.eq.s32.totalorder %s26, 0
      %p173 = por %p171, %p172
      %p174 = scmp.ne.s32.totalorder %s162, %s163
      %p175 = scmp.eq.s32.totalorder %s27, 1
      %p176 = por %p174, %p175
      %p178 = scmp.ne.s32.totalorder %s163, %s177
      %p179 = scmp.eq.s32.totalorder %s27, 0
      %p180 = por %p178, %p179
      %s182 = sadd.s32 %s181, 1
      %p185 = scmp.eq.s32.totalorder %s21, 1
      %p186 = scmp.ne.s32.totalorder %s181, %s183
      %p187 = scmp.eq.s32.totalorder %s21, 0
      %p188 = por %p186, %p187
      %p189 = scmp.ne.s32.totalorder %s181, %s183
      %p190 = scmp.eq.s32.totalorder %s26, 1
      %p191 = por %p189, %p190
      %p192 = scmp.ne.s32.totalorder %s183, %s184
      %p193 = scmp.eq.s32.totalorder %s26, 0
      %p194 = por %p192, %p193
      %p195 = scmp.ne.s32.totalorder %s183, %s184
      %p196 = scmp.eq.s32.totalorder %s27, 1
      %p197 = por %p195, %p196
      %p199 = scmp.ne.s32.totalorder %s184, %s198
      %p200 = scmp.eq.s32.totalorder %s27, 0
      %p201 = por %p199, %p200
      %s203 = sadd.s32 %s202, 1
      %p206 = scmp.eq.s32.totalorder %s21, 1
      %p207 = scmp.ne.s32.totalorder %s202, %s204
      %p208 = scmp.eq.s32.totalorder %s21, 0
      %p209 = por %p207, %p208
      %p210 = scmp.ne.s32.totalorder %s202, %s204
      %p211 = scmp.eq.s32.totalorder %s26, 1
      %p212 = por %p210, %p211
      %p213 = scmp.ne.s32.totalorder %s204, %s205
      %p214 = scmp.eq.s32.totalorder %s26, 0
      %p215 = por %p213, %p214
      %p216 = scmp.ne.s32.totalorder %s204, %s205
      %p217 = scmp.eq.s32.totalorder %s27, 1
      %p218 = por %p216, %p217
      %p220 = scmp.ne.s32.totalorder %s205, %s219
      %p221 = scmp.eq.s32.totalorder %s27, 0
      %p222 = por %p220, %p221
      %s224 = sadd.s32 %s223, 1
      %p227 = scmp.eq.s32.totalorder %s21, 1
      %p228 = scmp.ne.s32.totalorder %s223, %s225
      %p229 = scmp.eq.s32.totalorder %s21, 0
      %p230 = por %p228, %p229
      %p231 = scmp.ne.s32.totalorder %s223, %s225
      %p232 = scmp.eq.s32.totalorder %s26, 1
      %p233 = por %p231, %p232
      %p234 = scmp.ne.s32.totalorder %s225, %s226
      %p235 = scmp.eq.s32.totalorder %s26, 0
      %p236 = por %p234, %p235
      %p237 = scmp.ne.s32.totalorder %s225, %s226
      %p238 = scmp.eq.s32.totalorder %s27, 1
      %p239 = por %p237, %p238
      %p241 = scmp.ne.s32.totalorder %s226, %s240
      %p242 = scmp.eq.s32.totalorder %s27, 0
      %p243 = por %p241, %p242
      %s245 = sadd.s32 %s244, 1
      %p248 = scmp.eq.s32.totalorder %s21, 1
      %p249 = scmp.ne.s32.totalorder %s244, %s246
      %p250 = scmp.eq.s32.totalorder %s21, 0
      %p251 = por %p249, %p250
      %p252 = scmp.ne.s32.totalorder %s244, %s246
      %p253 = scmp.eq.s32.totalorder %s26, 1
      %p254 = por %p252, %p253
      %p255 = scmp.ne.s32.totalorder %s246, %s247
      %p256 = scmp.eq.s32.totalorder %s26, 0
      %p257 = por %p255, %p256
      %p258 = scmp.ne.s32.totalorder %s246, %s247
      %p259 = scmp.eq.s32.totalorder %s27, 1
      %p260 = por %p258, %p259
      %p262 = scmp.ne.s32.totalorder %s247, %s261
      %p263 = scmp.eq.s32.totalorder %s27, 0
      %p264 = por %p262, %p263
      %s266 = sadd.s32 %s265, 1
      %p269 = scmp.eq.s32.totalorder %s21, 1
      %p270 = scmp.ne.s32.totalorder %s265, %s267
      %p271 = scmp.eq.s32.totalorder %s21, 0
      %p272 = por %p270, %p271
      %p273 = scmp.ne.s32.totalorder %s265, %s267
      %p274 = scmp.eq.s32.totalorder %s26, 1
      %p275 = por %p273, %p274
      %p276 = scmp.ne.s32.totalorder %s267, %s268
      %p277 = scmp.eq.s32.totalorder %s26, 0
      %p278 = por %p276, %p277
      %p279 = scmp.ne.s32.totalorder %s267, %s268
      %p280 = scmp.eq.s32.totalorder %s27, 1
      %p281 = por %p279, %p280
      %p283 = scmp.ne.s32.totalorder %s268, %s282
      %p284 = scmp.eq.s32.totalorder %s27, 0
      %p285 = por %p283, %p284
      %s286 = ssub.s32 %s21, %s28
      %p287 = scmp.eq.s32.totalorder %s286, 0
      %s289 = sadd.s32 %s288, 1
      %s290 = scalar_select %p287, %s288, %s289
      %p293 = pneg %p287
      %p294 = scmp.eq.s32.totalorder %s21, 1
      %p295 = por %p293, %p294
      %p296 = scmp.ne.s32.totalorder %s288, %s291
      %p297 = scmp.eq.s32.totalorder %s21, 0
      %p298 = por %p296, %p297
      %p299 = scmp.ne.s32.totalorder %s288, %s291
      %p300 = scmp.eq.s32.totalorder %s26, 1
      %p301 = por %p299, %p300
      %p302 = scmp.ne.s32.totalorder %s291, %s292
      %p303 = scmp.eq.s32.totalorder %s26, 0
      %p304 = por %p302, %p303
      %p305 = scmp.ne.s32.totalorder %s291, %s292
      %p306 = scmp.eq.s32.totalorder %s27, 1
      %p307 = por %p305, %p306
      %p309 = scmp.ne.s32.totalorder %s292, %s308
      %p310 = scmp.eq.s32.totalorder %s27, 0
      %p311 = por %p309, %p310
      %p312 = scmp.le.s32.totalorder 1, %s21
      %p313 = scmp.lt.s32.totalorder %s21, 3
      %p314 = pnand %p312, %p313
      %p315 = pneg %p314
      // Predicated region
      $region9: #{tpu_custom_call.1} parent=5 // pred_check
        _
      $region10: #{tpu_custom_call.1} parent=5 // pred_check_branch
        %317 = sbr.rel (%p314) target = $region12
      $region11: #{tpu_custom_call.1} parent=5 // pred_region
        %s318 = ssub.s32 %s21, 1
        // Predicated region
        $region13: #{tpu_custom_call.1} parent=11 // pred_check
          %p319 = pneg %p68
        $region14: #{tpu_custom_call.1} parent=11 // pred_check_branch
          %321 = sbr.rel (%p319) target = $region16
        $region15: #{tpu_custom_call.1} parent=11 // pred_region
          _
        $region16: #{tpu_custom_call.1} parent=11 // pred_fallthru
          _
        // Predicated region
        $region17: #{tpu_custom_call.1} parent=11 // pred_check
          %p322 = pneg %p89
        $region18: #{tpu_custom_call.1} parent=11 // pred_check_branch
          %324 = sbr.rel (%p322) target = $region20
        $region19: #{tpu_custom_call.1} parent=11 // pred_region
          _
        $region20: #{tpu_custom_call.1} parent=11 // pred_fallthru
          _
        // Predicated region
        $region21: #{tpu_custom_call.1} parent=11 // pred_check
          %p325 = pneg %p110
        $region22: #{tpu_custom_call.1} parent=11 // pred_check_branch
          %327 = sbr.rel (%p325) target = $region24
        $region23: #{tpu_custom_call.1} parent=11 // pred_region
          _
        $region24: #{tpu_custom_call.1} parent=11 // pred_fallthru
          _
        // Predicated region
        $region25: #{tpu_custom_call.1} parent=11 // pred_check
          %p328 = pneg %p131
        $region26: #{tpu_custom_call.1} parent=11 // pred_check_branch
          %330 = sbr.rel (%p328) target = $region28
        $region27: #{tpu_custom_call.1} parent=11 // pred_region
          _
        $region28: #{tpu_custom_call.1} parent=11 // pred_fallthru
          _
        // Predicated region
        $region29: #{tpu_custom_call.1} parent=11 // pred_check
          %p331 = pneg %p152
        $region30: #{tpu_custom_call.1} parent=11 // pred_check_branch
          %333 = sbr.rel (%p331) target = $region32
        $region31: #{tpu_custom_call.1} parent=11 // pred_region
          _
        $region32: #{tpu_custom_call.1} parent=11 // pred_fallthru
          _
        // Predicated region
        $region33: #{tpu_custom_call.1} parent=11 // pred_check
          %p334 = pneg %p173
        $region34: #{tpu_custom_call.1} parent=11 // pred_check_branch
          %336 = sbr.rel (%p334) target = $region36
        $region35: #{tpu_custom_call.1} parent=11 // pred_region
          _
        $region36: #{tpu_custom_call.1} parent=11 // pred_fallthru
          _
        // Predicated region
        $region37: #{tpu_custom_call.1} parent=11 // pred_check
          %p337 = pneg %p194
        $region38: #{tpu_custom_call.1} parent=11 // pred_check_branch
          %339 = sbr.rel (%p337) target = $region40
        $region39: #{tpu_custom_call.1} parent=11 // pred_region
          _
        $region40: #{tpu_custom_call.1} parent=11 // pred_fallthru
          _
        // Predicated region
        $region41: #{tpu_custom_call.1} parent=11 // pred_check
          %p340 = pneg %p215
        $region42: #{tpu_custom_call.1} parent=11 // pred_check_branch
          %342 = sbr.rel (%p340) target = $region44
        $region43: #{tpu_custom_call.1} parent=11 // pred_region
          _
        $region44: #{tpu_custom_call.1} parent=11 // pred_fallthru
          _
        // Predicated region
        $region45: #{tpu_custom_call.1} parent=11 // pred_check
          %p343 = pneg %p236
        $region46: #{tpu_custom_call.1} parent=11 // pred_check_branch
          %345 = sbr.rel (%p343) target = $region48
        $region47: #{tpu_custom_call.1} parent=11 // pred_region
          _
        $region48: #{tpu_custom_call.1} parent=11 // pred_fallthru
          _
        // Predicated region
        $region49: #{tpu_custom_call.1} parent=11 // pred_check
          %p346 = pneg %p257
        $region50: #{tpu_custom_call.1} parent=11 // pred_check_branch
          %348 = sbr.rel (%p346) target = $region52
        $region51: #{tpu_custom_call.1} parent=11 // pred_region
          _
        $region52: #{tpu_custom_call.1} parent=11 // pred_fallthru
          _
        // Predicated region
        $region53: #{tpu_custom_call.1} parent=11 // pred_check
          %p349 = pneg %p278
        $region54: #{tpu_custom_call.1} parent=11 // pred_check_branch
          %351 = sbr.rel (%p349) target = $region56
        $region55: #{tpu_custom_call.1} parent=11 // pred_region
          _
        $region56: #{tpu_custom_call.1} parent=11 // pred_fallthru
          _
      $region12: #{tpu_custom_call.1} parent=5 // pred_fallthru
        _
      %p352 = scmp.lt.s32.totalorder %s21, 2
      // Predicated region
      $region57: #{tpu_custom_call.1} parent=5 // pred_check
        %p353 = pneg %p352
      $region58: #{tpu_custom_call.1} parent=5 // pred_check_branch
        %355 = sbr.rel (%p353) target = $region60
      $region59: #{tpu_custom_call.1} parent=5 // pred_region
        // Predicated region
        $region61: #{tpu_custom_call.1} parent=59 // pred_check
          %p356 = pneg %p41
        $region62: #{tpu_custom_call.1} parent=59 // pred_check_branch
          %358 = sbr.rel (%p356) target = $region64
        $region63: #{tpu_custom_call.1} parent=59 // pred_region
          %p359 = scmp.lt.s32.totalorder %s21, 1
          %s360 = scalar_select %p359, %s21, 1
          %s361 = smul.addr %s360, 32
          %s362 = smul.addr %s361, 8
          %s363 = scalar_lea.vmem %s0, %s362
        $region64: #{tpu_custom_call.1} parent=59 // pred_fallthru
          _
      $region60: #{tpu_custom_call.1} parent=5 // pred_fallthru
        _
      %p364 = scmp.le.s32.totalorder 1, %s21
      %p365 = scmp.lt.s32.totalorder %s21, 3
      %p366 = pnand %p364, %p365
      %p367 = pneg %p366
      // Predicated region
      $region65: #{tpu_custom_call.1} parent=5 // pred_check
        _
      $region66: #{tpu_custom_call.1} parent=5 // pred_check_branch
        %369 = sbr.rel (%p366) target = $region68
      $region67: #{tpu_custom_call.1} parent=5 // pred_region
        %s370 = ssub.s32 %s21, 1
        %p371 = scmp.lt.s32.totalorder %s26, 1
        %s372 = scalar_select %p371, %s26, 1
        %s373 = smul.addr %s372, 32
        %s374 = smul.addr %s373, 8
        %s375 = scalar_lea.vmem %s0, %s374
        %p376 = pneg %p47
        %p377 = pneg %p44
        %p378 = pneg %p68
        %p379 = pneg %p65
        %p380 = pneg %p89
        %p381 = pneg %p86
        %p382 = pneg %p110
        %p383 = pneg %p107
        %p384 = pneg %p131
        %p385 = pneg %p128
        %p386 = pneg %p152
        %p387 = pneg %p149
        %p388 = pneg %p173
        %p389 = pneg %p170
        %p390 = pneg %p194
        %p391 = pneg %p191
        %p392 = pneg %p215
        %p393 = pneg %p212
        %p394 = pneg %p236
        %p395 = pneg %p233
        %p396 = pneg %p257
        %p397 = pneg %p254
        %p398 = pneg %p278
        %p399 = pneg %p275
        %p400 = pneg %p304
        %p401 = pneg %p301
        %s402 = sand.u32 %s291, 1
        %s403 = scalar_lea.sflag [#allocation5], %s402
        %s404 = sand.u32 %s291, 1
        %s405 = smul.addr %s404, 256
        %s406 = scalar_lea.vmem [#allocation4], %s405
        %p407 = scmp.lt.s32.totalorder %s26, 1
        %s408 = scalar_select %p407, %s26, 1
        %s409 = smul.addr %s408, 32
        %s410 = smul.addr %s409, 8
        %s411 = scalar_lea.vmem %s0, %s410
        %v413 = vld [vmem:[%s411] sm:$0xff]
        %v414 = vld [vmem:[%s411 + $0x8] sm:$0xff]
        %v415 = vld [vmem:[%s411 + $0x10] sm:$0xff]
        %v416 = vld [vmem:[%s411 + $0x18] sm:$0xff]
        %v417 = vld [vmem:[%s411 + $0x20] sm:$0xff]
        %v418 = vld [vmem:[%s411 + $0x28] sm:$0xff]
        %v419 = vld [vmem:[%s411 + $0x30] sm:$0xff]
        %v420 = vld [vmem:[%s411 + $0x38] sm:$0xff]
        %v421 = vld [vmem:[%s411 + $0x40] sm:$0xff]
        %v422 = vld [vmem:[%s411 + $0x48] sm:$0xff]
        %v423 = vld [vmem:[%s411 + $0x50] sm:$0xff]
        %v424 = vld [vmem:[%s411 + $0x58] sm:$0xff]
        %v425 = vld [vmem:[%s411 + $0x60] sm:$0xff]
        %v426 = vld [vmem:[%s411 + $0x68] sm:$0xff]
        %v427 = vld [vmem:[%s411 + $0x70] sm:$0xff]
        %v428 = vld [vmem:[%s411 + $0x78] sm:$0xff]
        %v429 = vld [vmem:[%s411 + $0x80] sm:$0xff]
        %v430 = vld [vmem:[%s411 + $0x88] sm:$0xff]
        %v431 = vld [vmem:[%s411 + $0x90] sm:$0xff]
        %v432 = vld [vmem:[%s411 + $0x98] sm:$0xff]
        %v433 = vld [vmem:[%s411 + $0xa0] sm:$0xff]
        %v434 = vld [vmem:[%s411 + $0xa8] sm:$0xff]
        %v435 = vld [vmem:[%s411 + $0xb0] sm:$0xff]
        %v436 = vld [vmem:[%s411 + $0xb8] sm:$0xff]
        %v437 = vld [vmem:[%s411 + $0xc0] sm:$0xff]
        %v438 = vld [vmem:[%s411 + $0xc8] sm:$0xff]
        %v439 = vld [vmem:[%s411 + $0xd0] sm:$0xff]
        %v440 = vld [vmem:[%s411 + $0xd8] sm:$0xff]
        %v441 = vld [vmem:[%s411 + $0xe0] sm:$0xff]
        %v442 = vld [vmem:[%s411 + $0xe8] sm:$0xff]
        %v443 = vld [vmem:[%s411 + $0xf0] sm:$0xff]
        %v444 = vld [vmem:[%s411 + $0xf8] sm:$0xff]
        %vm445 = vcmask 60416
        %446 = vst.msk [vmem:[#allocation2] sm:$0xf] %vm445, 0
        %447 = vst.msk [vmem:[#allocation2 + $0x4] sm:$0xf] %vm445, 0
        %vm448 = vcmask 57344
        %449 = vst.msk [vmem:[#allocation2 + $0x8] sm:$0x1] %vm448, 0
        %450 = vst.msk [vmem:[#allocation2 + $0xc] sm:$0xf] %vm445, 0
        %451 = vst.msk [vmem:[#allocation2 + $0x10] sm:$0xf] %vm445, 0
        %452 = vst.msk [vmem:[#allocation2 + $0x14] sm:$0x1] %vm448, 0
        %453 = vst.msk [vmem:[#allocation2 + $0x18] sm:$0xf] %vm445, 0
        %454 = vst.msk [vmem:[#allocation2 + $0x1c] sm:$0xf] %vm445, 0
        %455 = vst.msk [vmem:[#allocation2 + $0x20] sm:$0x1] %vm448, 0
        %456 = vst.msk [vmem:[#allocation2 + $0x24] sm:$0xf] %vm445, 0
        %457 = vst.msk [vmem:[#allocation2 + $0x28] sm:$0xf] %vm445, 0
        %458 = vst.msk [vmem:[#allocation2 + $0x2c] sm:$0x1] %vm448, 0
        %459 = vst.msk [vmem:[#allocation2 + $0x30] sm:$0xf] %vm445, 0
        %460 = vst.msk [vmem:[#allocation2 + $0x34] sm:$0xf] %vm445, 0
        %461 = vst.msk [vmem:[#allocation2 + $0x38] sm:$0x1] %vm448, 0
        %462 = vst.msk [vmem:[#allocation2 + $0x3c] sm:$0xf] %vm445, 0
        %463 = vst.msk [vmem:[#allocation2 + $0x40] sm:$0xf] %vm445, 0
        %464 = vst.msk [vmem:[#allocation2 + $0x44] sm:$0x1] %vm448, 0
        %465 = vst.msk [vmem:[#allocation2 + $0x48] sm:$0xf] %vm445, 0
        %466 = vst.msk [vmem:[#allocation2 + $0x4c] sm:$0xf] %vm445, 0
        %467 = vst.msk [vmem:[#allocation2 + $0x50] sm:$0x1] %vm448, 0
        %468 = vst.msk [vmem:[#allocation2 + $0x54] sm:$0xf] %vm445, 0
        %469 = vst.msk [vmem:[#allocation2 + $0x58] sm:$0xf] %vm445, 0
        %470 = vst.msk [vmem:[#allocation2 + $0x5c] sm:$0x1] %vm448, 0
        %471 = vst.msk [vmem:[#allocation2 + $0x60] sm:$0xf] %vm445, 0
        %472 = vst.msk [vmem:[#allocation2 + $0x64] sm:$0xf] %vm445, 0
        %473 = vst.msk [vmem:[#allocation2 + $0x68] sm:$0x1] %vm448, 0
        %474 = vst.msk [vmem:[#allocation2 + $0x6c] sm:$0xf] %vm445, 0
        %475 = vst.msk [vmem:[#allocation2 + $0x70] sm:$0xf] %vm445, 0
        %476 = vst.msk [vmem:[#allocation2 + $0x74] sm:$0x1] %vm448, 0
        %477 = vst.msk [vmem:[#allocation2 + $0x78] sm:$0xf] %vm445, 0
        %478 = vst.msk [vmem:[#allocation2 + $0x7c] sm:$0xf] %vm445, 0
        %479 = vst.msk [vmem:[#allocation2 + $0x80] sm:$0x1] %vm448, 0
        %480 = vst.msk [vmem:[#allocation2 + $0x84] sm:$0xf] %vm445, 0
        %481 = vst.msk [vmem:[#allocation2 + $0x88] sm:$0xf] %vm445, 0
        %482 = vst.msk [vmem:[#allocation2 + $0x8c] sm:$0x1] %vm448, 0
        %483 = vst.msk [vmem:[#allocation2 + $0x90] sm:$0xf] %vm445, 0
        %484 = vst.msk [vmem:[#allocation2 + $0x94] sm:$0xf] %vm445, 0
        %485 = vst.msk [vmem:[#allocation2 + $0x98] sm:$0x1] %vm448, 0
        %486 = vst.msk [vmem:[#allocation2 + $0x9c] sm:$0xf] %vm445, 0
        %487 = vst.msk [vmem:[#allocation2 + $0xa0] sm:$0xf] %vm445, 0
        %488 = vst.msk [vmem:[#allocation2 + $0xa4] sm:$0x1] %vm448, 0
        %489 = vst.msk [vmem:[#allocation2 + $0xa8] sm:$0xf] %vm445, 0
        %490 = vst.msk [vmem:[#allocation2 + $0xac] sm:$0xf] %vm445, 0
        %491 = vst.msk [vmem:[#allocation2 + $0xb0] sm:$0x1] %vm448, 0
        %492 = vst.msk [vmem:[#allocation2 + $0xb4] sm:$0xf] %vm445, 0
        %493 = vst.msk [vmem:[#allocation2 + $0xb8] sm:$0xf] %vm445, 0
        %494 = vst.msk [vmem:[#allocation2 + $0xbc] sm:$0x1] %vm448, 0
        %495 = vst.msk [vmem:[#allocation2 + $0xc0] sm:$0xf] %vm445, 0
        %496 = vst.msk [vmem:[#allocation2 + $0xc4] sm:$0xf] %vm445, 0
        %497 = vst.msk [vmem:[#allocation2 + $0xc8] sm:$0x1] %vm448, 0
        %498 = vst.msk [vmem:[#allocation2 + $0xcc] sm:$0xf] %vm445, 0
        %499 = vst.msk [vmem:[#allocation2 + $0xd0] sm:$0xf] %vm445, 0
        %500 = vst.msk [vmem:[#allocation2 + $0xd4] sm:$0x1] %vm448, 0
        %v501 = vpack.c.bf16 %v413, %v413
        %v502 = vpack.c.bf16 %v414, %v414
        %v503 = vpack.c.bf16 %v415, %v415
        %v504 = vpack.c.bf16 %v416, %v416
        %v505 = vpack.c.bf16 %v417, %v417
        %v506 = vpack.c.bf16 %v418, %v418
        %v507 = vpack.c.bf16 %v419, %v419
        %v508 = vpack.c.bf16 %v420, %v420
        %v509 = vpack.c.bf16 %v421, %v421
        %v510 = vpack.c.bf16 %v422, %v422
        %v511 = vpack.c.bf16 %v423, %v423
        %v512 = vpack.c.bf16 %v424, %v424
        %v513 = vpack.c.bf16 %v425, %v425
        %v514 = vpack.c.bf16 %v426, %v426
        %v515 = vpack.c.bf16 %v427, %v427
        %v516 = vpack.c.bf16 %v428, %v428
        %v517 = vpack.c.bf16 %v429, %v429
        %v518 = vpack.c.bf16 %v430, %v430
        %v519 = vpack.c.bf16 %v431, %v431
        %v520 = vpack.c.bf16 %v432, %v432
        %v521 = vpack.c.bf16 %v433, %v433
        %v522 = vpack.c.bf16 %v434, %v434
        %v523 = vpack.c.bf16 %v435, %v435
        %v524 = vpack.c.bf16 %v436, %v436
        %v525 = vpack.c.bf16 %v437, %v437
        %v526 = vpack.c.bf16 %v438, %v438
        %v527 = vpack.c.bf16 %v439, %v439
        %v528 = vpack.c.bf16 %v440, %v440
        %v529 = vpack.c.bf16 %v441, %v441
        %v530 = vpack.c.bf16 %v442, %v442
        %v531 = vpack.c.bf16 %v443, %v443
        %v532 = vpack.c.bf16 %v444, %v444
        %vm533 = vsmask.f32 256
        %vm534 = vsmask.f32 4368
        %vm535 = vmor %vm533, %vm534
        %v537 = vshrl.u32 %v501, 16
        %v539 = vrot.slane %v537, 7
        %v540 = vshll.u32 %v501, 16
        %v542 = vor.u32 %v539, %v540
        %v543 = vrot.slane %v539, 4
        %v545 = vshrl.u32 %v502, 16
        %v547 = vrot.slane %v545, 7
        %v548 = vshll.u32 %v502, 16
        %v550 = vor.u32 %v547, %v548
        %v551 = vsel %vm535, %v543, %v550
        %v552 = vrot.slane %v547, 4
        %v554 = vshrl.u32 %v503, 16
        %v556 = vrot.slane %v554, 7
        %v557 = vshll.u32 %v503, 16
        %v559 = vor.u32 %v556, %v557
        %v560 = vrot.slane %v556, 4
        %v562 = vshrl.u32 %v504, 16
        %v564 = vrot.slane %v562, 7
        %v565 = vshll.u32 %v504, 16
        %v567 = vor.u32 %v564, %v565
        %v568 = vsel %vm535, %v560, %v567
        %v569 = vrot.slane %v564, 4
        %v571 = vshrl.u32 %v505, 16
        %v573 = vrot.slane %v571, 7
        %v574 = vshll.u32 %v505, 16
        %v576 = vor.u32 %v573, %v574
        %v577 = vrot.slane %v573, 4
        %v579 = vshrl.u32 %v506, 16
        %v581 = vrot.slane %v579, 7
        %v582 = vshll.u32 %v506, 16
        %v584 = vor.u32 %v581, %v582
        %v585 = vsel %vm535, %v577, %v584
        %v586 = vrot.slane %v581, 4
        %v588 = vshrl.u32 %v507, 16
        %v590 = vrot.slane %v588, 7
        %v591 = vshll.u32 %v507, 16
        %v593 = vor.u32 %v590, %v591
        %v594 = vrot.slane %v590, 4
        %v596 = vshrl.u32 %v508, 16
        %v598 = vrot.slane %v596, 7
        %v599 = vshll.u32 %v508, 16
        %v601 = vor.u32 %v598, %v599
        %v602 = vsel %vm535, %v594, %v601
        %v603 = vrot.slane %v598, 4
        %v605 = vshrl.u32 %v509, 16
        %v607 = vrot.slane %v605, 7
        %v608 = vshll.u32 %v509, 16
        %v610 = vor.u32 %v607, %v608
        %v611 = vrot.slane %v607, 4
        %v613 = vshrl.u32 %v510, 16
        %v615 = vrot.slane %v613, 7
        %v616 = vshll.u32 %v510, 16
        %v618 = vor.u32 %v615, %v616
        %v619 = vsel %vm535, %v611, %v618
        %v620 = vrot.slane %v615, 4
        %v622 = vshrl.u32 %v511, 16
        %v624 = vrot.slane %v622, 7
        %v625 = vshll.u32 %v511, 16
        %v627 = vor.u32 %v624, %v625
        %v628 = vrot.slane %v624, 4
        %v630 = vshrl.u32 %v512, 16
        %v632 = vrot.slane %v630, 7
        %v633 = vshll.u32 %v512, 16
        %v635 = vor.u32 %v632, %v633
        %v636 = vsel %vm535, %v628, %v635
        %v637 = vrot.slane %v632, 4
        %v639 = vshrl.u32 %v513, 16
        %v641 = vrot.slane %v639, 7
        %v642 = vshll.u32 %v513, 16
        %v644 = vor.u32 %v641, %v642
        %v645 = vrot.slane %v641, 4
        %v647 = vshrl.u32 %v514, 16
        %v649 = vrot.slane %v647, 7
        %v650 = vshll.u32 %v514, 16
        %v652 = vor.u32 %v649, %v650
        %v653 = vsel %vm535, %v645, %v652
        %v654 = vrot.slane %v649, 4
        %v656 = vshrl.u32 %v515, 16
        %v658 = vrot.slane %v656, 7
        %v659 = vshll.u32 %v515, 16
        %v661 = vor.u32 %v658, %v659
        %v662 = vrot.slane %v658, 4
        %v664 = vshrl.u32 %v516, 16
        %v666 = vrot.slane %v664, 7
        %v667 = vshll.u32 %v516, 16
        %v669 = vor.u32 %v666, %v667
        %v670 = vsel %vm535, %v662, %v669
        %v671 = vrot.slane %v666, 4
        %v673 = vshrl.u32 %v517, 16
        %v675 = vrot.slane %v673, 7
        %v676 = vshll.u32 %v517, 16
        %v678 = vor.u32 %v675, %v676
        %v679 = vrot.slane %v675, 4
        %v681 = vshrl.u32 %v518, 16
        %v683 = vrot.slane %v681, 7
        %v684 = vshll.u32 %v518, 16
        %v686 = vor.u32 %v683, %v684
        %v687 = vsel %vm535, %v679, %v686
        %v688 = vrot.slane %v683, 4
        %v690 = vshrl.u32 %v519, 16
        %v692 = vrot.slane %v690, 7
        %v693 = vshll.u32 %v519, 16
        %v695 = vor.u32 %v692, %v693
        %v696 = vrot.slane %v692, 4
        %v698 = vshrl.u32 %v520, 16
        %v700 = vrot.slane %v698, 7
        %v701 = vshll.u32 %v520, 16
        %v703 = vor.u32 %v700, %v701
        %v704 = vsel %vm535, %v696, %v703
        %v705 = vrot.slane %v700, 4
        %v707 = vshrl.u32 %v521, 16
        %v709 = vrot.slane %v707, 7
        %v710 = vshll.u32 %v521, 16
        %v712 = vor.u32 %v709, %v710
        %v713 = vrot.slane %v709, 4
        %v715 = vshrl.u32 %v522, 16
        %v717 = vrot.slane %v715, 7
        %v718 = vshll.u32 %v522, 16
        %v720 = vor.u32 %v717, %v718
        %v721 = vsel %vm535, %v713, %v720
        %v722 = vrot.slane %v717, 4
        %v724 = vshrl.u32 %v523, 16
        %v726 = vrot.slane %v724, 7
        %v727 = vshll.u32 %v523, 16
        %v729 = vor.u32 %v726, %v727
        %v730 = vrot.slane %v726, 4
        %v732 = vshrl.u32 %v524, 16
        %v734 = vrot.slane %v732, 7
        %v735 = vshll.u32 %v524, 16
        %v737 = vor.u32 %v734, %v735
        %v738 = vsel %vm535, %v730, %v737
        %v739 = vrot.slane %v734, 4
        %v741 = vshrl.u32 %v525, 16
        %v743 = vrot.slane %v741, 7
        %v744 = vshll.u32 %v525, 16
        %v746 = vor.u32 %v743, %v744
        %v747 = vrot.slane %v743, 4
        %v749 = vshrl.u32 %v526, 16
        %v751 = vrot.slane %v749, 7
        %v752 = vshll.u32 %v526, 16
        %v754 = vor.u32 %v751, %v752
        %v755 = vsel %vm535, %v747, %v754
        %v756 = vrot.slane %v751, 4
        %v758 = vshrl.u32 %v527, 16
        %v760 = vrot.slane %v758, 7
        %v761 = vshll.u32 %v527, 16
        %v763 = vor.u32 %v760, %v761
        %v764 = vrot.slane %v760, 4
        %v766 = vshrl.u32 %v528, 16
        %v768 = vrot.slane %v766, 7
        %v769 = vshll.u32 %v528, 16
        %v771 = vor.u32 %v768, %v769
        %v772 = vsel %vm535, %v764, %v771
        %v773 = vrot.slane %v768, 4
        %v775 = vshrl.u32 %v529, 16
        %v777 = vrot.slane %v775, 7
        %v778 = vshll.u32 %v529, 16
        %v780 = vor.u32 %v777, %v778
        %v781 = vrot.slane %v777, 4
        %v783 = vshrl.u32 %v530, 16
        %v785 = vrot.slane %v783, 7
        %v786 = vshll.u32 %v530, 16
        %v788 = vor.u32 %v785, %v786
        %v789 = vsel %vm535, %v781, %v788
        %v790 = vrot.slane %v785, 4
        %v792 = vshrl.u32 %v531, 16
        %v794 = vrot.slane %v792, 7
        %v795 = vshll.u32 %v531, 16
        %v797 = vor.u32 %v794, %v795
        %v798 = vrot.slane %v794, 4
        %v800 = vshrl.u32 %v532, 16
        %v802 = vrot.slane %v800, 7
        %v803 = vshll.u32 %v532, 16
        %v805 = vor.u32 %v802, %v803
        %v806 = vsel %vm535, %v798, %v805
        %v807 = vrot.slane %v802, 4
        %s856 = scalar_lea.vmem [#allocation2], 12
        %vm857 = vcmask 60416
        %vm858 = vsmask.f32 7938
        %vm859 = vmand %vm857, %vm858
        %v860 = vld [vmem:[%s856] sm:$0xf]
        %v861 = vsel %vm859, %v542, %v860
        %862 = vst [vmem:[%s856] sm:$0xf] %v861
        %863 = vst.msk [vmem:[%s856 + $0x4] sm:$0xf] %vm445, %v551
        %vm864 = vcmask 57344
        %vm865 = vmand %vm864, %vm533
        %v866 = vld [vmem:[%s856 + $0x8] sm:$0x1]
        %v867 = vsel %vm865, %v552, %v866
        %868 = vst [vmem:[%s856 + $0x8] sm:$0x1] %v867
        %v869 = vld [vmem:[%s856 + $0xc] sm:$0xf]
        %v870 = vsel %vm859, %v559, %v869
        %871 = vst [vmem:[%s856 + $0xc] sm:$0xf] %v870
        %872 = vst.msk [vmem:[%s856 + $0x10] sm:$0xf] %vm445, %v568
        %v873 = vld [vmem:[%s856 + $0x14] sm:$0x1]
        %v874 = vsel %vm865, %v569, %v873
        %875 = vst [vmem:[%s856 + $0x14] sm:$0x1] %v874
        %v876 = vld [vmem:[%s856 + $0x18] sm:$0xf]
        %v877 = vsel %vm859, %v576, %v876
        %878 = vst [vmem:[%s856 + $0x18] sm:$0xf] %v877
        %879 = vst.msk [vmem:[%s856 + $0x1c] sm:$0xf] %vm445, %v585
        %v880 = vld [vmem:[%s856 + $0x20] sm:$0x1]
        %v881 = vsel %vm865, %v586, %v880
        %882 = vst [vmem:[%s856 + $0x20] sm:$0x1] %v881
        %v883 = vld [vmem:[%s856 + $0x24] sm:$0xf]
        %v884 = vsel %vm859, %v593, %v883
        %885 = vst [vmem:[%s856 + $0x24] sm:$0xf] %v884
        %886 = vst.msk [vmem:[%s856 + $0x28] sm:$0xf] %vm445, %v602
        %v887 = vld [vmem:[%s856 + $0x2c] sm:$0x1]
        %v888 = vsel %vm865, %v603, %v887
        %889 = vst [vmem:[%s856 + $0x2c] sm:$0x1] %v888
        %v890 = vld [vmem:[%s856 + $0x30] sm:$0xf]
        %v891 = vsel %vm859, %v610, %v890
        %892 = vst [vmem:[%s856 + $0x30] sm:$0xf] %v891
        %893 = vst.msk [vmem:[%s856 + $0x34] sm:$0xf] %vm445, %v619
        %v894 = vld [vmem:[%s856 + $0x38] sm:$0x1]
        %v895 = vsel %vm865, %v620, %v894
        %896 = vst [vmem:[%s856 + $0x38] sm:$0x1] %v895
        %v897 = vld [vmem:[%s856 + $0x3c] sm:$0xf]
        %v898 = vsel %vm859, %v627, %v897
        %899 = vst [vmem:[%s856 + $0x3c] sm:$0xf] %v898
        %900 = vst.msk [vmem:[%s856 + $0x40] sm:$0xf] %vm445, %v636
        %v901 = vld [vmem:[%s856 + $0x44] sm:$0x1]
        %v902 = vsel %vm865, %v637, %v901
        %903 = vst [vmem:[%s856 + $0x44] sm:$0x1] %v902
        %v904 = vld [vmem:[%s856 + $0x48] sm:$0xf]
        %v905 = vsel %vm859, %v644, %v904
        %906 = vst [vmem:[%s856 + $0x48] sm:$0xf] %v905
        %907 = vst.msk [vmem:[%s856 + $0x4c] sm:$0xf] %vm445, %v653
        %v908 = vld [vmem:[%s856 + $0x50] sm:$0x1]
        %v909 = vsel %vm865, %v654, %v908
        %910 = vst [vmem:[%s856 + $0x50] sm:$0x1] %v909
        %v911 = vld [vmem:[%s856 + $0x54] sm:$0xf]
        %v912 = vsel %vm859, %v661, %v911
        %913 = vst [vmem:[%s856 + $0x54] sm:$0xf] %v912
        %914 = vst.msk [vmem:[%s856 + $0x58] sm:$0xf] %vm445, %v670
        %v915 = vld [vmem:[%s856 + $0x5c] sm:$0x1]
        %v916 = vsel %vm865, %v671, %v915
        %917 = vst [vmem:[%s856 + $0x5c] sm:$0x1] %v916
        %v918 = vld [vmem:[%s856 + $0x60] sm:$0xf]
        %v919 = vsel %vm859, %v678, %v918
        %920 = vst [vmem:[%s856 + $0x60] sm:$0xf] %v919
        %921 = vst.msk [vmem:[%s856 + $0x64] sm:$0xf] %vm445, %v687
        %v922 = vld [vmem:[%s856 + $0x68] sm:$0x1]
        %v923 = vsel %vm865, %v688, %v922
        %924 = vst [vmem:[%s856 + $0x68] sm:$0x1] %v923
        %v925 = vld [vmem:[%s856 + $0x6c] sm:$0xf]
        %v926 = vsel %vm859, %v695, %v925
        %927 = vst [vmem:[%s856 + $0x6c] sm:$0xf] %v926
        %928 = vst.msk [vmem:[%s856 + $0x70] sm:$0xf] %vm445, %v704
        %v929 = vld [vmem:[%s856 + $0x74] sm:$0x1]
        %v930 = vsel %vm865, %v705, %v929
        %931 = vst [vmem:[%s856 + $0x74] sm:$0x1] %v930
        %v932 = vld [vmem:[%s856 + $0x78] sm:$0xf]
        %v933 = vsel %vm859, %v712, %v932
        %934 = vst [vmem:[%s856 + $0x78] sm:$0xf] %v933
        %935 = vst.msk [vmem:[%s856 + $0x7c] sm:$0xf] %vm445, %v721
        %v936 = vld [vmem:[%s856 + $0x80] sm:$0x1]
        %v937 = vsel %vm865, %v722, %v936
        %938 = vst [vmem:[%s856 + $0x80] sm:$0x1] %v937
        %v939 = vld [vmem:[%s856 + $0x84] sm:$0xf]
        %v940 = vsel %vm859, %v729, %v939
        %941 = vst [vmem:[%s856 + $0x84] sm:$0xf] %v940
        %942 = vst.msk [vmem:[%s856 + $0x88] sm:$0xf] %vm445, %v738
        %v943 = vld [vmem:[%s856 + $0x8c] sm:$0x1]
        %v944 = vsel %vm865, %v739, %v943
        %945 = vst [vmem:[%s856 + $0x8c] sm:$0x1] %v944
        %v946 = vld [vmem:[%s856 + $0x90] sm:$0xf]
        %v947 = vsel %vm859, %v746, %v946
        %948 = vst [vmem:[%s856 + $0x90] sm:$0xf] %v947
        %949 = vst.msk [vmem:[%s856 + $0x94] sm:$0xf] %vm445, %v755
        %v950 = vld [vmem:[%s856 + $0x98] sm:$0x1]
        %v951 = vsel %vm865, %v756, %v950
        %952 = vst [vmem:[%s856 + $0x98] sm:$0x1] %v951
        %v953 = vld [vmem:[%s856 + $0x9c] sm:$0xf]
        %v954 = vsel %vm859, %v763, %v953
        %955 = vst [vmem:[%s856 + $0x9c] sm:$0xf] %v954
        %956 = vst.msk [vmem:[%s856 + $0xa0] sm:$0xf] %vm445, %v772
        %v957 = vld [vmem:[%s856 + $0xa4] sm:$0x1]
        %v958 = vsel %vm865, %v773, %v957
        %959 = vst [vmem:[%s856 + $0xa4] sm:$0x1] %v958
        %v960 = vld [vmem:[%s856 + $0xa8] sm:$0xf]
        %v961 = vsel %vm859, %v780, %v960
        %962 = vst [vmem:[%s856 + $0xa8] sm:$0xf] %v961
        %963 = vst.msk [vmem:[%s856 + $0xac] sm:$0xf] %vm445, %v789
        %v964 = vld [vmem:[%s856 + $0xb0] sm:$0x1]
        %v965 = vsel %vm865, %v790, %v964
        %966 = vst [vmem:[%s856 + $0xb0] sm:$0x1] %v965
        %v967 = vld [vmem:[%s856 + $0xb4] sm:$0xf]
        %v968 = vsel %vm859, %v797, %v967
        %969 = vst [vmem:[%s856 + $0xb4] sm:$0xf] %v968
        %970 = vst.msk [vmem:[%s856 + $0xb8] sm:$0xf] %vm445, %v806
        %v971 = vld [vmem:[%s856 + $0xbc] sm:$0x1]
        %v972 = vsel %vm865, %v807, %v971
        %973 = vst [vmem:[%s856 + $0xbc] sm:$0x1] %v972
        %v974 = vld [vmem:[#allocation2] sm:$0xf]
        %v975 = vld [vmem:[#allocation2 + $0x4] sm:$0xf]
        %v976 = vld [vmem:[#allocation2 + $0xc] sm:$0xf]
        %v977 = vld [vmem:[#allocation2 + $0x10] sm:$0xf]
        %v978 = vld [vmem:[#allocation2 + $0x18] sm:$0xf]
        %v979 = vld [vmem:[#allocation2 + $0x1c] sm:$0xf]
        %v980 = vld [vmem:[#allocation2 + $0x24] sm:$0xf]
        %v981 = vld [vmem:[#allocation2 + $0x28] sm:$0xf]
        %v982 = vld [vmem:[#allocation2 + $0x30] sm:$0xf]
        %v983 = vld [vmem:[#allocation2 + $0x34] sm:$0xf]
        %v984 = vld [vmem:[#allocation2 + $0x3c] sm:$0xf]
        %v985 = vld [vmem:[#allocation2 + $0x40] sm:$0xf]
        %v986 = vld [vmem:[#allocation2 + $0x48] sm:$0xf]
        %v987 = vld [vmem:[#allocation2 + $0x4c] sm:$0xf]
        %v988 = vld [vmem:[#allocation2 + $0x54] sm:$0xf]
        %v989 = vld [vmem:[#allocation2 + $0x58] sm:$0xf]
        %v990 = vld [vmem:[#allocation2 + $0x60] sm:$0xf]
        %v991 = vld [vmem:[#allocation2 + $0x64] sm:$0xf]
        %v992 = vld [vmem:[#allocation2 + $0x6c] sm:$0xf]
        %v993 = vld [vmem:[#allocation2 + $0x70] sm:$0xf]
        %v994 = vld [vmem:[#allocation2 + $0x78] sm:$0xf]
        %v995 = vld [vmem:[#allocation2 + $0x7c] sm:$0xf]
        %v996 = vld [vmem:[#allocation2 + $0x84] sm:$0xf]
        %v997 = vld [vmem:[#allocation2 + $0x88] sm:$0xf]
        %v998 = vld [vmem:[#allocation2 + $0x90] sm:$0xf]
        %v999 = vld [vmem:[#allocation2 + $0x94] sm:$0xf]
        %v1000 = vld [vmem:[#allocation2 + $0x9c] sm:$0xf]
        %v1001 = vld [vmem:[#allocation2 + $0xa0] sm:$0xf]
        %v1002 = vld [vmem:[#allocation2 + $0xa8] sm:$0xf]
        %v1003 = vld [vmem:[#allocation2 + $0xac] sm:$0xf]
        %v1004 = vld [vmem:[#allocation2 + $0xb4] sm:$0xf]
        %v1005 = vld [vmem:[#allocation2 + $0xb8] sm:$0xf]
        %v1006 = vld [vmem:[#allocation2 + $0xc0] sm:$0xf]
        %v1007 = vld [vmem:[#allocation2 + $0xc4] sm:$0xf]
        %v1008 = vld [vmem:[#allocation2 + $0xcc] sm:$0xf]
        %v1009 = vld [vmem:[#allocation2 + $0xd0] sm:$0xf]
        %v1010 = vld [vmem:[%s1] sm:$0xf]
        %v1011 = vld [vmem:[%s1 + $0xc] sm:$0xf]
        %v1044 = vunpack.c.l.b16 %v976
        %v1045 = vunpack.c.l.b16 %v977
        %v1046 = vunpack.c.l.b16 %v978
        %v1047 = vunpack.c.l.b16 %v979
        %v1048 = vunpack.c.l.b16 %v980
        %v1049 = vunpack.c.l.b16 %v981
        %v1050 = vunpack.c.l.b16 %v982
        %v1051 = vunpack.c.l.b16 %v983
        %v1052 = vunpack.c.l.b16 %v984
        %v1053 = vunpack.c.l.b16 %v985
        %v1054 = vunpack.c.l.b16 %v986
        %v1055 = vunpack.c.l.b16 %v987
        %v1056 = vunpack.c.l.b16 %v988
        %v1057 = vunpack.c.l.b16 %v989
        %v1058 = vunpack.c.l.b16 %v990
        %v1059 = vunpack.c.l.b16 %v991
        %v1060 = vunpack.c.l.b16 %v992
        %v1061 = vunpack.c.l.b16 %v993
        %v1062 = vunpack.c.l.b16 %v994
        %v1063 = vunpack.c.l.b16 %v995
        %v1064 = vunpack.c.l.b16 %v996
        %v1065 = vunpack.c.l.b16 %v997
        %v1066 = vunpack.c.l.b16 %v998
        %v1067 = vunpack.c.l.b16 %v999
        %v1068 = vunpack.c.l.b16 %v1000
        %v1069 = vunpack.c.l.b16 %v1001
        %v1070 = vunpack.c.l.b16 %v1002
        %v1071 = vunpack.c.l.b16 %v1003
        %v1072 = vunpack.c.l.b16 %v1004
        %v1073 = vunpack.c.l.b16 %v1005
        %v1074 = vunpack.c.l.b16 %v1006
        %v1075 = vunpack.c.l.b16 %v1007
        %v1076 = vpack.c.b16 %v1045, %v1044
        %v1077 = vpack.c.b16 %v1047, %v1046
        %v1078 = vpack.c.b16 %v1049, %v1048
        %v1079 = vpack.c.b16 %v1051, %v1050
        %v1080 = vpack.c.b16 %v1053, %v1052
        %v1081 = vpack.c.b16 %v1055, %v1054
        %v1082 = vpack.c.b16 %v1057, %v1056
        %v1083 = vpack.c.b16 %v1059, %v1058
        %v1084 = vpack.c.b16 %v1061, %v1060
        %v1085 = vpack.c.b16 %v1063, %v1062
        %v1086 = vpack.c.b16 %v1065, %v1064
        %v1087 = vpack.c.b16 %v1067, %v1066
        %v1088 = vpack.c.b16 %v1069, %v1068
        %v1089 = vpack.c.b16 %v1071, %v1070
        %v1090 = vpack.c.b16 %v1073, %v1072
        %v1091 = vpack.c.b16 %v1075, %v1074
        %vm1092 = vcmask 64512
        %v1094 = vsel %vm1092, %v1076, 0
        %v1097 = vsel %vm1092, %v1077, 0
        %v1100 = vsel %vm1092, %v1078, 0
        %v1103 = vsel %vm1092, %v1079, 0
        %v1106 = vsel %vm1092, %v1080, 0
        %v1109 = vsel %vm1092, %v1081, 0
        %v1112 = vsel %vm1092, %v1082, 0
        %v1115 = vsel %vm1092, %v1083, 0
        %v1118 = vsel %vm1092, %v1084, 0
        %v1121 = vsel %vm1092, %v1085, 0
        %v1124 = vsel %vm1092, %v1086, 0
        %v1127 = vsel %vm1092, %v1087, 0
        %v1130 = vsel %vm1092, %v1088, 0
        %v1133 = vsel %vm1092, %v1089, 0
        %v1136 = vsel %vm1092, %v1090, 0
        %v1139 = vsel %vm1092, %v1091, 0
        %vm1141 = vcmask 1043456
        %v1143 = vsel %vm1141, %v1011, 0
        %1145 = vmatpush.bf16.msra.mxu0 0
        %1146 = vmatpush.bf16.msra.mxu0 0
        %1147 = vmatpush.bf16.msra.mxu0 0
        %1148 = vmatpush.bf16.msra.mxu0 0
        %1149 = vmatpush.bf16.msra.mxu0 0
        %1150 = vmatpush.bf16.msra.mxu0 0
        %1151 = vmatpush.bf16.msra.mxu0 0
        %1152 = vmatpush.bf16.msra.mxu0 %v1143
        %1153 = vmatmul.bf16.gmra.mxu0 %v1094
        %v1154 = vpop.f32.mrf.mxu0
        %v1155 = vadd.f32 0.0, %v1154
        %v1156 = vpop.f32.mrf.mxu0
        %v1157 = vadd.f32 0.0, %v1156
        %1158 = vmatmul.bf16.gmra.mxu0 %v1097
        %v1159 = vpop.f32.mrf.mxu0
        %v1160 = vadd.f32 0.0, %v1159
        %v1161 = vpop.f32.mrf.mxu0
        %v1162 = vadd.f32 0.0, %v1161
        %1163 = vmatmul.bf16.gmra.mxu0 %v1100
        %v1164 = vpop.f32.mrf.mxu0
        %v1165 = vadd.f32 0.0, %v1164
        %v1166 = vpop.f32.mrf.mxu0
        %v1167 = vadd.f32 0.0, %v1166
        %1168 = vmatmul.bf16.gmra.mxu0 %v1103
        %v1169 = vpop.f32.mrf.mxu0
        %v1170 = vadd.f32 0.0, %v1169
        %v1171 = vpop.f32.mrf.mxu0
        %v1172 = vadd.f32 0.0, %v1171
        %1173 = vmatmul.bf16.gmra.mxu0 %v1106
        %v1174 = vpop.f32.mrf.mxu0
        %v1175 = vadd.f32 0.0, %v1174
        %v1176 = vpop.f32.mrf.mxu0
        %v1177 = vadd.f32 0.0, %v1176
        %1178 = vmatmul.bf16.gmra.mxu0 %v1109
        %v1179 = vpop.f32.mrf.mxu0
        %v1180 = vadd.f32 0.0, %v1179
        %v1181 = vpop.f32.mrf.mxu0
        %v1182 = vadd.f32 0.0, %v1181
        %1183 = vmatmul.bf16.gmra.mxu0 %v1112
        %v1184 = vpop.f32.mrf.mxu0
        %v1185 = vadd.f32 0.0, %v1184
        %v1186 = vpop.f32.mrf.mxu0
        %v1187 = vadd.f32 0.0, %v1186
        %1188 = vmatmul.bf16.gmra.mxu0 %v1115
        %v1189 = vpop.f32.mrf.mxu0
        %v1190 = vadd.f32 0.0, %v1189
        %v1191 = vpop.f32.mrf.mxu0
        %v1192 = vadd.f32 0.0, %v1191
        %1193 = vmatmul.bf16.gmra.mxu0 %v1118
        %v1194 = vpop.f32.mrf.mxu0
        %v1195 = vadd.f32 0.0, %v1194
        %v1196 = vpop.f32.mrf.mxu0
        %v1197 = vadd.f32 0.0, %v1196
        %1198 = vmatmul.bf16.gmra.mxu0 %v1121
        %v1199 = vpop.f32.mrf.mxu0
        %v1200 = vadd.f32 0.0, %v1199
        %v1201 = vpop.f32.mrf.mxu0
        %v1202 = vadd.f32 0.0, %v1201
        %1203 = vmatmul.bf16.gmra.mxu0 %v1124
        %v1204 = vpop.f32.mrf.mxu0
        %v1205 = vadd.f32 0.0, %v1204
        %v1206 = vpop.f32.mrf.mxu0
        %v1207 = vadd.f32 0.0, %v1206
        %1208 = vmatmul.bf16.gmra.mxu0 %v1127
        %v1209 = vpop.f32.mrf.mxu0
        %v1210 = vadd.f32 0.0, %v1209
        %v1211 = vpop.f32.mrf.mxu0
        %v1212 = vadd.f32 0.0, %v1211
        %1213 = vmatmul.bf16.gmra.mxu0 %v1130
        %v1214 = vpop.f32.mrf.mxu0
        %v1215 = vadd.f32 0.0, %v1214
        %v1216 = vpop.f32.mrf.mxu0
        %v1217 = vadd.f32 0.0, %v1216
        %1218 = vmatmul.bf16.gmra.mxu0 %v1133
        %v1219 = vpop.f32.mrf.mxu0
        %v1220 = vadd.f32 0.0, %v1219
        %v1221 = vpop.f32.mrf.mxu0
        %v1222 = vadd.f32 0.0, %v1221
        %1223 = vmatmul.bf16.gmra.mxu0 %v1136
        %v1224 = vpop.f32.mrf.mxu0
        %v1225 = vadd.f32 0.0, %v1224
        %v1226 = vpop.f32.mrf.mxu0
        %v1227 = vadd.f32 0.0, %v1226
        %1228 = vmatmul.bf16.gmra.mxu0 %v1139
        %v1229 = vpop.f32.mrf.mxu0
        %v1230 = vadd.f32 0.0, %v1229
        %v1231 = vpop.f32.mrf.mxu0
        %v1232 = vadd.f32 0.0, %v1231
        %1233 = vdwg.mxu0
        %v1236 = vunpack.c.l.b16 %v974
        %v1237 = vunpack.c.l.b16 %v975
        %v1238 = vpack.c.b16 %v1237, %v1236
        %v1240 = vsel %vm1092, %v1238, 0
        %v1243 = vsel %vm1141, %v1010, 0
        %1245 = vmatpush.bf16.msra.mxu0 0
        %1246 = vmatpush.bf16.msra.mxu0 0
        %1247 = vmatpush.bf16.msra.mxu0 0
        %1248 = vmatpush.bf16.msra.mxu0 0
        %1249 = vmatpush.bf16.msra.mxu0 0
        %1250 = vmatpush.bf16.msra.mxu0 0
        %1251 = vmatpush.bf16.msra.mxu0 0
        %1252 = vmatpush.bf16.msra.mxu0 %v1243
        %1253 = vmatmul.bf16.gmra.mxu0 %v1240
        %v1254 = vpop.f32.mrf.mxu0
        %v1255 = vadd.f32 %v1155, %v1254
        %v1256 = vpop.f32.mrf.mxu0
        %v1257 = vadd.f32 %v1157, %v1256
        %1258 = vmatmul.bf16.gmra.mxu0 %v1094
        %v1259 = vpop.f32.mrf.mxu0
        %v1260 = vadd.f32 %v1160, %v1259
        %v1261 = vpop.f32.mrf.mxu0
        %v1262 = vadd.f32 %v1162, %v1261
        %1263 = vmatmul.bf16.gmra.mxu0 %v1097
        %v1264 = vpop.f32.mrf.mxu0
        %v1265 = vadd.f32 %v1165, %v1264
        %v1266 = vpop.f32.mrf.mxu0
        %v1267 = vadd.f32 %v1167, %v1266
        %1268 = vmatmul.bf16.gmra.mxu0 %v1100
        %v1269 = vpop.f32.mrf.mxu0
        %v1270 = vadd.f32 %v1170, %v1269
        %v1271 = vpop.f32.mrf.mxu0
        %v1272 = vadd.f32 %v1172, %v1271
        %1273 = vmatmul.bf16.gmra.mxu0 %v1103
        %v1274 = vpop.f32.mrf.mxu0
        %v1275 = vadd.f32 %v1175, %v1274
        %v1276 = vpop.f32.mrf.mxu0
        %v1277 = vadd.f32 %v1177, %v1276
        %1278 = vmatmul.bf16.gmra.mxu0 %v1106
        %v1279 = vpop.f32.mrf.mxu0
        %v1280 = vadd.f32 %v1180, %v1279
        %v1281 = vpop.f32.mrf.mxu0
        %v1282 = vadd.f32 %v1182, %v1281
        %1283 = vmatmul.bf16.gmra.mxu0 %v1109
        %v1284 = vpop.f32.mrf.mxu0
        %v1285 = vadd.f32 %v1185, %v1284
        %v1286 = vpop.f32.mrf.mxu0
        %v1287 = vadd.f32 %v1187, %v1286
        %1288 = vmatmul.bf16.gmra.mxu0 %v1112
        %v1289 = vpop.f32.mrf.mxu0
        %v1290 = vadd.f32 %v1190, %v1289
        %v1291 = vpop.f32.mrf.mxu0
        %v1292 = vadd.f32 %v1192, %v1291
        %1293 = vmatmul.bf16.gmra.mxu0 %v1115
        %v1294 = vpop.f32.mrf.mxu0
        %v1295 = vadd.f32 %v1195, %v1294
        %v1296 = vpop.f32.mrf.mxu0
        %v1297 = vadd.f32 %v1197, %v1296
        %1298 = vmatmul.bf16.gmra.mxu0 %v1118
        %v1299 = vpop.f32.mrf.mxu0
        %v1300 = vadd.f32 %v1200, %v1299
        %v1301 = vpop.f32.mrf.mxu0
        %v1302 = vadd.f32 %v1202, %v1301
        %1303 = vmatmul.bf16.gmra.mxu0 %v1121
        %v1304 = vpop.f32.mrf.mxu0
        %v1305 = vadd.f32 %v1205, %v1304
        %v1306 = vpop.f32.mrf.mxu0
        %v1307 = vadd.f32 %v1207, %v1306
        %1308 = vmatmul.bf16.gmra.mxu0 %v1124
        %v1309 = vpop.f32.mrf.mxu0
        %v1310 = vadd.f32 %v1210, %v1309
        %v1311 = vpop.f32.mrf.mxu0
        %v1312 = vadd.f32 %v1212, %v1311
        %1313 = vmatmul.bf16.gmra.mxu0 %v1127
        %v1314 = vpop.f32.mrf.mxu0
        %v1315 = vadd.f32 %v1215, %v1314
        %v1316 = vpop.f32.mrf.mxu0
        %v1317 = vadd.f32 %v1217, %v1316
        %1318 = vmatmul.bf16.gmra.mxu0 %v1130
        %v1319 = vpop.f32.mrf.mxu0
        %v1320 = vadd.f32 %v1220, %v1319
        %v1321 = vpop.f32.mrf.mxu0
        %v1322 = vadd.f32 %v1222, %v1321
        %1323 = vmatmul.bf16.gmra.mxu0 %v1133
        %v1324 = vpop.f32.mrf.mxu0
        %v1325 = vadd.f32 %v1225, %v1324
        %v1326 = vpop.f32.mrf.mxu0
        %v1327 = vadd.f32 %v1227, %v1326
        %1328 = vmatmul.bf16.gmra.mxu0 %v1136
        %v1329 = vpop.f32.mrf.mxu0
        %v1330 = vadd.f32 %v1230, %v1329
        %v1331 = vpop.f32.mrf.mxu0
        %v1332 = vadd.f32 %v1232, %v1331
        %1333 = vdwg.mxu0
        %v1334 = vld [vmem:[%s1 + $0x18] sm:$0xf]
        %v1337 = vunpack.c.l.b16 %v1008
        %v1338 = vunpack.c.l.b16 %v1009
        %v1339 = vpack.c.b16 %v1338, %v1337
        %v1341 = vsel %vm1092, %v1339, 0
        %v1344 = vsel %vm1141, %v1334, 0
        %1346 = vmatpush.bf16.msra.mxu0 0
        %1347 = vmatpush.bf16.msra.mxu0 0
        %1348 = vmatpush.bf16.msra.mxu0 0
        %1349 = vmatpush.bf16.msra.mxu0 0
        %1350 = vmatpush.bf16.msra.mxu0 0
        %1351 = vmatpush.bf16.msra.mxu0 0
        %1352 = vmatpush.bf16.msra.mxu0 0
        %1353 = vmatpush.bf16.msra.mxu0 %v1344
        %1354 = vmatmul.bf16.gmra.mxu0 %v1097
        %v1355 = vpop.f32.mrf.mxu0
        %v1356 = vadd.f32 0.0, %v1355
        %v1357 = vpop.f32.mrf.mxu0
        %v1358 = vadd.f32 0.0, %v1357
        %1359 = vmatmul.bf16.gmra.mxu0 %v1100
        %v1360 = vpop.f32.mrf.mxu0
        %v1361 = vadd.f32 0.0, %v1360
        %v1362 = vpop.f32.mrf.mxu0
        %v1363 = vadd.f32 0.0, %v1362
        %1364 = vmatmul.bf16.gmra.mxu0 %v1103
        %v1365 = vpop.f32.mrf.mxu0
        %v1366 = vadd.f32 0.0, %v1365
        %v1367 = vpop.f32.mrf.mxu0
        %v1368 = vadd.f32 0.0, %v1367
        %1369 = vmatmul.bf16.gmra.mxu0 %v1106
        %v1370 = vpop.f32.mrf.mxu0
        %v1371 = vadd.f32 0.0, %v1370
        %v1372 = vpop.f32.mrf.mxu0
        %v1373 = vadd.f32 0.0, %v1372
        %1374 = vmatmul.bf16.gmra.mxu0 %v1109
        %v1375 = vpop.f32.mrf.mxu0
        %v1376 = vadd.f32 0.0, %v1375
        %v1377 = vpop.f32.mrf.mxu0
        %v1378 = vadd.f32 0.0, %v1377
        %1379 = vmatmul.bf16.gmra.mxu0 %v1112
        %v1380 = vpop.f32.mrf.mxu0
        %v1381 = vadd.f32 0.0, %v1380
        %v1382 = vpop.f32.mrf.mxu0
        %v1383 = vadd.f32 0.0, %v1382
        %1384 = vmatmul.bf16.gmra.mxu0 %v1115
        %v1385 = vpop.f32.mrf.mxu0
        %v1386 = vadd.f32 0.0, %v1385
        %v1387 = vpop.f32.mrf.mxu0
        %v1388 = vadd.f32 0.0, %v1387
        %1389 = vmatmul.bf16.gmra.mxu0 %v1118
        %v1390 = vpop.f32.mrf.mxu0
        %v1391 = vadd.f32 0.0, %v1390
        %v1392 = vpop.f32.mrf.mxu0
        %v1393 = vadd.f32 0.0, %v1392
        %1394 = vmatmul.bf16.gmra.mxu0 %v1121
        %v1395 = vpop.f32.mrf.mxu0
        %v1396 = vadd.f32 0.0, %v1395
        %v1397 = vpop.f32.mrf.mxu0
        %v1398 = vadd.f32 0.0, %v1397
        %1399 = vmatmul.bf16.gmra.mxu0 %v1124
        %v1400 = vpop.f32.mrf.mxu0
        %v1401 = vadd.f32 0.0, %v1400
        %v1402 = vpop.f32.mrf.mxu0
        %v1403 = vadd.f32 0.0, %v1402
        %1404 = vmatmul.bf16.gmra.mxu0 %v1127
        %v1405 = vpop.f32.mrf.mxu0
        %v1406 = vadd.f32 0.0, %v1405
        %v1407 = vpop.f32.mrf.mxu0
        %v1408 = vadd.f32 0.0, %v1407
        %1409 = vmatmul.bf16.gmra.mxu0 %v1130
        %v1410 = vpop.f32.mrf.mxu0
        %v1411 = vadd.f32 0.0, %v1410
        %v1412 = vpop.f32.mrf.mxu0
        %v1413 = vadd.f32 0.0, %v1412
        %1414 = vmatmul.bf16.gmra.mxu0 %v1133
        %v1415 = vpop.f32.mrf.mxu0
        %v1416 = vadd.f32 0.0, %v1415
        %v1417 = vpop.f32.mrf.mxu0
        %v1418 = vadd.f32 0.0, %v1417
        %1419 = vmatmul.bf16.gmra.mxu0 %v1136
        %v1420 = vpop.f32.mrf.mxu0
        %v1421 = vadd.f32 0.0, %v1420
        %v1422 = vpop.f32.mrf.mxu0
        %v1423 = vadd.f32 0.0, %v1422
        %1424 = vmatmul.bf16.gmra.mxu0 %v1139
        %v1425 = vpop.f32.mrf.mxu0
        %v1426 = vadd.f32 0.0, %v1425
        %v1427 = vpop.f32.mrf.mxu0
        %v1428 = vadd.f32 0.0, %v1427
        %1429 = vmatmul.bf16.gmra.mxu0 %v1341
        %v1430 = vpop.f32.mrf.mxu0
        %v1431 = vadd.f32 0.0, %v1430
        %v1432 = vpop.f32.mrf.mxu0
        %v1433 = vadd.f32 0.0, %v1432
        %1434 = vdwg.mxu0
        %v1435 = vadd.f32 %v1255, %v1356
        %v1436 = vadd.f32 %v1257, %v1358
        %v1437 = vadd.f32 %v1260, %v1361
        %v1438 = vadd.f32 %v1262, %v1363
        %v1439 = vadd.f32 %v1265, %v1366
        %v1440 = vadd.f32 %v1267, %v1368
        %v1441 = vadd.f32 %v1270, %v1371
        %v1442 = vadd.f32 %v1272, %v1373
        %v1443 = vadd.f32 %v1275, %v1376
        %v1444 = vadd.f32 %v1277, %v1378
        %v1445 = vadd.f32 %v1280, %v1381
        %v1446 = vadd.f32 %v1282, %v1383
        %v1447 = vadd.f32 %v1285, %v1386
        %v1448 = vadd.f32 %v1287, %v1388
        %v1449 = vadd.f32 %v1290, %v1391
        %v1450 = vadd.f32 %v1292, %v1393
        %v1451 = vadd.f32 %v1295, %v1396
        %v1452 = vadd.f32 %v1297, %v1398
        %v1453 = vadd.f32 %v1300, %v1401
        %v1454 = vadd.f32 %v1302, %v1403
        %v1455 = vadd.f32 %v1305, %v1406
        %v1456 = vadd.f32 %v1307, %v1408
        %v1457 = vadd.f32 %v1310, %v1411
        %v1458 = vadd.f32 %v1312, %v1413
        %v1459 = vadd.f32 %v1315, %v1416
        %v1460 = vadd.f32 %v1317, %v1418
        %v1461 = vadd.f32 %v1320, %v1421
        %v1462 = vadd.f32 %v1322, %v1423
        %v1463 = vadd.f32 %v1325, %v1426
        %v1464 = vadd.f32 %v1327, %v1428
        %v1465 = vadd.f32 %v1330, %v1431
        %v1466 = vadd.f32 %v1332, %v1433
        %v1467 = vld [vmem:[#allocation2] sm:$0xf]
        %v1468 = vld [vmem:[#allocation2 + $0x4] sm:$0xf]
        %v1469 = vld [vmem:[#allocation2 + $0x8] sm:$0x1]
        %v1470 = vld [vmem:[#allocation2 + $0xc] sm:$0xf]
        %v1471 = vld [vmem:[#allocation2 + $0x10] sm:$0xf]
        %v1472 = vld [vmem:[#allocation2 + $0x14] sm:$0x1]
        %v1473 = vld [vmem:[#allocation2 + $0x18] sm:$0xf]
        %v1474 = vld [vmem:[#allocation2 + $0x1c] sm:$0xf]
        %v1475 = vld [vmem:[#allocation2 + $0x20] sm:$0x1]
        %v1476 = vld [vmem:[#allocation2 + $0x24] sm:$0xf]
        %v1477 = vld [vmem:[#allocation2 + $0x28] sm:$0xf]
        %v1478 = vld [vmem:[#allocation2 + $0x2c] sm:$0x1]
        %v1479 = vld [vmem:[#allocation2 + $0x30] sm:$0xf]
        %v1480 = vld [vmem:[#allocation2 + $0x34] sm:$0xf]
        %v1481 = vld [vmem:[#allocation2 + $0x38] sm:$0x1]
        %v1482 = vld [vmem:[#allocation2 + $0x3c] sm:$0xf]
        %v1483 = vld [vmem:[#allocation2 + $0x40] sm:$0xf]
        %v1484 = vld [vmem:[#allocation2 + $0x44] sm:$0x1]
        %v1485 = vld [vmem:[#allocation2 + $0x48] sm:$0xf]
        %v1486 = vld [vmem:[#allocation2 + $0x4c] sm:$0xf]
        %v1487 = vld [vmem:[#allocation2 + $0x50] sm:$0x1]
        %v1488 = vld [vmem:[#allocation2 + $0x54] sm:$0xf]
        %v1489 = vld [vmem:[#allocation2 + $0x58] sm:$0xf]
        %v1490 = vld [vmem:[#allocation2 + $0x5c] sm:$0x1]
        %v1491 = vld [vmem:[#allocation2 + $0x60] sm:$0xf]
        %v1492 = vld [vmem:[#allocation2 + $0x64] sm:$0xf]
        %v1493 = vld [vmem:[#allocation2 + $0x68] sm:$0x1]
        %v1494 = vld [vmem:[#allocation2 + $0x6c] sm:$0xf]
        %v1495 = vld [vmem:[#allocation2 + $0x70] sm:$0xf]
        %v1496 = vld [vmem:[#allocation2 + $0x74] sm:$0x1]
        %v1497 = vld [vmem:[#allocation2 + $0x78] sm:$0xf]
        %v1498 = vld [vmem:[#allocation2 + $0x7c] sm:$0xf]
        %v1499 = vld [vmem:[#allocation2 + $0x80] sm:$0x1]
        %v1500 = vld [vmem:[#allocation2 + $0x84] sm:$0xf]
        %v1501 = vld [vmem:[#allocation2 + $0x88] sm:$0xf]
        %v1502 = vld [vmem:[#allocation2 + $0x8c] sm:$0x1]
        %v1503 = vld [vmem:[#allocation2 + $0x90] sm:$0xf]
        %v1504 = vld [vmem:[#allocation2 + $0x94] sm:$0xf]
        %v1505 = vld [vmem:[#allocation2 + $0x98] sm:$0x1]
        %v1506 = vld [vmem:[#allocation2 + $0x9c] sm:$0xf]
        %v1507 = vld [vmem:[#allocation2 + $0xa0] sm:$0xf]
        %v1508 = vld [vmem:[#allocation2 + $0xa4] sm:$0x1]
        %v1509 = vld [vmem:[#allocation2 + $0xa8] sm:$0xf]
        %v1510 = vld [vmem:[#allocation2 + $0xac] sm:$0xf]
        %v1511 = vld [vmem:[#allocation2 + $0xb0] sm:$0x1]
        %v1512 = vld [vmem:[#allocation2 + $0xb4] sm:$0xf]
        %v1513 = vld [vmem:[#allocation2 + $0xb8] sm:$0xf]
        %v1514 = vld [vmem:[#allocation2 + $0xbc] sm:$0x1]
        %v1515 = vld [vmem:[#allocation2 + $0xc0] sm:$0xf]
        %v1516 = vld [vmem:[#allocation2 + $0xc4] sm:$0xf]
        %v1517 = vld [vmem:[#allocation2 + $0xc8] sm:$0x1]
        %v1518 = vld [vmem:[#allocation2 + $0xcc] sm:$0xf]
        %v1519 = vld [vmem:[#allocation2 + $0xd0] sm:$0xf]
        %v1520 = vld [vmem:[#allocation2 + $0xd4] sm:$0x1]
        %vm1521 = vsmask.f32 3328
        %vm1522 = vsmask.f32 7440
        %vm1523 = vmor %vm1521, %vm1522
        %v1525 = vshrl.u32 %v1467, 16
        %v1527 = vrot.slane %v1525, 4
        %v1528 = vshll.u32 %v1467, 16
        %v1530 = vrot.slane %v1528, 5
        %v1531 = vor.u32 %v1527, %v1530
        %v1532 = vrot.slane %v1531, 4
        %v1534 = vshll.u32 %v1468, 16
        %v1536 = vrot.slane %v1534, 5
        %v1537 = vsel %vm1523, %v1532, %v1536
        %v1538 = vshrl.u32 %v1468, 16
        %v1540 = vrot.slane %v1538, 4
        %v1541 = vor.u32 %v1540, %v1536
        %v1542 = vrot.slane %v1541, 4
        %v1544 = vshll.u32 %v1469, 16
        %v1546 = vrot.slane %v1544, 5
        %v1547 = vsel %vm1523, %v1542, %v1546
        %v1549 = vshrl.u32 %v1470, 16
        %v1551 = vrot.slane %v1549, 4
        %v1552 = vshll.u32 %v1470, 16
        %v1554 = vrot.slane %v1552, 5
        %v1555 = vor.u32 %v1551, %v1554
        %v1556 = vrot.slane %v1555, 4
        %v1558 = vshll.u32 %v1471, 16
        %v1560 = vrot.slane %v1558, 5
        %v1561 = vsel %vm1523, %v1556, %v1560
        %v1562 = vshrl.u32 %v1471, 16
        %v1564 = vrot.slane %v1562, 4
        %v1565 = vor.u32 %v1564, %v1560
        %v1566 = vrot.slane %v1565, 4
        %v1568 = vshll.u32 %v1472, 16
        %v1570 = vrot.slane %v1568, 5
        %v1571 = vsel %vm1523, %v1566, %v1570
        %v1573 = vshrl.u32 %v1473, 16
        %v1575 = vrot.slane %v1573, 4
        %v1576 = vshll.u32 %v1473, 16
        %v1578 = vrot.slane %v1576, 5
        %v1579 = vor.u32 %v1575, %v1578
        %v1580 = vrot.slane %v1579, 4
        %v1582 = vshll.u32 %v1474, 16
        %v1584 = vrot.slane %v1582, 5
        %v1585 = vsel %vm1523, %v1580, %v1584
        %v1586 = vshrl.u32 %v1474, 16
        %v1588 = vrot.slane %v1586, 4
        %v1589 = vor.u32 %v1588, %v1584
        %v1590 = vrot.slane %v1589, 4
        %v1592 = vshll.u32 %v1475, 16
        %v1594 = vrot.slane %v1592, 5
        %v1595 = vsel %vm1523, %v1590, %v1594
        %v1597 = vshrl.u32 %v1476, 16
        %v1599 = vrot.slane %v1597, 4
        %v1600 = vshll.u32 %v1476, 16
        %v1602 = vrot.slane %v1600, 5
        %v1603 = vor.u32 %v1599, %v1602
        %v1604 = vrot.slane %v1603, 4
        %v1606 = vshll.u32 %v1477, 16
        %v1608 = vrot.slane %v1606, 5
        %v1609 = vsel %vm1523, %v1604, %v1608
        %v1610 = vshrl.u32 %v1477, 16
        %v1612 = vrot.slane %v1610, 4
        %v1613 = vor.u32 %v1612, %v1608
        %v1614 = vrot.slane %v1613, 4
        %v1616 = vshll.u32 %v1478, 16
        %v1618 = vrot.slane %v1616, 5
        %v1619 = vsel %vm1523, %v1614, %v1618
        %v1621 = vshrl.u32 %v1479, 16
        %v1623 = vrot.slane %v1621, 4
        %v1624 = vshll.u32 %v1479, 16
        %v1626 = vrot.slane %v1624, 5
        %v1627 = vor.u32 %v1623, %v1626
        %v1628 = vrot.slane %v1627, 4
        %v1630 = vshll.u32 %v1480, 16
        %v1632 = vrot.slane %v1630, 5
        %v1633 = vsel %vm1523, %v1628, %v1632
        %v1634 = vshrl.u32 %v1480, 16
        %v1636 = vrot.slane %v1634, 4
        %v1637 = vor.u32 %v1636, %v1632
        %v1638 = vrot.slane %v1637, 4
        %v1640 = vshll.u32 %v1481, 16
        %v1642 = vrot.slane %v1640, 5
        %v1643 = vsel %vm1523, %v1638, %v1642
        %v1645 = vshrl.u32 %v1482, 16
        %v1647 = vrot.slane %v1645, 4
        %v1648 = vshll.u32 %v1482, 16
        %v1650 = vrot.slane %v1648, 5
        %v1651 = vor.u32 %v1647, %v1650
        %v1652 = vrot.slane %v1651, 4
        %v1654 = vshll.u32 %v1483, 16
        %v1656 = vrot.slane %v1654, 5
        %v1657 = vsel %vm1523, %v1652, %v1656
        %v1658 = vshrl.u32 %v1483, 16
        %v1660 = vrot.slane %v1658, 4
        %v1661 = vor.u32 %v1660, %v1656
        %v1662 = vrot.slane %v1661, 4
        %v1664 = vshll.u32 %v1484, 16
        %v1666 = vrot.slane %v1664, 5
        %v1667 = vsel %vm1523, %v1662, %v1666
        %v1669 = vshrl.u32 %v1485, 16
        %v1671 = vrot.slane %v1669, 4
        %v1672 = vshll.u32 %v1485, 16
        %v1674 = vrot.slane %v1672, 5
        %v1675 = vor.u32 %v1671, %v1674
        %v1676 = vrot.slane %v1675, 4
        %v1678 = vshll.u32 %v1486, 16
        %v1680 = vrot.slane %v1678, 5
        %v1681 = vsel %vm1523, %v1676, %v1680
        %v1682 = vshrl.u32 %v1486, 16
        %v1684 = vrot.slane %v1682, 4
        %v1685 = vor.u32 %v1684, %v1680
        %v1686 = vrot.slane %v1685, 4
        %v1688 = vshll.u32 %v1487, 16
        %v1690 = vrot.slane %v1688, 5
        %v1691 = vsel %vm1523, %v1686, %v1690
        %v1693 = vshrl.u32 %v1488, 16
        %v1695 = vrot.slane %v1693, 4
        %v1696 = vshll.u32 %v1488, 16
        %v1698 = vrot.slane %v1696, 5
        %v1699 = vor.u32 %v1695, %v1698
        %v1700 = vrot.slane %v1699, 4
        %v1702 = vshll.u32 %v1489, 16
        %v1704 = vrot.slane %v1702, 5
        %v1705 = vsel %vm1523, %v1700, %v1704
        %v1706 = vshrl.u32 %v1489, 16
        %v1708 = vrot.slane %v1706, 4
        %v1709 = vor.u32 %v1708, %v1704
        %v1710 = vrot.slane %v1709, 4
        %v1712 = vshll.u32 %v1490, 16
        %v1714 = vrot.slane %v1712, 5
        %v1715 = vsel %vm1523, %v1710, %v1714
        %v1717 = vshrl.u32 %v1491, 16
        %v1719 = vrot.slane %v1717, 4
        %v1720 = vshll.u32 %v1491, 16
        %v1722 = vrot.slane %v1720, 5
        %v1723 = vor.u32 %v1719, %v1722
        %v1724 = vrot.slane %v1723, 4
        %v1726 = vshll.u32 %v1492, 16
        %v1728 = vrot.slane %v1726, 5
        %v1729 = vsel %vm1523, %v1724, %v1728
        %v1730 = vshrl.u32 %v1492, 16
        %v1732 = vrot.slane %v1730, 4
        %v1733 = vor.u32 %v1732, %v1728
        %v1734 = vrot.slane %v1733, 4
        %v1736 = vshll.u32 %v1493, 16
        %v1738 = vrot.slane %v1736, 5
        %v1739 = vsel %vm1523, %v1734, %v1738
        %v1741 = vshrl.u32 %v1494, 16
        %v1743 = vrot.slane %v1741, 4
        %v1744 = vshll.u32 %v1494, 16
        %v1746 = vrot.slane %v1744, 5
        %v1747 = vor.u32 %v1743, %v1746
        %v1748 = vrot.slane %v1747, 4
        %v1750 = vshll.u32 %v1495, 16
        %v1752 = vrot.slane %v1750, 5
        %v1753 = vsel %vm1523, %v1748, %v1752
        %v1754 = vshrl.u32 %v1495, 16
        %v1756 = vrot.slane %v1754, 4
        %v1757 = vor.u32 %v1756, %v1752
        %v1758 = vrot.slane %v1757, 4
        %v1760 = vshll.u32 %v1496, 16
        %v1762 = vrot.slane %v1760, 5
        %v1763 = vsel %vm1523, %v1758, %v1762
        %v1765 = vshrl.u32 %v1497, 16
        %v1767 = vrot.slane %v1765, 4
        %v1768 = vshll.u32 %v1497, 16
        %v1770 = vrot.slane %v1768, 5
        %v1771 = vor.u32 %v1767, %v1770
        %v1772 = vrot.slane %v1771, 4
        %v1774 = vshll.u32 %v1498, 16
        %v1776 = vrot.slane %v1774, 5
        %v1777 = vsel %vm1523, %v1772, %v1776
        %v1778 = vshrl.u32 %v1498, 16
        %v1780 = vrot.slane %v1778, 4
        %v1781 = vor.u32 %v1780, %v1776
        %v1782 = vrot.slane %v1781, 4
        %v1784 = vshll.u32 %v1499, 16
        %v1786 = vrot.slane %v1784, 5
        %v1787 = vsel %vm1523, %v1782, %v1786
        %v1789 = vshrl.u32 %v1500, 16
        %v1791 = vrot.slane %v1789, 4
        %v1792 = vshll.u32 %v1500, 16
        %v1794 = vrot.slane %v1792, 5
        %v1795 = vor.u32 %v1791, %v1794
        %v1796 = vrot.slane %v1795, 4
        %v1798 = vshll.u32 %v1501, 16
        %v1800 = vrot.slane %v1798, 5
        %v1801 = vsel %vm1523, %v1796, %v1800
        %v1802 = vshrl.u32 %v1501, 16
        %v1804 = vrot.slane %v1802, 4
        %v1805 = vor.u32 %v1804, %v1800
        %v1806 = vrot.slane %v1805, 4
        %v1808 = vshll.u32 %v1502, 16
        %v1810 = vrot.slane %v1808, 5
        %v1811 = vsel %vm1523, %v1806, %v1810
        %v1813 = vshrl.u32 %v1503, 16
        %v1815 = vrot.slane %v1813, 4
        %v1816 = vshll.u32 %v1503, 16
        %v1818 = vrot.slane %v1816, 5
        %v1819 = vor.u32 %v1815, %v1818
        %v1820 = vrot.slane %v1819, 4
        %v1822 = vshll.u32 %v1504, 16
        %v1824 = vrot.slane %v1822, 5
        %v1825 = vsel %vm1523, %v1820, %v1824
        %v1826 = vshrl.u32 %v1504, 16
        %v1828 = vrot.slane %v1826, 4
        %v1829 = vor.u32 %v1828, %v1824
        %v1830 = vrot.slane %v1829, 4
        %v1832 = vshll.u32 %v1505, 16
        %v1834 = vrot.slane %v1832, 5
        %v1835 = vsel %vm1523, %v1830, %v1834
        %v1837 = vshrl.u32 %v1506, 16
        %v1839 = vrot.slane %v1837, 4
        %v1840 = vshll.u32 %v1506, 16
        %v1842 = vrot.slane %v1840, 5
        %v1843 = vor.u32 %v1839, %v1842
        %v1844 = vrot.slane %v1843, 4
        %v1846 = vshll.u32 %v1507, 16
        %v1848 = vrot.slane %v1846, 5
        %v1849 = vsel %vm1523, %v1844, %v1848
        %v1850 = vshrl.u32 %v1507, 16
        %v1852 = vrot.slane %v1850, 4
        %v1853 = vor.u32 %v1852, %v1848
        %v1854 = vrot.slane %v1853, 4
        %v1856 = vshll.u32 %v1508, 16
        %v1858 = vrot.slane %v1856, 5
        %v1859 = vsel %vm1523, %v1854, %v1858
        %v1861 = vshrl.u32 %v1509, 16
        %v1863 = vrot.slane %v1861, 4
        %v1864 = vshll.u32 %v1509, 16
        %v1866 = vrot.slane %v1864, 5
        %v1867 = vor.u32 %v1863, %v1866
        %v1868 = vrot.slane %v1867, 4
        %v1870 = vshll.u32 %v1510, 16
        %v1872 = vrot.slane %v1870, 5
        %v1873 = vsel %vm1523, %v1868, %v1872
        %v1874 = vshrl.u32 %v1510, 16
        %v1876 = vrot.slane %v1874, 4
        %v1877 = vor.u32 %v1876, %v1872
        %v1878 = vrot.slane %v1877, 4
        %v1880 = vshll.u32 %v1511, 16
        %v1882 = vrot.slane %v1880, 5
        %v1883 = vsel %vm1523, %v1878, %v1882
        %v1885 = vshrl.u32 %v1512, 16
        %v1887 = vrot.slane %v1885, 4
        %v1888 = vshll.u32 %v1512, 16
        %v1890 = vrot.slane %v1888, 5
        %v1891 = vor.u32 %v1887, %v1890
        %v1892 = vrot.slane %v1891, 4
        %v1894 = vshll.u32 %v1513, 16
        %v1896 = vrot.slane %v1894, 5
        %v1897 = vsel %vm1523, %v1892, %v1896
        %v1898 = vshrl.u32 %v1513, 16
        %v1900 = vrot.slane %v1898, 4
        %v1901 = vor.u32 %v1900, %v1896
        %v1902 = vrot.slane %v1901, 4
        %v1904 = vshll.u32 %v1514, 16
        %v1906 = vrot.slane %v1904, 5
        %v1907 = vsel %vm1523, %v1902, %v1906
        %v1908 = vld [vmem:[%s1 + $0x4] sm:$0xf]
        %v1909 = vunpack.c.l.b16 %v1537
        %v1910 = vunpack.c.l.b16 %v1547
        %v1911 = vunpack.c.l.b16 %v1561
        %v1912 = vunpack.c.l.b16 %v1571
        %v1913 = vunpack.c.l.b16 %v1585
        %v1914 = vunpack.c.l.b16 %v1595
        %v1915 = vunpack.c.l.b16 %v1609
        %v1916 = vunpack.c.l.b16 %v1619
        %v1917 = vunpack.c.l.b16 %v1633
        %v1918 = vunpack.c.l.b16 %v1643
        %v1919 = vunpack.c.l.b16 %v1657
        %v1920 = vunpack.c.l.b16 %v1667
        %v1921 = vunpack.c.l.b16 %v1681
        %v1922 = vunpack.c.l.b16 %v1691
        %v1923 = vunpack.c.l.b16 %v1705
        %v1924 = vunpack.c.l.b16 %v1715
        %v1925 = vunpack.c.l.b16 %v1729
        %v1926 = vunpack.c.l.b16 %v1739
        %v1927 = vunpack.c.l.b16 %v1753
        %v1928 = vunpack.c.l.b16 %v1763
        %v1929 = vunpack.c.l.b16 %v1777
        %v1930 = vunpack.c.l.b16 %v1787
        %v1931 = vunpack.c.l.b16 %v1801
        %v1932 = vunpack.c.l.b16 %v1811
        %v1933 = vunpack.c.l.b16 %v1825
        %v1934 = vunpack.c.l.b16 %v1835
        %v1935 = vunpack.c.l.b16 %v1849
        %v1936 = vunpack.c.l.b16 %v1859
        %v1937 = vunpack.c.l.b16 %v1873
        %v1938 = vunpack.c.l.b16 %v1883
        %v1939 = vunpack.c.l.b16 %v1897
        %v1940 = vunpack.c.l.b16 %v1907
        %v1941 = vpack.c.b16 %v1910, %v1909
        %v1942 = vpack.c.b16 %v1912, %v1911
        %v1943 = vpack.c.b16 %v1914, %v1913
        %v1944 = vpack.c.b16 %v1916, %v1915
        %v1945 = vpack.c.b16 %v1918, %v1917
        %v1946 = vpack.c.b16 %v1920, %v1919
        %v1947 = vpack.c.b16 %v1922, %v1921
        %v1948 = vpack.c.b16 %v1924, %v1923
        %v1949 = vpack.c.b16 %v1926, %v1925
        %v1950 = vpack.c.b16 %v1928, %v1927
        %v1951 = vpack.c.b16 %v1930, %v1929
        %v1952 = vpack.c.b16 %v1932, %v1931
        %v1953 = vpack.c.b16 %v1934, %v1933
        %v1954 = vpack.c.b16 %v1936, %v1935
        %v1955 = vpack.c.b16 %v1938, %v1937
        %v1956 = vpack.c.b16 %v1940, %v1939
        %v1958 = vsel %vm1092, %v1941, 0
        %v1961 = vsel %vm1092, %v1942, 0
        %v1964 = vsel %vm1092, %v1943, 0
        %v1967 = vsel %vm1092, %v1944, 0
        %v1970 = vsel %vm1092, %v1945, 0
        %v1973 = vsel %vm1092, %v1946, 0
        %v1976 = vsel %vm1092, %v1947, 0
        %v1979 = vsel %vm1092, %v1948, 0
        %v1982 = vsel %vm1092, %v1949, 0
        %v1985 = vsel %vm1092, %v1950, 0
        %v1988 = vsel %vm1092, %v1951, 0
        %v1991 = vsel %vm1092, %v1952, 0
        %v1994 = vsel %vm1092, %v1953, 0
        %v1997 = vsel %vm1092, %v1954, 0
        %v2000 = vsel %vm1092, %v1955, 0
        %v2003 = vsel %vm1092, %v1956, 0
        %v2006 = vsel %vm1141, %v1908, 0
        %2008 = vmatpush.bf16.msra.mxu0 0
        %2009 = vmatpush.bf16.msra.mxu0 0
        %2010 = vmatpush.bf16.msra.mxu0 0
        %2011 = vmatpush.bf16.msra.mxu0 0
        %2012 = vmatpush.bf16.msra.mxu0 0
        %2013 = vmatpush.bf16.msra.mxu0 0
        %2014 = vmatpush.bf16.msra.mxu0 0
        %2015 = vmatpush.bf16.msra.mxu0 %v2006
        %2016 = vmatmul.bf16.gmra.mxu0 %v1958
        %v2017 = vpop.f32.mrf.mxu0
        %v2018 = vadd.f32 0.0, %v2017
        %v2019 = vpop.f32.mrf.mxu0
        %v2020 = vadd.f32 0.0, %v2019
        %2021 = vmatmul.bf16.gmra.mxu0 %v1961
        %v2022 = vpop.f32.mrf.mxu0
        %v2023 = vadd.f32 0.0, %v2022
        %v2024 = vpop.f32.mrf.mxu0
        %v2025 = vadd.f32 0.0, %v2024
        %2026 = vmatmul.bf16.gmra.mxu0 %v1964
        %v2027 = vpop.f32.mrf.mxu0
        %v2028 = vadd.f32 0.0, %v2027
        %v2029 = vpop.f32.mrf.mxu0
        %v2030 = vadd.f32 0.0, %v2029
        %2031 = vmatmul.bf16.gmra.mxu0 %v1967
        %v2032 = vpop.f32.mrf.mxu0
        %v2033 = vadd.f32 0.0, %v2032
        %v2034 = vpop.f32.mrf.mxu0
        %v2035 = vadd.f32 0.0, %v2034
        %2036 = vmatmul.bf16.gmra.mxu0 %v1970
        %v2037 = vpop.f32.mrf.mxu0
        %v2038 = vadd.f32 0.0, %v2037
        %v2039 = vpop.f32.mrf.mxu0
        %v2040 = vadd.f32 0.0, %v2039
        %2041 = vmatmul.bf16.gmra.mxu0 %v1973
        %v2042 = vpop.f32.mrf.mxu0
        %v2043 = vadd.f32 0.0, %v2042
        %v2044 = vpop.f32.mrf.mxu0
        %v2045 = vadd.f32 0.0, %v2044
        %2046 = vmatmul.bf16.gmra.mxu0 %v1976
        %v2047 = vpop.f32.mrf.mxu0
        %v2048 = vadd.f32 0.0, %v2047
        %v2049 = vpop.f32.mrf.mxu0
        %v2050 = vadd.f32 0.0, %v2049
        %2051 = vmatmul.bf16.gmra.mxu0 %v1979
        %v2052 = vpop.f32.mrf.mxu0
        %v2053 = vadd.f32 0.0, %v2052
        %v2054 = vpop.f32.mrf.mxu0
        %v2055 = vadd.f32 0.0, %v2054
        %2056 = vmatmul.bf16.gmra.mxu0 %v1982
        %v2057 = vpop.f32.mrf.mxu0
        %v2058 = vadd.f32 0.0, %v2057
        %v2059 = vpop.f32.mrf.mxu0
        %v2060 = vadd.f32 0.0, %v2059
        %2061 = vmatmul.bf16.gmra.mxu0 %v1985
        %v2062 = vpop.f32.mrf.mxu0
        %v2063 = vadd.f32 0.0, %v2062
        %v2064 = vpop.f32.mrf.mxu0
        %v2065 = vadd.f32 0.0, %v2064
        %2066 = vmatmul.bf16.gmra.mxu0 %v1988
        %v2067 = vpop.f32.mrf.mxu0
        %v2068 = vadd.f32 0.0, %v2067
        %v2069 = vpop.f32.mrf.mxu0
        %v2070 = vadd.f32 0.0, %v2069
        %2071 = vmatmul.bf16.gmra.mxu0 %v1991
        %v2072 = vpop.f32.mrf.mxu0
        %v2073 = vadd.f32 0.0, %v2072
        %v2074 = vpop.f32.mrf.mxu0
        %v2075 = vadd.f32 0.0, %v2074
        %2076 = vmatmul.bf16.gmra.mxu0 %v1994
        %v2077 = vpop.f32.mrf.mxu0
        %v2078 = vadd.f32 0.0, %v2077
        %v2079 = vpop.f32.mrf.mxu0
        %v2080 = vadd.f32 0.0, %v2079
        %2081 = vmatmul.bf16.gmra.mxu0 %v1997
        %v2082 = vpop.f32.mrf.mxu0
        %v2083 = vadd.f32 0.0, %v2082
        %v2084 = vpop.f32.mrf.mxu0
        %v2085 = vadd.f32 0.0, %v2084
        %2086 = vmatmul.bf16.gmra.mxu0 %v2000
        %v2087 = vpop.f32.mrf.mxu0
        %v2088 = vadd.f32 0.0, %v2087
        %v2089 = vpop.f32.mrf.mxu0
        %v2090 = vadd.f32 0.0, %v2089
        %2091 = vmatmul.bf16.gmra.mxu0 %v2003
        %v2092 = vpop.f32.mrf.mxu0
        %v2093 = vadd.f32 0.0, %v2092
        %v2094 = vpop.f32.mrf.mxu0
        %v2095 = vadd.f32 0.0, %v2094
        %2096 = vdwg.mxu0
        %v2097 = vadd.f32 %v1435, %v2018
        %v2098 = vadd.f32 %v1436, %v2020
        %v2099 = vadd.f32 %v1437, %v2023
        %v2100 = vadd.f32 %v1438, %v2025
        %v2101 = vadd.f32 %v1439, %v2028
        %v2102 = vadd.f32 %v1440, %v2030
        %v2103 = vadd.f32 %v1441, %v2033
        %v2104 = vadd.f32 %v1442, %v2035
        %v2105 = vadd.f32 %v1443, %v2038
        %v2106 = vadd.f32 %v1444, %v2040
        %v2107 = vadd.f32 %v1445, %v2043
        %v2108 = vadd.f32 %v1446, %v2045
        %v2109 = vadd.f32 %v1447, %v2048
        %v2110 = vadd.f32 %v1448, %v2050
        %v2111 = vadd.f32 %v1449, %v2053
        %v2112 = vadd.f32 %v1450, %v2055
        %v2113 = vadd.f32 %v1451, %v2058
        %v2114 = vadd.f32 %v1452, %v2060
        %v2115 = vadd.f32 %v1453, %v2063
        %v2116 = vadd.f32 %v1454, %v2065
        %v2117 = vadd.f32 %v1455, %v2068
        %v2118 = vadd.f32 %v1456, %v2070
        %v2119 = vadd.f32 %v1457, %v2073
        %v2120 = vadd.f32 %v1458, %v2075
        %v2121 = vadd.f32 %v1459, %v2078
        %v2122 = vadd.f32 %v1460, %v2080
        %v2123 = vadd.f32 %v1461, %v2083
        %v2124 = vadd.f32 %v1462, %v2085
        %v2125 = vadd.f32 %v1463, %v2088
        %v2126 = vadd.f32 %v1464, %v2090
        %v2127 = vadd.f32 %v1465, %v2093
        %v2128 = vadd.f32 %v1466, %v2095
        %v2130 = vshrl.u32 %v1515, 16
        %v2132 = vrot.slane %v2130, 4
        %v2133 = vshll.u32 %v1515, 16
        %v2135 = vrot.slane %v2133, 5
        %v2136 = vor.u32 %v2132, %v2135
        %v2137 = vrot.slane %v2136, 4
        %v2139 = vshll.u32 %v1516, 16
        %v2141 = vrot.slane %v2139, 5
        %v2142 = vsel %vm1523, %v2137, %v2141
        %v2143 = vshrl.u32 %v1516, 16
        %v2145 = vrot.slane %v2143, 4
        %v2146 = vor.u32 %v2145, %v2141
        %v2147 = vrot.slane %v2146, 4
        %v2149 = vshll.u32 %v1517, 16
        %v2151 = vrot.slane %v2149, 5
        %v2152 = vsel %vm1523, %v2147, %v2151
        %v2153 = vld [vmem:[%s1 + $0x10] sm:$0xf]
        %v2154 = vunpack.c.l.b16 %v2142
        %v2155 = vunpack.c.l.b16 %v2152
        %v2156 = vpack.c.b16 %v2155, %v2154
        %v2158 = vsel %vm1092, %v2156, 0
        %v2161 = vsel %vm1141, %v2153, 0
        %2163 = vmatpush.bf16.msra.mxu0 0
        %2164 = vmatpush.bf16.msra.mxu0 0
        %2165 = vmatpush.bf16.msra.mxu0 0
        %2166 = vmatpush.bf16.msra.mxu0 0
        %2167 = vmatpush.bf16.msra.mxu0 0
        %2168 = vmatpush.bf16.msra.mxu0 0
        %2169 = vmatpush.bf16.msra.mxu0 0
        %2170 = vmatpush.bf16.msra.mxu0 %v2161
        %2171 = vmatmul.bf16.gmra.mxu0 %v1961
        %v2172 = vpop.f32.mrf.mxu0
        %v2173 = vadd.f32 0.0, %v2172
        %v2174 = vpop.f32.mrf.mxu0
        %v2175 = vadd.f32 0.0, %v2174
        %2176 = vmatmul.bf16.gmra.mxu0 %v1964
        %v2177 = vpop.f32.mrf.mxu0
        %v2178 = vadd.f32 0.0, %v2177
        %v2179 = vpop.f32.mrf.mxu0
        %v2180 = vadd.f32 0.0, %v2179
        %2181 = vmatmul.bf16.gmra.mxu0 %v1967
        %v2182 = vpop.f32.mrf.mxu0
        %v2183 = vadd.f32 0.0, %v2182
        %v2184 = vpop.f32.mrf.mxu0
        %v2185 = vadd.f32 0.0, %v2184
        %2186 = vmatmul.bf16.gmra.mxu0 %v1970
        %v2187 = vpop.f32.mrf.mxu0
        %v2188 = vadd.f32 0.0, %v2187
        %v2189 = vpop.f32.mrf.mxu0
        %v2190 = vadd.f32 0.0, %v2189
        %2191 = vmatmul.bf16.gmra.mxu0 %v1973
        %v2192 = vpop.f32.mrf.mxu0
        %v2193 = vadd.f32 0.0, %v2192
        %v2194 = vpop.f32.mrf.mxu0
        %v2195 = vadd.f32 0.0, %v2194
        %2196 = vmatmul.bf16.gmra.mxu0 %v1976
        %v2197 = vpop.f32.mrf.mxu0
        %v2198 = vadd.f32 0.0, %v2197
        %v2199 = vpop.f32.mrf.mxu0
        %v2200 = vadd.f32 0.0, %v2199
        %2201 = vmatmul.bf16.gmra.mxu0 %v1979
        %v2202 = vpop.f32.mrf.mxu0
        %v2203 = vadd.f32 0.0, %v2202
        %v2204 = vpop.f32.mrf.mxu0
        %v2205 = vadd.f32 0.0, %v2204
        %2206 = vmatmul.bf16.gmra.mxu0 %v1982
        %v2207 = vpop.f32.mrf.mxu0
        %v2208 = vadd.f32 0.0, %v2207
        %v2209 = vpop.f32.mrf.mxu0
        %v2210 = vadd.f32 0.0, %v2209
        %2211 = vmatmul.bf16.gmra.mxu0 %v1985
        %v2212 = vpop.f32.mrf.mxu0
        %v2213 = vadd.f32 0.0, %v2212
        %v2214 = vpop.f32.mrf.mxu0
        %v2215 = vadd.f32 0.0, %v2214
        %2216 = vmatmul.bf16.gmra.mxu0 %v1988
        %v2217 = vpop.f32.mrf.mxu0
        %v2218 = vadd.f32 0.0, %v2217
        %v2219 = vpop.f32.mrf.mxu0
        %v2220 = vadd.f32 0.0, %v2219
        %2221 = vmatmul.bf16.gmra.mxu0 %v1991
        %v2222 = vpop.f32.mrf.mxu0
        %v2223 = vadd.f32 0.0, %v2222
        %v2224 = vpop.f32.mrf.mxu0
        %v2225 = vadd.f32 0.0, %v2224
        %2226 = vmatmul.bf16.gmra.mxu0 %v1994
        %v2227 = vpop.f32.mrf.mxu0
        %v2228 = vadd.f32 0.0, %v2227
        %v2229 = vpop.f32.mrf.mxu0
        %v2230 = vadd.f32 0.0, %v2229
        %2231 = vmatmul.bf16.gmra.mxu0 %v1997
        %v2232 = vpop.f32.mrf.mxu0
        %v2233 = vadd.f32 0.0, %v2232
        %v2234 = vpop.f32.mrf.mxu0
        %v2235 = vadd.f32 0.0, %v2234
        %2236 = vmatmul.bf16.gmra.mxu0 %v2000
        %v2237 = vpop.f32.mrf.mxu0
        %v2238 = vadd.f32 0.0, %v2237
        %v2239 = vpop.f32.mrf.mxu0
        %v2240 = vadd.f32 0.0, %v2239
        %2241 = vmatmul.bf16.gmra.mxu0 %v2003
        %v2242 = vpop.f32.mrf.mxu0
        %v2243 = vadd.f32 0.0, %v2242
        %v2244 = vpop.f32.mrf.mxu0
        %v2245 = vadd.f32 0.0, %v2244
        %2246 = vmatmul.bf16.gmra.mxu0 %v2158
        %v2247 = vpop.f32.mrf.mxu0
        %v2248 = vadd.f32 0.0, %v2247
        %v2249 = vpop.f32.mrf.mxu0
        %v2250 = vadd.f32 0.0, %v2249
        %2251 = vdwg.mxu0
        %v2252 = vadd.f32 %v2097, %v2173
        %v2253 = vadd.f32 %v2098, %v2175
        %v2254 = vadd.f32 %v2099, %v2178
        %v2255 = vadd.f32 %v2100, %v2180
        %v2256 = vadd.f32 %v2101, %v2183
        %v2257 = vadd.f32 %v2102, %v2185
        %v2258 = vadd.f32 %v2103, %v2188
        %v2259 = vadd.f32 %v2104, %v2190
        %v2260 = vadd.f32 %v2105, %v2193
        %v2261 = vadd.f32 %v2106, %v2195
        %v2262 = vadd.f32 %v2107, %v2198
        %v2263 = vadd.f32 %v2108, %v2200
        %v2264 = vadd.f32 %v2109, %v2203
        %v2265 = vadd.f32 %v2110, %v2205
        %v2266 = vadd.f32 %v2111, %v2208
        %v2267 = vadd.f32 %v2112, %v2210
        %v2268 = vadd.f32 %v2113, %v2213
        %v2269 = vadd.f32 %v2114, %v2215
        %v2270 = vadd.f32 %v2115, %v2218
        %v2271 = vadd.f32 %v2116, %v2220
        %v2272 = vadd.f32 %v2117, %v2223
        %v2273 = vadd.f32 %v2118, %v2225
        %v2274 = vadd.f32 %v2119, %v2228
        %v2275 = vadd.f32 %v2120, %v2230
        %v2276 = vadd.f32 %v2121, %v2233
        %v2277 = vadd.f32 %v2122, %v2235
        %v2278 = vadd.f32 %v2123, %v2238
        %v2279 = vadd.f32 %v2124, %v2240
        %v2280 = vadd.f32 %v2125, %v2243
        %v2281 = vadd.f32 %v2126, %v2245
        %v2282 = vadd.f32 %v2127, %v2248
        %v2283 = vadd.f32 %v2128, %v2250
        %v2285 = vshrl.u32 %v1518, 16
        %v2287 = vrot.slane %v2285, 4
        %v2288 = vshll.u32 %v1518, 16
        %v2290 = vrot.slane %v2288, 5
        %v2291 = vor.u32 %v2287, %v2290
        %v2292 = vrot.slane %v2291, 4
        %v2294 = vshll.u32 %v1519, 16
        %v2296 = vrot.slane %v2294, 5
        %v2297 = vsel %vm1523, %v2292, %v2296
        %v2298 = vshrl.u32 %v1519, 16
        %v2300 = vrot.slane %v2298, 4
        %v2301 = vor.u32 %v2300, %v2296
        %v2302 = vrot.slane %v2301, 4
        %v2304 = vshll.u32 %v1520, 16
        %v2306 = vrot.slane %v2304, 5
        %v2307 = vsel %vm1523, %v2302, %v2306
        %v2308 = vld [vmem:[%s1 + $0x1c] sm:$0xf]
        %v2309 = vunpack.c.l.b16 %v2297
        %v2310 = vunpack.c.l.b16 %v2307
        %v2311 = vpack.c.b16 %v2310, %v2309
        %v2313 = vsel %vm1092, %v2311, 0
        %v2316 = vsel %vm1141, %v2308, 0
        %2318 = vmatpush.bf16.msra.mxu0 0
        %2319 = vmatpush.bf16.msra.mxu0 0
        %2320 = vmatpush.bf16.msra.mxu0 0
        %2321 = vmatpush.bf16.msra.mxu0 0
        %2322 = vmatpush.bf16.msra.mxu0 0
        %2323 = vmatpush.bf16.msra.mxu0 0
        %2324 = vmatpush.bf16.msra.mxu0 0
        %2325 = vmatpush.bf16.msra.mxu0 %v2316
        %2326 = vmatmul.bf16.gmra.mxu0 %v1964
        %v2327 = vpop.f32.mrf.mxu0
        %v2328 = vadd.f32 0.0, %v2327
        %v2329 = vpop.f32.mrf.mxu0
        %v2330 = vadd.f32 0.0, %v2329
        %2331 = vmatmul.bf16.gmra.mxu0 %v1967
        %v2332 = vpop.f32.mrf.mxu0
        %v2333 = vadd.f32 0.0, %v2332
        %v2334 = vpop.f32.mrf.mxu0
        %v2335 = vadd.f32 0.0, %v2334
        %2336 = vmatmul.bf16.gmra.mxu0 %v1970
        %v2337 = vpop.f32.mrf.mxu0
        %v2338 = vadd.f32 0.0, %v2337
        %v2339 = vpop.f32.mrf.mxu0
        %v2340 = vadd.f32 0.0, %v2339
        %2341 = vmatmul.bf16.gmra.mxu0 %v1973
        %v2342 = vpop.f32.mrf.mxu0
        %v2343 = vadd.f32 0.0, %v2342
        %v2344 = vpop.f32.mrf.mxu0
        %v2345 = vadd.f32 0.0, %v2344
        %2346 = vmatmul.bf16.gmra.mxu0 %v1976
        %v2347 = vpop.f32.mrf.mxu0
        %v2348 = vadd.f32 0.0, %v2347
        %v2349 = vpop.f32.mrf.mxu0
        %v2350 = vadd.f32 0.0, %v2349
        %2351 = vmatmul.bf16.gmra.mxu0 %v1979
        %v2352 = vpop.f32.mrf.mxu0
        %v2353 = vadd.f32 0.0, %v2352
        %v2354 = vpop.f32.mrf.mxu0
        %v2355 = vadd.f32 0.0, %v2354
        %2356 = vmatmul.bf16.gmra.mxu0 %v1982
        %v2357 = vpop.f32.mrf.mxu0
        %v2358 = vadd.f32 0.0, %v2357
        %v2359 = vpop.f32.mrf.mxu0
        %v2360 = vadd.f32 0.0, %v2359
        %2361 = vmatmul.bf16.gmra.mxu0 %v1985
        %v2362 = vpop.f32.mrf.mxu0
        %v2363 = vadd.f32 0.0, %v2362
        %v2364 = vpop.f32.mrf.mxu0
        %v2365 = vadd.f32 0.0, %v2364
        %2366 = vmatmul.bf16.gmra.mxu0 %v1988
        %v2367 = vpop.f32.mrf.mxu0
        %v2368 = vadd.f32 0.0, %v2367
        %v2369 = vpop.f32.mrf.mxu0
        %v2370 = vadd.f32 0.0, %v2369
        %2371 = vmatmul.bf16.gmra.mxu0 %v1991
        %v2372 = vpop.f32.mrf.mxu0
        %v2373 = vadd.f32 0.0, %v2372
        %v2374 = vpop.f32.mrf.mxu0
        %v2375 = vadd.f32 0.0, %v2374
        %2376 = vmatmul.bf16.gmra.mxu0 %v1994
        %v2377 = vpop.f32.mrf.mxu0
        %v2378 = vadd.f32 0.0, %v2377
        %v2379 = vpop.f32.mrf.mxu0
        %v2380 = vadd.f32 0.0, %v2379
        %2381 = vmatmul.bf16.gmra.mxu0 %v1997
        %v2382 = vpop.f32.mrf.mxu0
        %v2383 = vadd.f32 0.0, %v2382
        %v2384 = vpop.f32.mrf.mxu0
        %v2385 = vadd.f32 0.0, %v2384
        %2386 = vmatmul.bf16.gmra.mxu0 %v2000
        %v2387 = vpop.f32.mrf.mxu0
        %v2388 = vadd.f32 0.0, %v2387
        %v2389 = vpop.f32.mrf.mxu0
        %v2390 = vadd.f32 0.0, %v2389
        %2391 = vmatmul.bf16.gmra.mxu0 %v2003
        %v2392 = vpop.f32.mrf.mxu0
        %v2393 = vadd.f32 0.0, %v2392
        %v2394 = vpop.f32.mrf.mxu0
        %v2395 = vadd.f32 0.0, %v2394
        %2396 = vmatmul.bf16.gmra.mxu0 %v2158
        %v2397 = vpop.f32.mrf.mxu0
        %v2398 = vadd.f32 0.0, %v2397
        %v2399 = vpop.f32.mrf.mxu0
        %v2400 = vadd.f32 0.0, %v2399
        %2401 = vmatmul.bf16.gmra.mxu0 %v2313
        %v2402 = vpop.f32.mrf.mxu0
        %v2403 = vadd.f32 0.0, %v2402
        %v2404 = vpop.f32.mrf.mxu0
        %v2405 = vadd.f32 0.0, %v2404
        %2406 = vdwg.mxu0
        %v2407 = vadd.f32 %v2252, %v2328
        %v2408 = vadd.f32 %v2253, %v2330
        %v2409 = vadd.f32 %v2254, %v2333
        %v2410 = vadd.f32 %v2255, %v2335
        %v2411 = vadd.f32 %v2256, %v2338
        %v2412 = vadd.f32 %v2257, %v2340
        %v2413 = vadd.f32 %v2258, %v2343
        %v2414 = vadd.f32 %v2259, %v2345
        %v2415 = vadd.f32 %v2260, %v2348
        %v2416 = vadd.f32 %v2261, %v2350
        %v2417 = vadd.f32 %v2262, %v2353
        %v2418 = vadd.f32 %v2263, %v2355
        %v2419 = vadd.f32 %v2264, %v2358
        %v2420 = vadd.f32 %v2265, %v2360
        %v2421 = vadd.f32 %v2266, %v2363
        %v2422 = vadd.f32 %v2267, %v2365
        %v2423 = vadd.f32 %v2268, %v2368
        %v2424 = vadd.f32 %v2269, %v2370
        %v2425 = vadd.f32 %v2270, %v2373
        %v2426 = vadd.f32 %v2271, %v2375
        %v2427 = vadd.f32 %v2272, %v2378
        %v2428 = vadd.f32 %v2273, %v2380
        %v2429 = vadd.f32 %v2274, %v2383
        %v2430 = vadd.f32 %v2275, %v2385
        %v2431 = vadd.f32 %v2276, %v2388
        %v2432 = vadd.f32 %v2277, %v2390
        %v2433 = vadd.f32 %v2278, %v2393
        %v2434 = vadd.f32 %v2279, %v2395
        %v2435 = vadd.f32 %v2280, %v2398
        %v2436 = vadd.f32 %v2281, %v2400
        %v2437 = vadd.f32 %v2282, %v2403
        %v2438 = vadd.f32 %v2283, %v2405
        %v2439 = vld [vmem:[#allocation2] sm:$0xe]
        %v2440 = vld [vmem:[#allocation2 + $0xc] sm:$0xe]
        %v2441 = vld [vmem:[#allocation2 + $0x18] sm:$0xe]
        %v2442 = vld [vmem:[#allocation2 + $0x24] sm:$0xe]
        %v2443 = vld [vmem:[#allocation2 + $0x30] sm:$0xe]
        %v2444 = vld [vmem:[#allocation2 + $0x3c] sm:$0xe]
        %v2445 = vld [vmem:[#allocation2 + $0x48] sm:$0xe]
        %v2446 = vld [vmem:[#allocation2 + $0x54] sm:$0xe]
        %v2447 = vld [vmem:[#allocation2 + $0x60] sm:$0xe]
        %v2448 = vld [vmem:[#allocation2 + $0x6c] sm:$0xe]
        %v2449 = vld [vmem:[#allocation2 + $0x78] sm:$0xe]
        %v2450 = vld [vmem:[#allocation2 + $0x84] sm:$0xe]
        %v2451 = vld [vmem:[#allocation2 + $0x90] sm:$0xe]
        %v2452 = vld [vmem:[#allocation2 + $0x9c] sm:$0xe]
        %v2453 = vld [vmem:[#allocation2 + $0xa8] sm:$0xe]
        %v2454 = vld [vmem:[#allocation2 + $0xb4] sm:$0xe]
        %v2455 = vld [vmem:[#allocation2 + $0xc0] sm:$0xe]
        %v2456 = vld [vmem:[#allocation2 + $0xcc] sm:$0xe]
        %vm2505 = vcmask 1042432
        %vm2506 = vcmask 1046532
        %vm2507 = vmor %vm2505, %vm2506
        %v2508 = vrot.slane %v2439, 5
        %v2509 = vrot.slane %v2508, 4
        %v2510 = vrot.slane %v1468, 5
        %v2511 = vsel %vm2507, %v2509, %v2510
        %v2512 = vrot.slane %v2510, 4
        %v2513 = vrot.slane %v1469, 5
        %v2514 = vsel %vm2507, %v2512, %v2513
        %v2515 = vrot.slane %v2440, 5
        %v2516 = vrot.slane %v2515, 4
        %v2517 = vrot.slane %v1471, 5
        %v2518 = vsel %vm2507, %v2516, %v2517
        %v2519 = vrot.slane %v2517, 4
        %v2520 = vrot.slane %v1472, 5
        %v2521 = vsel %vm2507, %v2519, %v2520
        %v2522 = vrot.slane %v2441, 5
        %v2523 = vrot.slane %v2522, 4
        %v2524 = vrot.slane %v1474, 5
        %v2525 = vsel %vm2507, %v2523, %v2524
        %v2526 = vrot.slane %v2524, 4
        %v2527 = vrot.slane %v1475, 5
        %v2528 = vsel %vm2507, %v2526, %v2527
        %v2529 = vrot.slane %v2442, 5
        %v2530 = vrot.slane %v2529, 4
        %v2531 = vrot.slane %v1477, 5
        %v2532 = vsel %vm2507, %v2530, %v2531
        %v2533 = vrot.slane %v2531, 4
        %v2534 = vrot.slane %v1478, 5
        %v2535 = vsel %vm2507, %v2533, %v2534
        %v2536 = vrot.slane %v2443, 5
        %v2537 = vrot.slane %v2536, 4
        %v2538 = vrot.slane %v1480, 5
        %v2539 = vsel %vm2507, %v2537, %v2538
        %v2540 = vrot.slane %v2538, 4
        %v2541 = vrot.slane %v1481, 5
        %v2542 = vsel %vm2507, %v2540, %v2541
        %v2543 = vrot.slane %v2444, 5
        %v2544 = vrot.slane %v2543, 4
        %v2545 = vrot.slane %v1483, 5
        %v2546 = vsel %vm2507, %v2544, %v2545
        %v2547 = vrot.slane %v2545, 4
        %v2548 = vrot.slane %v1484, 5
        %v2549 = vsel %vm2507, %v2547, %v2548
        %v2550 = vrot.slane %v2445, 5
        %v2551 = vrot.slane %v2550, 4
        %v2552 = vrot.slane %v1486, 5
        %v2553 = vsel %vm2507, %v2551, %v2552
        %v2554 = vrot.slane %v2552, 4
        %v2555 = vrot.slane %v1487, 5
        %v2556 = vsel %vm2507, %v2554, %v2555
        %v2557 = vrot.slane %v2446, 5
        %v2558 = vrot.slane %v2557, 4
        %v2559 = vrot.slane %v1489, 5
        %v2560 = vsel %vm2507, %v2558, %v2559
        %v2561 = vrot.slane %v2559, 4
        %v2562 = vrot.slane %v1490, 5
        %v2563 = vsel %vm2507, %v2561, %v2562
        %v2564 = vrot.slane %v2447, 5
        %v2565 = vrot.slane %v2564, 4
        %v2566 = vrot.slane %v1492, 5
        %v2567 = vsel %vm2507, %v2565, %v2566
        %v2568 = vrot.slane %v2566, 4
        %v2569 = vrot.slane %v1493, 5
        %v2570 = vsel %vm2507, %v2568, %v2569
        %v2571 = vrot.slane %v2448, 5
        %v2572 = vrot.slane %v2571, 4
        %v2573 = vrot.slane %v1495, 5
        %v2574 = vsel %vm2507, %v2572, %v2573
        %v2575 = vrot.slane %v2573, 4
        %v2576 = vrot.slane %v1496, 5
        %v2577 = vsel %vm2507, %v2575, %v2576
        %v2578 = vrot.slane %v2449, 5
        %v2579 = vrot.slane %v2578, 4
        %v2580 = vrot.slane %v1498, 5
        %v2581 = vsel %vm2507, %v2579, %v2580
        %v2582 = vrot.slane %v2580, 4
        %v2583 = vrot.slane %v1499, 5
        %v2584 = vsel %vm2507, %v2582, %v2583
        %v2585 = vrot.slane %v2450, 5
        %v2586 = vrot.slane %v2585, 4
        %v2587 = vrot.slane %v1501, 5
        %v2588 = vsel %vm2507, %v2586, %v2587
        %v2589 = vrot.slane %v2587, 4
        %v2590 = vrot.slane %v1502, 5
        %v2591 = vsel %vm2507, %v2589, %v2590
        %v2592 = vrot.slane %v2451, 5
        %v2593 = vrot.slane %v2592, 4
        %v2594 = vrot.slane %v1504, 5
        %v2595 = vsel %vm2507, %v2593, %v2594
        %v2596 = vrot.slane %v2594, 4
        %v2597 = vrot.slane %v1505, 5
        %v2598 = vsel %vm2507, %v2596, %v2597
        %v2599 = vrot.slane %v2452, 5
        %v2600 = vrot.slane %v2599, 4
        %v2601 = vrot.slane %v1507, 5
        %v2602 = vsel %vm2507, %v2600, %v2601
        %v2603 = vrot.slane %v2601, 4
        %v2604 = vrot.slane %v1508, 5
        %v2605 = vsel %vm2507, %v2603, %v2604
        %v2606 = vrot.slane %v2453, 5
        %v2607 = vrot.slane %v2606, 4
        %v2608 = vrot.slane %v1510, 5
        %v2609 = vsel %vm2507, %v2607, %v2608
        %v2610 = vrot.slane %v2608, 4
        %v2611 = vrot.slane %v1511, 5
        %v2612 = vsel %vm2507, %v2610, %v2611
        %v2613 = vrot.slane %v2454, 5
        %v2614 = vrot.slane %v2613, 4
        %v2615 = vrot.slane %v1513, 5
        %v2616 = vsel %vm2507, %v2614, %v2615
        %v2617 = vrot.slane %v2615, 4
        %v2618 = vrot.slane %v1514, 5
        %v2619 = vsel %vm2507, %v2617, %v2618
        %v2620 = vld [vmem:[%s1 + $0x8] sm:$0xf]
        %v2621 = vunpack.c.l.b16 %v2511
        %v2622 = vunpack.c.l.b16 %v2514
        %v2623 = vunpack.c.l.b16 %v2518
        %v2624 = vunpack.c.l.b16 %v2521
        %v2625 = vunpack.c.l.b16 %v2525
        %v2626 = vunpack.c.l.b16 %v2528
        %v2627 = vunpack.c.l.b16 %v2532
        %v2628 = vunpack.c.l.b16 %v2535
        %v2629 = vunpack.c.l.b16 %v2539
        %v2630 = vunpack.c.l.b16 %v2542
        %v2631 = vunpack.c.l.b16 %v2546
        %v2632 = vunpack.c.l.b16 %v2549
        %v2633 = vunpack.c.l.b16 %v2553
        %v2634 = vunpack.c.l.b16 %v2556
        %v2635 = vunpack.c.l.b16 %v2560
        %v2636 = vunpack.c.l.b16 %v2563
        %v2637 = vunpack.c.l.b16 %v2567
        %v2638 = vunpack.c.l.b16 %v2570
        %v2639 = vunpack.c.l.b16 %v2574
        %v2640 = vunpack.c.l.b16 %v2577
        %v2641 = vunpack.c.l.b16 %v2581
        %v2642 = vunpack.c.l.b16 %v2584
        %v2643 = vunpack.c.l.b16 %v2588
        %v2644 = vunpack.c.l.b16 %v2591
        %v2645 = vunpack.c.l.b16 %v2595
        %v2646 = vunpack.c.l.b16 %v2598
        %v2647 = vunpack.c.l.b16 %v2602
        %v2648 = vunpack.c.l.b16 %v2605
        %v2649 = vunpack.c.l.b16 %v2609
        %v2650 = vunpack.c.l.b16 %v2612
        %v2651 = vunpack.c.l.b16 %v2616
        %v2652 = vunpack.c.l.b16 %v2619
        %v2653 = vpack.c.b16 %v2622, %v2621
        %v2654 = vpack.c.b16 %v2624, %v2623
        %v2655 = vpack.c.b16 %v2626, %v2625
        %v2656 = vpack.c.b16 %v2628, %v2627
        %v2657 = vpack.c.b16 %v2630, %v2629
        %v2658 = vpack.c.b16 %v2632, %v2631
        %v2659 = vpack.c.b16 %v2634, %v2633
        %v2660 = vpack.c.b16 %v2636, %v2635
        %v2661 = vpack.c.b16 %v2638, %v2637
        %v2662 = vpack.c.b16 %v2640, %v2639
        %v2663 = vpack.c.b16 %v2642, %v2641
        %v2664 = vpack.c.b16 %v2644, %v2643
        %v2665 = vpack.c.b16 %v2646, %v2645
        %v2666 = vpack.c.b16 %v2648, %v2647
        %v2667 = vpack.c.b16 %v2650, %v2649
        %v2668 = vpack.c.b16 %v2652, %v2651
        %v2670 = vsel %vm1092, %v2653, 0
        %v2673 = vsel %vm1092, %v2654, 0
        %v2676 = vsel %vm1092, %v2655, 0
        %v2679 = vsel %vm1092, %v2656, 0
        %v2682 = vsel %vm1092, %v2657, 0
        %v2685 = vsel %vm1092, %v2658, 0
        %v2688 = vsel %vm1092, %v2659, 0
        %v2691 = vsel %vm1092, %v2660, 0
        %v2694 = vsel %vm1092, %v2661, 0
        %v2697 = vsel %vm1092, %v2662, 0
        %v2700 = vsel %vm1092, %v2663, 0
        %v2703 = vsel %vm1092, %v2664, 0
        %v2706 = vsel %vm1092, %v2665, 0
        %v2709 = vsel %vm1092, %v2666, 0
        %v2712 = vsel %vm1092, %v2667, 0
        %v2715 = vsel %vm1092, %v2668, 0
        %v2718 = vsel %vm1141, %v2620, 0
        %2720 = vmatpush.bf16.msra.mxu0 0
        %2721 = vmatpush.bf16.msra.mxu0 0
        %2722 = vmatpush.bf16.msra.mxu0 0
        %2723 = vmatpush.bf16.msra.mxu0 0
        %2724 = vmatpush.bf16.msra.mxu0 0
        %2725 = vmatpush.bf16.msra.mxu0 0
        %2726 = vmatpush.bf16.msra.mxu0 0
        %2727 = vmatpush.bf16.msra.mxu0 %v2718
        %2728 = vmatmul.bf16.gmra.mxu0 %v2670
        %v2729 = vpop.f32.mrf.mxu0
        %v2730 = vadd.f32 0.0, %v2729
        %v2731 = vpop.f32.mrf.mxu0
        %v2732 = vadd.f32 0.0, %v2731
        %2733 = vmatmul.bf16.gmra.mxu0 %v2673
        %v2734 = vpop.f32.mrf.mxu0
        %v2735 = vadd.f32 0.0, %v2734
        %v2736 = vpop.f32.mrf.mxu0
        %v2737 = vadd.f32 0.0, %v2736
        %2738 = vmatmul.bf16.gmra.mxu0 %v2676
        %v2739 = vpop.f32.mrf.mxu0
        %v2740 = vadd.f32 0.0, %v2739
        %v2741 = vpop.f32.mrf.mxu0
        %v2742 = vadd.f32 0.0, %v2741
        %2743 = vmatmul.bf16.gmra.mxu0 %v2679
        %v2744 = vpop.f32.mrf.mxu0
        %v2745 = vadd.f32 0.0, %v2744
        %v2746 = vpop.f32.mrf.mxu0
        %v2747 = vadd.f32 0.0, %v2746
        %2748 = vmatmul.bf16.gmra.mxu0 %v2682
        %v2749 = vpop.f32.mrf.mxu0
        %v2750 = vadd.f32 0.0, %v2749
        %v2751 = vpop.f32.mrf.mxu0
        %v2752 = vadd.f32 0.0, %v2751
        %2753 = vmatmul.bf16.gmra.mxu0 %v2685
        %v2754 = vpop.f32.mrf.mxu0
        %v2755 = vadd.f32 0.0, %v2754
        %v2756 = vpop.f32.mrf.mxu0
        %v2757 = vadd.f32 0.0, %v2756
        %2758 = vmatmul.bf16.gmra.mxu0 %v2688
        %v2759 = vpop.f32.mrf.mxu0
        %v2760 = vadd.f32 0.0, %v2759
        %v2761 = vpop.f32.mrf.mxu0
        %v2762 = vadd.f32 0.0, %v2761
        %2763 = vmatmul.bf16.gmra.mxu0 %v2691
        %v2764 = vpop.f32.mrf.mxu0
        %v2765 = vadd.f32 0.0, %v2764
        %v2766 = vpop.f32.mrf.mxu0
        %v2767 = vadd.f32 0.0, %v2766
        %2768 = vmatmul.bf16.gmra.mxu0 %v2694
        %v2769 = vpop.f32.mrf.mxu0
        %v2770 = vadd.f32 0.0, %v2769
        %v2771 = vpop.f32.mrf.mxu0
        %v2772 = vadd.f32 0.0, %v2771
        %2773 = vmatmul.bf16.gmra.mxu0 %v2697
        %v2774 = vpop.f32.mrf.mxu0
        %v2775 = vadd.f32 0.0, %v2774
        %v2776 = vpop.f32.mrf.mxu0
        %v2777 = vadd.f32 0.0, %v2776
        %2778 = vmatmul.bf16.gmra.mxu0 %v2700
        %v2779 = vpop.f32.mrf.mxu0
        %v2780 = vadd.f32 0.0, %v2779
        %v2781 = vpop.f32.mrf.mxu0
        %v2782 = vadd.f32 0.0, %v2781
        %2783 = vmatmul.bf16.gmra.mxu0 %v2703
        %v2784 = vpop.f32.mrf.mxu0
        %v2785 = vadd.f32 0.0, %v2784
        %v2786 = vpop.f32.mrf.mxu0
        %v2787 = vadd.f32 0.0, %v2786
        %2788 = vmatmul.bf16.gmra.mxu0 %v2706
        %v2789 = vpop.f32.mrf.mxu0
        %v2790 = vadd.f32 0.0, %v2789
        %v2791 = vpop.f32.mrf.mxu0
        %v2792 = vadd.f32 0.0, %v2791
        %2793 = vmatmul.bf16.gmra.mxu0 %v2709
        %v2794 = vpop.f32.mrf.mxu0
        %v2795 = vadd.f32 0.0, %v2794
        %v2796 = vpop.f32.mrf.mxu0
        %v2797 = vadd.f32 0.0, %v2796
        %2798 = vmatmul.bf16.gmra.mxu0 %v2712
        %v2799 = vpop.f32.mrf.mxu0
        %v2800 = vadd.f32 0.0, %v2799
        %v2801 = vpop.f32.mrf.mxu0
        %v2802 = vadd.f32 0.0, %v2801
        %2803 = vmatmul.bf16.gmra.mxu0 %v2715
        %v2804 = vpop.f32.mrf.mxu0
        %v2805 = vadd.f32 0.0, %v2804
        %v2806 = vpop.f32.mrf.mxu0
        %v2807 = vadd.f32 0.0, %v2806
        %2808 = vdwg.mxu0
        %v2809 = vadd.f32 %v2407, %v2730
        %v2810 = vadd.f32 %v2408, %v2732
        %v2811 = vadd.f32 %v2409, %v2735
        %v2812 = vadd.f32 %v2410, %v2737
        %v2813 = vadd.f32 %v2411, %v2740
        %v2814 = vadd.f32 %v2412, %v2742
        %v2815 = vadd.f32 %v2413, %v2745
        %v2816 = vadd.f32 %v2414, %v2747
        %v2817 = vadd.f32 %v2415, %v2750
        %v2818 = vadd.f32 %v2416, %v2752
        %v2819 = vadd.f32 %v2417, %v2755
        %v2820 = vadd.f32 %v2418, %v2757
        %v2821 = vadd.f32 %v2419, %v2760
        %v2822 = vadd.f32 %v2420, %v2762
        %v2823 = vadd.f32 %v2421, %v2765
        %v2824 = vadd.f32 %v2422, %v2767
        %v2825 = vadd.f32 %v2423, %v2770
        %v2826 = vadd.f32 %v2424, %v2772
        %v2827 = vadd.f32 %v2425, %v2775
        %v2828 = vadd.f32 %v2426, %v2777
        %v2829 = vadd.f32 %v2427, %v2780
        %v2830 = vadd.f32 %v2428, %v2782
        %v2831 = vadd.f32 %v2429, %v2785
        %v2832 = vadd.f32 %v2430, %v2787
        %v2833 = vadd.f32 %v2431, %v2790
        %v2834 = vadd.f32 %v2432, %v2792
        %v2835 = vadd.f32 %v2433, %v2795
        %v2836 = vadd.f32 %v2434, %v2797
        %v2837 = vadd.f32 %v2435, %v2800
        %v2838 = vadd.f32 %v2436, %v2802
        %v2839 = vadd.f32 %v2437, %v2805
        %v2840 = vadd.f32 %v2438, %v2807
        %v2844 = vrot.slane %v2455, 5
        %v2845 = vrot.slane %v2844, 4
        %v2846 = vrot.slane %v1516, 5
        %v2847 = vsel %vm2507, %v2845, %v2846
        %v2848 = vrot.slane %v2846, 4
        %v2849 = vrot.slane %v1517, 5
        %v2850 = vsel %vm2507, %v2848, %v2849
        %v2851 = vld [vmem:[%s1 + $0x14] sm:$0xf]
        %v2852 = vunpack.c.l.b16 %v2847
        %v2853 = vunpack.c.l.b16 %v2850
        %v2854 = vpack.c.b16 %v2853, %v2852
        %v2856 = vsel %vm1092, %v2854, 0
        %v2859 = vsel %vm1141, %v2851, 0
        %2861 = vmatpush.bf16.msra.mxu0 0
        %2862 = vmatpush.bf16.msra.mxu0 0
        %2863 = vmatpush.bf16.msra.mxu0 0
        %2864 = vmatpush.bf16.msra.mxu0 0
        %2865 = vmatpush.bf16.msra.mxu0 0
        %2866 = vmatpush.bf16.msra.mxu0 0
        %2867 = vmatpush.bf16.msra.mxu0 0
        %2868 = vmatpush.bf16.msra.mxu0 %v2859
        %2869 = vmatmul.bf16.gmra.mxu0 %v2673
        %v2870 = vpop.f32.mrf.mxu0
        %v2871 = vadd.f32 0.0, %v2870
        %v2872 = vpop.f32.mrf.mxu0
        %v2873 = vadd.f32 0.0, %v2872
        %2874 = vmatmul.bf16.gmra.mxu0 %v2676
        %v2875 = vpop.f32.mrf.mxu0
        %v2876 = vadd.f32 0.0, %v2875
        %v2877 = vpop.f32.mrf.mxu0
        %v2878 = vadd.f32 0.0, %v2877
        %2879 = vmatmul.bf16.gmra.mxu0 %v2679
        %v2880 = vpop.f32.mrf.mxu0
        %v2881 = vadd.f32 0.0, %v2880
        %v2882 = vpop.f32.mrf.mxu0
        %v2883 = vadd.f32 0.0, %v2882
        %2884 = vmatmul.bf16.gmra.mxu0 %v2682
        %v2885 = vpop.f32.mrf.mxu0
        %v2886 = vadd.f32 0.0, %v2885
        %v2887 = vpop.f32.mrf.mxu0
        %v2888 = vadd.f32 0.0, %v2887
        %2889 = vmatmul.bf16.gmra.mxu0 %v2685
        %v2890 = vpop.f32.mrf.mxu0
        %v2891 = vadd.f32 0.0, %v2890
        %v2892 = vpop.f32.mrf.mxu0
        %v2893 = vadd.f32 0.0, %v2892
        %2894 = vmatmul.bf16.gmra.mxu0 %v2688
        %v2895 = vpop.f32.mrf.mxu0
        %v2896 = vadd.f32 0.0, %v2895
        %v2897 = vpop.f32.mrf.mxu0
        %v2898 = vadd.f32 0.0, %v2897
        %2899 = vmatmul.bf16.gmra.mxu0 %v2691
        %v2900 = vpop.f32.mrf.mxu0
        %v2901 = vadd.f32 0.0, %v2900
        %v2902 = vpop.f32.mrf.mxu0
        %v2903 = vadd.f32 0.0, %v2902
        %2904 = vmatmul.bf16.gmra.mxu0 %v2694
        %v2905 = vpop.f32.mrf.mxu0
        %v2906 = vadd.f32 0.0, %v2905
        %v2907 = vpop.f32.mrf.mxu0
        %v2908 = vadd.f32 0.0, %v2907
        %2909 = vmatmul.bf16.gmra.mxu0 %v2697
        %v2910 = vpop.f32.mrf.mxu0
        %v2911 = vadd.f32 0.0, %v2910
        %v2912 = vpop.f32.mrf.mxu0
        %v2913 = vadd.f32 0.0, %v2912
        %2914 = vmatmul.bf16.gmra.mxu0 %v2700
        %v2915 = vpop.f32.mrf.mxu0
        %v2916 = vadd.f32 0.0, %v2915
        %v2917 = vpop.f32.mrf.mxu0
        %v2918 = vadd.f32 0.0, %v2917
        %2919 = vmatmul.bf16.gmra.mxu0 %v2703
        %v2920 = vpop.f32.mrf.mxu0
        %v2921 = vadd.f32 0.0, %v2920
        %v2922 = vpop.f32.mrf.mxu0
        %v2923 = vadd.f32 0.0, %v2922
        %2924 = vmatmul.bf16.gmra.mxu0 %v2706
        %v2925 = vpop.f32.mrf.mxu0
        %v2926 = vadd.f32 0.0, %v2925
        %v2927 = vpop.f32.mrf.mxu0
        %v2928 = vadd.f32 0.0, %v2927
        %2929 = vmatmul.bf16.gmra.mxu0 %v2709
        %v2930 = vpop.f32.mrf.mxu0
        %v2931 = vadd.f32 0.0, %v2930
        %v2932 = vpop.f32.mrf.mxu0
        %v2933 = vadd.f32 0.0, %v2932
        %2934 = vmatmul.bf16.gmra.mxu0 %v2712
        %v2935 = vpop.f32.mrf.mxu0
        %v2936 = vadd.f32 0.0, %v2935
        %v2937 = vpop.f32.mrf.mxu0
        %v2938 = vadd.f32 0.0, %v2937
        %2939 = vmatmul.bf16.gmra.mxu0 %v2715
        %v2940 = vpop.f32.mrf.mxu0
        %v2941 = vadd.f32 0.0, %v2940
        %v2942 = vpop.f32.mrf.mxu0
        %v2943 = vadd.f32 0.0, %v2942
        %2944 = vmatmul.bf16.gmra.mxu0 %v2856
        %v2945 = vpop.f32.mrf.mxu0
        %v2946 = vadd.f32 0.0, %v2945
        %v2947 = vpop.f32.mrf.mxu0
        %v2948 = vadd.f32 0.0, %v2947
        %2949 = vdwg.mxu0
        %v2950 = vadd.f32 %v2809, %v2871
        %v2951 = vadd.f32 %v2810, %v2873
        %v2952 = vadd.f32 %v2811, %v2876
        %v2953 = vadd.f32 %v2812, %v2878
        %v2954 = vadd.f32 %v2813, %v2881
        %v2955 = vadd.f32 %v2814, %v2883
        %v2956 = vadd.f32 %v2815, %v2886
        %v2957 = vadd.f32 %v2816, %v2888
        %v2958 = vadd.f32 %v2817, %v2891
        %v2959 = vadd.f32 %v2818, %v2893
        %v2960 = vadd.f32 %v2819, %v2896
        %v2961 = vadd.f32 %v2820, %v2898
        %v2962 = vadd.f32 %v2821, %v2901
        %v2963 = vadd.f32 %v2822, %v2903
        %v2964 = vadd.f32 %v2823, %v2906
        %v2965 = vadd.f32 %v2824, %v2908
        %v2966 = vadd.f32 %v2825, %v2911
        %v2967 = vadd.f32 %v2826, %v2913
        %v2968 = vadd.f32 %v2827, %v2916
        %v2969 = vadd.f32 %v2828, %v2918
        %v2970 = vadd.f32 %v2829, %v2921
        %v2971 = vadd.f32 %v2830, %v2923
        %v2972 = vadd.f32 %v2831, %v2926
        %v2973 = vadd.f32 %v2832, %v2928
        %v2974 = vadd.f32 %v2833, %v2931
        %v2975 = vadd.f32 %v2834, %v2933
        %v2976 = vadd.f32 %v2835, %v2936
        %v2977 = vadd.f32 %v2836, %v2938
        %v2978 = vadd.f32 %v2837, %v2941
        %v2979 = vadd.f32 %v2838, %v2943
        %v2980 = vadd.f32 %v2839, %v2946
        %v2981 = vadd.f32 %v2840, %v2948
        %v2985 = vrot.slane %v2456, 5
        %v2986 = vrot.slane %v2985, 4
        %v2987 = vrot.slane %v1519, 5
        %v2988 = vsel %vm2507, %v2986, %v2987
        %v2989 = vrot.slane %v2987, 4
        %v2990 = vrot.slane %v1520, 5
        %v2991 = vsel %vm2507, %v2989, %v2990
        %v2992 = vld [vmem:[%s1 + $0x20] sm:$0xf]
        %v2993 = vunpack.c.l.b16 %v2988
        %v2994 = vunpack.c.l.b16 %v2991
        %v2995 = vpack.c.b16 %v2994, %v2993
        %v2997 = vsel %vm1092, %v2995, 0
        %v3000 = vsel %vm1141, %v2992, 0
        %3002 = vmatpush.bf16.msra.mxu0 0
        %3003 = vmatpush.bf16.msra.mxu0 0
        %3004 = vmatpush.bf16.msra.mxu0 0
        %3005 = vmatpush.bf16.msra.mxu0 0
        %3006 = vmatpush.bf16.msra.mxu0 0
        %3007 = vmatpush.bf16.msra.mxu0 0
        %3008 = vmatpush.bf16.msra.mxu0 0
        %3009 = vmatpush.bf16.msra.mxu0 %v3000
        %3010 = vmatmul.bf16.gmra.mxu0 %v2676
        %v3011 = vpop.f32.mrf.mxu0
        %v3012 = vadd.f32 0.0, %v3011
        %v3013 = vpop.f32.mrf.mxu0
        %v3014 = vadd.f32 0.0, %v3013
        %3015 = vmatmul.bf16.gmra.mxu0 %v2679
        %v3016 = vpop.f32.mrf.mxu0
        %v3017 = vadd.f32 0.0, %v3016
        %v3018 = vpop.f32.mrf.mxu0
        %v3019 = vadd.f32 0.0, %v3018
        %3020 = vmatmul.bf16.gmra.mxu0 %v2682
        %v3021 = vpop.f32.mrf.mxu0
        %v3022 = vadd.f32 0.0, %v3021
        %v3023 = vpop.f32.mrf.mxu0
        %v3024 = vadd.f32 0.0, %v3023
        %3025 = vmatmul.bf16.gmra.mxu0 %v2685
        %v3026 = vpop.f32.mrf.mxu0
        %v3027 = vadd.f32 0.0, %v3026
        %v3028 = vpop.f32.mrf.mxu0
        %v3029 = vadd.f32 0.0, %v3028
        %3030 = vmatmul.bf16.gmra.mxu0 %v2688
        %v3031 = vpop.f32.mrf.mxu0
        %v3032 = vadd.f32 0.0, %v3031
        %v3033 = vpop.f32.mrf.mxu0
        %v3034 = vadd.f32 0.0, %v3033
        %3035 = vmatmul.bf16.gmra.mxu0 %v2691
        %v3036 = vpop.f32.mrf.mxu0
        %v3037 = vadd.f32 0.0, %v3036
        %v3038 = vpop.f32.mrf.mxu0
        %v3039 = vadd.f32 0.0, %v3038
        %3040 = vmatmul.bf16.gmra.mxu0 %v2694
        %v3041 = vpop.f32.mrf.mxu0
        %v3042 = vadd.f32 0.0, %v3041
        %v3043 = vpop.f32.mrf.mxu0
        %v3044 = vadd.f32 0.0, %v3043
        %3045 = vmatmul.bf16.gmra.mxu0 %v2697
        %v3046 = vpop.f32.mrf.mxu0
        %v3047 = vadd.f32 0.0, %v3046
        %v3048 = vpop.f32.mrf.mxu0
        %v3049 = vadd.f32 0.0, %v3048
        %3050 = vmatmul.bf16.gmra.mxu0 %v2700
        %v3051 = vpop.f32.mrf.mxu0
        %v3052 = vadd.f32 0.0, %v3051
        %v3053 = vpop.f32.mrf.mxu0
        %v3054 = vadd.f32 0.0, %v3053
        %3055 = vmatmul.bf16.gmra.mxu0 %v2703
        %v3056 = vpop.f32.mrf.mxu0
        %v3057 = vadd.f32 0.0, %v3056
        %v3058 = vpop.f32.mrf.mxu0
        %v3059 = vadd.f32 0.0, %v3058
        %3060 = vmatmul.bf16.gmra.mxu0 %v2706
        %v3061 = vpop.f32.mrf.mxu0
        %v3062 = vadd.f32 0.0, %v3061
        %v3063 = vpop.f32.mrf.mxu0
        %v3064 = vadd.f32 0.0, %v3063
        %3065 = vmatmul.bf16.gmra.mxu0 %v2709
        %v3066 = vpop.f32.mrf.mxu0
        %v3067 = vadd.f32 0.0, %v3066
        %v3068 = vpop.f32.mrf.mxu0
        %v3069 = vadd.f32 0.0, %v3068
        %3070 = vmatmul.bf16.gmra.mxu0 %v2712
        %v3071 = vpop.f32.mrf.mxu0
        %v3072 = vadd.f32 0.0, %v3071
        %v3073 = vpop.f32.mrf.mxu0
        %v3074 = vadd.f32 0.0, %v3073
        %3075 = vmatmul.bf16.gmra.mxu0 %v2715
        %v3076 = vpop.f32.mrf.mxu0
        %v3077 = vadd.f32 0.0, %v3076
        %v3078 = vpop.f32.mrf.mxu0
        %v3079 = vadd.f32 0.0, %v3078
        %3080 = vmatmul.bf16.gmra.mxu0 %v2856
        %v3081 = vpop.f32.mrf.mxu0
        %v3082 = vadd.f32 0.0, %v3081
        %v3083 = vpop.f32.mrf.mxu0
        %v3084 = vadd.f32 0.0, %v3083
        %3085 = vmatmul.bf16.gmra.mxu0 %v2997
        %v3086 = vpop.f32.mrf.mxu0
        %v3087 = vadd.f32 0.0, %v3086
        %v3088 = vpop.f32.mrf.mxu0
        %v3089 = vadd.f32 0.0, %v3088
        %3090 = vdwg.mxu0
        %v3091 = vadd.f32 %v2950, %v3012
        %v3092 = vadd.f32 %v2951, %v3014
        %v3093 = vadd.f32 %v2952, %v3017
        %v3094 = vadd.f32 %v2953, %v3019
        %v3095 = vadd.f32 %v2954, %v3022
        %v3096 = vadd.f32 %v2955, %v3024
        %v3097 = vadd.f32 %v2956, %v3027
        %v3098 = vadd.f32 %v2957, %v3029
        %v3099 = vadd.f32 %v2958, %v3032
        %v3100 = vadd.f32 %v2959, %v3034
        %v3101 = vadd.f32 %v2960, %v3037
        %v3102 = vadd.f32 %v2961, %v3039
        %v3103 = vadd.f32 %v2962, %v3042
        %v3104 = vadd.f32 %v2963, %v3044
        %v3105 = vadd.f32 %v2964, %v3047
        %v3106 = vadd.f32 %v2965, %v3049
        %v3107 = vadd.f32 %v2966, %v3052
        %v3108 = vadd.f32 %v2967, %v3054
        %v3109 = vadd.f32 %v2968, %v3057
        %v3110 = vadd.f32 %v2969, %v3059
        %v3111 = vadd.f32 %v2970, %v3062
        %v3112 = vadd.f32 %v2971, %v3064
        %v3113 = vadd.f32 %v2972, %v3067
        %v3114 = vadd.f32 %v2973, %v3069
        %v3115 = vadd.f32 %v2974, %v3072
        %v3116 = vadd.f32 %v2975, %v3074
        %v3117 = vadd.f32 %v2976, %v3077
        %v3118 = vadd.f32 %v2977, %v3079
        %v3119 = vadd.f32 %v2978, %v3082
        %v3120 = vadd.f32 %v2979, %v3084
        %v3121 = vadd.f32 %v2980, %v3087
        %v3122 = vadd.f32 %v2981, %v3089
        %v3123 = vld [vmem:[%s2] sm:$0x1]
        %v3125 = vperm.slane %v3123, 0
        %v3127 = vmul.f32 %v3091, %v3125
        %v3128 = vmul.f32 %v3092, %v3125
        %v3129 = vmul.f32 %v3093, %v3125
        %v3130 = vmul.f32 %v3094, %v3125
        %v3131 = vmul.f32 %v3095, %v3125
        %v3132 = vmul.f32 %v3096, %v3125
        %v3133 = vmul.f32 %v3097, %v3125
        %v3134 = vmul.f32 %v3098, %v3125
        %v3135 = vmul.f32 %v3099, %v3125
        %v3136 = vmul.f32 %v3100, %v3125
        %v3137 = vmul.f32 %v3101, %v3125
        %v3138 = vmul.f32 %v3102, %v3125
        %v3139 = vmul.f32 %v3103, %v3125
        %v3140 = vmul.f32 %v3104, %v3125
        %v3141 = vmul.f32 %v3105, %v3125
        %v3142 = vmul.f32 %v3106, %v3125
        %v3143 = vmul.f32 %v3107, %v3125
        %v3144 = vmul.f32 %v3108, %v3125
        %v3145 = vmul.f32 %v3109, %v3125
        %v3146 = vmul.f32 %v3110, %v3125
        %v3147 = vmul.f32 %v3111, %v3125
        %v3148 = vmul.f32 %v3112, %v3125
        %v3149 = vmul.f32 %v3113, %v3125
        %v3150 = vmul.f32 %v3114, %v3125
        %v3151 = vmul.f32 %v3115, %v3125
        %v3152 = vmul.f32 %v3116, %v3125
        %v3153 = vmul.f32 %v3117, %v3125
        %v3154 = vmul.f32 %v3118, %v3125
        %v3155 = vmul.f32 %v3119, %v3125
        %v3156 = vmul.f32 %v3120, %v3125
        %v3157 = vmul.f32 %v3121, %v3125
        %v3158 = vmul.f32 %v3122, %v3125
        %v3159 = vld [vmem:[%s3] sm:$0x1]
        %v3161 = vperm.slane %v3159, 0
        %v3163 = vadd.f32 %v3127, %v3161
        %v3164 = vadd.f32 %v3128, %v3161
        %v3165 = vadd.f32 %v3129, %v3161
        %v3166 = vadd.f32 %v3130, %v3161
        %v3167 = vadd.f32 %v3131, %v3161
        %v3168 = vadd.f32 %v3132, %v3161
        %v3169 = vadd.f32 %v3133, %v3161
        %v3170 = vadd.f32 %v3134, %v3161
        %v3171 = vadd.f32 %v3135, %v3161
        %v3172 = vadd.f32 %v3136, %v3161
        %v3173 = vadd.f32 %v3137, %v3161
        %v3174 = vadd.f32 %v3138, %v3161
        %v3175 = vadd.f32 %v3139, %v3161
        %v3176 = vadd.f32 %v3140, %v3161
        %v3177 = vadd.f32 %v3141, %v3161
        %v3178 = vadd.f32 %v3142, %v3161
        %v3179 = vadd.f32 %v3143, %v3161
        %v3180 = vadd.f32 %v3144, %v3161
        %v3181 = vadd.f32 %v3145, %v3161
        %v3182 = vadd.f32 %v3146, %v3161
        %v3183 = vadd.f32 %v3147, %v3161
        %v3184 = vadd.f32 %v3148, %v3161
        %v3185 = vadd.f32 %v3149, %v3161
        %v3186 = vadd.f32 %v3150, %v3161
        %v3187 = vadd.f32 %v3151, %v3161
        %v3188 = vadd.f32 %v3152, %v3161
        %v3189 = vadd.f32 %v3153, %v3161
        %v3190 = vadd.f32 %v3154, %v3161
        %v3191 = vadd.f32 %v3155, %v3161
        %v3192 = vadd.f32 %v3156, %v3161
        %v3193 = vadd.f32 %v3157, %v3161
        %v3194 = vadd.f32 %v3158, %v3161
        %vm3195 = vcmp.ge.f32.partialorder %v3163, 0.0
        %vm3196 = vcmp.ge.f32.partialorder %v3164, 0.0
        %vm3197 = vcmp.ge.f32.partialorder %v3165, 0.0
        %vm3198 = vcmp.ge.f32.partialorder %v3166, 0.0
        %vm3199 = vcmp.ge.f32.partialorder %v3167, 0.0
        %vm3200 = vcmp.ge.f32.partialorder %v3168, 0.0
        %vm3201 = vcmp.ge.f32.partialorder %v3169, 0.0
        %vm3202 = vcmp.ge.f32.partialorder %v3170, 0.0
        %vm3203 = vcmp.ge.f32.partialorder %v3171, 0.0
        %vm3204 = vcmp.ge.f32.partialorder %v3172, 0.0
        %vm3205 = vcmp.ge.f32.partialorder %v3173, 0.0
        %vm3206 = vcmp.ge.f32.partialorder %v3174, 0.0
        %vm3207 = vcmp.ge.f32.partialorder %v3175, 0.0
        %vm3208 = vcmp.ge.f32.partialorder %v3176, 0.0
        %vm3209 = vcmp.ge.f32.partialorder %v3177, 0.0
        %vm3210 = vcmp.ge.f32.partialorder %v3178, 0.0
        %vm3211 = vcmp.ge.f32.partialorder %v3179, 0.0
        %vm3212 = vcmp.ge.f32.partialorder %v3180, 0.0
        %vm3213 = vcmp.ge.f32.partialorder %v3181, 0.0
        %vm3214 = vcmp.ge.f32.partialorder %v3182, 0.0
        %vm3215 = vcmp.ge.f32.partialorder %v3183, 0.0
        %vm3216 = vcmp.ge.f32.partialorder %v3184, 0.0
        %vm3217 = vcmp.ge.f32.partialorder %v3185, 0.0
        %vm3218 = vcmp.ge.f32.partialorder %v3186, 0.0
        %vm3219 = vcmp.ge.f32.partialorder %v3187, 0.0
        %vm3220 = vcmp.ge.f32.partialorder %v3188, 0.0
        %vm3221 = vcmp.ge.f32.partialorder %v3189, 0.0
        %vm3222 = vcmp.ge.f32.partialorder %v3190, 0.0
        %vm3223 = vcmp.ge.f32.partialorder %v3191, 0.0
        %vm3224 = vcmp.ge.f32.partialorder %v3192, 0.0
        %vm3225 = vcmp.ge.f32.partialorder %v3193, 0.0
        %vm3226 = vcmp.ge.f32.partialorder %v3194, 0.0
        %v3227 = vld [vmem:[%s4] sm:$0x1]
        %v3229 = vperm.slane %v3227, 0
        %v3231 = vmul.f32 %v3163, %v3229
        %v3232 = vmul.f32 %v3164, %v3229
        %v3233 = vmul.f32 %v3165, %v3229
        %v3234 = vmul.f32 %v3166, %v3229
        %v3235 = vmul.f32 %v3167, %v3229
        %v3236 = vmul.f32 %v3168, %v3229
        %v3237 = vmul.f32 %v3169, %v3229
        %v3238 = vmul.f32 %v3170, %v3229
        %v3239 = vmul.f32 %v3171, %v3229
        %v3240 = vmul.f32 %v3172, %v3229
        %v3241 = vmul.f32 %v3173, %v3229
        %v3242 = vmul.f32 %v3174, %v3229
        %v3243 = vmul.f32 %v3175, %v3229
        %v3244 = vmul.f32 %v3176, %v3229
        %v3245 = vmul.f32 %v3177, %v3229
        %v3246 = vmul.f32 %v3178, %v3229
        %v3247 = vmul.f32 %v3179, %v3229
        %v3248 = vmul.f32 %v3180, %v3229
        %v3249 = vmul.f32 %v3181, %v3229
        %v3250 = vmul.f32 %v3182, %v3229
        %v3251 = vmul.f32 %v3183, %v3229
        %v3252 = vmul.f32 %v3184, %v3229
        %v3253 = vmul.f32 %v3185, %v3229
        %v3254 = vmul.f32 %v3186, %v3229
        %v3255 = vmul.f32 %v3187, %v3229
        %v3256 = vmul.f32 %v3188, %v3229
        %v3257 = vmul.f32 %v3189, %v3229
        %v3258 = vmul.f32 %v3190, %v3229
        %v3259 = vmul.f32 %v3191, %v3229
        %v3260 = vmul.f32 %v3192, %v3229
        %v3261 = vmul.f32 %v3193, %v3229
        %v3262 = vmul.f32 %v3194, %v3229
        %v3263 = vsel %vm3195, %v3163, %v3231
        %v3264 = vsel %vm3196, %v3164, %v3232
        %v3265 = vsel %vm3197, %v3165, %v3233
        %v3266 = vsel %vm3198, %v3166, %v3234
        %v3267 = vsel %vm3199, %v3167, %v3235
        %v3268 = vsel %vm3200, %v3168, %v3236
        %v3269 = vsel %vm3201, %v3169, %v3237
        %v3270 = vsel %vm3202, %v3170, %v3238
        %v3271 = vsel %vm3203, %v3171, %v3239
        %v3272 = vsel %vm3204, %v3172, %v3240
        %v3273 = vsel %vm3205, %v3173, %v3241
        %v3274 = vsel %vm3206, %v3174, %v3242
        %v3275 = vsel %vm3207, %v3175, %v3243
        %v3276 = vsel %vm3208, %v3176, %v3244
        %v3277 = vsel %vm3209, %v3177, %v3245
        %v3278 = vsel %vm3210, %v3178, %v3246
        %v3279 = vsel %vm3211, %v3179, %v3247
        %v3280 = vsel %vm3212, %v3180, %v3248
        %v3281 = vsel %vm3213, %v3181, %v3249
        %v3282 = vsel %vm3214, %v3182, %v3250
        %v3283 = vsel %vm3215, %v3183, %v3251
        %v3284 = vsel %vm3216, %v3184, %v3252
        %v3285 = vsel %vm3217, %v3185, %v3253
        %v3286 = vsel %vm3218, %v3186, %v3254
        %v3287 = vsel %vm3219, %v3187, %v3255
        %v3288 = vsel %vm3220, %v3188, %v3256
        %v3289 = vsel %vm3221, %v3189, %v3257
        %v3290 = vsel %vm3222, %v3190, %v3258
        %v3291 = vsel %vm3223, %v3191, %v3259
        %v3292 = vsel %vm3224, %v3192, %v3260
        %v3293 = vsel %vm3225, %v3193, %v3261
        %v3294 = vsel %vm3226, %v3194, %v3262
        %v3295 = vpack.c.bf16 %v3263, %v3263
        %v3296 = vpack.c.bf16 %v3264, %v3264
        %v3297 = vpack.c.bf16 %v3265, %v3265
        %v3298 = vpack.c.bf16 %v3266, %v3266
        %v3299 = vpack.c.bf16 %v3267, %v3267
        %v3300 = vpack.c.bf16 %v3268, %v3268
        %v3301 = vpack.c.bf16 %v3269, %v3269
        %v3302 = vpack.c.bf16 %v3270, %v3270
        %v3303 = vpack.c.bf16 %v3271, %v3271
        %v3304 = vpack.c.bf16 %v3272, %v3272
        %v3305 = vpack.c.bf16 %v3273, %v3273
        %v3306 = vpack.c.bf16 %v3274, %v3274
        %v3307 = vpack.c.bf16 %v3275, %v3275
        %v3308 = vpack.c.bf16 %v3276, %v3276
        %v3309 = vpack.c.bf16 %v3277, %v3277
        %v3310 = vpack.c.bf16 %v3278, %v3278
        %v3311 = vpack.c.bf16 %v3279, %v3279
        %v3312 = vpack.c.bf16 %v3280, %v3280
        %v3313 = vpack.c.bf16 %v3281, %v3281
        %v3314 = vpack.c.bf16 %v3282, %v3282
        %v3315 = vpack.c.bf16 %v3283, %v3283
        %v3316 = vpack.c.bf16 %v3284, %v3284
        %v3317 = vpack.c.bf16 %v3285, %v3285
        %v3318 = vpack.c.bf16 %v3286, %v3286
        %v3319 = vpack.c.bf16 %v3287, %v3287
        %v3320 = vpack.c.bf16 %v3288, %v3288
        %v3321 = vpack.c.bf16 %v3289, %v3289
        %v3322 = vpack.c.bf16 %v3290, %v3290
        %v3323 = vpack.c.bf16 %v3291, %v3291
        %v3324 = vpack.c.bf16 %v3292, %v3292
        %v3325 = vpack.c.bf16 %v3293, %v3293
        %v3326 = vpack.c.bf16 %v3294, %v3294
        %vm3327 = vcmask 27648
        %3328 = vst.msk [vmem:[#allocation3] sm:$0xf] %vm3327, 0
        %3329 = vst.msk [vmem:[#allocation3 + $0x4] sm:$0xf] %vm3327, 0
        %vm3330 = vcmask 24576
        %3331 = vst.msk [vmem:[#allocation3 + $0x8] sm:$0x1] %vm3330, 0
        %3332 = vst.msk [vmem:[#allocation3 + $0xc] sm:$0xf] %vm3327, 0
        %3333 = vst.msk [vmem:[#allocation3 + $0x10] sm:$0xf] %vm3327, 0
        %3334 = vst.msk [vmem:[#allocation3 + $0x14] sm:$0x1] %vm3330, 0
        %3335 = vst.msk [vmem:[#allocation3 + $0x18] sm:$0xf] %vm3327, 0
        %3336 = vst.msk [vmem:[#allocation3 + $0x1c] sm:$0xf] %vm3327, 0
        %3337 = vst.msk [vmem:[#allocation3 + $0x20] sm:$0x1] %vm3330, 0
        %3338 = vst.msk [vmem:[#allocation3 + $0x24] sm:$0xf] %vm3327, 0
        %3339 = vst.msk [vmem:[#allocation3 + $0x28] sm:$0xf] %vm3327, 0
        %3340 = vst.msk [vmem:[#allocation3 + $0x2c] sm:$0x1] %vm3330, 0
        %3341 = vst.msk [vmem:[#allocation3 + $0x30] sm:$0xf] %vm3327, 0
        %3342 = vst.msk [vmem:[#allocation3 + $0x34] sm:$0xf] %vm3327, 0
        %3343 = vst.msk [vmem:[#allocation3 + $0x38] sm:$0x1] %vm3330, 0
        %3344 = vst.msk [vmem:[#allocation3 + $0x3c] sm:$0xf] %vm3327, 0
        %3345 = vst.msk [vmem:[#allocation3 + $0x40] sm:$0xf] %vm3327, 0
        %3346 = vst.msk [vmem:[#allocation3 + $0x44] sm:$0x1] %vm3330, 0
        %3347 = vst.msk [vmem:[#allocation3 + $0x48] sm:$0xf] %vm3327, 0
        %3348 = vst.msk [vmem:[#allocation3 + $0x4c] sm:$0xf] %vm3327, 0
        %3349 = vst.msk [vmem:[#allocation3 + $0x50] sm:$0x1] %vm3330, 0
        %3350 = vst.msk [vmem:[#allocation3 + $0x54] sm:$0xf] %vm3327, 0
        %3351 = vst.msk [vmem:[#allocation3 + $0x58] sm:$0xf] %vm3327, 0
        %3352 = vst.msk [vmem:[#allocation3 + $0x5c] sm:$0x1] %vm3330, 0
        %3353 = vst.msk [vmem:[#allocation3 + $0x60] sm:$0xf] %vm3327, 0
        %3354 = vst.msk [vmem:[#allocation3 + $0x64] sm:$0xf] %vm3327, 0
        %3355 = vst.msk [vmem:[#allocation3 + $0x68] sm:$0x1] %vm3330, 0
        %3356 = vst.msk [vmem:[#allocation3 + $0x6c] sm:$0xf] %vm3327, 0
        %3357 = vst.msk [vmem:[#allocation3 + $0x70] sm:$0xf] %vm3327, 0
        %3358 = vst.msk [vmem:[#allocation3 + $0x74] sm:$0x1] %vm3330, 0
        %3359 = vst.msk [vmem:[#allocation3 + $0x78] sm:$0xf] %vm3327, 0
        %3360 = vst.msk [vmem:[#allocation3 + $0x7c] sm:$0xf] %vm3327, 0
        %3361 = vst.msk [vmem:[#allocation3 + $0x80] sm:$0x1] %vm3330, 0
        %3362 = vst.msk [vmem:[#allocation3 + $0x84] sm:$0xf] %vm3327, 0
        %3363 = vst.msk [vmem:[#allocation3 + $0x88] sm:$0xf] %vm3327, 0
        %3364 = vst.msk [vmem:[#allocation3 + $0x8c] sm:$0x1] %vm3330, 0
        %3365 = vst.msk [vmem:[#allocation3 + $0x90] sm:$0xf] %vm3327, 0
        %3366 = vst.msk [vmem:[#allocation3 + $0x94] sm:$0xf] %vm3327, 0
        %3367 = vst.msk [vmem:[#allocation3 + $0x98] sm:$0x1] %vm3330, 0
        %3368 = vst.msk [vmem:[#allocation3 + $0x9c] sm:$0xf] %vm3327, 0
        %3369 = vst.msk [vmem:[#allocation3 + $0xa0] sm:$0xf] %vm3327, 0
        %3370 = vst.msk [vmem:[#allocation3 + $0xa4] sm:$0x1] %vm3330, 0
        %3371 = vst.msk [vmem:[#allocation3 + $0xa8] sm:$0xf] %vm3327, 0
        %3372 = vst.msk [vmem:[#allocation3 + $0xac] sm:$0xf] %vm3327, 0
        %3373 = vst.msk [vmem:[#allocation3 + $0xb0] sm:$0x1] %vm3330, 0
        %3374 = vst.msk [vmem:[#allocation3 + $0xb4] sm:$0xf] %vm3327, 0
        %3375 = vst.msk [vmem:[#allocation3 + $0xb8] sm:$0xf] %vm3327, 0
        %3376 = vst.msk [vmem:[#allocation3 + $0xbc] sm:$0x1] %vm3330, 0
        %3377 = vst.msk [vmem:[#allocation3 + $0xc0] sm:$0xf] %vm3327, 0
        %3378 = vst.msk [vmem:[#allocation3 + $0xc4] sm:$0xf] %vm3327, 0
        %3379 = vst.msk [vmem:[#allocation3 + $0xc8] sm:$0x1] %vm3330, 0
        %3380 = vst.msk [vmem:[#allocation3 + $0xcc] sm:$0xf] %vm3327, 0
        %3381 = vst.msk [vmem:[#allocation3 + $0xd0] sm:$0xf] %vm3327, 0
        %3382 = vst.msk [vmem:[#allocation3 + $0xd4] sm:$0x1] %vm3330, 0
        %v3384 = vshrl.u32 %v3295, 16
        %v3386 = vrot.slane %v3384, 7
        %v3387 = vshll.u32 %v3295, 16
        %v3389 = vor.u32 %v3386, %v3387
        %v3390 = vrot.slane %v3386, 4
        %v3392 = vshrl.u32 %v3296, 16
        %v3394 = vrot.slane %v3392, 7
        %v3395 = vshll.u32 %v3296, 16
        %v3397 = vor.u32 %v3394, %v3395
        %v3398 = vsel %vm535, %v3390, %v3397
        %v3399 = vrot.slane %v3394, 4
        %v3401 = vshrl.u32 %v3297, 16
        %v3403 = vrot.slane %v3401, 7
        %v3404 = vshll.u32 %v3297, 16
        %v3406 = vor.u32 %v3403, %v3404
        %v3407 = vrot.slane %v3403, 4
        %v3409 = vshrl.u32 %v3298, 16
        %v3411 = vrot.slane %v3409, 7
        %v3412 = vshll.u32 %v3298, 16
        %v3414 = vor.u32 %v3411, %v3412
        %v3415 = vsel %vm535, %v3407, %v3414
        %v3416 = vrot.slane %v3411, 4
        %v3418 = vshrl.u32 %v3299, 16
        %v3420 = vrot.slane %v3418, 7
        %v3421 = vshll.u32 %v3299, 16
        %v3423 = vor.u32 %v3420, %v3421
        %v3424 = vrot.slane %v3420, 4
        %v3426 = vshrl.u32 %v3300, 16
        %v3428 = vrot.slane %v3426, 7
        %v3429 = vshll.u32 %v3300, 16
        %v3431 = vor.u32 %v3428, %v3429
        %v3432 = vsel %vm535, %v3424, %v3431
        %v3433 = vrot.slane %v3428, 4
        %v3435 = vshrl.u32 %v3301, 16
        %v3437 = vrot.slane %v3435, 7
        %v3438 = vshll.u32 %v3301, 16
        %v3440 = vor.u32 %v3437, %v3438
        %v3441 = vrot.slane %v3437, 4
        %v3443 = vshrl.u32 %v3302, 16
        %v3445 = vrot.slane %v3443, 7
        %v3446 = vshll.u32 %v3302, 16
        %v3448 = vor.u32 %v3445, %v3446
        %v3449 = vsel %vm535, %v3441, %v3448
        %v3450 = vrot.slane %v3445, 4
        %v3452 = vshrl.u32 %v3303, 16
        %v3454 = vrot.slane %v3452, 7
        %v3455 = vshll.u32 %v3303, 16
        %v3457 = vor.u32 %v3454, %v3455
        %v3458 = vrot.slane %v3454, 4
        %v3460 = vshrl.u32 %v3304, 16
        %v3462 = vrot.slane %v3460, 7
        %v3463 = vshll.u32 %v3304, 16
        %v3465 = vor.u32 %v3462, %v3463
        %v3466 = vsel %vm535, %v3458, %v3465
        %v3467 = vrot.slane %v3462, 4
        %v3469 = vshrl.u32 %v3305, 16
        %v3471 = vrot.slane %v3469, 7
        %v3472 = vshll.u32 %v3305, 16
        %v3474 = vor.u32 %v3471, %v3472
        %v3475 = vrot.slane %v3471, 4
        %v3477 = vshrl.u32 %v3306, 16
        %v3479 = vrot.slane %v3477, 7
        %v3480 = vshll.u32 %v3306, 16
        %v3482 = vor.u32 %v3479, %v3480
        %v3483 = vsel %vm535, %v3475, %v3482
        %v3484 = vrot.slane %v3479, 4
        %v3486 = vshrl.u32 %v3307, 16
        %v3488 = vrot.slane %v3486, 7
        %v3489 = vshll.u32 %v3307, 16
        %v3491 = vor.u32 %v3488, %v3489
        %v3492 = vrot.slane %v3488, 4
        %v3494 = vshrl.u32 %v3308, 16
        %v3496 = vrot.slane %v3494, 7
        %v3497 = vshll.u32 %v3308, 16
        %v3499 = vor.u32 %v3496, %v3497
        %v3500 = vsel %vm535, %v3492, %v3499
        %v3501 = vrot.slane %v3496, 4
        %v3503 = vshrl.u32 %v3309, 16
        %v3505 = vrot.slane %v3503, 7
        %v3506 = vshll.u32 %v3309, 16
        %v3508 = vor.u32 %v3505, %v3506
        %v3509 = vrot.slane %v3505, 4
        %v3511 = vshrl.u32 %v3310, 16
        %v3513 = vrot.slane %v3511, 7
        %v3514 = vshll.u32 %v3310, 16
        %v3516 = vor.u32 %v3513, %v3514
        %v3517 = vsel %vm535, %v3509, %v3516
        %v3518 = vrot.slane %v3513, 4
        %v3520 = vshrl.u32 %v3311, 16
        %v3522 = vrot.slane %v3520, 7
        %v3523 = vshll.u32 %v3311, 16
        %v3525 = vor.u32 %v3522, %v3523
        %v3526 = vrot.slane %v3522, 4
        %v3528 = vshrl.u32 %v3312, 16
        %v3530 = vrot.slane %v3528, 7
        %v3531 = vshll.u32 %v3312, 16
        %v3533 = vor.u32 %v3530, %v3531
        %v3534 = vsel %vm535, %v3526, %v3533
        %v3535 = vrot.slane %v3530, 4
        %v3537 = vshrl.u32 %v3313, 16
        %v3539 = vrot.slane %v3537, 7
        %v3540 = vshll.u32 %v3313, 16
        %v3542 = vor.u32 %v3539, %v3540
        %v3543 = vrot.slane %v3539, 4
        %v3545 = vshrl.u32 %v3314, 16
        %v3547 = vrot.slane %v3545, 7
        %v3548 = vshll.u32 %v3314, 16
        %v3550 = vor.u32 %v3547, %v3548
        %v3551 = vsel %vm535, %v3543, %v3550
        %v3552 = vrot.slane %v3547, 4
        %v3554 = vshrl.u32 %v3315, 16
        %v3556 = vrot.slane %v3554, 7
        %v3557 = vshll.u32 %v3315, 16
        %v3559 = vor.u32 %v3556, %v3557
        %v3560 = vrot.slane %v3556, 4
        %v3562 = vshrl.u32 %v3316, 16
        %v3564 = vrot.slane %v3562, 7
        %v3565 = vshll.u32 %v3316, 16
        %v3567 = vor.u32 %v3564, %v3565
        %v3568 = vsel %vm535, %v3560, %v3567
        %v3569 = vrot.slane %v3564, 4
        %v3571 = vshrl.u32 %v3317, 16
        %v3573 = vrot.slane %v3571, 7
        %v3574 = vshll.u32 %v3317, 16
        %v3576 = vor.u32 %v3573, %v3574
        %v3577 = vrot.slane %v3573, 4
        %v3579 = vshrl.u32 %v3318, 16
        %v3581 = vrot.slane %v3579, 7
        %v3582 = vshll.u32 %v3318, 16
        %v3584 = vor.u32 %v3581, %v3582
        %v3585 = vsel %vm535, %v3577, %v3584
        %v3586 = vrot.slane %v3581, 4
        %v3588 = vshrl.u32 %v3319, 16
        %v3590 = vrot.slane %v3588, 7
        %v3591 = vshll.u32 %v3319, 16
        %v3593 = vor.u32 %v3590, %v3591
        %v3594 = vrot.slane %v3590, 4
        %v3596 = vshrl.u32 %v3320, 16
        %v3598 = vrot.slane %v3596, 7
        %v3599 = vshll.u32 %v3320, 16
        %v3601 = vor.u32 %v3598, %v3599
        %v3602 = vsel %vm535, %v3594, %v3601
        %v3603 = vrot.slane %v3598, 4
        %v3605 = vshrl.u32 %v3321, 16
        %v3607 = vrot.slane %v3605, 7
        %v3608 = vshll.u32 %v3321, 16
        %v3610 = vor.u32 %v3607, %v3608
        %v3611 = vrot.slane %v3607, 4
        %v3613 = vshrl.u32 %v3322, 16
        %v3615 = vrot.slane %v3613, 7
        %v3616 = vshll.u32 %v3322, 16
        %v3618 = vor.u32 %v3615, %v3616
        %v3619 = vsel %vm535, %v3611, %v3618
        %v3620 = vrot.slane %v3615, 4
        %v3622 = vshrl.u32 %v3323, 16
        %v3624 = vrot.slane %v3622, 7
        %v3625 = vshll.u32 %v3323, 16
        %v3627 = vor.u32 %v3624, %v3625
        %v3628 = vrot.slane %v3624, 4
        %v3630 = vshrl.u32 %v3324, 16
        %v3632 = vrot.slane %v3630, 7
        %v3633 = vshll.u32 %v3324, 16
        %v3635 = vor.u32 %v3632, %v3633
        %v3636 = vsel %vm535, %v3628, %v3635
        %v3637 = vrot.slane %v3632, 4
        %v3639 = vshrl.u32 %v3325, 16
        %v3641 = vrot.slane %v3639, 7
        %v3642 = vshll.u32 %v3325, 16
        %v3644 = vor.u32 %v3641, %v3642
        %v3645 = vrot.slane %v3641, 4
        %v3647 = vshrl.u32 %v3326, 16
        %v3649 = vrot.slane %v3647, 7
        %v3650 = vshll.u32 %v3326, 16
        %v3652 = vor.u32 %v3649, %v3650
        %v3653 = vsel %vm535, %v3645, %v3652
        %v3654 = vrot.slane %v3649, 4
        %3655 = vrot.lane.b32.xlu0 %v3389, 120
        %v3656 = vpop.permute.xlu0 %3655
        %3657 = vrot.lane.b32.xlu0 %v3398, 120
        %v3658 = vpop.permute.xlu0 %3657
        %3659 = vrot.lane.b32.xlu0 %v3399, 120
        %v3660 = vpop.permute.xlu0 %3659
        %3661 = vrot.lane.b32.xlu0 %v3406, 120
        %v3662 = vpop.permute.xlu0 %3661
        %3663 = vrot.lane.b32.xlu0 %v3415, 120
        %v3664 = vpop.permute.xlu0 %3663
        %3665 = vrot.lane.b32.xlu0 %v3416, 120
        %v3666 = vpop.permute.xlu0 %3665
        %3667 = vrot.lane.b32.xlu0 %v3423, 120
        %v3668 = vpop.permute.xlu0 %3667
        %3669 = vrot.lane.b32.xlu0 %v3432, 120
        %v3670 = vpop.permute.xlu0 %3669
        %3671 = vrot.lane.b32.xlu0 %v3433, 120
        %v3672 = vpop.permute.xlu0 %3671
        %3673 = vrot.lane.b32.xlu0 %v3440, 120
        %v3674 = vpop.permute.xlu0 %3673
        %3675 = vrot.lane.b32.xlu0 %v3449, 120
        %v3676 = vpop.permute.xlu0 %3675
        %3677 = vrot.lane.b32.xlu0 %v3450, 120
        %v3678 = vpop.permute.xlu0 %3677
        %3679 = vrot.lane.b32.xlu0 %v3457, 120
        %v3680 = vpop.permute.xlu0 %3679
        %3681 = vrot.lane.b32.xlu0 %v3466, 120
        %v3682 = vpop.permute.xlu0 %3681
        %3683 = vrot.lane.b32.xlu0 %v3467, 120
        %v3684 = vpop.permute.xlu0 %3683
        %3685 = vrot.lane.b32.xlu0 %v3474, 120
        %v3686 = vpop.permute.xlu0 %3685
        %3687 = vrot.lane.b32.xlu0 %v3483, 120
        %v3688 = vpop.permute.xlu0 %3687
        %3689 = vrot.lane.b32.xlu0 %v3484, 120
        %v3690 = vpop.permute.xlu0 %3689
        %3691 = vrot.lane.b32.xlu0 %v3491, 120
        %v3692 = vpop.permute.xlu0 %3691
        %3693 = vrot.lane.b32.xlu0 %v3500, 120
        %v3694 = vpop.permute.xlu0 %3693
        %3695 = vrot.lane.b32.xlu0 %v3501, 120
        %v3696 = vpop.permute.xlu0 %3695
        %3697 = vrot.lane.b32.xlu0 %v3508, 120
        %v3698 = vpop.permute.xlu0 %3697
        %3699 = vrot.lane.b32.xlu0 %v3517, 120
        %v3700 = vpop.permute.xlu0 %3699
        %3701 = vrot.lane.b32.xlu0 %v3518, 120
        %v3702 = vpop.permute.xlu0 %3701
        %3703 = vrot.lane.b32.xlu0 %v3525, 120
        %v3704 = vpop.permute.xlu0 %3703
        %3705 = vrot.lane.b32.xlu0 %v3534, 120
        %v3706 = vpop.permute.xlu0 %3705
        %3707 = vrot.lane.b32.xlu0 %v3535, 120
        %v3708 = vpop.permute.xlu0 %3707
        %3709 = vrot.lane.b32.xlu0 %v3542, 120
        %v3710 = vpop.permute.xlu0 %3709
        %3711 = vrot.lane.b32.xlu0 %v3551, 120
        %v3712 = vpop.permute.xlu0 %3711
        %3713 = vrot.lane.b32.xlu0 %v3552, 120
        %v3714 = vpop.permute.xlu0 %3713
        %3715 = vrot.lane.b32.xlu0 %v3559, 120
        %v3716 = vpop.permute.xlu0 %3715
        %3717 = vrot.lane.b32.xlu0 %v3568, 120
        %v3718 = vpop.permute.xlu0 %3717
        %3719 = vrot.lane.b32.xlu0 %v3569, 120
        %v3720 = vpop.permute.xlu0 %3719
        %3721 = vrot.lane.b32.xlu0 %v3576, 120
        %v3722 = vpop.permute.xlu0 %3721
        %3723 = vrot.lane.b32.xlu0 %v3585, 120
        %v3724 = vpop.permute.xlu0 %3723
        %3725 = vrot.lane.b32.xlu0 %v3586, 120
        %v3726 = vpop.permute.xlu0 %3725
        %3727 = vrot.lane.b32.xlu0 %v3593, 120
        %v3728 = vpop.permute.xlu0 %3727
        %3729 = vrot.lane.b32.xlu0 %v3602, 120
        %v3730 = vpop.permute.xlu0 %3729
        %3731 = vrot.lane.b32.xlu0 %v3603, 120
        %v3732 = vpop.permute.xlu0 %3731
        %3733 = vrot.lane.b32.xlu0 %v3610, 120
        %v3734 = vpop.permute.xlu0 %3733
        %3735 = vrot.lane.b32.xlu0 %v3619, 120
        %v3736 = vpop.permute.xlu0 %3735
        %3737 = vrot.lane.b32.xlu0 %v3620, 120
        %v3738 = vpop.permute.xlu0 %3737
        %3739 = vrot.lane.b32.xlu0 %v3627, 120
        %v3740 = vpop.permute.xlu0 %3739
        %3741 = vrot.lane.b32.xlu0 %v3636, 120
        %v3742 = vpop.permute.xlu0 %3741
        %3743 = vrot.lane.b32.xlu0 %v3637, 120
        %v3744 = vpop.permute.xlu0 %3743
        %3745 = vrot.lane.b32.xlu0 %v3644, 120
        %v3746 = vpop.permute.xlu0 %3745
        %3747 = vrot.lane.b32.xlu0 %v3653, 120
        %v3748 = vpop.permute.xlu0 %3747
        %3749 = vrot.lane.b32.xlu0 %v3654, 120
        %v3750 = vpop.permute.xlu0 %3749
        %s3799 = scalar_lea.vmem [#allocation3], 12
        %vm3800 = vcmask 27648
        %vm3801 = vmand %vm3800, %vm858
        %v3802 = vld [vmem:[%s3799] sm:$0xf]
        %v3803 = vsel %vm3801, %v3656, %v3802
        %3804 = vst [vmem:[%s3799] sm:$0xf] %v3803
        %3805 = vst.msk [vmem:[%s3799 + $0x4] sm:$0xf] %vm3327, %v3658
        %vm3806 = vcmask 24576
        %vm3807 = vmand %vm3806, %vm533
        %v3808 = vld [vmem:[%s3799 + $0x8] sm:$0x1]
        %v3809 = vsel %vm3807, %v3660, %v3808
        %3810 = vst [vmem:[%s3799 + $0x8] sm:$0x1] %v3809
        %v3811 = vld [vmem:[%s3799 + $0xc] sm:$0xf]
        %v3812 = vsel %vm3801, %v3662, %v3811
        %3813 = vst [vmem:[%s3799 + $0xc] sm:$0xf] %v3812
        %3814 = vst.msk [vmem:[%s3799 + $0x10] sm:$0xf] %vm3327, %v3664
        %v3815 = vld [vmem:[%s3799 + $0x14] sm:$0x1]
        %v3816 = vsel %vm3807, %v3666, %v3815
        %3817 = vst [vmem:[%s3799 + $0x14] sm:$0x1] %v3816
        %v3818 = vld [vmem:[%s3799 + $0x18] sm:$0xf]
        %v3819 = vsel %vm3801, %v3668, %v3818
        %3820 = vst [vmem:[%s3799 + $0x18] sm:$0xf] %v3819
        %3821 = vst.msk [vmem:[%s3799 + $0x1c] sm:$0xf] %vm3327, %v3670
        %v3822 = vld [vmem:[%s3799 + $0x20] sm:$0x1]
        %v3823 = vsel %vm3807, %v3672, %v3822
        %3824 = vst [vmem:[%s3799 + $0x20] sm:$0x1] %v3823
        %v3825 = vld [vmem:[%s3799 + $0x24] sm:$0xf]
        %v3826 = vsel %vm3801, %v3674, %v3825
        %3827 = vst [vmem:[%s3799 + $0x24] sm:$0xf] %v3826
        %3828 = vst.msk [vmem:[%s3799 + $0x28] sm:$0xf] %vm3327, %v3676
        %v3829 = vld [vmem:[%s3799 + $0x2c] sm:$0x1]
        %v3830 = vsel %vm3807, %v3678, %v3829
        %3831 = vst [vmem:[%s3799 + $0x2c] sm:$0x1] %v3830
        %v3832 = vld [vmem:[%s3799 + $0x30] sm:$0xf]
        %v3833 = vsel %vm3801, %v3680, %v3832
        %3834 = vst [vmem:[%s3799 + $0x30] sm:$0xf] %v3833
        %3835 = vst.msk [vmem:[%s3799 + $0x34] sm:$0xf] %vm3327, %v3682
        %v3836 = vld [vmem:[%s3799 + $0x38] sm:$0x1]
        %v3837 = vsel %vm3807, %v3684, %v3836
        %3838 = vst [vmem:[%s3799 + $0x38] sm:$0x1] %v3837
        %v3839 = vld [vmem:[%s3799 + $0x3c] sm:$0xf]
        %v3840 = vsel %vm3801, %v3686, %v3839
        %3841 = vst [vmem:[%s3799 + $0x3c] sm:$0xf] %v3840
        %3842 = vst.msk [vmem:[%s3799 + $0x40] sm:$0xf] %vm3327, %v3688
        %v3843 = vld [vmem:[%s3799 + $0x44] sm:$0x1]
        %v3844 = vsel %vm3807, %v3690, %v3843
        %3845 = vst [vmem:[%s3799 + $0x44] sm:$0x1] %v3844
        %v3846 = vld [vmem:[%s3799 + $0x48] sm:$0xf]
        %v3847 = vsel %vm3801, %v3692, %v3846
        %3848 = vst [vmem:[%s3799 + $0x48] sm:$0xf] %v3847
        %3849 = vst.msk [vmem:[%s3799 + $0x4c] sm:$0xf] %vm3327, %v3694
        %v3850 = vld [vmem:[%s3799 + $0x50] sm:$0x1]
        %v3851 = vsel %vm3807, %v3696, %v3850
        %3852 = vst [vmem:[%s3799 + $0x50] sm:$0x1] %v3851
        %v3853 = vld [vmem:[%s3799 + $0x54] sm:$0xf]
        %v3854 = vsel %vm3801, %v3698, %v3853
        %3855 = vst [vmem:[%s3799 + $0x54] sm:$0xf] %v3854
        %3856 = vst.msk [vmem:[%s3799 + $0x58] sm:$0xf] %vm3327, %v3700
        %v3857 = vld [vmem:[%s3799 + $0x5c] sm:$0x1]
        %v3858 = vsel %vm3807, %v3702, %v3857
        %3859 = vst [vmem:[%s3799 + $0x5c] sm:$0x1] %v3858
        %v3860 = vld [vmem:[%s3799 + $0x60] sm:$0xf]
        %v3861 = vsel %vm3801, %v3704, %v3860
        %3862 = vst [vmem:[%s3799 + $0x60] sm:$0xf] %v3861
        %3863 = vst.msk [vmem:[%s3799 + $0x64] sm:$0xf] %vm3327, %v3706
        %v3864 = vld [vmem:[%s3799 + $0x68] sm:$0x1]
        %v3865 = vsel %vm3807, %v3708, %v3864
        %3866 = vst [vmem:[%s3799 + $0x68] sm:$0x1] %v3865
        %v3867 = vld [vmem:[%s3799 + $0x6c] sm:$0xf]
        %v3868 = vsel %vm3801, %v3710, %v3867
        %3869 = vst [vmem:[%s3799 + $0x6c] sm:$0xf] %v3868
        %3870 = vst.msk [vmem:[%s3799 + $0x70] sm:$0xf] %vm3327, %v3712
        %v3871 = vld [vmem:[%s3799 + $0x74] sm:$0x1]
        %v3872 = vsel %vm3807, %v3714, %v3871
        %3873 = vst [vmem:[%s3799 + $0x74] sm:$0x1] %v3872
        %v3874 = vld [vmem:[%s3799 + $0x78] sm:$0xf]
        %v3875 = vsel %vm3801, %v3716, %v3874
        %3876 = vst [vmem:[%s3799 + $0x78] sm:$0xf] %v3875
        %3877 = vst.msk [vmem:[%s3799 + $0x7c] sm:$0xf] %vm3327, %v3718
        %v3878 = vld [vmem:[%s3799 + $0x80] sm:$0x1]
        %v3879 = vsel %vm3807, %v3720, %v3878
        %3880 = vst [vmem:[%s3799 + $0x80] sm:$0x1] %v3879
        %v3881 = vld [vmem:[%s3799 + $0x84] sm:$0xf]
        %v3882 = vsel %vm3801, %v3722, %v3881
        %3883 = vst [vmem:[%s3799 + $0x84] sm:$0xf] %v3882
        %3884 = vst.msk [vmem:[%s3799 + $0x88] sm:$0xf] %vm3327, %v3724
        %v3885 = vld [vmem:[%s3799 + $0x8c] sm:$0x1]
        %v3886 = vsel %vm3807, %v3726, %v3885
        %3887 = vst [vmem:[%s3799 + $0x8c] sm:$0x1] %v3886
        %v3888 = vld [vmem:[%s3799 + $0x90] sm:$0xf]
        %v3889 = vsel %vm3801, %v3728, %v3888
        %3890 = vst [vmem:[%s3799 + $0x90] sm:$0xf] %v3889
        %3891 = vst.msk [vmem:[%s3799 + $0x94] sm:$0xf] %vm3327, %v3730
        %v3892 = vld [vmem:[%s3799 + $0x98] sm:$0x1]
        %v3893 = vsel %vm3807, %v3732, %v3892
        %3894 = vst [vmem:[%s3799 + $0x98] sm:$0x1] %v3893
        %v3895 = vld [vmem:[%s3799 + $0x9c] sm:$0xf]
        %v3896 = vsel %vm3801, %v3734, %v3895
        %3897 = vst [vmem:[%s3799 + $0x9c] sm:$0xf] %v3896
        %3898 = vst.msk [vmem:[%s3799 + $0xa0] sm:$0xf] %vm3327, %v3736
        %v3899 = vld [vmem:[%s3799 + $0xa4] sm:$0x1]
        %v3900 = vsel %vm3807, %v3738, %v3899
        %3901 = vst [vmem:[%s3799 + $0xa4] sm:$0x1] %v3900
        %v3902 = vld [vmem:[%s3799 + $0xa8] sm:$0xf]
        %v3903 = vsel %vm3801, %v3740, %v3902
        %3904 = vst [vmem:[%s3799 + $0xa8] sm:$0xf] %v3903
        %3905 = vst.msk [vmem:[%s3799 + $0xac] sm:$0xf] %vm3327, %v3742
        %v3906 = vld [vmem:[%s3799 + $0xb0] sm:$0x1]
        %v3907 = vsel %vm3807, %v3744, %v3906
        %3908 = vst [vmem:[%s3799 + $0xb0] sm:$0x1] %v3907
        %v3909 = vld [vmem:[%s3799 + $0xb4] sm:$0xf]
        %v3910 = vsel %vm3801, %v3746, %v3909
        %3911 = vst [vmem:[%s3799 + $0xb4] sm:$0xf] %v3910
        %3912 = vst.msk [vmem:[%s3799 + $0xb8] sm:$0xf] %vm3327, %v3748
        %v3913 = vld [vmem:[%s3799 + $0xbc] sm:$0x1]
        %v3914 = vsel %vm3807, %v3750, %v3913
        %3915 = vst [vmem:[%s3799 + $0xbc] sm:$0x1] %v3914
        %v3916 = vld [vmem:[#allocation3] sm:$0xf]
        %v3917 = vld [vmem:[#allocation3 + $0x4] sm:$0xf]
        %v3918 = vld [vmem:[#allocation3 + $0xc] sm:$0xf]
        %v3919 = vld [vmem:[#allocation3 + $0x10] sm:$0xf]
        %v3920 = vld [vmem:[#allocation3 + $0x18] sm:$0xf]
        %v3921 = vld [vmem:[#allocation3 + $0x1c] sm:$0xf]
        %v3922 = vld [vmem:[#allocation3 + $0x24] sm:$0xf]
        %v3923 = vld [vmem:[#allocation3 + $0x28] sm:$0xf]
        %v3924 = vld [vmem:[#allocation3 + $0x30] sm:$0xf]
        %v3925 = vld [vmem:[#allocation3 + $0x34] sm:$0xf]
        %v3926 = vld [vmem:[#allocation3 + $0x3c] sm:$0xf]
        %v3927 = vld [vmem:[#allocation3 + $0x40] sm:$0xf]
        %v3928 = vld [vmem:[#allocation3 + $0x48] sm:$0xf]
        %v3929 = vld [vmem:[#allocation3 + $0x4c] sm:$0xf]
        %v3930 = vld [vmem:[#allocation3 + $0x54] sm:$0xf]
        %v3931 = vld [vmem:[#allocation3 + $0x58] sm:$0xf]
        %v3932 = vld [vmem:[#allocation3 + $0x60] sm:$0xf]
        %v3933 = vld [vmem:[#allocation3 + $0x64] sm:$0xf]
        %v3934 = vld [vmem:[#allocation3 + $0x6c] sm:$0xf]
        %v3935 = vld [vmem:[#allocation3 + $0x70] sm:$0xf]
        %v3936 = vld [vmem:[#allocation3 + $0x78] sm:$0xf]
        %v3937 = vld [vmem:[#allocation3 + $0x7c] sm:$0xf]
        %v3938 = vld [vmem:[#allocation3 + $0x84] sm:$0xf]
        %v3939 = vld [vmem:[#allocation3 + $0x88] sm:$0xf]
        %v3940 = vld [vmem:[#allocation3 + $0x90] sm:$0xf]
        %v3941 = vld [vmem:[#allocation3 + $0x94] sm:$0xf]
        %v3942 = vld [vmem:[#allocation3 + $0x9c] sm:$0xf]
        %v3943 = vld [vmem:[#allocation3 + $0xa0] sm:$0xf]
        %v3944 = vld [vmem:[#allocation3 + $0xa8] sm:$0xf]
        %v3945 = vld [vmem:[#allocation3 + $0xac] sm:$0xf]
        %v3946 = vld [vmem:[#allocation3 + $0xb4] sm:$0xf]
        %v3947 = vld [vmem:[#allocation3 + $0xb8] sm:$0xf]
        %v3948 = vld [vmem:[#allocation3 + $0xc0] sm:$0xf]
        %v3949 = vld [vmem:[#allocation3 + $0xc4] sm:$0xf]
        %v3950 = vld [vmem:[#allocation3 + $0xcc] sm:$0xf]
        %v3951 = vld [vmem:[#allocation3 + $0xd0] sm:$0xf]
        %v3952 = vld [vmem:[%s5] sm:$0x3]
        %v3953 = vld [vmem:[%s5 + $0x4] sm:$0xc]
        %v3986 = vunpack.c.l.b16 %v3918
        %v3987 = vunpack.c.l.b16 %v3919
        %v3988 = vunpack.c.l.b16 %v3920
        %v3989 = vunpack.c.l.b16 %v3921
        %v3990 = vunpack.c.l.b16 %v3922
        %v3991 = vunpack.c.l.b16 %v3923
        %v3992 = vunpack.c.l.b16 %v3924
        %v3993 = vunpack.c.l.b16 %v3925
        %v3994 = vunpack.c.l.b16 %v3926
        %v3995 = vunpack.c.l.b16 %v3927
        %v3996 = vunpack.c.l.b16 %v3928
        %v3997 = vunpack.c.l.b16 %v3929
        %v3998 = vunpack.c.l.b16 %v3930
        %v3999 = vunpack.c.l.b16 %v3931
        %v4000 = vunpack.c.l.b16 %v3932
        %v4001 = vunpack.c.l.b16 %v3933
        %v4002 = vunpack.c.l.b16 %v3934
        %v4003 = vunpack.c.l.b16 %v3935
        %v4004 = vunpack.c.l.b16 %v3936
        %v4005 = vunpack.c.l.b16 %v3937
        %v4006 = vunpack.c.l.b16 %v3938
        %v4007 = vunpack.c.l.b16 %v3939
        %v4008 = vunpack.c.l.b16 %v3940
        %v4009 = vunpack.c.l.b16 %v3941
        %v4010 = vunpack.c.l.b16 %v3942
        %v4011 = vunpack.c.l.b16 %v3943
        %v4012 = vunpack.c.l.b16 %v3944
        %v4013 = vunpack.c.l.b16 %v3945
        %v4014 = vunpack.c.l.b16 %v3946
        %v4015 = vunpack.c.l.b16 %v3947
        %v4016 = vunpack.c.l.b16 %v3948
        %v4017 = vunpack.c.l.b16 %v3949
        %v4018 = vpack.c.b16 %v3987, %v3986
        %v4019 = vpack.c.b16 %v3989, %v3988
        %v4020 = vpack.c.b16 %v3991, %v3990
        %v4021 = vpack.c.b16 %v3993, %v3992
        %v4022 = vpack.c.b16 %v3995, %v3994
        %v4023 = vpack.c.b16 %v3997, %v3996
        %v4024 = vpack.c.b16 %v3999, %v3998
        %v4025 = vpack.c.b16 %v4001, %v4000
        %v4026 = vpack.c.b16 %v4003, %v4002
        %v4027 = vpack.c.b16 %v4005, %v4004
        %v4028 = vpack.c.b16 %v4007, %v4006
        %v4029 = vpack.c.b16 %v4009, %v4008
        %v4030 = vpack.c.b16 %v4011, %v4010
        %v4031 = vpack.c.b16 %v4013, %v4012
        %v4032 = vpack.c.b16 %v4015, %v4014
        %v4033 = vpack.c.b16 %v4017, %v4016
        %v4035 = vunpack.c.l.b16 %v3953
        %v4036 = vpack.c.b16 %v4035, %v4035
        %v4037 = vrot.slane %v4036, 2
        %vm4038 = vcmask 31744
        %v4040 = vsel %vm4038, %v4018, 0
        %v4043 = vsel %vm4038, %v4019, 0
        %v4046 = vsel %vm4038, %v4020, 0
        %v4049 = vsel %vm4038, %v4021, 0
        %v4052 = vsel %vm4038, %v4022, 0
        %v4055 = vsel %vm4038, %v4023, 0
        %v4058 = vsel %vm4038, %v4024, 0
        %v4061 = vsel %vm4038, %v4025, 0
        %v4064 = vsel %vm4038, %v4026, 0
        %v4067 = vsel %vm4038, %v4027, 0
        %v4070 = vsel %vm4038, %v4028, 0
        %v4073 = vsel %vm4038, %v4029, 0
        %v4076 = vsel %vm4038, %v4030, 0
        %v4079 = vsel %vm4038, %v4031, 0
        %v4082 = vsel %vm4038, %v4032, 0
        %v4085 = vsel %vm4038, %v4033, 0
        %vm4087 = vcmask 1041408
        %v4089 = vsel %vm4087, %v4037, 0
        %4091 = vmatpush.bf16.msra.mxu0 0
        %4092 = vmatpush.bf16.msra.mxu0 0
        %4093 = vmatpush.bf16.msra.mxu0 0
        %4094 = vmatpush.bf16.msra.mxu0 0
        %4095 = vmatpush.bf16.msra.mxu0 0
        %4096 = vmatpush.bf16.msra.mxu0 0
        %4097 = vmatpush.bf16.msra.mxu0 0
        %4098 = vmatpush.bf16.msra.mxu0 %v4089
        %4099 = vmatmul.bf16.gmra.mxu0 %v4040
        %v4100 = vpop.f32.mrf.mxu0
        %v4101 = vadd.f32 0.0, %v4100
        %v4102 = vpop.f32.mrf.mxu0
        %v4103 = vadd.f32 0.0, %v4102
        %4104 = vmatmul.bf16.gmra.mxu0 %v4043
        %v4105 = vpop.f32.mrf.mxu0
        %v4106 = vadd.f32 0.0, %v4105
        %v4107 = vpop.f32.mrf.mxu0
        %v4108 = vadd.f32 0.0, %v4107
        %4109 = vmatmul.bf16.gmra.mxu0 %v4046
        %v4110 = vpop.f32.mrf.mxu0
        %v4111 = vadd.f32 0.0, %v4110
        %v4112 = vpop.f32.mrf.mxu0
        %v4113 = vadd.f32 0.0, %v4112
        %4114 = vmatmul.bf16.gmra.mxu0 %v4049
        %v4115 = vpop.f32.mrf.mxu0
        %v4116 = vadd.f32 0.0, %v4115
        %v4117 = vpop.f32.mrf.mxu0
        %v4118 = vadd.f32 0.0, %v4117
        %4119 = vmatmul.bf16.gmra.mxu0 %v4052
        %v4120 = vpop.f32.mrf.mxu0
        %v4121 = vadd.f32 0.0, %v4120
        %v4122 = vpop.f32.mrf.mxu0
        %v4123 = vadd.f32 0.0, %v4122
        %4124 = vmatmul.bf16.gmra.mxu0 %v4055
        %v4125 = vpop.f32.mrf.mxu0
        %v4126 = vadd.f32 0.0, %v4125
        %v4127 = vpop.f32.mrf.mxu0
        %v4128 = vadd.f32 0.0, %v4127
        %4129 = vmatmul.bf16.gmra.mxu0 %v4058
        %v4130 = vpop.f32.mrf.mxu0
        %v4131 = vadd.f32 0.0, %v4130
        %v4132 = vpop.f32.mrf.mxu0
        %v4133 = vadd.f32 0.0, %v4132
        %4134 = vmatmul.bf16.gmra.mxu0 %v4061
        %v4135 = vpop.f32.mrf.mxu0
        %v4136 = vadd.f32 0.0, %v4135
        %v4137 = vpop.f32.mrf.mxu0
        %v4138 = vadd.f32 0.0, %v4137
        %4139 = vmatmul.bf16.gmra.mxu0 %v4064
        %v4140 = vpop.f32.mrf.mxu0
        %v4141 = vadd.f32 0.0, %v4140
        %v4142 = vpop.f32.mrf.mxu0
        %v4143 = vadd.f32 0.0, %v4142
        %4144 = vmatmul.bf16.gmra.mxu0 %v4067
        %v4145 = vpop.f32.mrf.mxu0
        %v4146 = vadd.f32 0.0, %v4145
        %v4147 = vpop.f32.mrf.mxu0
        %v4148 = vadd.f32 0.0, %v4147
        %4149 = vmatmul.bf16.gmra.mxu0 %v4070
        %v4150 = vpop.f32.mrf.mxu0
        %v4151 = vadd.f32 0.0, %v4150
        %v4152 = vpop.f32.mrf.mxu0
        %v4153 = vadd.f32 0.0, %v4152
        %4154 = vmatmul.bf16.gmra.mxu0 %v4073
        %v4155 = vpop.f32.mrf.mxu0
        %v4156 = vadd.f32 0.0, %v4155
        %v4157 = vpop.f32.mrf.mxu0
        %v4158 = vadd.f32 0.0, %v4157
        %4159 = vmatmul.bf16.gmra.mxu0 %v4076
        %v4160 = vpop.f32.mrf.mxu0
        %v4161 = vadd.f32 0.0, %v4160
        %v4162 = vpop.f32.mrf.mxu0
        %v4163 = vadd.f32 0.0, %v4162
        %4164 = vmatmul.bf16.gmra.mxu0 %v4079
        %v4165 = vpop.f32.mrf.mxu0
        %v4166 = vadd.f32 0.0, %v4165
        %v4167 = vpop.f32.mrf.mxu0
        %v4168 = vadd.f32 0.0, %v4167
        %4169 = vmatmul.bf16.gmra.mxu0 %v4082
        %v4170 = vpop.f32.mrf.mxu0
        %v4171 = vadd.f32 0.0, %v4170
        %v4172 = vpop.f32.mrf.mxu0
        %v4173 = vadd.f32 0.0, %v4172
        %4174 = vmatmul.bf16.gmra.mxu0 %v4085
        %v4175 = vpop.f32.mrf.mxu0
        %v4176 = vadd.f32 0.0, %v4175
        %v4177 = vpop.f32.mrf.mxu0
        %v4178 = vadd.f32 0.0, %v4177
        %4179 = vdwg.mxu0
        %v4182 = vunpack.c.l.b16 %v3916
        %v4183 = vunpack.c.l.b16 %v3917
        %v4184 = vpack.c.b16 %v4183, %v4182
        %v4186 = vsel %vm4038, %v4184, 0
        %v4189 = vsel %vm4087, %v3952, 0
        %4191 = vmatpush.bf16.msra.mxu0 0
        %4192 = vmatpush.bf16.msra.mxu0 0
        %4193 = vmatpush.bf16.msra.mxu0 0
        %4194 = vmatpush.bf16.msra.mxu0 0
        %4195 = vmatpush.bf16.msra.mxu0 0
        %4196 = vmatpush.bf16.msra.mxu0 0
        %4197 = vmatpush.bf16.msra.mxu0 0
        %4198 = vmatpush.bf16.msra.mxu0 %v4189
        %4199 = vmatmul.bf16.gmra.mxu0 %v4186
        %v4200 = vpop.f32.mrf.mxu0
        %v4201 = vadd.f32 %v4101, %v4200
        %v4202 = vpop.f32.mrf.mxu0
        %v4203 = vadd.f32 %v4103, %v4202
        %4204 = vmatmul.bf16.gmra.mxu0 %v4040
        %v4205 = vpop.f32.mrf.mxu0
        %v4206 = vadd.f32 %v4106, %v4205
        %v4207 = vpop.f32.mrf.mxu0
        %v4208 = vadd.f32 %v4108, %v4207
        %4209 = vmatmul.bf16.gmra.mxu0 %v4043
        %v4210 = vpop.f32.mrf.mxu0
        %v4211 = vadd.f32 %v4111, %v4210
        %v4212 = vpop.f32.mrf.mxu0
        %v4213 = vadd.f32 %v4113, %v4212
        %4214 = vmatmul.bf16.gmra.mxu0 %v4046
        %v4215 = vpop.f32.mrf.mxu0
        %v4216 = vadd.f32 %v4116, %v4215
        %v4217 = vpop.f32.mrf.mxu0
        %v4218 = vadd.f32 %v4118, %v4217
        %4219 = vmatmul.bf16.gmra.mxu0 %v4049
        %v4220 = vpop.f32.mrf.mxu0
        %v4221 = vadd.f32 %v4121, %v4220
        %v4222 = vpop.f32.mrf.mxu0
        %v4223 = vadd.f32 %v4123, %v4222
        %4224 = vmatmul.bf16.gmra.mxu0 %v4052
        %v4225 = vpop.f32.mrf.mxu0
        %v4226 = vadd.f32 %v4126, %v4225
        %v4227 = vpop.f32.mrf.mxu0
        %v4228 = vadd.f32 %v4128, %v4227
        %4229 = vmatmul.bf16.gmra.mxu0 %v4055
        %v4230 = vpop.f32.mrf.mxu0
        %v4231 = vadd.f32 %v4131, %v4230
        %v4232 = vpop.f32.mrf.mxu0
        %v4233 = vadd.f32 %v4133, %v4232
        %4234 = vmatmul.bf16.gmra.mxu0 %v4058
        %v4235 = vpop.f32.mrf.mxu0
        %v4236 = vadd.f32 %v4136, %v4235
        %v4237 = vpop.f32.mrf.mxu0
        %v4238 = vadd.f32 %v4138, %v4237
        %4239 = vmatmul.bf16.gmra.mxu0 %v4061
        %v4240 = vpop.f32.mrf.mxu0
        %v4241 = vadd.f32 %v4141, %v4240
        %v4242 = vpop.f32.mrf.mxu0
        %v4243 = vadd.f32 %v4143, %v4242
        %4244 = vmatmul.bf16.gmra.mxu0 %v4064
        %v4245 = vpop.f32.mrf.mxu0
        %v4246 = vadd.f32 %v4146, %v4245
        %v4247 = vpop.f32.mrf.mxu0
        %v4248 = vadd.f32 %v4148, %v4247
        %4249 = vmatmul.bf16.gmra.mxu0 %v4067
        %v4250 = vpop.f32.mrf.mxu0
        %v4251 = vadd.f32 %v4151, %v4250
        %v4252 = vpop.f32.mrf.mxu0
        %v4253 = vadd.f32 %v4153, %v4252
        %4254 = vmatmul.bf16.gmra.mxu0 %v4070
        %v4255 = vpop.f32.mrf.mxu0
        %v4256 = vadd.f32 %v4156, %v4255
        %v4257 = vpop.f32.mrf.mxu0
        %v4258 = vadd.f32 %v4158, %v4257
        %4259 = vmatmul.bf16.gmra.mxu0 %v4073
        %v4260 = vpop.f32.mrf.mxu0
        %v4261 = vadd.f32 %v4161, %v4260
        %v4262 = vpop.f32.mrf.mxu0
        %v4263 = vadd.f32 %v4163, %v4262
        %4264 = vmatmul.bf16.gmra.mxu0 %v4076
        %v4265 = vpop.f32.mrf.mxu0
        %v4266 = vadd.f32 %v4166, %v4265
        %v4267 = vpop.f32.mrf.mxu0
        %v4268 = vadd.f32 %v4168, %v4267
        %4269 = vmatmul.bf16.gmra.mxu0 %v4079
        %v4270 = vpop.f32.mrf.mxu0
        %v4271 = vadd.f32 %v4171, %v4270
        %v4272 = vpop.f32.mrf.mxu0
        %v4273 = vadd.f32 %v4173, %v4272
        %4274 = vmatmul.bf16.gmra.mxu0 %v4082
        %v4275 = vpop.f32.mrf.mxu0
        %v4276 = vadd.f32 %v4176, %v4275
        %v4277 = vpop.f32.mrf.mxu0
        %v4278 = vadd.f32 %v4178, %v4277
        %4279 = vdwg.mxu0
        %v4280 = vld [vmem:[%s5 + $0xc] sm:$0x3]
        %v4283 = vunpack.c.l.b16 %v3950
        %v4284 = vunpack.c.l.b16 %v3951
        %v4285 = vpack.c.b16 %v4284, %v4283
        %v4287 = vsel %vm4038, %v4285, 0
        %v4290 = vsel %vm4087, %v4280, 0
        %4292 = vmatpush.bf16.msra.mxu0 0
        %4293 = vmatpush.bf16.msra.mxu0 0
        %4294 = vmatpush.bf16.msra.mxu0 0
        %4295 = vmatpush.bf16.msra.mxu0 0
        %4296 = vmatpush.bf16.msra.mxu0 0
        %4297 = vmatpush.bf16.msra.mxu0 0
        %4298 = vmatpush.bf16.msra.mxu0 0
        %4299 = vmatpush.bf16.msra.mxu0 %v4290
        %4300 = vmatmul.bf16.gmra.mxu0 %v4043
        %v4301 = vpop.f32.mrf.mxu0
        %v4302 = vadd.f32 0.0, %v4301
        %v4303 = vpop.f32.mrf.mxu0
        %v4304 = vadd.f32 0.0, %v4303
        %4305 = vmatmul.bf16.gmra.mxu0 %v4046
        %v4306 = vpop.f32.mrf.mxu0
        %v4307 = vadd.f32 0.0, %v4306
        %v4308 = vpop.f32.mrf.mxu0
        %v4309 = vadd.f32 0.0, %v4308
        %4310 = vmatmul.bf16.gmra.mxu0 %v4049
        %v4311 = vpop.f32.mrf.mxu0
        %v4312 = vadd.f32 0.0, %v4311
        %v4313 = vpop.f32.mrf.mxu0
        %v4314 = vadd.f32 0.0, %v4313
        %4315 = vmatmul.bf16.gmra.mxu0 %v4052
        %v4316 = vpop.f32.mrf.mxu0
        %v4317 = vadd.f32 0.0, %v4316
        %v4318 = vpop.f32.mrf.mxu0
        %v4319 = vadd.f32 0.0, %v4318
        %4320 = vmatmul.bf16.gmra.mxu0 %v4055
        %v4321 = vpop.f32.mrf.mxu0
        %v4322 = vadd.f32 0.0, %v4321
        %v4323 = vpop.f32.mrf.mxu0
        %v4324 = vadd.f32 0.0, %v4323
        %4325 = vmatmul.bf16.gmra.mxu0 %v4058
        %v4326 = vpop.f32.mrf.mxu0
        %v4327 = vadd.f32 0.0, %v4326
        %v4328 = vpop.f32.mrf.mxu0
        %v4329 = vadd.f32 0.0, %v4328
        %4330 = vmatmul.bf16.gmra.mxu0 %v4061
        %v4331 = vpop.f32.mrf.mxu0
        %v4332 = vadd.f32 0.0, %v4331
        %v4333 = vpop.f32.mrf.mxu0
        %v4334 = vadd.f32 0.0, %v4333
        %4335 = vmatmul.bf16.gmra.mxu0 %v4064
        %v4336 = vpop.f32.mrf.mxu0
        %v4337 = vadd.f32 0.0, %v4336
        %v4338 = vpop.f32.mrf.mxu0
        %v4339 = vadd.f32 0.0, %v4338
        %4340 = vmatmul.bf16.gmra.mxu0 %v4067
        %v4341 = vpop.f32.mrf.mxu0
        %v4342 = vadd.f32 0.0, %v4341
        %v4343 = vpop.f32.mrf.mxu0
        %v4344 = vadd.f32 0.0, %v4343
        %4345 = vmatmul.bf16.gmra.mxu0 %v4070
        %v4346 = vpop.f32.mrf.mxu0
        %v4347 = vadd.f32 0.0, %v4346
        %v4348 = vpop.f32.mrf.mxu0
        %v4349 = vadd.f32 0.0, %v4348
        %4350 = vmatmul.bf16.gmra.mxu0 %v4073
        %v4351 = vpop.f32.mrf.mxu0
        %v4352 = vadd.f32 0.0, %v4351
        %v4353 = vpop.f32.mrf.mxu0
        %v4354 = vadd.f32 0.0, %v4353
        %4355 = vmatmul.bf16.gmra.mxu0 %v4076
        %v4356 = vpop.f32.mrf.mxu0
        %v4357 = vadd.f32 0.0, %v4356
        %v4358 = vpop.f32.mrf.mxu0
        %v4359 = vadd.f32 0.0, %v4358
        %4360 = vmatmul.bf16.gmra.mxu0 %v4079
        %v4361 = vpop.f32.mrf.mxu0
        %v4362 = vadd.f32 0.0, %v4361
        %v4363 = vpop.f32.mrf.mxu0
        %v4364 = vadd.f32 0.0, %v4363
        %4365 = vmatmul.bf16.gmra.mxu0 %v4082
        %v4366 = vpop.f32.mrf.mxu0
        %v4367 = vadd.f32 0.0, %v4366
        %v4368 = vpop.f32.mrf.mxu0
        %v4369 = vadd.f32 0.0, %v4368
        %4370 = vmatmul.bf16.gmra.mxu0 %v4085
        %v4371 = vpop.f32.mrf.mxu0
        %v4372 = vadd.f32 0.0, %v4371
        %v4373 = vpop.f32.mrf.mxu0
        %v4374 = vadd.f32 0.0, %v4373
        %4375 = vmatmul.bf16.gmra.mxu0 %v4287
        %v4376 = vpop.f32.mrf.mxu0
        %v4377 = vadd.f32 0.0, %v4376
        %v4378 = vpop.f32.mrf.mxu0
        %v4379 = vadd.f32 0.0, %v4378
        %4380 = vdwg.mxu0
        %v4381 = vadd.f32 %v4201, %v4302
        %v4382 = vadd.f32 %v4203, %v4304
        %v4383 = vadd.f32 %v4206, %v4307
        %v4384 = vadd.f32 %v4208, %v4309
        %v4385 = vadd.f32 %v4211, %v4312
        %v4386 = vadd.f32 %v4213, %v4314
        %v4387 = vadd.f32 %v4216, %v4317
        %v4388 = vadd.f32 %v4218, %v4319
        %v4389 = vadd.f32 %v4221, %v4322
        %v4390 = vadd.f32 %v4223, %v4324
        %v4391 = vadd.f32 %v4226, %v4327
        %v4392 = vadd.f32 %v4228, %v4329
        %v4393 = vadd.f32 %v4231, %v4332
        %v4394 = vadd.f32 %v4233, %v4334
        %v4395 = vadd.f32 %v4236, %v4337
        %v4396 = vadd.f32 %v4238, %v4339
        %v4397 = vadd.f32 %v4241, %v4342
        %v4398 = vadd.f32 %v4243, %v4344
        %v4399 = vadd.f32 %v4246, %v4347
        %v4400 = vadd.f32 %v4248, %v4349
        %v4401 = vadd.f32 %v4251, %v4352
        %v4402 = vadd.f32 %v4253, %v4354
        %v4403 = vadd.f32 %v4256, %v4357
        %v4404 = vadd.f32 %v4258, %v4359
        %v4405 = vadd.f32 %v4261, %v4362
        %v4406 = vadd.f32 %v4263, %v4364
        %v4407 = vadd.f32 %v4266, %v4367
        %v4408 = vadd.f32 %v4268, %v4369
        %v4409 = vadd.f32 %v4271, %v4372
        %v4410 = vadd.f32 %v4273, %v4374
        %v4411 = vadd.f32 %v4276, %v4377
        %v4412 = vadd.f32 %v4278, %v4379
        %v4413 = vld [vmem:[#allocation3] sm:$0xf]
        %v4414 = vld [vmem:[#allocation3 + $0x4] sm:$0xf]
        %v4415 = vld [vmem:[#allocation3 + $0x8] sm:$0x1]
        %v4416 = vld [vmem:[#allocation3 + $0xc] sm:$0xf]
        %v4417 = vld [vmem:[#allocation3 + $0x10] sm:$0xf]
        %v4418 = vld [vmem:[#allocation3 + $0x14] sm:$0x1]
        %v4419 = vld [vmem:[#allocation3 + $0x18] sm:$0xf]
        %v4420 = vld [vmem:[#allocation3 + $0x1c] sm:$0xf]
        %v4421 = vld [vmem:[#allocation3 + $0x20] sm:$0x1]
        %v4422 = vld [vmem:[#allocation3 + $0x24] sm:$0xf]
        %v4423 = vld [vmem:[#allocation3 + $0x28] sm:$0xf]
        %v4424 = vld [vmem:[#allocation3 + $0x2c] sm:$0x1]
        %v4425 = vld [vmem:[#allocation3 + $0x30] sm:$0xf]
        %v4426 = vld [vmem:[#allocation3 + $0x34] sm:$0xf]
        %v4427 = vld [vmem:[#allocation3 + $0x38] sm:$0x1]
        %v4428 = vld [vmem:[#allocation3 + $0x3c] sm:$0xf]
        %v4429 = vld [vmem:[#allocation3 + $0x40] sm:$0xf]
        %v4430 = vld [vmem:[#allocation3 + $0x44] sm:$0x1]
        %v4431 = vld [vmem:[#allocation3 + $0x48] sm:$0xf]
        %v4432 = vld [vmem:[#allocation3 + $0x4c] sm:$0xf]
        %v4433 = vld [vmem:[#allocation3 + $0x50] sm:$0x1]
        %v4434 = vld [vmem:[#allocation3 + $0x54] sm:$0xf]
        %v4435 = vld [vmem:[#allocation3 + $0x58] sm:$0xf]
        %v4436 = vld [vmem:[#allocation3 + $0x5c] sm:$0x1]
        %v4437 = vld [vmem:[#allocation3 + $0x60] sm:$0xf]
        %v4438 = vld [vmem:[#allocation3 + $0x64] sm:$0xf]
        %v4439 = vld [vmem:[#allocation3 + $0x68] sm:$0x1]
        %v4440 = vld [vmem:[#allocation3 + $0x6c] sm:$0xf]
        %v4441 = vld [vmem:[#allocation3 + $0x70] sm:$0xf]
        %v4442 = vld [vmem:[#allocation3 + $0x74] sm:$0x1]
        %v4443 = vld [vmem:[#allocation3 + $0x78] sm:$0xf]
        %v4444 = vld [vmem:[#allocation3 + $0x7c] sm:$0xf]
        %v4445 = vld [vmem:[#allocation3 + $0x80] sm:$0x1]
        %v4446 = vld [vmem:[#allocation3 + $0x84] sm:$0xf]
        %v4447 = vld [vmem:[#allocation3 + $0x88] sm:$0xf]
        %v4448 = vld [vmem:[#allocation3 + $0x8c] sm:$0x1]
        %v4449 = vld [vmem:[#allocation3 + $0x90] sm:$0xf]
        %v4450 = vld [vmem:[#allocation3 + $0x94] sm:$0xf]
        %v4451 = vld [vmem:[#allocation3 + $0x98] sm:$0x1]
        %v4452 = vld [vmem:[#allocation3 + $0x9c] sm:$0xf]
        %v4453 = vld [vmem:[#allocation3 + $0xa0] sm:$0xf]
        %v4454 = vld [vmem:[#allocation3 + $0xa4] sm:$0x1]
        %v4455 = vld [vmem:[#allocation3 + $0xa8] sm:$0xf]
        %v4456 = vld [vmem:[#allocation3 + $0xac] sm:$0xf]
        %v4457 = vld [vmem:[#allocation3 + $0xb0] sm:$0x1]
        %v4458 = vld [vmem:[#allocation3 + $0xb4] sm:$0xf]
        %v4459 = vld [vmem:[#allocation3 + $0xb8] sm:$0xf]
        %v4460 = vld [vmem:[#allocation3 + $0xbc] sm:$0x1]
        %v4461 = vld [vmem:[#allocation3 + $0xc0] sm:$0xf]
        %v4462 = vld [vmem:[#allocation3 + $0xc4] sm:$0xf]
        %v4463 = vld [vmem:[#allocation3 + $0xc8] sm:$0x1]
        %v4464 = vld [vmem:[#allocation3 + $0xcc] sm:$0xf]
        %v4465 = vld [vmem:[#allocation3 + $0xd0] sm:$0xf]
        %v4466 = vld [vmem:[#allocation3 + $0xd4] sm:$0x1]
        %v4468 = vshrl.u32 %v4413, 16
        %v4470 = vrot.slane %v4468, 4
        %v4471 = vshll.u32 %v4413, 16
        %v4473 = vrot.slane %v4471, 5
        %v4474 = vor.u32 %v4470, %v4473
        %v4475 = vrot.slane %v4474, 4
        %v4477 = vshll.u32 %v4414, 16
        %v4479 = vrot.slane %v4477, 5
        %v4480 = vsel %vm1523, %v4475, %v4479
        %v4481 = vshrl.u32 %v4414, 16
        %v4483 = vrot.slane %v4481, 4
        %v4484 = vor.u32 %v4483, %v4479
        %v4485 = vrot.slane %v4484, 4
        %v4487 = vshll.u32 %v4415, 16
        %v4489 = vrot.slane %v4487, 5
        %v4490 = vsel %vm1523, %v4485, %v4489
        %v4492 = vshrl.u32 %v4416, 16
        %v4494 = vrot.slane %v4492, 4
        %v4495 = vshll.u32 %v4416, 16
        %v4497 = vrot.slane %v4495, 5
        %v4498 = vor.u32 %v4494, %v4497
        %v4499 = vrot.slane %v4498, 4
        %v4501 = vshll.u32 %v4417, 16
        %v4503 = vrot.slane %v4501, 5
        %v4504 = vsel %vm1523, %v4499, %v4503
        %v4505 = vshrl.u32 %v4417, 16
        %v4507 = vrot.slane %v4505, 4
        %v4508 = vor.u32 %v4507, %v4503
        %v4509 = vrot.slane %v4508, 4
        %v4511 = vshll.u32 %v4418, 16
        %v4513 = vrot.slane %v4511, 5
        %v4514 = vsel %vm1523, %v4509, %v4513
        %v4516 = vshrl.u32 %v4419, 16
        %v4518 = vrot.slane %v4516, 4
        %v4519 = vshll.u32 %v4419, 16
        %v4521 = vrot.slane %v4519, 5
        %v4522 = vor.u32 %v4518, %v4521
        %v4523 = vrot.slane %v4522, 4
        %v4525 = vshll.u32 %v4420, 16
        %v4527 = vrot.slane %v4525, 5
        %v4528 = vsel %vm1523, %v4523, %v4527
        %v4529 = vshrl.u32 %v4420, 16
        %v4531 = vrot.slane %v4529, 4
        %v4532 = vor.u32 %v4531, %v4527
        %v4533 = vrot.slane %v4532, 4
        %v4535 = vshll.u32 %v4421, 16
        %v4537 = vrot.slane %v4535, 5
        %v4538 = vsel %vm1523, %v4533, %v4537
        %v4540 = vshrl.u32 %v4422, 16
        %v4542 = vrot.slane %v4540, 4
        %v4543 = vshll.u32 %v4422, 16
        %v4545 = vrot.slane %v4543, 5
        %v4546 = vor.u32 %v4542, %v4545
        %v4547 = vrot.slane %v4546, 4
        %v4549 = vshll.u32 %v4423, 16
        %v4551 = vrot.slane %v4549, 5
        %v4552 = vsel %vm1523, %v4547, %v4551
        %v4553 = vshrl.u32 %v4423, 16
        %v4555 = vrot.slane %v4553, 4
        %v4556 = vor.u32 %v4555, %v4551
        %v4557 = vrot.slane %v4556, 4
        %v4559 = vshll.u32 %v4424, 16
        %v4561 = vrot.slane %v4559, 5
        %v4562 = vsel %vm1523, %v4557, %v4561
        %v4564 = vshrl.u32 %v4425, 16
        %v4566 = vrot.slane %v4564, 4
        %v4567 = vshll.u32 %v4425, 16
        %v4569 = vrot.slane %v4567, 5
        %v4570 = vor.u32 %v4566, %v4569
        %v4571 = vrot.slane %v4570, 4
        %v4573 = vshll.u32 %v4426, 16
        %v4575 = vrot.slane %v4573, 5
        %v4576 = vsel %vm1523, %v4571, %v4575
        %v4577 = vshrl.u32 %v4426, 16
        %v4579 = vrot.slane %v4577, 4
        %v4580 = vor.u32 %v4579, %v4575
        %v4581 = vrot.slane %v4580, 4
        %v4583 = vshll.u32 %v4427, 16
        %v4585 = vrot.slane %v4583, 5
        %v4586 = vsel %vm1523, %v4581, %v4585
        %v4588 = vshrl.u32 %v4428, 16
        %v4590 = vrot.slane %v4588, 4
        %v4591 = vshll.u32 %v4428, 16
        %v4593 = vrot.slane %v4591, 5
        %v4594 = vor.u32 %v4590, %v4593
        %v4595 = vrot.slane %v4594, 4
        %v4597 = vshll.u32 %v4429, 16
        %v4599 = vrot.slane %v4597, 5
        %v4600 = vsel %vm1523, %v4595, %v4599
        %v4601 = vshrl.u32 %v4429, 16
        %v4603 = vrot.slane %v4601, 4
        %v4604 = vor.u32 %v4603, %v4599
        %v4605 = vrot.slane %v4604, 4
        %v4607 = vshll.u32 %v4430, 16
        %v4609 = vrot.slane %v4607, 5
        %v4610 = vsel %vm1523, %v4605, %v4609
        %v4612 = vshrl.u32 %v4431, 16
        %v4614 = vrot.slane %v4612, 4
        %v4615 = vshll.u32 %v4431, 16
        %v4617 = vrot.slane %v4615, 5
        %v4618 = vor.u32 %v4614, %v4617
        %v4619 = vrot.slane %v4618, 4
        %v4621 = vshll.u32 %v4432, 16
        %v4623 = vrot.slane %v4621, 5
        %v4624 = vsel %vm1523, %v4619, %v4623
        %v4625 = vshrl.u32 %v4432, 16
        %v4627 = vrot.slane %v4625, 4
        %v4628 = vor.u32 %v4627, %v4623
        %v4629 = vrot.slane %v4628, 4
        %v4631 = vshll.u32 %v4433, 16
        %v4633 = vrot.slane %v4631, 5
        %v4634 = vsel %vm1523, %v4629, %v4633
        %v4636 = vshrl.u32 %v4434, 16
        %v4638 = vrot.slane %v4636, 4
        %v4639 = vshll.u32 %v4434, 16
        %v4641 = vrot.slane %v4639, 5
        %v4642 = vor.u32 %v4638, %v4641
        %v4643 = vrot.slane %v4642, 4
        %v4645 = vshll.u32 %v4435, 16
        %v4647 = vrot.slane %v4645, 5
        %v4648 = vsel %vm1523, %v4643, %v4647
        %v4649 = vshrl.u32 %v4435, 16
        %v4651 = vrot.slane %v4649, 4
        %v4652 = vor.u32 %v4651, %v4647
        %v4653 = vrot.slane %v4652, 4
        %v4655 = vshll.u32 %v4436, 16
        %v4657 = vrot.slane %v4655, 5
        %v4658 = vsel %vm1523, %v4653, %v4657
        %v4660 = vshrl.u32 %v4437, 16
        %v4662 = vrot.slane %v4660, 4
        %v4663 = vshll.u32 %v4437, 16
        %v4665 = vrot.slane %v4663, 5
        %v4666 = vor.u32 %v4662, %v4665
        %v4667 = vrot.slane %v4666, 4
        %v4669 = vshll.u32 %v4438, 16
        %v4671 = vrot.slane %v4669, 5
        %v4672 = vsel %vm1523, %v4667, %v4671
        %v4673 = vshrl.u32 %v4438, 16
        %v4675 = vrot.slane %v4673, 4
        %v4676 = vor.u32 %v4675, %v4671
        %v4677 = vrot.slane %v4676, 4
        %v4679 = vshll.u32 %v4439, 16
        %v4681 = vrot.slane %v4679, 5
        %v4682 = vsel %vm1523, %v4677, %v4681
        %v4684 = vshrl.u32 %v4440, 16
        %v4686 = vrot.slane %v4684, 4
        %v4687 = vshll.u32 %v4440, 16
        %v4689 = vrot.slane %v4687, 5
        %v4690 = vor.u32 %v4686, %v4689
        %v4691 = vrot.slane %v4690, 4
        %v4693 = vshll.u32 %v4441, 16
        %v4695 = vrot.slane %v4693, 5
        %v4696 = vsel %vm1523, %v4691, %v4695
        %v4697 = vshrl.u32 %v4441, 16
        %v4699 = vrot.slane %v4697, 4
        %v4700 = vor.u32 %v4699, %v4695
        %v4701 = vrot.slane %v4700, 4
        %v4703 = vshll.u32 %v4442, 16
        %v4705 = vrot.slane %v4703, 5
        %v4706 = vsel %vm1523, %v4701, %v4705
        %v4708 = vshrl.u32 %v4443, 16
        %v4710 = vrot.slane %v4708, 4
        %v4711 = vshll.u32 %v4443, 16
        %v4713 = vrot.slane %v4711, 5
        %v4714 = vor.u32 %v4710, %v4713
        %v4715 = vrot.slane %v4714, 4
        %v4717 = vshll.u32 %v4444, 16
        %v4719 = vrot.slane %v4717, 5
        %v4720 = vsel %vm1523, %v4715, %v4719
        %v4721 = vshrl.u32 %v4444, 16
        %v4723 = vrot.slane %v4721, 4
        %v4724 = vor.u32 %v4723, %v4719
        %v4725 = vrot.slane %v4724, 4
        %v4727 = vshll.u32 %v4445, 16
        %v4729 = vrot.slane %v4727, 5
        %v4730 = vsel %vm1523, %v4725, %v4729
        %v4732 = vshrl.u32 %v4446, 16
        %v4734 = vrot.slane %v4732, 4
        %v4735 = vshll.u32 %v4446, 16
        %v4737 = vrot.slane %v4735, 5
        %v4738 = vor.u32 %v4734, %v4737
        %v4739 = vrot.slane %v4738, 4
        %v4741 = vshll.u32 %v4447, 16
        %v4743 = vrot.slane %v4741, 5
        %v4744 = vsel %vm1523, %v4739, %v4743
        %v4745 = vshrl.u32 %v4447, 16
        %v4747 = vrot.slane %v4745, 4
        %v4748 = vor.u32 %v4747, %v4743
        %v4749 = vrot.slane %v4748, 4
        %v4751 = vshll.u32 %v4448, 16
        %v4753 = vrot.slane %v4751, 5
        %v4754 = vsel %vm1523, %v4749, %v4753
        %v4756 = vshrl.u32 %v4449, 16
        %v4758 = vrot.slane %v4756, 4
        %v4759 = vshll.u32 %v4449, 16
        %v4761 = vrot.slane %v4759, 5
        %v4762 = vor.u32 %v4758, %v4761
        %v4763 = vrot.slane %v4762, 4
        %v4765 = vshll.u32 %v4450, 16
        %v4767 = vrot.slane %v4765, 5
        %v4768 = vsel %vm1523, %v4763, %v4767
        %v4769 = vshrl.u32 %v4450, 16
        %v4771 = vrot.slane %v4769, 4
        %v4772 = vor.u32 %v4771, %v4767
        %v4773 = vrot.slane %v4772, 4
        %v4775 = vshll.u32 %v4451, 16
        %v4777 = vrot.slane %v4775, 5
        %v4778 = vsel %vm1523, %v4773, %v4777
        %v4780 = vshrl.u32 %v4452, 16
        %v4782 = vrot.slane %v4780, 4
        %v4783 = vshll.u32 %v4452, 16
        %v4785 = vrot.slane %v4783, 5
        %v4786 = vor.u32 %v4782, %v4785
        %v4787 = vrot.slane %v4786, 4
        %v4789 = vshll.u32 %v4453, 16
        %v4791 = vrot.slane %v4789, 5
        %v4792 = vsel %vm1523, %v4787, %v4791
        %v4793 = vshrl.u32 %v4453, 16
        %v4795 = vrot.slane %v4793, 4
        %v4796 = vor.u32 %v4795, %v4791
        %v4797 = vrot.slane %v4796, 4
        %v4799 = vshll.u32 %v4454, 16
        %v4801 = vrot.slane %v4799, 5
        %v4802 = vsel %vm1523, %v4797, %v4801
        %v4804 = vshrl.u32 %v4455, 16
        %v4806 = vrot.slane %v4804, 4
        %v4807 = vshll.u32 %v4455, 16
        %v4809 = vrot.slane %v4807, 5
        %v4810 = vor.u32 %v4806, %v4809
        %v4811 = vrot.slane %v4810, 4
        %v4813 = vshll.u32 %v4456, 16
        %v4815 = vrot.slane %v4813, 5
        %v4816 = vsel %vm1523, %v4811, %v4815
        %v4817 = vshrl.u32 %v4456, 16
        %v4819 = vrot.slane %v4817, 4
        %v4820 = vor.u32 %v4819, %v4815
        %v4821 = vrot.slane %v4820, 4
        %v4823 = vshll.u32 %v4457, 16
        %v4825 = vrot.slane %v4823, 5
        %v4826 = vsel %vm1523, %v4821, %v4825
        %v4828 = vshrl.u32 %v4458, 16
        %v4830 = vrot.slane %v4828, 4
        %v4831 = vshll.u32 %v4458, 16
        %v4833 = vrot.slane %v4831, 5
        %v4834 = vor.u32 %v4830, %v4833
        %v4835 = vrot.slane %v4834, 4
        %v4837 = vshll.u32 %v4459, 16
        %v4839 = vrot.slane %v4837, 5
        %v4840 = vsel %vm1523, %v4835, %v4839
        %v4841 = vshrl.u32 %v4459, 16
        %v4843 = vrot.slane %v4841, 4
        %v4844 = vor.u32 %v4843, %v4839
        %v4845 = vrot.slane %v4844, 4
        %v4847 = vshll.u32 %v4460, 16
        %v4849 = vrot.slane %v4847, 5
        %v4850 = vsel %vm1523, %v4845, %v4849
        %v4851 = vld [vmem:[%s5] sm:$0xc]
        %v4852 = vunpack.c.l.b16 %v4480
        %v4853 = vunpack.c.l.b16 %v4490
        %v4854 = vunpack.c.l.b16 %v4504
        %v4855 = vunpack.c.l.b16 %v4514
        %v4856 = vunpack.c.l.b16 %v4528
        %v4857 = vunpack.c.l.b16 %v4538
        %v4858 = vunpack.c.l.b16 %v4552
        %v4859 = vunpack.c.l.b16 %v4562
        %v4860 = vunpack.c.l.b16 %v4576
        %v4861 = vunpack.c.l.b16 %v4586
        %v4862 = vunpack.c.l.b16 %v4600
        %v4863 = vunpack.c.l.b16 %v4610
        %v4864 = vunpack.c.l.b16 %v4624
        %v4865 = vunpack.c.l.b16 %v4634
        %v4866 = vunpack.c.l.b16 %v4648
        %v4867 = vunpack.c.l.b16 %v4658
        %v4868 = vunpack.c.l.b16 %v4672
        %v4869 = vunpack.c.l.b16 %v4682
        %v4870 = vunpack.c.l.b16 %v4696
        %v4871 = vunpack.c.l.b16 %v4706
        %v4872 = vunpack.c.l.b16 %v4720
        %v4873 = vunpack.c.l.b16 %v4730
        %v4874 = vunpack.c.l.b16 %v4744
        %v4875 = vunpack.c.l.b16 %v4754
        %v4876 = vunpack.c.l.b16 %v4768
        %v4877 = vunpack.c.l.b16 %v4778
        %v4878 = vunpack.c.l.b16 %v4792
        %v4879 = vunpack.c.l.b16 %v4802
        %v4880 = vunpack.c.l.b16 %v4816
        %v4881 = vunpack.c.l.b16 %v4826
        %v4882 = vunpack.c.l.b16 %v4840
        %v4883 = vunpack.c.l.b16 %v4850
        %v4884 = vpack.c.b16 %v4853, %v4852
        %v4885 = vpack.c.b16 %v4855, %v4854
        %v4886 = vpack.c.b16 %v4857, %v4856
        %v4887 = vpack.c.b16 %v4859, %v4858
        %v4888 = vpack.c.b16 %v4861, %v4860
        %v4889 = vpack.c.b16 %v4863, %v4862
        %v4890 = vpack.c.b16 %v4865, %v4864
        %v4891 = vpack.c.b16 %v4867, %v4866
        %v4892 = vpack.c.b16 %v4869, %v4868
        %v4893 = vpack.c.b16 %v4871, %v4870
        %v4894 = vpack.c.b16 %v4873, %v4872
        %v4895 = vpack.c.b16 %v4875, %v4874
        %v4896 = vpack.c.b16 %v4877, %v4876
        %v4897 = vpack.c.b16 %v4879, %v4878
        %v4898 = vpack.c.b16 %v4881, %v4880
        %v4899 = vpack.c.b16 %v4883, %v4882
        %v4901 = vunpack.c.l.b16 %v4851
        %v4902 = vpack.c.b16 %v4901, %v4901
        %v4903 = vrot.slane %v4902, 2
        %v4905 = vsel %vm4038, %v4884, 0
        %v4908 = vsel %vm4038, %v4885, 0
        %v4911 = vsel %vm4038, %v4886, 0
        %v4914 = vsel %vm4038, %v4887, 0
        %v4917 = vsel %vm4038, %v4888, 0
        %v4920 = vsel %vm4038, %v4889, 0
        %v4923 = vsel %vm4038, %v4890, 0
        %v4926 = vsel %vm4038, %v4891, 0
        %v4929 = vsel %vm4038, %v4892, 0
        %v4932 = vsel %vm4038, %v4893, 0
        %v4935 = vsel %vm4038, %v4894, 0
        %v4938 = vsel %vm4038, %v4895, 0
        %v4941 = vsel %vm4038, %v4896, 0
        %v4944 = vsel %vm4038, %v4897, 0
        %v4947 = vsel %vm4038, %v4898, 0
        %v4950 = vsel %vm4038, %v4899, 0
        %v4953 = vsel %vm4087, %v4903, 0
        %4955 = vmatpush.bf16.msra.mxu0 0
        %4956 = vmatpush.bf16.msra.mxu0 0
        %4957 = vmatpush.bf16.msra.mxu0 0
        %4958 = vmatpush.bf16.msra.mxu0 0
        %4959 = vmatpush.bf16.msra.mxu0 0
        %4960 = vmatpush.bf16.msra.mxu0 0
        %4961 = vmatpush.bf16.msra.mxu0 0
        %4962 = vmatpush.bf16.msra.mxu0 %v4953
        %4963 = vmatmul.bf16.gmra.mxu0 %v4905
        %v4964 = vpop.f32.mrf.mxu0
        %v4965 = vadd.f32 0.0, %v4964
        %v4966 = vpop.f32.mrf.mxu0
        %v4967 = vadd.f32 0.0, %v4966
        %4968 = vmatmul.bf16.gmra.mxu0 %v4908
        %v4969 = vpop.f32.mrf.mxu0
        %v4970 = vadd.f32 0.0, %v4969
        %v4971 = vpop.f32.mrf.mxu0
        %v4972 = vadd.f32 0.0, %v4971
        %4973 = vmatmul.bf16.gmra.mxu0 %v4911
        %v4974 = vpop.f32.mrf.mxu0
        %v4975 = vadd.f32 0.0, %v4974
        %v4976 = vpop.f32.mrf.mxu0
        %v4977 = vadd.f32 0.0, %v4976
        %4978 = vmatmul.bf16.gmra.mxu0 %v4914
        %v4979 = vpop.f32.mrf.mxu0
        %v4980 = vadd.f32 0.0, %v4979
        %v4981 = vpop.f32.mrf.mxu0
        %v4982 = vadd.f32 0.0, %v4981
        %4983 = vmatmul.bf16.gmra.mxu0 %v4917
        %v4984 = vpop.f32.mrf.mxu0
        %v4985 = vadd.f32 0.0, %v4984
        %v4986 = vpop.f32.mrf.mxu0
        %v4987 = vadd.f32 0.0, %v4986
        %4988 = vmatmul.bf16.gmra.mxu0 %v4920
        %v4989 = vpop.f32.mrf.mxu0
        %v4990 = vadd.f32 0.0, %v4989
        %v4991 = vpop.f32.mrf.mxu0
        %v4992 = vadd.f32 0.0, %v4991
        %4993 = vmatmul.bf16.gmra.mxu0 %v4923
        %v4994 = vpop.f32.mrf.mxu0
        %v4995 = vadd.f32 0.0, %v4994
        %v4996 = vpop.f32.mrf.mxu0
        %v4997 = vadd.f32 0.0, %v4996
        %4998 = vmatmul.bf16.gmra.mxu0 %v4926
        %v4999 = vpop.f32.mrf.mxu0
        %v5000 = vadd.f32 0.0, %v4999
        %v5001 = vpop.f32.mrf.mxu0
        %v5002 = vadd.f32 0.0, %v5001
        %5003 = vmatmul.bf16.gmra.mxu0 %v4929
        %v5004 = vpop.f32.mrf.mxu0
        %v5005 = vadd.f32 0.0, %v5004
        %v5006 = vpop.f32.mrf.mxu0
        %v5007 = vadd.f32 0.0, %v5006
        %5008 = vmatmul.bf16.gmra.mxu0 %v4932
        %v5009 = vpop.f32.mrf.mxu0
        %v5010 = vadd.f32 0.0, %v5009
        %v5011 = vpop.f32.mrf.mxu0
        %v5012 = vadd.f32 0.0, %v5011
        %5013 = vmatmul.bf16.gmra.mxu0 %v4935
        %v5014 = vpop.f32.mrf.mxu0
        %v5015 = vadd.f32 0.0, %v5014
        %v5016 = vpop.f32.mrf.mxu0
        %v5017 = vadd.f32 0.0, %v5016
        %5018 = vmatmul.bf16.gmra.mxu0 %v4938
        %v5019 = vpop.f32.mrf.mxu0
        %v5020 = vadd.f32 0.0, %v5019
        %v5021 = vpop.f32.mrf.mxu0
        %v5022 = vadd.f32 0.0, %v5021
        %5023 = vmatmul.bf16.gmra.mxu0 %v4941
        %v5024 = vpop.f32.mrf.mxu0
        %v5025 = vadd.f32 0.0, %v5024
        %v5026 = vpop.f32.mrf.mxu0
        %v5027 = vadd.f32 0.0, %v5026
        %5028 = vmatmul.bf16.gmra.mxu0 %v4944
        %v5029 = vpop.f32.mrf.mxu0
        %v5030 = vadd.f32 0.0, %v5029
        %v5031 = vpop.f32.mrf.mxu0
        %v5032 = vadd.f32 0.0, %v5031
        %5033 = vmatmul.bf16.gmra.mxu0 %v4947
        %v5034 = vpop.f32.mrf.mxu0
        %v5035 = vadd.f32 0.0, %v5034
        %v5036 = vpop.f32.mrf.mxu0
        %v5037 = vadd.f32 0.0, %v5036
        %5038 = vmatmul.bf16.gmra.mxu0 %v4950
        %v5039 = vpop.f32.mrf.mxu0
        %v5040 = vadd.f32 0.0, %v5039
        %v5041 = vpop.f32.mrf.mxu0
        %v5042 = vadd.f32 0.0, %v5041
        %5043 = vdwg.mxu0
        %v5044 = vadd.f32 %v4381, %v4965
        %v5045 = vadd.f32 %v4382, %v4967
        %v5046 = vadd.f32 %v4383, %v4970
        %v5047 = vadd.f32 %v4384, %v4972
        %v5048 = vadd.f32 %v4385, %v4975
        %v5049 = vadd.f32 %v4386, %v4977
        %v5050 = vadd.f32 %v4387, %v4980
        %v5051 = vadd.f32 %v4388, %v4982
        %v5052 = vadd.f32 %v4389, %v4985
        %v5053 = vadd.f32 %v4390, %v4987
        %v5054 = vadd.f32 %v4391, %v4990
        %v5055 = vadd.f32 %v4392, %v4992
        %v5056 = vadd.f32 %v4393, %v4995
        %v5057 = vadd.f32 %v4394, %v4997
        %v5058 = vadd.f32 %v4395, %v5000
        %v5059 = vadd.f32 %v4396, %v5002
        %v5060 = vadd.f32 %v4397, %v5005
        %v5061 = vadd.f32 %v4398, %v5007
        %v5062 = vadd.f32 %v4399, %v5010
        %v5063 = vadd.f32 %v4400, %v5012
        %v5064 = vadd.f32 %v4401, %v5015
        %v5065 = vadd.f32 %v4402, %v5017
        %v5066 = vadd.f32 %v4403, %v5020
        %v5067 = vadd.f32 %v4404, %v5022
        %v5068 = vadd.f32 %v4405, %v5025
        %v5069 = vadd.f32 %v4406, %v5027
        %v5070 = vadd.f32 %v4407, %v5030
        %v5071 = vadd.f32 %v4408, %v5032
        %v5072 = vadd.f32 %v4409, %v5035
        %v5073 = vadd.f32 %v4410, %v5037
        %v5074 = vadd.f32 %v4411, %v5040
        %v5075 = vadd.f32 %v4412, %v5042
        %v5077 = vshrl.u32 %v4461, 16
        %v5079 = vrot.slane %v5077, 4
        %v5080 = vshll.u32 %v4461, 16
        %v5082 = vrot.slane %v5080, 5
        %v5083 = vor.u32 %v5079, %v5082
        %v5084 = vrot.slane %v5083, 4
        %v5086 = vshll.u32 %v4462, 16
        %v5088 = vrot.slane %v5086, 5
        %v5089 = vsel %vm1523, %v5084, %v5088
        %v5090 = vshrl.u32 %v4462, 16
        %v5092 = vrot.slane %v5090, 4
        %v5093 = vor.u32 %v5092, %v5088
        %v5094 = vrot.slane %v5093, 4
        %v5096 = vshll.u32 %v4463, 16
        %v5098 = vrot.slane %v5096, 5
        %v5099 = vsel %vm1523, %v5094, %v5098
        %v5100 = vld [vmem:[%s5 + $0x8] sm:$0x3]
        %v5101 = vunpack.c.l.b16 %v5089
        %v5102 = vunpack.c.l.b16 %v5099
        %v5103 = vpack.c.b16 %v5102, %v5101
        %v5105 = vsel %vm4038, %v5103, 0
        %v5108 = vsel %vm4087, %v5100, 0
        %5110 = vmatpush.bf16.msra.mxu0 0
        %5111 = vmatpush.bf16.msra.mxu0 0
        %5112 = vmatpush.bf16.msra.mxu0 0
        %5113 = vmatpush.bf16.msra.mxu0 0
        %5114 = vmatpush.bf16.msra.mxu0 0
        %5115 = vmatpush.bf16.msra.mxu0 0
        %5116 = vmatpush.bf16.msra.mxu0 0
        %5117 = vmatpush.bf16.msra.mxu0 %v5108
        %5118 = vmatmul.bf16.gmra.mxu0 %v4908
        %v5119 = vpop.f32.mrf.mxu0
        %v5120 = vadd.f32 0.0, %v5119
        %v5121 = vpop.f32.mrf.mxu0
        %v5122 = vadd.f32 0.0, %v5121
        %5123 = vmatmul.bf16.gmra.mxu0 %v4911
        %v5124 = vpop.f32.mrf.mxu0
        %v5125 = vadd.f32 0.0, %v5124
        %v5126 = vpop.f32.mrf.mxu0
        %v5127 = vadd.f32 0.0, %v5126
        %5128 = vmatmul.bf16.gmra.mxu0 %v4914
        %v5129 = vpop.f32.mrf.mxu0
        %v5130 = vadd.f32 0.0, %v5129
        %v5131 = vpop.f32.mrf.mxu0
        %v5132 = vadd.f32 0.0, %v5131
        %5133 = vmatmul.bf16.gmra.mxu0 %v4917
        %v5134 = vpop.f32.mrf.mxu0
        %v5135 = vadd.f32 0.0, %v5134
        %v5136 = vpop.f32.mrf.mxu0
        %v5137 = vadd.f32 0.0, %v5136
        %5138 = vmatmul.bf16.gmra.mxu0 %v4920
        %v5139 = vpop.f32.mrf.mxu0
        %v5140 = vadd.f32 0.0, %v5139
        %v5141 = vpop.f32.mrf.mxu0
        %v5142 = vadd.f32 0.0, %v5141
        %5143 = vmatmul.bf16.gmra.mxu0 %v4923
        %v5144 = vpop.f32.mrf.mxu0
        %v5145 = vadd.f32 0.0, %v5144
        %v5146 = vpop.f32.mrf.mxu0
        %v5147 = vadd.f32 0.0, %v5146
        %5148 = vmatmul.bf16.gmra.mxu0 %v4926
        %v5149 = vpop.f32.mrf.mxu0
        %v5150 = vadd.f32 0.0, %v5149
        %v5151 = vpop.f32.mrf.mxu0
        %v5152 = vadd.f32 0.0, %v5151
        %5153 = vmatmul.bf16.gmra.mxu0 %v4929
        %v5154 = vpop.f32.mrf.mxu0
        %v5155 = vadd.f32 0.0, %v5154
        %v5156 = vpop.f32.mrf.mxu0
        %v5157 = vadd.f32 0.0, %v5156
        %5158 = vmatmul.bf16.gmra.mxu0 %v4932
        %v5159 = vpop.f32.mrf.mxu0
        %v5160 = vadd.f32 0.0, %v5159
        %v5161 = vpop.f32.mrf.mxu0
        %v5162 = vadd.f32 0.0, %v5161
        %5163 = vmatmul.bf16.gmra.mxu0 %v4935
        %v5164 = vpop.f32.mrf.mxu0
        %v5165 = vadd.f32 0.0, %v5164
        %v5166 = vpop.f32.mrf.mxu0
        %v5167 = vadd.f32 0.0, %v5166
        %5168 = vmatmul.bf16.gmra.mxu0 %v4938
        %v5169 = vpop.f32.mrf.mxu0
        %v5170 = vadd.f32 0.0, %v5169
        %v5171 = vpop.f32.mrf.mxu0
        %v5172 = vadd.f32 0.0, %v5171
        %5173 = vmatmul.bf16.gmra.mxu0 %v4941
        %v5174 = vpop.f32.mrf.mxu0
        %v5175 = vadd.f32 0.0, %v5174
        %v5176 = vpop.f32.mrf.mxu0
        %v5177 = vadd.f32 0.0, %v5176
        %5178 = vmatmul.bf16.gmra.mxu0 %v4944
        %v5179 = vpop.f32.mrf.mxu0
        %v5180 = vadd.f32 0.0, %v5179
        %v5181 = vpop.f32.mrf.mxu0
        %v5182 = vadd.f32 0.0, %v5181
        %5183 = vmatmul.bf16.gmra.mxu0 %v4947
        %v5184 = vpop.f32.mrf.mxu0
        %v5185 = vadd.f32 0.0, %v5184
        %v5186 = vpop.f32.mrf.mxu0
        %v5187 = vadd.f32 0.0, %v5186
        %5188 = vmatmul.bf16.gmra.mxu0 %v4950
        %v5189 = vpop.f32.mrf.mxu0
        %v5190 = vadd.f32 0.0, %v5189
        %v5191 = vpop.f32.mrf.mxu0
        %v5192 = vadd.f32 0.0, %v5191
        %5193 = vmatmul.bf16.gmra.mxu0 %v5105
        %v5194 = vpop.f32.mrf.mxu0
        %v5195 = vadd.f32 0.0, %v5194
        %v5196 = vpop.f32.mrf.mxu0
        %v5197 = vadd.f32 0.0, %v5196
        %5198 = vdwg.mxu0
        %v5199 = vadd.f32 %v5044, %v5120
        %v5200 = vadd.f32 %v5045, %v5122
        %v5201 = vadd.f32 %v5046, %v5125
        %v5202 = vadd.f32 %v5047, %v5127
        %v5203 = vadd.f32 %v5048, %v5130
        %v5204 = vadd.f32 %v5049, %v5132
        %v5205 = vadd.f32 %v5050, %v5135
        %v5206 = vadd.f32 %v5051, %v5137
        %v5207 = vadd.f32 %v5052, %v5140
        %v5208 = vadd.f32 %v5053, %v5142
        %v5209 = vadd.f32 %v5054, %v5145
        %v5210 = vadd.f32 %v5055, %v5147
        %v5211 = vadd.f32 %v5056, %v5150
        %v5212 = vadd.f32 %v5057, %v5152
        %v5213 = vadd.f32 %v5058, %v5155
        %v5214 = vadd.f32 %v5059, %v5157
        %v5215 = vadd.f32 %v5060, %v5160
        %v5216 = vadd.f32 %v5061, %v5162
        %v5217 = vadd.f32 %v5062, %v5165
        %v5218 = vadd.f32 %v5063, %v5167
        %v5219 = vadd.f32 %v5064, %v5170
        %v5220 = vadd.f32 %v5065, %v5172
        %v5221 = vadd.f32 %v5066, %v5175
        %v5222 = vadd.f32 %v5067, %v5177
        %v5223 = vadd.f32 %v5068, %v5180
        %v5224 = vadd.f32 %v5069, %v5182
        %v5225 = vadd.f32 %v5070, %v5185
        %v5226 = vadd.f32 %v5071, %v5187
        %v5227 = vadd.f32 %v5072, %v5190
        %v5228 = vadd.f32 %v5073, %v5192
        %v5229 = vadd.f32 %v5074, %v5195
        %v5230 = vadd.f32 %v5075, %v5197
        %v5232 = vshrl.u32 %v4464, 16
        %v5234 = vrot.slane %v5232, 4
        %v5235 = vshll.u32 %v4464, 16
        %v5237 = vrot.slane %v5235, 5
        %v5238 = vor.u32 %v5234, %v5237
        %v5239 = vrot.slane %v5238, 4
        %v5241 = vshll.u32 %v4465, 16
        %v5243 = vrot.slane %v5241, 5
        %v5244 = vsel %vm1523, %v5239, %v5243
        %v5245 = vshrl.u32 %v4465, 16
        %v5247 = vrot.slane %v5245, 4
        %v5248 = vor.u32 %v5247, %v5243
        %v5249 = vrot.slane %v5248, 4
        %v5251 = vshll.u32 %v4466, 16
        %v5253 = vrot.slane %v5251, 5
        %v5254 = vsel %vm1523, %v5249, %v5253
        %v5255 = vld [vmem:[%s5 + $0xc] sm:$0xc]
        %v5256 = vunpack.c.l.b16 %v5244
        %v5257 = vunpack.c.l.b16 %v5254
        %v5258 = vpack.c.b16 %v5257, %v5256
        %v5260 = vunpack.c.l.b16 %v5255
        %v5261 = vpack.c.b16 %v5260, %v5260
        %v5262 = vrot.slane %v5261, 2
        %v5264 = vsel %vm4038, %v5258, 0
        %v5267 = vsel %vm4087, %v5262, 0
        %5269 = vmatpush.bf16.msra.mxu0 0
        %5270 = vmatpush.bf16.msra.mxu0 0
        %5271 = vmatpush.bf16.msra.mxu0 0
        %5272 = vmatpush.bf16.msra.mxu0 0
        %5273 = vmatpush.bf16.msra.mxu0 0
        %5274 = vmatpush.bf16.msra.mxu0 0
        %5275 = vmatpush.bf16.msra.mxu0 0
        %5276 = vmatpush.bf16.msra.mxu0 %v5267
        %5277 = vmatmul.bf16.gmra.mxu0 %v4911
        %v5278 = vpop.f32.mrf.mxu0
        %v5279 = vadd.f32 0.0, %v5278
        %v5280 = vpop.f32.mrf.mxu0
        %v5281 = vadd.f32 0.0, %v5280
        %5282 = vmatmul.bf16.gmra.mxu0 %v4914
        %v5283 = vpop.f32.mrf.mxu0
        %v5284 = vadd.f32 0.0, %v5283
        %v5285 = vpop.f32.mrf.mxu0
        %v5286 = vadd.f32 0.0, %v5285
        %5287 = vmatmul.bf16.gmra.mxu0 %v4917
        %v5288 = vpop.f32.mrf.mxu0
        %v5289 = vadd.f32 0.0, %v5288
        %v5290 = vpop.f32.mrf.mxu0
        %v5291 = vadd.f32 0.0, %v5290
        %5292 = vmatmul.bf16.gmra.mxu0 %v4920
        %v5293 = vpop.f32.mrf.mxu0
        %v5294 = vadd.f32 0.0, %v5293
        %v5295 = vpop.f32.mrf.mxu0
        %v5296 = vadd.f32 0.0, %v5295
        %5297 = vmatmul.bf16.gmra.mxu0 %v4923
        %v5298 = vpop.f32.mrf.mxu0
        %v5299 = vadd.f32 0.0, %v5298
        %v5300 = vpop.f32.mrf.mxu0
        %v5301 = vadd.f32 0.0, %v5300
        %5302 = vmatmul.bf16.gmra.mxu0 %v4926
        %v5303 = vpop.f32.mrf.mxu0
        %v5304 = vadd.f32 0.0, %v5303
        %v5305 = vpop.f32.mrf.mxu0
        %v5306 = vadd.f32 0.0, %v5305
        %5307 = vmatmul.bf16.gmra.mxu0 %v4929
        %v5308 = vpop.f32.mrf.mxu0
        %v5309 = vadd.f32 0.0, %v5308
        %v5310 = vpop.f32.mrf.mxu0
        %v5311 = vadd.f32 0.0, %v5310
        %5312 = vmatmul.bf16.gmra.mxu0 %v4932
        %v5313 = vpop.f32.mrf.mxu0
        %v5314 = vadd.f32 0.0, %v5313
        %v5315 = vpop.f32.mrf.mxu0
        %v5316 = vadd.f32 0.0, %v5315
        %5317 = vmatmul.bf16.gmra.mxu0 %v4935
        %v5318 = vpop.f32.mrf.mxu0
        %v5319 = vadd.f32 0.0, %v5318
        %v5320 = vpop.f32.mrf.mxu0
        %v5321 = vadd.f32 0.0, %v5320
        %5322 = vmatmul.bf16.gmra.mxu0 %v4938
        %v5323 = vpop.f32.mrf.mxu0
        %v5324 = vadd.f32 0.0, %v5323
        %v5325 = vpop.f32.mrf.mxu0
        %v5326 = vadd.f32 0.0, %v5325
        %5327 = vmatmul.bf16.gmra.mxu0 %v4941
        %v5328 = vpop.f32.mrf.mxu0
        %v5329 = vadd.f32 0.0, %v5328
        %v5330 = vpop.f32.mrf.mxu0
        %v5331 = vadd.f32 0.0, %v5330
        %5332 = vmatmul.bf16.gmra.mxu0 %v4944
        %v5333 = vpop.f32.mrf.mxu0
        %v5334 = vadd.f32 0.0, %v5333
        %v5335 = vpop.f32.mrf.mxu0
        %v5336 = vadd.f32 0.0, %v5335
        %5337 = vmatmul.bf16.gmra.mxu0 %v4947
        %v5338 = vpop.f32.mrf.mxu0
        %v5339 = vadd.f32 0.0, %v5338
        %v5340 = vpop.f32.mrf.mxu0
        %v5341 = vadd.f32 0.0, %v5340
        %5342 = vmatmul.bf16.gmra.mxu0 %v4950
        %v5343 = vpop.f32.mrf.mxu0
        %v5344 = vadd.f32 0.0, %v5343
        %v5345 = vpop.f32.mrf.mxu0
        %v5346 = vadd.f32 0.0, %v5345
        %5347 = vmatmul.bf16.gmra.mxu0 %v5105
        %v5348 = vpop.f32.mrf.mxu0
        %v5349 = vadd.f32 0.0, %v5348
        %v5350 = vpop.f32.mrf.mxu0
        %v5351 = vadd.f32 0.0, %v5350
        %5352 = vmatmul.bf16.gmra.mxu0 %v5264
        %v5353 = vpop.f32.mrf.mxu0
        %v5354 = vadd.f32 0.0, %v5353
        %v5355 = vpop.f32.mrf.mxu0
        %v5356 = vadd.f32 0.0, %v5355
        %5357 = vdwg.mxu0
        %v5358 = vadd.f32 %v5199, %v5279
        %v5359 = vadd.f32 %v5200, %v5281
        %v5360 = vadd.f32 %v5201, %v5284
        %v5361 = vadd.f32 %v5202, %v5286
        %v5362 = vadd.f32 %v5203, %v5289
        %v5363 = vadd.f32 %v5204, %v5291
        %v5364 = vadd.f32 %v5205, %v5294
        %v5365 = vadd.f32 %v5206, %v5296
        %v5366 = vadd.f32 %v5207, %v5299
        %v5367 = vadd.f32 %v5208, %v5301
        %v5368 = vadd.f32 %v5209, %v5304
        %v5369 = vadd.f32 %v5210, %v5306
        %v5370 = vadd.f32 %v5211, %v5309
        %v5371 = vadd.f32 %v5212, %v5311
        %v5372 = vadd.f32 %v5213, %v5314
        %v5373 = vadd.f32 %v5214, %v5316
        %v5374 = vadd.f32 %v5215, %v5319
        %v5375 = vadd.f32 %v5216, %v5321
        %v5376 = vadd.f32 %v5217, %v5324
        %v5377 = vadd.f32 %v5218, %v5326
        %v5378 = vadd.f32 %v5219, %v5329
        %v5379 = vadd.f32 %v5220, %v5331
        %v5380 = vadd.f32 %v5221, %v5334
        %v5381 = vadd.f32 %v5222, %v5336
        %v5382 = vadd.f32 %v5223, %v5339
        %v5383 = vadd.f32 %v5224, %v5341
        %v5384 = vadd.f32 %v5225, %v5344
        %v5385 = vadd.f32 %v5226, %v5346
        %v5386 = vadd.f32 %v5227, %v5349
        %v5387 = vadd.f32 %v5228, %v5351
        %v5388 = vadd.f32 %v5229, %v5354
        %v5389 = vadd.f32 %v5230, %v5356
        %v5390 = vld [vmem:[#allocation3] sm:$0xe]
        %v5391 = vld [vmem:[#allocation3 + $0xc] sm:$0xe]
        %v5392 = vld [vmem:[#allocation3 + $0x18] sm:$0xe]
        %v5393 = vld [vmem:[#allocation3 + $0x24] sm:$0xe]
        %v5394 = vld [vmem:[#allocation3 + $0x30] sm:$0xe]
        %v5395 = vld [vmem:[#allocation3 + $0x3c] sm:$0xe]
        %v5396 = vld [vmem:[#allocation3 + $0x48] sm:$0xe]
        %v5397 = vld [vmem:[#allocation3 + $0x54] sm:$0xe]
        %v5398 = vld [vmem:[#allocation3 + $0x60] sm:$0xe]
        %v5399 = vld [vmem:[#allocation3 + $0x6c] sm:$0xe]
        %v5400 = vld [vmem:[#allocation3 + $0x78] sm:$0xe]
        %v5401 = vld [vmem:[#allocation3 + $0x84] sm:$0xe]
        %v5402 = vld [vmem:[#allocation3 + $0x90] sm:$0xe]
        %v5403 = vld [vmem:[#allocation3 + $0x9c] sm:$0xe]
        %v5404 = vld [vmem:[#allocation3 + $0xa8] sm:$0xe]
        %v5405 = vld [vmem:[#allocation3 + $0xb4] sm:$0xe]
        %v5406 = vld [vmem:[#allocation3 + $0xc0] sm:$0xe]
        %v5407 = vld [vmem:[#allocation3 + $0xcc] sm:$0xe]
        %v5456 = vrot.slane %v5390, 5
        %v5457 = vrot.slane %v5456, 4
        %v5458 = vrot.slane %v4414, 5
        %v5459 = vsel %vm2507, %v5457, %v5458
        %v5460 = vrot.slane %v5458, 4
        %v5461 = vrot.slane %v4415, 5
        %v5462 = vsel %vm2507, %v5460, %v5461
        %v5463 = vrot.slane %v5391, 5
        %v5464 = vrot.slane %v5463, 4
        %v5465 = vrot.slane %v4417, 5
        %v5466 = vsel %vm2507, %v5464, %v5465
        %v5467 = vrot.slane %v5465, 4
        %v5468 = vrot.slane %v4418, 5
        %v5469 = vsel %vm2507, %v5467, %v5468
        %v5470 = vrot.slane %v5392, 5
        %v5471 = vrot.slane %v5470, 4
        %v5472 = vrot.slane %v4420, 5
        %v5473 = vsel %vm2507, %v5471, %v5472
        %v5474 = vrot.slane %v5472, 4
        %v5475 = vrot.slane %v4421, 5
        %v5476 = vsel %vm2507, %v5474, %v5475
        %v5477 = vrot.slane %v5393, 5
        %v5478 = vrot.slane %v5477, 4
        %v5479 = vrot.slane %v4423, 5
        %v5480 = vsel %vm2507, %v5478, %v5479
        %v5481 = vrot.slane %v5479, 4
        %v5482 = vrot.slane %v4424, 5
        %v5483 = vsel %vm2507, %v5481, %v5482
        %v5484 = vrot.slane %v5394, 5
        %v5485 = vrot.slane %v5484, 4
        %v5486 = vrot.slane %v4426, 5
        %v5487 = vsel %vm2507, %v5485, %v5486
        %v5488 = vrot.slane %v5486, 4
        %v5489 = vrot.slane %v4427, 5
        %v5490 = vsel %vm2507, %v5488, %v5489
        %v5491 = vrot.slane %v5395, 5
        %v5492 = vrot.slane %v5491, 4
        %v5493 = vrot.slane %v4429, 5
        %v5494 = vsel %vm2507, %v5492, %v5493
        %v5495 = vrot.slane %v5493, 4
        %v5496 = vrot.slane %v4430, 5
        %v5497 = vsel %vm2507, %v5495, %v5496
        %v5498 = vrot.slane %v5396, 5
        %v5499 = vrot.slane %v5498, 4
        %v5500 = vrot.slane %v4432, 5
        %v5501 = vsel %vm2507, %v5499, %v5500
        %v5502 = vrot.slane %v5500, 4
        %v5503 = vrot.slane %v4433, 5
        %v5504 = vsel %vm2507, %v5502, %v5503
        %v5505 = vrot.slane %v5397, 5
        %v5506 = vrot.slane %v5505, 4
        %v5507 = vrot.slane %v4435, 5
        %v5508 = vsel %vm2507, %v5506, %v5507
        %v5509 = vrot.slane %v5507, 4
        %v5510 = vrot.slane %v4436, 5
        %v5511 = vsel %vm2507, %v5509, %v5510
        %v5512 = vrot.slane %v5398, 5
        %v5513 = vrot.slane %v5512, 4
        %v5514 = vrot.slane %v4438, 5
        %v5515 = vsel %vm2507, %v5513, %v5514
        %v5516 = vrot.slane %v5514, 4
        %v5517 = vrot.slane %v4439, 5
        %v5518 = vsel %vm2507, %v5516, %v5517
        %v5519 = vrot.slane %v5399, 5
        %v5520 = vrot.slane %v5519, 4
        %v5521 = vrot.slane %v4441, 5
        %v5522 = vsel %vm2507, %v5520, %v5521
        %v5523 = vrot.slane %v5521, 4
        %v5524 = vrot.slane %v4442, 5
        %v5525 = vsel %vm2507, %v5523, %v5524
        %v5526 = vrot.slane %v5400, 5
        %v5527 = vrot.slane %v5526, 4
        %v5528 = vrot.slane %v4444, 5
        %v5529 = vsel %vm2507, %v5527, %v5528
        %v5530 = vrot.slane %v5528, 4
        %v5531 = vrot.slane %v4445, 5
        %v5532 = vsel %vm2507, %v5530, %v5531
        %v5533 = vrot.slane %v5401, 5
        %v5534 = vrot.slane %v5533, 4
        %v5535 = vrot.slane %v4447, 5
        %v5536 = vsel %vm2507, %v5534, %v5535
        %v5537 = vrot.slane %v5535, 4
        %v5538 = vrot.slane %v4448, 5
        %v5539 = vsel %vm2507, %v5537, %v5538
        %v5540 = vrot.slane %v5402, 5
        %v5541 = vrot.slane %v5540, 4
        %v5542 = vrot.slane %v4450, 5
        %v5543 = vsel %vm2507, %v5541, %v5542
        %v5544 = vrot.slane %v5542, 4
        %v5545 = vrot.slane %v4451, 5
        %v5546 = vsel %vm2507, %v5544, %v5545
        %v5547 = vrot.slane %v5403, 5
        %v5548 = vrot.slane %v5547, 4
        %v5549 = vrot.slane %v4453, 5
        %v5550 = vsel %vm2507, %v5548, %v5549
        %v5551 = vrot.slane %v5549, 4
        %v5552 = vrot.slane %v4454, 5
        %v5553 = vsel %vm2507, %v5551, %v5552
        %v5554 = vrot.slane %v5404, 5
        %v5555 = vrot.slane %v5554, 4
        %v5556 = vrot.slane %v4456, 5
        %v5557 = vsel %vm2507, %v5555, %v5556
        %v5558 = vrot.slane %v5556, 4
        %v5559 = vrot.slane %v4457, 5
        %v5560 = vsel %vm2507, %v5558, %v5559
        %v5561 = vrot.slane %v5405, 5
        %v5562 = vrot.slane %v5561, 4
        %v5563 = vrot.slane %v4459, 5
        %v5564 = vsel %vm2507, %v5562, %v5563
        %v5565 = vrot.slane %v5563, 4
        %v5566 = vrot.slane %v4460, 5
        %v5567 = vsel %vm2507, %v5565, %v5566
        %v5568 = vld [vmem:[%s5 + $0x4] sm:$0x3]
        %v5569 = vunpack.c.l.b16 %v5459
        %v5570 = vunpack.c.l.b16 %v5462
        %v5571 = vunpack.c.l.b16 %v5466
        %v5572 = vunpack.c.l.b16 %v5469
        %v5573 = vunpack.c.l.b16 %v5473
        %v5574 = vunpack.c.l.b16 %v5476
        %v5575 = vunpack.c.l.b16 %v5480
        %v5576 = vunpack.c.l.b16 %v5483
        %v5577 = vunpack.c.l.b16 %v5487
        %v5578 = vunpack.c.l.b16 %v5490
        %v5579 = vunpack.c.l.b16 %v5494
        %v5580 = vunpack.c.l.b16 %v5497
        %v5581 = vunpack.c.l.b16 %v5501
        %v5582 = vunpack.c.l.b16 %v5504
        %v5583 = vunpack.c.l.b16 %v5508
        %v5584 = vunpack.c.l.b16 %v5511
        %v5585 = vunpack.c.l.b16 %v5515
        %v5586 = vunpack.c.l.b16 %v5518
        %v5587 = vunpack.c.l.b16 %v5522
        %v5588 = vunpack.c.l.b16 %v5525
        %v5589 = vunpack.c.l.b16 %v5529
        %v5590 = vunpack.c.l.b16 %v5532
        %v5591 = vunpack.c.l.b16 %v5536
        %v5592 = vunpack.c.l.b16 %v5539
        %v5593 = vunpack.c.l.b16 %v5543
        %v5594 = vunpack.c.l.b16 %v5546
        %v5595 = vunpack.c.l.b16 %v5550
        %v5596 = vunpack.c.l.b16 %v5553
        %v5597 = vunpack.c.l.b16 %v5557
        %v5598 = vunpack.c.l.b16 %v5560
        %v5599 = vunpack.c.l.b16 %v5564
        %v5600 = vunpack.c.l.b16 %v5567
        %v5601 = vpack.c.b16 %v5570, %v5569
        %v5602 = vpack.c.b16 %v5572, %v5571
        %v5603 = vpack.c.b16 %v5574, %v5573
        %v5604 = vpack.c.b16 %v5576, %v5575
        %v5605 = vpack.c.b16 %v5578, %v5577
        %v5606 = vpack.c.b16 %v5580, %v5579
        %v5607 = vpack.c.b16 %v5582, %v5581
        %v5608 = vpack.c.b16 %v5584, %v5583
        %v5609 = vpack.c.b16 %v5586, %v5585
        %v5610 = vpack.c.b16 %v5588, %v5587
        %v5611 = vpack.c.b16 %v5590, %v5589
        %v5612 = vpack.c.b16 %v5592, %v5591
        %v5613 = vpack.c.b16 %v5594, %v5593
        %v5614 = vpack.c.b16 %v5596, %v5595
        %v5615 = vpack.c.b16 %v5598, %v5597
        %v5616 = vpack.c.b16 %v5600, %v5599
        %v5618 = vsel %vm4038, %v5601, 0
        %v5621 = vsel %vm4038, %v5602, 0
        %v5624 = vsel %vm4038, %v5603, 0
        %v5627 = vsel %vm4038, %v5604, 0
        %v5630 = vsel %vm4038, %v5605, 0
        %v5633 = vsel %vm4038, %v5606, 0
        %v5636 = vsel %vm4038, %v5607, 0
        %v5639 = vsel %vm4038, %v5608, 0
        %v5642 = vsel %vm4038, %v5609, 0
        %v5645 = vsel %vm4038, %v5610, 0
        %v5648 = vsel %vm4038, %v5611, 0
        %v5651 = vsel %vm4038, %v5612, 0
        %v5654 = vsel %vm4038, %v5613, 0
        %v5657 = vsel %vm4038, %v5614, 0
        %v5660 = vsel %vm4038, %v5615, 0
        %v5663 = vsel %vm4038, %v5616, 0
        %v5666 = vsel %vm4087, %v5568, 0
        %5668 = vmatpush.bf16.msra.mxu0 0
        %5669 = vmatpush.bf16.msra.mxu0 0
        %5670 = vmatpush.bf16.msra.mxu0 0
        %5671 = vmatpush.bf16.msra.mxu0 0
        %5672 = vmatpush.bf16.msra.mxu0 0
        %5673 = vmatpush.bf16.msra.mxu0 0
        %5674 = vmatpush.bf16.msra.mxu0 0
        %5675 = vmatpush.bf16.msra.mxu0 %v5666
        %5676 = vmatmul.bf16.gmra.mxu0 %v5618
        %v5677 = vpop.f32.mrf.mxu0
        %v5678 = vadd.f32 0.0, %v5677
        %v5679 = vpop.f32.mrf.mxu0
        %v5680 = vadd.f32 0.0, %v5679
        %5681 = vmatmul.bf16.gmra.mxu0 %v5621
        %v5682 = vpop.f32.mrf.mxu0
        %v5683 = vadd.f32 0.0, %v5682
        %v5684 = vpop.f32.mrf.mxu0
        %v5685 = vadd.f32 0.0, %v5684
        %5686 = vmatmul.bf16.gmra.mxu0 %v5624
        %v5687 = vpop.f32.mrf.mxu0
        %v5688 = vadd.f32 0.0, %v5687
        %v5689 = vpop.f32.mrf.mxu0
        %v5690 = vadd.f32 0.0, %v5689
        %5691 = vmatmul.bf16.gmra.mxu0 %v5627
        %v5692 = vpop.f32.mrf.mxu0
        %v5693 = vadd.f32 0.0, %v5692
        %v5694 = vpop.f32.mrf.mxu0
        %v5695 = vadd.f32 0.0, %v5694
        %5696 = vmatmul.bf16.gmra.mxu0 %v5630
        %v5697 = vpop.f32.mrf.mxu0
        %v5698 = vadd.f32 0.0, %v5697
        %v5699 = vpop.f32.mrf.mxu0
        %v5700 = vadd.f32 0.0, %v5699
        %5701 = vmatmul.bf16.gmra.mxu0 %v5633
        %v5702 = vpop.f32.mrf.mxu0
        %v5703 = vadd.f32 0.0, %v5702
        %v5704 = vpop.f32.mrf.mxu0
        %v5705 = vadd.f32 0.0, %v5704
        %5706 = vmatmul.bf16.gmra.mxu0 %v5636
        %v5707 = vpop.f32.mrf.mxu0
        %v5708 = vadd.f32 0.0, %v5707
        %v5709 = vpop.f32.mrf.mxu0
        %v5710 = vadd.f32 0.0, %v5709
        %5711 = vmatmul.bf16.gmra.mxu0 %v5639
        %v5712 = vpop.f32.mrf.mxu0
        %v5713 = vadd.f32 0.0, %v5712
        %v5714 = vpop.f32.mrf.mxu0
        %v5715 = vadd.f32 0.0, %v5714
        %5716 = vmatmul.bf16.gmra.mxu0 %v5642
        %v5717 = vpop.f32.mrf.mxu0
        %v5718 = vadd.f32 0.0, %v5717
        %v5719 = vpop.f32.mrf.mxu0
        %v5720 = vadd.f32 0.0, %v5719
        %5721 = vmatmul.bf16.gmra.mxu0 %v5645
        %v5722 = vpop.f32.mrf.mxu0
        %v5723 = vadd.f32 0.0, %v5722
        %v5724 = vpop.f32.mrf.mxu0
        %v5725 = vadd.f32 0.0, %v5724
        %5726 = vmatmul.bf16.gmra.mxu0 %v5648
        %v5727 = vpop.f32.mrf.mxu0
        %v5728 = vadd.f32 0.0, %v5727
        %v5729 = vpop.f32.mrf.mxu0
        %v5730 = vadd.f32 0.0, %v5729
        %5731 = vmatmul.bf16.gmra.mxu0 %v5651
        %v5732 = vpop.f32.mrf.mxu0
        %v5733 = vadd.f32 0.0, %v5732
        %v5734 = vpop.f32.mrf.mxu0
        %v5735 = vadd.f32 0.0, %v5734
        %5736 = vmatmul.bf16.gmra.mxu0 %v5654
        %v5737 = vpop.f32.mrf.mxu0
        %v5738 = vadd.f32 0.0, %v5737
        %v5739 = vpop.f32.mrf.mxu0
        %v5740 = vadd.f32 0.0, %v5739
        %5741 = vmatmul.bf16.gmra.mxu0 %v5657
        %v5742 = vpop.f32.mrf.mxu0
        %v5743 = vadd.f32 0.0, %v5742
        %v5744 = vpop.f32.mrf.mxu0
        %v5745 = vadd.f32 0.0, %v5744
        %5746 = vmatmul.bf16.gmra.mxu0 %v5660
        %v5747 = vpop.f32.mrf.mxu0
        %v5748 = vadd.f32 0.0, %v5747
        %v5749 = vpop.f32.mrf.mxu0
        %v5750 = vadd.f32 0.0, %v5749
        %5751 = vmatmul.bf16.gmra.mxu0 %v5663
        %v5752 = vpop.f32.mrf.mxu0
        %v5753 = vadd.f32 0.0, %v5752
        %v5754 = vpop.f32.mrf.mxu0
        %v5755 = vadd.f32 0.0, %v5754
        %5756 = vdwg.mxu0
        %v5757 = vadd.f32 %v5358, %v5678
        %v5758 = vadd.f32 %v5359, %v5680
        %v5759 = vadd.f32 %v5360, %v5683
        %v5760 = vadd.f32 %v5361, %v5685
        %v5761 = vadd.f32 %v5362, %v5688
        %v5762 = vadd.f32 %v5363, %v5690
        %v5763 = vadd.f32 %v5364, %v5693
        %v5764 = vadd.f32 %v5365, %v5695
        %v5765 = vadd.f32 %v5366, %v5698
        %v5766 = vadd.f32 %v5367, %v5700
        %v5767 = vadd.f32 %v5368, %v5703
        %v5768 = vadd.f32 %v5369, %v5705
        %v5769 = vadd.f32 %v5370, %v5708
        %v5770 = vadd.f32 %v5371, %v5710
        %v5771 = vadd.f32 %v5372, %v5713
        %v5772 = vadd.f32 %v5373, %v5715
        %v5773 = vadd.f32 %v5374, %v5718
        %v5774 = vadd.f32 %v5375, %v5720
        %v5775 = vadd.f32 %v5376, %v5723
        %v5776 = vadd.f32 %v5377, %v5725
        %v5777 = vadd.f32 %v5378, %v5728
        %v5778 = vadd.f32 %v5379, %v5730
        %v5779 = vadd.f32 %v5380, %v5733
        %v5780 = vadd.f32 %v5381, %v5735
        %v5781 = vadd.f32 %v5382, %v5738
        %v5782 = vadd.f32 %v5383, %v5740
        %v5783 = vadd.f32 %v5384, %v5743
        %v5784 = vadd.f32 %v5385, %v5745
        %v5785 = vadd.f32 %v5386, %v5748
        %v5786 = vadd.f32 %v5387, %v5750
        %v5787 = vadd.f32 %v5388, %v5753
        %v5788 = vadd.f32 %v5389, %v5755
        %v5792 = vrot.slane %v5406, 5
        %v5793 = vrot.slane %v5792, 4
        %v5794 = vrot.slane %v4462, 5
        %v5795 = vsel %vm2507, %v5793, %v5794
        %v5796 = vrot.slane %v5794, 4
        %v5797 = vrot.slane %v4463, 5
        %v5798 = vsel %vm2507, %v5796, %v5797
        %v5799 = vld [vmem:[%s5 + $0x8] sm:$0xc]
        %v5800 = vunpack.c.l.b16 %v5795
        %v5801 = vunpack.c.l.b16 %v5798
        %v5802 = vpack.c.b16 %v5801, %v5800
        %v5804 = vunpack.c.l.b16 %v5799
        %v5805 = vpack.c.b16 %v5804, %v5804
        %v5806 = vrot.slane %v5805, 2
        %v5808 = vsel %vm4038, %v5802, 0
        %v5811 = vsel %vm4087, %v5806, 0
        %5813 = vmatpush.bf16.msra.mxu0 0
        %5814 = vmatpush.bf16.msra.mxu0 0
        %5815 = vmatpush.bf16.msra.mxu0 0
        %5816 = vmatpush.bf16.msra.mxu0 0
        %5817 = vmatpush.bf16.msra.mxu0 0
        %5818 = vmatpush.bf16.msra.mxu0 0
        %5819 = vmatpush.bf16.msra.mxu0 0
        %5820 = vmatpush.bf16.msra.mxu0 %v5811
        %5821 = vmatmul.bf16.gmra.mxu0 %v5621
        %v5822 = vpop.f32.mrf.mxu0
        %v5823 = vadd.f32 0.0, %v5822
        %v5824 = vpop.f32.mrf.mxu0
        %v5825 = vadd.f32 0.0, %v5824
        %5826 = vmatmul.bf16.gmra.mxu0 %v5624
        %v5827 = vpop.f32.mrf.mxu0
        %v5828 = vadd.f32 0.0, %v5827
        %v5829 = vpop.f32.mrf.mxu0
        %v5830 = vadd.f32 0.0, %v5829
        %5831 = vmatmul.bf16.gmra.mxu0 %v5627
        %v5832 = vpop.f32.mrf.mxu0
        %v5833 = vadd.f32 0.0, %v5832
        %v5834 = vpop.f32.mrf.mxu0
        %v5835 = vadd.f32 0.0, %v5834
        %5836 = vmatmul.bf16.gmra.mxu0 %v5630
        %v5837 = vpop.f32.mrf.mxu0
        %v5838 = vadd.f32 0.0, %v5837
        %v5839 = vpop.f32.mrf.mxu0
        %v5840 = vadd.f32 0.0, %v5839
        %5841 = vmatmul.bf16.gmra.mxu0 %v5633
        %v5842 = vpop.f32.mrf.mxu0
        %v5843 = vadd.f32 0.0, %v5842
        %v5844 = vpop.f32.mrf.mxu0
        %v5845 = vadd.f32 0.0, %v5844
        %5846 = vmatmul.bf16.gmra.mxu0 %v5636
        %v5847 = vpop.f32.mrf.mxu0
        %v5848 = vadd.f32 0.0, %v5847
        %v5849 = vpop.f32.mrf.mxu0
        %v5850 = vadd.f32 0.0, %v5849
        %5851 = vmatmul.bf16.gmra.mxu0 %v5639
        %v5852 = vpop.f32.mrf.mxu0
        %v5853 = vadd.f32 0.0, %v5852
        %v5854 = vpop.f32.mrf.mxu0
        %v5855 = vadd.f32 0.0, %v5854
        %5856 = vmatmul.bf16.gmra.mxu0 %v5642
        %v5857 = vpop.f32.mrf.mxu0
        %v5858 = vadd.f32 0.0, %v5857
        %v5859 = vpop.f32.mrf.mxu0
        %v5860 = vadd.f32 0.0, %v5859
        %5861 = vmatmul.bf16.gmra.mxu0 %v5645
        %v5862 = vpop.f32.mrf.mxu0
        %v5863 = vadd.f32 0.0, %v5862
        %v5864 = vpop.f32.mrf.mxu0
        %v5865 = vadd.f32 0.0, %v5864
        %5866 = vmatmul.bf16.gmra.mxu0 %v5648
        %v5867 = vpop.f32.mrf.mxu0
        %v5868 = vadd.f32 0.0, %v5867
        %v5869 = vpop.f32.mrf.mxu0
        %v5870 = vadd.f32 0.0, %v5869
        %5871 = vmatmul.bf16.gmra.mxu0 %v5651
        %v5872 = vpop.f32.mrf.mxu0
        %v5873 = vadd.f32 0.0, %v5872
        %v5874 = vpop.f32.mrf.mxu0
        %v5875 = vadd.f32 0.0, %v5874
        %5876 = vmatmul.bf16.gmra.mxu0 %v5654
        %v5877 = vpop.f32.mrf.mxu0
        %v5878 = vadd.f32 0.0, %v5877
        %v5879 = vpop.f32.mrf.mxu0
        %v5880 = vadd.f32 0.0, %v5879
        %5881 = vmatmul.bf16.gmra.mxu0 %v5657
        %v5882 = vpop.f32.mrf.mxu0
        %v5883 = vadd.f32 0.0, %v5882
        %v5884 = vpop.f32.mrf.mxu0
        %v5885 = vadd.f32 0.0, %v5884
        %5886 = vmatmul.bf16.gmra.mxu0 %v5660
        %v5887 = vpop.f32.mrf.mxu0
        %v5888 = vadd.f32 0.0, %v5887
        %v5889 = vpop.f32.mrf.mxu0
        %v5890 = vadd.f32 0.0, %v5889
        %5891 = vmatmul.bf16.gmra.mxu0 %v5663
        %v5892 = vpop.f32.mrf.mxu0
        %v5893 = vadd.f32 0.0, %v5892
        %v5894 = vpop.f32.mrf.mxu0
        %v5895 = vadd.f32 0.0, %v5894
        %5896 = vmatmul.bf16.gmra.mxu0 %v5808
        %v5897 = vpop.f32.mrf.mxu0
        %v5898 = vadd.f32 0.0, %v5897
        %v5899 = vpop.f32.mrf.mxu0
        %v5900 = vadd.f32 0.0, %v5899
        %5901 = vdwg.mxu0
        %v5902 = vadd.f32 %v5757, %v5823
        %v5903 = vadd.f32 %v5758, %v5825
        %v5904 = vadd.f32 %v5759, %v5828
        %v5905 = vadd.f32 %v5760, %v5830
        %v5906 = vadd.f32 %v5761, %v5833
        %v5907 = vadd.f32 %v5762, %v5835
        %v5908 = vadd.f32 %v5763, %v5838
        %v5909 = vadd.f32 %v5764, %v5840
        %v5910 = vadd.f32 %v5765, %v5843
        %v5911 = vadd.f32 %v5766, %v5845
        %v5912 = vadd.f32 %v5767, %v5848
        %v5913 = vadd.f32 %v5768, %v5850
        %v5914 = vadd.f32 %v5769, %v5853
        %v5915 = vadd.f32 %v5770, %v5855
        %v5916 = vadd.f32 %v5771, %v5858
        %v5917 = vadd.f32 %v5772, %v5860
        %v5918 = vadd.f32 %v5773, %v5863
        %v5919 = vadd.f32 %v5774, %v5865
        %v5920 = vadd.f32 %v5775, %v5868
        %v5921 = vadd.f32 %v5776, %v5870
        %v5922 = vadd.f32 %v5777, %v5873
        %v5923 = vadd.f32 %v5778, %v5875
        %v5924 = vadd.f32 %v5779, %v5878
        %v5925 = vadd.f32 %v5780, %v5880
        %v5926 = vadd.f32 %v5781, %v5883
        %v5927 = vadd.f32 %v5782, %v5885
        %v5928 = vadd.f32 %v5783, %v5888
        %v5929 = vadd.f32 %v5784, %v5890
        %v5930 = vadd.f32 %v5785, %v5893
        %v5931 = vadd.f32 %v5786, %v5895
        %v5932 = vadd.f32 %v5787, %v5898
        %v5933 = vadd.f32 %v5788, %v5900
        %v5937 = vrot.slane %v5407, 5
        %v5938 = vrot.slane %v5937, 4
        %v5939 = vrot.slane %v4465, 5
        %v5940 = vsel %vm2507, %v5938, %v5939
        %v5941 = vrot.slane %v5939, 4
        %v5942 = vrot.slane %v4466, 5
        %v5943 = vsel %vm2507, %v5941, %v5942
        %v5944 = vld [vmem:[%s5 + $0x10] sm:$0x3]
        %v5945 = vunpack.c.l.b16 %v5940
        %v5946 = vunpack.c.l.b16 %v5943
        %v5947 = vpack.c.b16 %v5946, %v5945
        %v5949 = vsel %vm4038, %v5947, 0
        %v5952 = vsel %vm4087, %v5944, 0
        %5954 = vmatpush.bf16.msra.mxu0 0
        %5955 = vmatpush.bf16.msra.mxu0 0
        %5956 = vmatpush.bf16.msra.mxu0 0
        %5957 = vmatpush.bf16.msra.mxu0 0
        %5958 = vmatpush.bf16.msra.mxu0 0
        %5959 = vmatpush.bf16.msra.mxu0 0
        %5960 = vmatpush.bf16.msra.mxu0 0
        %5961 = vmatpush.bf16.msra.mxu0 %v5952
        %5962 = vmatmul.bf16.gmra.mxu0 %v5624
        %v5963 = vpop.f32.mrf.mxu0
        %v5964 = vadd.f32 0.0, %v5963
        %v5965 = vpop.f32.mrf.mxu0
        %v5966 = vadd.f32 0.0, %v5965
        %5967 = vmatmul.bf16.gmra.mxu0 %v5627
        %v5968 = vpop.f32.mrf.mxu0
        %v5969 = vadd.f32 0.0, %v5968
        %v5970 = vpop.f32.mrf.mxu0
        %v5971 = vadd.f32 0.0, %v5970
        %5972 = vmatmul.bf16.gmra.mxu0 %v5630
        %v5973 = vpop.f32.mrf.mxu0
        %v5974 = vadd.f32 0.0, %v5973
        %v5975 = vpop.f32.mrf.mxu0
        %v5976 = vadd.f32 0.0, %v5975
        %5977 = vmatmul.bf16.gmra.mxu0 %v5633
        %v5978 = vpop.f32.mrf.mxu0
        %v5979 = vadd.f32 0.0, %v5978
        %v5980 = vpop.f32.mrf.mxu0
        %v5981 = vadd.f32 0.0, %v5980
        %5982 = vmatmul.bf16.gmra.mxu0 %v5636
        %v5983 = vpop.f32.mrf.mxu0
        %v5984 = vadd.f32 0.0, %v5983
        %v5985 = vpop.f32.mrf.mxu0
        %v5986 = vadd.f32 0.0, %v5985
        %5987 = vmatmul.bf16.gmra.mxu0 %v5639
        %v5988 = vpop.f32.mrf.mxu0
        %v5989 = vadd.f32 0.0, %v5988
        %v5990 = vpop.f32.mrf.mxu0
        %v5991 = vadd.f32 0.0, %v5990
        %5992 = vmatmul.bf16.gmra.mxu0 %v5642
        %v5993 = vpop.f32.mrf.mxu0
        %v5994 = vadd.f32 0.0, %v5993
        %v5995 = vpop.f32.mrf.mxu0
        %v5996 = vadd.f32 0.0, %v5995
        %5997 = vmatmul.bf16.gmra.mxu0 %v5645
        %v5998 = vpop.f32.mrf.mxu0
        %v5999 = vadd.f32 0.0, %v5998
        %v6000 = vpop.f32.mrf.mxu0
        %v6001 = vadd.f32 0.0, %v6000
        %6002 = vmatmul.bf16.gmra.mxu0 %v5648
        %v6003 = vpop.f32.mrf.mxu0
        %v6004 = vadd.f32 0.0, %v6003
        %v6005 = vpop.f32.mrf.mxu0
        %v6006 = vadd.f32 0.0, %v6005
        %6007 = vmatmul.bf16.gmra.mxu0 %v5651
        %v6008 = vpop.f32.mrf.mxu0
        %v6009 = vadd.f32 0.0, %v6008
        %v6010 = vpop.f32.mrf.mxu0
        %v6011 = vadd.f32 0.0, %v6010
        %6012 = vmatmul.bf16.gmra.mxu0 %v5654
        %v6013 = vpop.f32.mrf.mxu0
        %v6014 = vadd.f32 0.0, %v6013
        %v6015 = vpop.f32.mrf.mxu0
        %v6016 = vadd.f32 0.0, %v6015
        %6017 = vmatmul.bf16.gmra.mxu0 %v5657
        %v6018 = vpop.f32.mrf.mxu0
        %v6019 = vadd.f32 0.0, %v6018
        %v6020 = vpop.f32.mrf.mxu0
        %v6021 = vadd.f32 0.0, %v6020
        %6022 = vmatmul.bf16.gmra.mxu0 %v5660
        %v6023 = vpop.f32.mrf.mxu0
        %v6024 = vadd.f32 0.0, %v6023
        %v6025 = vpop.f32.mrf.mxu0
        %v6026 = vadd.f32 0.0, %v6025
        %6027 = vmatmul.bf16.gmra.mxu0 %v5663
        %v6028 = vpop.f32.mrf.mxu0
        %v6029 = vadd.f32 0.0, %v6028
        %v6030 = vpop.f32.mrf.mxu0
        %v6031 = vadd.f32 0.0, %v6030
        %6032 = vmatmul.bf16.gmra.mxu0 %v5808
        %v6033 = vpop.f32.mrf.mxu0
        %v6034 = vadd.f32 0.0, %v6033
        %v6035 = vpop.f32.mrf.mxu0
        %v6036 = vadd.f32 0.0, %v6035
        %6037 = vmatmul.bf16.gmra.mxu0 %v5949
        %v6038 = vpop.f32.mrf.mxu0
        %v6039 = vadd.f32 0.0, %v6038
        %v6040 = vpop.f32.mrf.mxu0
        %v6041 = vadd.f32 0.0, %v6040
        %6042 = vdwg.mxu0
        %v6043 = vadd.f32 %v5902, %v5964
        %v6044 = vadd.f32 %v5903, %v5966
        %v6045 = vadd.f32 %v5904, %v5969
        %v6046 = vadd.f32 %v5905, %v5971
        %v6047 = vadd.f32 %v5906, %v5974
        %v6048 = vadd.f32 %v5907, %v5976
        %v6049 = vadd.f32 %v5908, %v5979
        %v6050 = vadd.f32 %v5909, %v5981
        %v6051 = vadd.f32 %v5910, %v5984
        %v6052 = vadd.f32 %v5911, %v5986
        %v6053 = vadd.f32 %v5912, %v5989
        %v6054 = vadd.f32 %v5913, %v5991
        %v6055 = vadd.f32 %v5914, %v5994
        %v6056 = vadd.f32 %v5915, %v5996
        %v6057 = vadd.f32 %v5916, %v5999
        %v6058 = vadd.f32 %v5917, %v6001
        %v6059 = vadd.f32 %v5918, %v6004
        %v6060 = vadd.f32 %v5919, %v6006
        %v6061 = vadd.f32 %v5920, %v6009
        %v6062 = vadd.f32 %v5921, %v6011
        %v6063 = vadd.f32 %v5922, %v6014
        %v6064 = vadd.f32 %v5923, %v6016
        %v6065 = vadd.f32 %v5924, %v6019
        %v6066 = vadd.f32 %v5925, %v6021
        %v6067 = vadd.f32 %v5926, %v6024
        %v6068 = vadd.f32 %v5927, %v6026
        %v6069 = vadd.f32 %v5928, %v6029
        %v6070 = vadd.f32 %v5929, %v6031
        %v6071 = vadd.f32 %v5930, %v6034
        %v6072 = vadd.f32 %v5931, %v6036
        %v6073 = vadd.f32 %v5932, %v6039
        %v6074 = vadd.f32 %v5933, %v6041
        %v6075 = vld [vmem:[%s6] sm:$0x1]
        %v6077 = vperm.slane %v6075, 0
        %v6079 = vmul.f32 %v6043, %v6077
        %v6080 = vmul.f32 %v6044, %v6077
        %v6081 = vmul.f32 %v6045, %v6077
        %v6082 = vmul.f32 %v6046, %v6077
        %v6083 = vmul.f32 %v6047, %v6077
        %v6084 = vmul.f32 %v6048, %v6077
        %v6085 = vmul.f32 %v6049, %v6077
        %v6086 = vmul.f32 %v6050, %v6077
        %v6087 = vmul.f32 %v6051, %v6077
        %v6088 = vmul.f32 %v6052, %v6077
        %v6089 = vmul.f32 %v6053, %v6077
        %v6090 = vmul.f32 %v6054, %v6077
        %v6091 = vmul.f32 %v6055, %v6077
        %v6092 = vmul.f32 %v6056, %v6077
        %v6093 = vmul.f32 %v6057, %v6077
        %v6094 = vmul.f32 %v6058, %v6077
        %v6095 = vmul.f32 %v6059, %v6077
        %v6096 = vmul.f32 %v6060, %v6077
        %v6097 = vmul.f32 %v6061, %v6077
        %v6098 = vmul.f32 %v6062, %v6077
        %v6099 = vmul.f32 %v6063, %v6077
        %v6100 = vmul.f32 %v6064, %v6077
        %v6101 = vmul.f32 %v6065, %v6077
        %v6102 = vmul.f32 %v6066, %v6077
        %v6103 = vmul.f32 %v6067, %v6077
        %v6104 = vmul.f32 %v6068, %v6077
        %v6105 = vmul.f32 %v6069, %v6077
        %v6106 = vmul.f32 %v6070, %v6077
        %v6107 = vmul.f32 %v6071, %v6077
        %v6108 = vmul.f32 %v6072, %v6077
        %v6109 = vmul.f32 %v6073, %v6077
        %v6110 = vmul.f32 %v6074, %v6077
        %v6111 = vld [vmem:[%s7] sm:$0x1]
        %v6113 = vperm.slane %v6111, 0
        %v6115 = vadd.f32 %v6079, %v6113
        %v6116 = vadd.f32 %v6080, %v6113
        %v6117 = vadd.f32 %v6081, %v6113
        %v6118 = vadd.f32 %v6082, %v6113
        %v6119 = vadd.f32 %v6083, %v6113
        %v6120 = vadd.f32 %v6084, %v6113
        %v6121 = vadd.f32 %v6085, %v6113
        %v6122 = vadd.f32 %v6086, %v6113
        %v6123 = vadd.f32 %v6087, %v6113
        %v6124 = vadd.f32 %v6088, %v6113
        %v6125 = vadd.f32 %v6089, %v6113
        %v6126 = vadd.f32 %v6090, %v6113
        %v6127 = vadd.f32 %v6091, %v6113
        %v6128 = vadd.f32 %v6092, %v6113
        %v6129 = vadd.f32 %v6093, %v6113
        %v6130 = vadd.f32 %v6094, %v6113
        %v6131 = vadd.f32 %v6095, %v6113
        %v6132 = vadd.f32 %v6096, %v6113
        %v6133 = vadd.f32 %v6097, %v6113
        %v6134 = vadd.f32 %v6098, %v6113
        %v6135 = vadd.f32 %v6099, %v6113
        %v6136 = vadd.f32 %v6100, %v6113
        %v6137 = vadd.f32 %v6101, %v6113
        %v6138 = vadd.f32 %v6102, %v6113
        %v6139 = vadd.f32 %v6103, %v6113
        %v6140 = vadd.f32 %v6104, %v6113
        %v6141 = vadd.f32 %v6105, %v6113
        %v6142 = vadd.f32 %v6106, %v6113
        %v6143 = vadd.f32 %v6107, %v6113
        %v6144 = vadd.f32 %v6108, %v6113
        %v6145 = vadd.f32 %v6109, %v6113
        %v6146 = vadd.f32 %v6110, %v6113
        %vm6147 = vcmp.ge.f32.partialorder %v6115, 0.0
        %vm6148 = vcmp.ge.f32.partialorder %v6116, 0.0
        %vm6149 = vcmp.ge.f32.partialorder %v6117, 0.0
        %vm6150 = vcmp.ge.f32.partialorder %v6118, 0.0
        %vm6151 = vcmp.ge.f32.partialorder %v6119, 0.0
        %vm6152 = vcmp.ge.f32.partialorder %v6120, 0.0
        %vm6153 = vcmp.ge.f32.partialorder %v6121, 0.0
        %vm6154 = vcmp.ge.f32.partialorder %v6122, 0.0
        %vm6155 = vcmp.ge.f32.partialorder %v6123, 0.0
        %vm6156 = vcmp.ge.f32.partialorder %v6124, 0.0
        %vm6157 = vcmp.ge.f32.partialorder %v6125, 0.0
        %vm6158 = vcmp.ge.f32.partialorder %v6126, 0.0
        %vm6159 = vcmp.ge.f32.partialorder %v6127, 0.0
        %vm6160 = vcmp.ge.f32.partialorder %v6128, 0.0
        %vm6161 = vcmp.ge.f32.partialorder %v6129, 0.0
        %vm6162 = vcmp.ge.f32.partialorder %v6130, 0.0
        %vm6163 = vcmp.ge.f32.partialorder %v6131, 0.0
        %vm6164 = vcmp.ge.f32.partialorder %v6132, 0.0
        %vm6165 = vcmp.ge.f32.partialorder %v6133, 0.0
        %vm6166 = vcmp.ge.f32.partialorder %v6134, 0.0
        %vm6167 = vcmp.ge.f32.partialorder %v6135, 0.0
        %vm6168 = vcmp.ge.f32.partialorder %v6136, 0.0
        %vm6169 = vcmp.ge.f32.partialorder %v6137, 0.0
        %vm6170 = vcmp.ge.f32.partialorder %v6138, 0.0
        %vm6171 = vcmp.ge.f32.partialorder %v6139, 0.0
        %vm6172 = vcmp.ge.f32.partialorder %v6140, 0.0
        %vm6173 = vcmp.ge.f32.partialorder %v6141, 0.0
        %vm6174 = vcmp.ge.f32.partialorder %v6142, 0.0
        %vm6175 = vcmp.ge.f32.partialorder %v6143, 0.0
        %vm6176 = vcmp.ge.f32.partialorder %v6144, 0.0
        %vm6177 = vcmp.ge.f32.partialorder %v6145, 0.0
        %vm6178 = vcmp.ge.f32.partialorder %v6146, 0.0
        %v6179 = vld [vmem:[%s8] sm:$0x1]
        %v6181 = vperm.slane %v6179, 0
        %v6183 = vmul.f32 %v6115, %v6181
        %v6184 = vmul.f32 %v6116, %v6181
        %v6185 = vmul.f32 %v6117, %v6181
        %v6186 = vmul.f32 %v6118, %v6181
        %v6187 = vmul.f32 %v6119, %v6181
        %v6188 = vmul.f32 %v6120, %v6181
        %v6189 = vmul.f32 %v6121, %v6181
        %v6190 = vmul.f32 %v6122, %v6181
        %v6191 = vmul.f32 %v6123, %v6181
        %v6192 = vmul.f32 %v6124, %v6181
        %v6193 = vmul.f32 %v6125, %v6181
        %v6194 = vmul.f32 %v6126, %v6181
        %v6195 = vmul.f32 %v6127, %v6181
        %v6196 = vmul.f32 %v6128, %v6181
        %v6197 = vmul.f32 %v6129, %v6181
        %v6198 = vmul.f32 %v6130, %v6181
        %v6199 = vmul.f32 %v6131, %v6181
        %v6200 = vmul.f32 %v6132, %v6181
        %v6201 = vmul.f32 %v6133, %v6181
        %v6202 = vmul.f32 %v6134, %v6181
        %v6203 = vmul.f32 %v6135, %v6181
        %v6204 = vmul.f32 %v6136, %v6181
        %v6205 = vmul.f32 %v6137, %v6181
        %v6206 = vmul.f32 %v6138, %v6181
        %v6207 = vmul.f32 %v6139, %v6181
        %v6208 = vmul.f32 %v6140, %v6181
        %v6209 = vmul.f32 %v6141, %v6181
        %v6210 = vmul.f32 %v6142, %v6181
        %v6211 = vmul.f32 %v6143, %v6181
        %v6212 = vmul.f32 %v6144, %v6181
        %v6213 = vmul.f32 %v6145, %v6181
        %v6214 = vmul.f32 %v6146, %v6181
        %v6215 = vsel %vm6147, %v6115, %v6183
        %v6216 = vsel %vm6148, %v6116, %v6184
        %v6217 = vsel %vm6149, %v6117, %v6185
        %v6218 = vsel %vm6150, %v6118, %v6186
        %v6219 = vsel %vm6151, %v6119, %v6187
        %v6220 = vsel %vm6152, %v6120, %v6188
        %v6221 = vsel %vm6153, %v6121, %v6189
        %v6222 = vsel %vm6154, %v6122, %v6190
        %v6223 = vsel %vm6155, %v6123, %v6191
        %v6224 = vsel %vm6156, %v6124, %v6192
        %v6225 = vsel %vm6157, %v6125, %v6193
        %v6226 = vsel %vm6158, %v6126, %v6194
        %v6227 = vsel %vm6159, %v6127, %v6195
        %v6228 = vsel %vm6160, %v6128, %v6196
        %v6229 = vsel %vm6161, %v6129, %v6197
        %v6230 = vsel %vm6162, %v6130, %v6198
        %v6231 = vsel %vm6163, %v6131, %v6199
        %v6232 = vsel %vm6164, %v6132, %v6200
        %v6233 = vsel %vm6165, %v6133, %v6201
        %v6234 = vsel %vm6166, %v6134, %v6202
        %v6235 = vsel %vm6167, %v6135, %v6203
        %v6236 = vsel %vm6168, %v6136, %v6204
        %v6237 = vsel %vm6169, %v6137, %v6205
        %v6238 = vsel %vm6170, %v6138, %v6206
        %v6239 = vsel %vm6171, %v6139, %v6207
        %v6240 = vsel %vm6172, %v6140, %v6208
        %v6241 = vsel %vm6173, %v6141, %v6209
        %v6242 = vsel %vm6174, %v6142, %v6210
        %v6243 = vsel %vm6175, %v6143, %v6211
        %v6244 = vsel %vm6176, %v6144, %v6212
        %v6245 = vsel %vm6177, %v6145, %v6213
        %v6246 = vsel %vm6178, %v6146, %v6214
        %v6247 = vpack.c.bf16 %v6215, %v6215
        %v6248 = vpack.c.bf16 %v6216, %v6216
        %v6249 = vpack.c.bf16 %v6217, %v6217
        %v6250 = vpack.c.bf16 %v6218, %v6218
        %v6251 = vpack.c.bf16 %v6219, %v6219
        %v6252 = vpack.c.bf16 %v6220, %v6220
        %v6253 = vpack.c.bf16 %v6221, %v6221
        %v6254 = vpack.c.bf16 %v6222, %v6222
        %v6255 = vpack.c.bf16 %v6223, %v6223
        %v6256 = vpack.c.bf16 %v6224, %v6224
        %v6257 = vpack.c.bf16 %v6225, %v6225
        %v6258 = vpack.c.bf16 %v6226, %v6226
        %v6259 = vpack.c.bf16 %v6227, %v6227
        %v6260 = vpack.c.bf16 %v6228, %v6228
        %v6261 = vpack.c.bf16 %v6229, %v6229
        %v6262 = vpack.c.bf16 %v6230, %v6230
        %v6263 = vpack.c.bf16 %v6231, %v6231
        %v6264 = vpack.c.bf16 %v6232, %v6232
        %v6265 = vpack.c.bf16 %v6233, %v6233
        %v6266 = vpack.c.bf16 %v6234, %v6234
        %v6267 = vpack.c.bf16 %v6235, %v6235
        %v6268 = vpack.c.bf16 %v6236, %v6236
        %v6269 = vpack.c.bf16 %v6237, %v6237
        %v6270 = vpack.c.bf16 %v6238, %v6238
        %v6271 = vpack.c.bf16 %v6239, %v6239
        %v6272 = vpack.c.bf16 %v6240, %v6240
        %v6273 = vpack.c.bf16 %v6241, %v6241
        %v6274 = vpack.c.bf16 %v6242, %v6242
        %v6275 = vpack.c.bf16 %v6243, %v6243
        %v6276 = vpack.c.bf16 %v6244, %v6244
        %v6277 = vpack.c.bf16 %v6245, %v6245
        %v6278 = vpack.c.bf16 %v6246, %v6246
        %v6280 = vshrl.u32 %v6247, 16
        %v6282 = vrot.slane %v6280, 7
        %v6283 = vshll.u32 %v6247, 16
        %v6285 = vor.u32 %v6282, %v6283
        %v6286 = vrot.slane %v6282, 4
        %v6288 = vshrl.u32 %v6248, 16
        %v6290 = vrot.slane %v6288, 7
        %v6291 = vshll.u32 %v6248, 16
        %v6293 = vor.u32 %v6290, %v6291
        %v6294 = vsel %vm535, %v6286, %v6293
        %v6295 = vrot.slane %v6290, 4
        %v6297 = vshrl.u32 %v6249, 16
        %v6299 = vrot.slane %v6297, 7
        %v6300 = vshll.u32 %v6249, 16
        %v6302 = vor.u32 %v6299, %v6300
        %v6303 = vrot.slane %v6299, 4
        %v6305 = vshrl.u32 %v6250, 16
        %v6307 = vrot.slane %v6305, 7
        %v6308 = vshll.u32 %v6250, 16
        %v6310 = vor.u32 %v6307, %v6308
        %v6311 = vsel %vm535, %v6303, %v6310
        %v6312 = vrot.slane %v6307, 4
        %v6314 = vshrl.u32 %v6251, 16
        %v6316 = vrot.slane %v6314, 7
        %v6317 = vshll.u32 %v6251, 16
        %v6319 = vor.u32 %v6316, %v6317
        %v6320 = vrot.slane %v6316, 4
        %v6322 = vshrl.u32 %v6252, 16
        %v6324 = vrot.slane %v6322, 7
        %v6325 = vshll.u32 %v6252, 16
        %v6327 = vor.u32 %v6324, %v6325
        %v6328 = vsel %vm535, %v6320, %v6327
        %v6329 = vrot.slane %v6324, 4
        %v6331 = vshrl.u32 %v6253, 16
        %v6333 = vrot.slane %v6331, 7
        %v6334 = vshll.u32 %v6253, 16
        %v6336 = vor.u32 %v6333, %v6334
        %v6337 = vrot.slane %v6333, 4
        %v6339 = vshrl.u32 %v6254, 16
        %v6341 = vrot.slane %v6339, 7
        %v6342 = vshll.u32 %v6254, 16
        %v6344 = vor.u32 %v6341, %v6342
        %v6345 = vsel %vm535, %v6337, %v6344
        %v6346 = vrot.slane %v6341, 4
        %v6348 = vshrl.u32 %v6255, 16
        %v6350 = vrot.slane %v6348, 7
        %v6351 = vshll.u32 %v6255, 16
        %v6353 = vor.u32 %v6350, %v6351
        %v6354 = vrot.slane %v6350, 4
        %v6356 = vshrl.u32 %v6256, 16
        %v6358 = vrot.slane %v6356, 7
        %v6359 = vshll.u32 %v6256, 16
        %v6361 = vor.u32 %v6358, %v6359
        %v6362 = vsel %vm535, %v6354, %v6361
        %v6363 = vrot.slane %v6358, 4
        %v6365 = vshrl.u32 %v6257, 16
        %v6367 = vrot.slane %v6365, 7
        %v6368 = vshll.u32 %v6257, 16
        %v6370 = vor.u32 %v6367, %v6368
        %v6371 = vrot.slane %v6367, 4
        %v6373 = vshrl.u32 %v6258, 16
        %v6375 = vrot.slane %v6373, 7
        %v6376 = vshll.u32 %v6258, 16
        %v6378 = vor.u32 %v6375, %v6376
        %v6379 = vsel %vm535, %v6371, %v6378
        %v6380 = vrot.slane %v6375, 4
        %v6382 = vshrl.u32 %v6259, 16
        %v6384 = vrot.slane %v6382, 7
        %v6385 = vshll.u32 %v6259, 16
        %v6387 = vor.u32 %v6384, %v6385
        %v6388 = vrot.slane %v6384, 4
        %v6390 = vshrl.u32 %v6260, 16
        %v6392 = vrot.slane %v6390, 7
        %v6393 = vshll.u32 %v6260, 16
        %v6395 = vor.u32 %v6392, %v6393
        %v6396 = vsel %vm535, %v6388, %v6395
        %v6397 = vrot.slane %v6392, 4
        %v6399 = vshrl.u32 %v6261, 16
        %v6401 = vrot.slane %v6399, 7
        %v6402 = vshll.u32 %v6261, 16
        %v6404 = vor.u32 %v6401, %v6402
        %v6405 = vrot.slane %v6401, 4
        %v6407 = vshrl.u32 %v6262, 16
        %v6409 = vrot.slane %v6407, 7
        %v6410 = vshll.u32 %v6262, 16
        %v6412 = vor.u32 %v6409, %v6410
        %v6413 = vsel %vm535, %v6405, %v6412
        %v6414 = vrot.slane %v6409, 4
        %v6416 = vshrl.u32 %v6263, 16
        %v6418 = vrot.slane %v6416, 7
        %v6419 = vshll.u32 %v6263, 16
        %v6421 = vor.u32 %v6418, %v6419
        %v6422 = vrot.slane %v6418, 4
        %v6424 = vshrl.u32 %v6264, 16
        %v6426 = vrot.slane %v6424, 7
        %v6427 = vshll.u32 %v6264, 16
        %v6429 = vor.u32 %v6426, %v6427
        %v6430 = vsel %vm535, %v6422, %v6429
        %v6431 = vrot.slane %v6426, 4
        %v6433 = vshrl.u32 %v6265, 16
        %v6435 = vrot.slane %v6433, 7
        %v6436 = vshll.u32 %v6265, 16
        %v6438 = vor.u32 %v6435, %v6436
        %v6439 = vrot.slane %v6435, 4
        %v6441 = vshrl.u32 %v6266, 16
        %v6443 = vrot.slane %v6441, 7
        %v6444 = vshll.u32 %v6266, 16
        %v6446 = vor.u32 %v6443, %v6444
        %v6447 = vsel %vm535, %v6439, %v6446
        %v6448 = vrot.slane %v6443, 4
        %v6450 = vshrl.u32 %v6267, 16
        %v6452 = vrot.slane %v6450, 7
        %v6453 = vshll.u32 %v6267, 16
        %v6455 = vor.u32 %v6452, %v6453
        %v6456 = vrot.slane %v6452, 4
        %v6458 = vshrl.u32 %v6268, 16
        %v6460 = vrot.slane %v6458, 7
        %v6461 = vshll.u32 %v6268, 16
        %v6463 = vor.u32 %v6460, %v6461
        %v6464 = vsel %vm535, %v6456, %v6463
        %v6465 = vrot.slane %v6460, 4
        %v6467 = vshrl.u32 %v6269, 16
        %v6469 = vrot.slane %v6467, 7
        %v6470 = vshll.u32 %v6269, 16
        %v6472 = vor.u32 %v6469, %v6470
        %v6473 = vrot.slane %v6469, 4
        %v6475 = vshrl.u32 %v6270, 16
        %v6477 = vrot.slane %v6475, 7
        %v6478 = vshll.u32 %v6270, 16
        %v6480 = vor.u32 %v6477, %v6478
        %v6481 = vsel %vm535, %v6473, %v6480
        %v6482 = vrot.slane %v6477, 4
        %v6484 = vshrl.u32 %v6271, 16
        %v6486 = vrot.slane %v6484, 7
        %v6487 = vshll.u32 %v6271, 16
        %v6489 = vor.u32 %v6486, %v6487
        %v6490 = vrot.slane %v6486, 4
        %v6492 = vshrl.u32 %v6272, 16
        %v6494 = vrot.slane %v6492, 7
        %v6495 = vshll.u32 %v6272, 16
        %v6497 = vor.u32 %v6494, %v6495
        %v6498 = vsel %vm535, %v6490, %v6497
        %v6499 = vrot.slane %v6494, 4
        %v6501 = vshrl.u32 %v6273, 16
        %v6503 = vrot.slane %v6501, 7
        %v6504 = vshll.u32 %v6273, 16
        %v6506 = vor.u32 %v6503, %v6504
        %v6507 = vrot.slane %v6503, 4
        %v6509 = vshrl.u32 %v6274, 16
        %v6511 = vrot.slane %v6509, 7
        %v6512 = vshll.u32 %v6274, 16
        %v6514 = vor.u32 %v6511, %v6512
        %v6515 = vsel %vm535, %v6507, %v6514
        %v6516 = vrot.slane %v6511, 4
        %v6518 = vshrl.u32 %v6275, 16
        %v6520 = vrot.slane %v6518, 7
        %v6521 = vshll.u32 %v6275, 16
        %v6523 = vor.u32 %v6520, %v6521
        %v6524 = vrot.slane %v6520, 4
        %v6526 = vshrl.u32 %v6276, 16
        %v6528 = vrot.slane %v6526, 7
        %v6529 = vshll.u32 %v6276, 16
        %v6531 = vor.u32 %v6528, %v6529
        %v6532 = vsel %vm535, %v6524, %v6531
        %v6533 = vrot.slane %v6528, 4
        %v6535 = vshrl.u32 %v6277, 16
        %v6537 = vrot.slane %v6535, 7
        %v6538 = vshll.u32 %v6277, 16
        %v6540 = vor.u32 %v6537, %v6538
        %v6541 = vrot.slane %v6537, 4
        %v6543 = vshrl.u32 %v6278, 16
        %v6545 = vrot.slane %v6543, 7
        %v6546 = vshll.u32 %v6278, 16
        %v6548 = vor.u32 %v6545, %v6546
        %v6549 = vsel %vm535, %v6541, %v6548
        %v6550 = vrot.slane %v6545, 4
        %6551 = vrot.lane.b32.xlu0 %v6285, 124
        %v6552 = vpop.permute.xlu0 %6551
        %6553 = vrot.lane.b32.xlu0 %v6294, 124
        %v6554 = vpop.permute.xlu0 %6553
        %6555 = vrot.lane.b32.xlu0 %v6295, 124
        %v6556 = vpop.permute.xlu0 %6555
        %6557 = vrot.lane.b32.xlu0 %v6302, 124
        %v6558 = vpop.permute.xlu0 %6557
        %6559 = vrot.lane.b32.xlu0 %v6311, 124
        %v6560 = vpop.permute.xlu0 %6559
        %6561 = vrot.lane.b32.xlu0 %v6312, 124
        %v6562 = vpop.permute.xlu0 %6561
        %6563 = vrot.lane.b32.xlu0 %v6319, 124
        %v6564 = vpop.permute.xlu0 %6563
        %6565 = vrot.lane.b32.xlu0 %v6328, 124
        %v6566 = vpop.permute.xlu0 %6565
        %6567 = vrot.lane.b32.xlu0 %v6329, 124
        %v6568 = vpop.permute.xlu0 %6567
        %6569 = vrot.lane.b32.xlu0 %v6336, 124
        %v6570 = vpop.permute.xlu0 %6569
        %6571 = vrot.lane.b32.xlu0 %v6345, 124
        %v6572 = vpop.permute.xlu0 %6571
        %6573 = vrot.lane.b32.xlu0 %v6346, 124
        %v6574 = vpop.permute.xlu0 %6573
        %6575 = vrot.lane.b32.xlu0 %v6353, 124
        %v6576 = vpop.permute.xlu0 %6575
        %6577 = vrot.lane.b32.xlu0 %v6362, 124
        %v6578 = vpop.permute.xlu0 %6577
        %6579 = vrot.lane.b32.xlu0 %v6363, 124
        %v6580 = vpop.permute.xlu0 %6579
        %6581 = vrot.lane.b32.xlu0 %v6370, 124
        %v6582 = vpop.permute.xlu0 %6581
        %6583 = vrot.lane.b32.xlu0 %v6379, 124
        %v6584 = vpop.permute.xlu0 %6583
        %6585 = vrot.lane.b32.xlu0 %v6380, 124
        %v6586 = vpop.permute.xlu0 %6585
        %6587 = vrot.lane.b32.xlu0 %v6387, 124
        %v6588 = vpop.permute.xlu0 %6587
        %6589 = vrot.lane.b32.xlu0 %v6396, 124
        %v6590 = vpop.permute.xlu0 %6589
        %6591 = vrot.lane.b32.xlu0 %v6397, 124
        %v6592 = vpop.permute.xlu0 %6591
        %6593 = vrot.lane.b32.xlu0 %v6404, 124
        %v6594 = vpop.permute.xlu0 %6593
        %6595 = vrot.lane.b32.xlu0 %v6413, 124
        %v6596 = vpop.permute.xlu0 %6595
        %6597 = vrot.lane.b32.xlu0 %v6414, 124
        %v6598 = vpop.permute.xlu0 %6597
        %6599 = vrot.lane.b32.xlu0 %v6421, 124
        %v6600 = vpop.permute.xlu0 %6599
        %6601 = vrot.lane.b32.xlu0 %v6430, 124
        %v6602 = vpop.permute.xlu0 %6601
        %6603 = vrot.lane.b32.xlu0 %v6431, 124
        %v6604 = vpop.permute.xlu0 %6603
        %6605 = vrot.lane.b32.xlu0 %v6438, 124
        %v6606 = vpop.permute.xlu0 %6605
        %6607 = vrot.lane.b32.xlu0 %v6447, 124
        %v6608 = vpop.permute.xlu0 %6607
        %6609 = vrot.lane.b32.xlu0 %v6448, 124
        %v6610 = vpop.permute.xlu0 %6609
        %6611 = vrot.lane.b32.xlu0 %v6455, 124
        %v6612 = vpop.permute.xlu0 %6611
        %6613 = vrot.lane.b32.xlu0 %v6464, 124
        %v6614 = vpop.permute.xlu0 %6613
        %6615 = vrot.lane.b32.xlu0 %v6465, 124
        %v6616 = vpop.permute.xlu0 %6615
        %6617 = vrot.lane.b32.xlu0 %v6472, 124
        %v6618 = vpop.permute.xlu0 %6617
        %6619 = vrot.lane.b32.xlu0 %v6481, 124
        %v6620 = vpop.permute.xlu0 %6619
        %6621 = vrot.lane.b32.xlu0 %v6482, 124
        %v6622 = vpop.permute.xlu0 %6621
        %6623 = vrot.lane.b32.xlu0 %v6489, 124
        %v6624 = vpop.permute.xlu0 %6623
        %6625 = vrot.lane.b32.xlu0 %v6498, 124
        %v6626 = vpop.permute.xlu0 %6625
        %6627 = vrot.lane.b32.xlu0 %v6499, 124
        %v6628 = vpop.permute.xlu0 %6627
        %6629 = vrot.lane.b32.xlu0 %v6506, 124
        %v6630 = vpop.permute.xlu0 %6629
        %6631 = vrot.lane.b32.xlu0 %v6515, 124
        %v6632 = vpop.permute.xlu0 %6631
        %6633 = vrot.lane.b32.xlu0 %v6516, 124
        %v6634 = vpop.permute.xlu0 %6633
        %6635 = vrot.lane.b32.xlu0 %v6523, 124
        %v6636 = vpop.permute.xlu0 %6635
        %6637 = vrot.lane.b32.xlu0 %v6532, 124
        %v6638 = vpop.permute.xlu0 %6637
        %6639 = vrot.lane.b32.xlu0 %v6533, 124
        %v6640 = vpop.permute.xlu0 %6639
        %6641 = vrot.lane.b32.xlu0 %v6540, 124
        %v6642 = vpop.permute.xlu0 %6641
        %6643 = vrot.lane.b32.xlu0 %v6549, 124
        %v6644 = vpop.permute.xlu0 %6643
        %6645 = vrot.lane.b32.xlu0 %v6550, 124
        %v6646 = vpop.permute.xlu0 %6645
        %v6695 = vld [vmem:[%s3799] sm:$0xf]
        %v6696 = vsel %vm3801, %v6552, %v6695
        %6697 = vst [vmem:[%s3799] sm:$0xf] %v6696
        %6698 = vst.msk [vmem:[%s3799 + $0x4] sm:$0xf] %vm3327, %v6554
        %v6699 = vld [vmem:[%s3799 + $0x8] sm:$0x1]
        %v6700 = vsel %vm3807, %v6556, %v6699
        %6701 = vst [vmem:[%s3799 + $0x8] sm:$0x1] %v6700
        %v6702 = vld [vmem:[%s3799 + $0xc] sm:$0xf]
        %v6703 = vsel %vm3801, %v6558, %v6702
        %6704 = vst [vmem:[%s3799 + $0xc] sm:$0xf] %v6703
        %6705 = vst.msk [vmem:[%s3799 + $0x10] sm:$0xf] %vm3327, %v6560
        %v6706 = vld [vmem:[%s3799 + $0x14] sm:$0x1]
        %v6707 = vsel %vm3807, %v6562, %v6706
        %6708 = vst [vmem:[%s3799 + $0x14] sm:$0x1] %v6707
        %v6709 = vld [vmem:[%s3799 + $0x18] sm:$0xf]
        %v6710 = vsel %vm3801, %v6564, %v6709
        %6711 = vst [vmem:[%s3799 + $0x18] sm:$0xf] %v6710
        %6712 = vst.msk [vmem:[%s3799 + $0x1c] sm:$0xf] %vm3327, %v6566
        %v6713 = vld [vmem:[%s3799 + $0x20] sm:$0x1]
        %v6714 = vsel %vm3807, %v6568, %v6713
        %6715 = vst [vmem:[%s3799 + $0x20] sm:$0x1] %v6714
        %v6716 = vld [vmem:[%s3799 + $0x24] sm:$0xf]
        %v6717 = vsel %vm3801, %v6570, %v6716
        %6718 = vst [vmem:[%s3799 + $0x24] sm:$0xf] %v6717
        %6719 = vst.msk [vmem:[%s3799 + $0x28] sm:$0xf] %vm3327, %v6572
        %v6720 = vld [vmem:[%s3799 + $0x2c] sm:$0x1]
        %v6721 = vsel %vm3807, %v6574, %v6720
        %6722 = vst [vmem:[%s3799 + $0x2c] sm:$0x1] %v6721
        %v6723 = vld [vmem:[%s3799 + $0x30] sm:$0xf]
        %v6724 = vsel %vm3801, %v6576, %v6723
        %6725 = vst [vmem:[%s3799 + $0x30] sm:$0xf] %v6724
        %6726 = vst.msk [vmem:[%s3799 + $0x34] sm:$0xf] %vm3327, %v6578
        %v6727 = vld [vmem:[%s3799 + $0x38] sm:$0x1]
        %v6728 = vsel %vm3807, %v6580, %v6727
        %6729 = vst [vmem:[%s3799 + $0x38] sm:$0x1] %v6728
        %v6730 = vld [vmem:[%s3799 + $0x3c] sm:$0xf]
        %v6731 = vsel %vm3801, %v6582, %v6730
        %6732 = vst [vmem:[%s3799 + $0x3c] sm:$0xf] %v6731
        %6733 = vst.msk [vmem:[%s3799 + $0x40] sm:$0xf] %vm3327, %v6584
        %v6734 = vld [vmem:[%s3799 + $0x44] sm:$0x1]
        %v6735 = vsel %vm3807, %v6586, %v6734
        %6736 = vst [vmem:[%s3799 + $0x44] sm:$0x1] %v6735
        %v6737 = vld [vmem:[%s3799 + $0x48] sm:$0xf]
        %v6738 = vsel %vm3801, %v6588, %v6737
        %6739 = vst [vmem:[%s3799 + $0x48] sm:$0xf] %v6738
        %6740 = vst.msk [vmem:[%s3799 + $0x4c] sm:$0xf] %vm3327, %v6590
        %v6741 = vld [vmem:[%s3799 + $0x50] sm:$0x1]
        %v6742 = vsel %vm3807, %v6592, %v6741
        %6743 = vst [vmem:[%s3799 + $0x50] sm:$0x1] %v6742
        %v6744 = vld [vmem:[%s3799 + $0x54] sm:$0xf]
        %v6745 = vsel %vm3801, %v6594, %v6744
        %6746 = vst [vmem:[%s3799 + $0x54] sm:$0xf] %v6745
        %6747 = vst.msk [vmem:[%s3799 + $0x58] sm:$0xf] %vm3327, %v6596
        %v6748 = vld [vmem:[%s3799 + $0x5c] sm:$0x1]
        %v6749 = vsel %vm3807, %v6598, %v6748
        %6750 = vst [vmem:[%s3799 + $0x5c] sm:$0x1] %v6749
        %v6751 = vld [vmem:[%s3799 + $0x60] sm:$0xf]
        %v6752 = vsel %vm3801, %v6600, %v6751
        %6753 = vst [vmem:[%s3799 + $0x60] sm:$0xf] %v6752
        %6754 = vst.msk [vmem:[%s3799 + $0x64] sm:$0xf] %vm3327, %v6602
        %v6755 = vld [vmem:[%s3799 + $0x68] sm:$0x1]
        %v6756 = vsel %vm3807, %v6604, %v6755
        %6757 = vst [vmem:[%s3799 + $0x68] sm:$0x1] %v6756
        %v6758 = vld [vmem:[%s3799 + $0x6c] sm:$0xf]
        %v6759 = vsel %vm3801, %v6606, %v6758
        %6760 = vst [vmem:[%s3799 + $0x6c] sm:$0xf] %v6759
        %6761 = vst.msk [vmem:[%s3799 + $0x70] sm:$0xf] %vm3327, %v6608
        %v6762 = vld [vmem:[%s3799 + $0x74] sm:$0x1]
        %v6763 = vsel %vm3807, %v6610, %v6762
        %6764 = vst [vmem:[%s3799 + $0x74] sm:$0x1] %v6763
        %v6765 = vld [vmem:[%s3799 + $0x78] sm:$0xf]
        %v6766 = vsel %vm3801, %v6612, %v6765
        %6767 = vst [vmem:[%s3799 + $0x78] sm:$0xf] %v6766
        %6768 = vst.msk [vmem:[%s3799 + $0x7c] sm:$0xf] %vm3327, %v6614
        %v6769 = vld [vmem:[%s3799 + $0x80] sm:$0x1]
        %v6770 = vsel %vm3807, %v6616, %v6769
        %6771 = vst [vmem:[%s3799 + $0x80] sm:$0x1] %v6770
        %v6772 = vld [vmem:[%s3799 + $0x84] sm:$0xf]
        %v6773 = vsel %vm3801, %v6618, %v6772
        %6774 = vst [vmem:[%s3799 + $0x84] sm:$0xf] %v6773
        %6775 = vst.msk [vmem:[%s3799 + $0x88] sm:$0xf] %vm3327, %v6620
        %v6776 = vld [vmem:[%s3799 + $0x8c] sm:$0x1]
        %v6777 = vsel %vm3807, %v6622, %v6776
        %6778 = vst [vmem:[%s3799 + $0x8c] sm:$0x1] %v6777
        %v6779 = vld [vmem:[%s3799 + $0x90] sm:$0xf]
        %v6780 = vsel %vm3801, %v6624, %v6779
        %6781 = vst [vmem:[%s3799 + $0x90] sm:$0xf] %v6780
        %6782 = vst.msk [vmem:[%s3799 + $0x94] sm:$0xf] %vm3327, %v6626
        %v6783 = vld [vmem:[%s3799 + $0x98] sm:$0x1]
        %v6784 = vsel %vm3807, %v6628, %v6783
        %6785 = vst [vmem:[%s3799 + $0x98] sm:$0x1] %v6784
        %v6786 = vld [vmem:[%s3799 + $0x9c] sm:$0xf]
        %v6787 = vsel %vm3801, %v6630, %v6786
        %6788 = vst [vmem:[%s3799 + $0x9c] sm:$0xf] %v6787
        %6789 = vst.msk [vmem:[%s3799 + $0xa0] sm:$0xf] %vm3327, %v6632
        %v6790 = vld [vmem:[%s3799 + $0xa4] sm:$0x1]
        %v6791 = vsel %vm3807, %v6634, %v6790
        %6792 = vst [vmem:[%s3799 + $0xa4] sm:$0x1] %v6791
        %v6793 = vld [vmem:[%s3799 + $0xa8] sm:$0xf]
        %v6794 = vsel %vm3801, %v6636, %v6793
        %6795 = vst [vmem:[%s3799 + $0xa8] sm:$0xf] %v6794
        %6796 = vst.msk [vmem:[%s3799 + $0xac] sm:$0xf] %vm3327, %v6638
        %v6797 = vld [vmem:[%s3799 + $0xb0] sm:$0x1]
        %v6798 = vsel %vm3807, %v6640, %v6797
        %6799 = vst [vmem:[%s3799 + $0xb0] sm:$0x1] %v6798
        %v6800 = vld [vmem:[%s3799 + $0xb4] sm:$0xf]
        %v6801 = vsel %vm3801, %v6642, %v6800
        %6802 = vst [vmem:[%s3799 + $0xb4] sm:$0xf] %v6801
        %6803 = vst.msk [vmem:[%s3799 + $0xb8] sm:$0xf] %vm3327, %v6644
        %v6804 = vld [vmem:[%s3799 + $0xbc] sm:$0x1]
        %v6805 = vsel %vm3807, %v6646, %v6804
        %6806 = vst [vmem:[%s3799 + $0xbc] sm:$0x1] %v6805
        %v6807 = vld [vmem:[#allocation3] sm:$0xf]
        %v6808 = vld [vmem:[#allocation3 + $0x4] sm:$0xf]
        %v6809 = vld [vmem:[#allocation3 + $0xc] sm:$0xf]
        %v6810 = vld [vmem:[#allocation3 + $0x10] sm:$0xf]
        %v6811 = vld [vmem:[#allocation3 + $0x18] sm:$0xf]
        %v6812 = vld [vmem:[#allocation3 + $0x1c] sm:$0xf]
        %v6813 = vld [vmem:[#allocation3 + $0x24] sm:$0xf]
        %v6814 = vld [vmem:[#allocation3 + $0x28] sm:$0xf]
        %v6815 = vld [vmem:[#allocation3 + $0x30] sm:$0xf]
        %v6816 = vld [vmem:[#allocation3 + $0x34] sm:$0xf]
        %v6817 = vld [vmem:[#allocation3 + $0x3c] sm:$0xf]
        %v6818 = vld [vmem:[#allocation3 + $0x40] sm:$0xf]
        %v6819 = vld [vmem:[#allocation3 + $0x48] sm:$0xf]
        %v6820 = vld [vmem:[#allocation3 + $0x4c] sm:$0xf]
        %v6821 = vld [vmem:[#allocation3 + $0x54] sm:$0xf]
        %v6822 = vld [vmem:[#allocation3 + $0x58] sm:$0xf]
        %v6823 = vld [vmem:[#allocation3 + $0x60] sm:$0xf]
        %v6824 = vld [vmem:[#allocation3 + $0x64] sm:$0xf]
        %v6825 = vld [vmem:[#allocation3 + $0x6c] sm:$0xf]
        %v6826 = vld [vmem:[#allocation3 + $0x70] sm:$0xf]
        %v6827 = vld [vmem:[#allocation3 + $0x78] sm:$0xf]
        %v6828 = vld [vmem:[#allocation3 + $0x7c] sm:$0xf]
        %v6829 = vld [vmem:[#allocation3 + $0x84] sm:$0xf]
        %v6830 = vld [vmem:[#allocation3 + $0x88] sm:$0xf]
        %v6831 = vld [vmem:[#allocation3 + $0x90] sm:$0xf]
        %v6832 = vld [vmem:[#allocation3 + $0x94] sm:$0xf]
        %v6833 = vld [vmem:[#allocation3 + $0x9c] sm:$0xf]
        %v6834 = vld [vmem:[#allocation3 + $0xa0] sm:$0xf]
        %v6835 = vld [vmem:[#allocation3 + $0xa8] sm:$0xf]
        %v6836 = vld [vmem:[#allocation3 + $0xac] sm:$0xf]
        %v6837 = vld [vmem:[#allocation3 + $0xb4] sm:$0xf]
        %v6838 = vld [vmem:[#allocation3 + $0xb8] sm:$0xf]
        %v6839 = vld [vmem:[#allocation3 + $0xc0] sm:$0xf]
        %v6840 = vld [vmem:[#allocation3 + $0xc4] sm:$0xf]
        %v6841 = vld [vmem:[#allocation3 + $0xcc] sm:$0xf]
        %v6842 = vld [vmem:[#allocation3 + $0xd0] sm:$0xf]
        %v6843 = vld [vmem:[%s9] sm:$0x3]
        %v6844 = vld [vmem:[%s9 + $0x4] sm:$0xc]
        %v6877 = vunpack.c.l.b16 %v6809
        %v6878 = vunpack.c.l.b16 %v6810
        %v6879 = vunpack.c.l.b16 %v6811
        %v6880 = vunpack.c.l.b16 %v6812
        %v6881 = vunpack.c.l.b16 %v6813
        %v6882 = vunpack.c.l.b16 %v6814
        %v6883 = vunpack.c.l.b16 %v6815
        %v6884 = vunpack.c.l.b16 %v6816
        %v6885 = vunpack.c.l.b16 %v6817
        %v6886 = vunpack.c.l.b16 %v6818
        %v6887 = vunpack.c.l.b16 %v6819
        %v6888 = vunpack.c.l.b16 %v6820
        %v6889 = vunpack.c.l.b16 %v6821
        %v6890 = vunpack.c.l.b16 %v6822
        %v6891 = vunpack.c.l.b16 %v6823
        %v6892 = vunpack.c.l.b16 %v6824
        %v6893 = vunpack.c.l.b16 %v6825
        %v6894 = vunpack.c.l.b16 %v6826
        %v6895 = vunpack.c.l.b16 %v6827
        %v6896 = vunpack.c.l.b16 %v6828
        %v6897 = vunpack.c.l.b16 %v6829
        %v6898 = vunpack.c.l.b16 %v6830
        %v6899 = vunpack.c.l.b16 %v6831
        %v6900 = vunpack.c.l.b16 %v6832
        %v6901 = vunpack.c.l.b16 %v6833
        %v6902 = vunpack.c.l.b16 %v6834
        %v6903 = vunpack.c.l.b16 %v6835
        %v6904 = vunpack.c.l.b16 %v6836
        %v6905 = vunpack.c.l.b16 %v6837
        %v6906 = vunpack.c.l.b16 %v6838
        %v6907 = vunpack.c.l.b16 %v6839
        %v6908 = vunpack.c.l.b16 %v6840
        %v6909 = vpack.c.b16 %v6878, %v6877
        %v6910 = vpack.c.b16 %v6880, %v6879
        %v6911 = vpack.c.b16 %v6882, %v6881
        %v6912 = vpack.c.b16 %v6884, %v6883
        %v6913 = vpack.c.b16 %v6886, %v6885
        %v6914 = vpack.c.b16 %v6888, %v6887
        %v6915 = vpack.c.b16 %v6890, %v6889
        %v6916 = vpack.c.b16 %v6892, %v6891
        %v6917 = vpack.c.b16 %v6894, %v6893
        %v6918 = vpack.c.b16 %v6896, %v6895
        %v6919 = vpack.c.b16 %v6898, %v6897
        %v6920 = vpack.c.b16 %v6900, %v6899
        %v6921 = vpack.c.b16 %v6902, %v6901
        %v6922 = vpack.c.b16 %v6904, %v6903
        %v6923 = vpack.c.b16 %v6906, %v6905
        %v6924 = vpack.c.b16 %v6908, %v6907
        %v6926 = vunpack.c.l.b16 %v6844
        %v6927 = vpack.c.b16 %v6926, %v6926
        %v6928 = vrot.slane %v6927, 2
        %v6930 = vsel %vm4038, %v6909, 0
        %v6933 = vsel %vm4038, %v6910, 0
        %v6936 = vsel %vm4038, %v6911, 0
        %v6939 = vsel %vm4038, %v6912, 0
        %v6942 = vsel %vm4038, %v6913, 0
        %v6945 = vsel %vm4038, %v6914, 0
        %v6948 = vsel %vm4038, %v6915, 0
        %v6951 = vsel %vm4038, %v6916, 0
        %v6954 = vsel %vm4038, %v6917, 0
        %v6957 = vsel %vm4038, %v6918, 0
        %v6960 = vsel %vm4038, %v6919, 0
        %v6963 = vsel %vm4038, %v6920, 0
        %v6966 = vsel %vm4038, %v6921, 0
        %v6969 = vsel %vm4038, %v6922, 0
        %v6972 = vsel %vm4038, %v6923, 0
        %v6975 = vsel %vm4038, %v6924, 0
        %v6978 = vsel %vm4087, %v6928, 0
        %6980 = vmatpush.bf16.msra.mxu0 0
        %6981 = vmatpush.bf16.msra.mxu0 0
        %6982 = vmatpush.bf16.msra.mxu0 0
        %6983 = vmatpush.bf16.msra.mxu0 0
        %6984 = vmatpush.bf16.msra.mxu0 0
        %6985 = vmatpush.bf16.msra.mxu0 0
        %6986 = vmatpush.bf16.msra.mxu0 0
        %6987 = vmatpush.bf16.msra.mxu0 %v6978
        %6988 = vmatmul.bf16.gmra.mxu0 %v6930
        %v6989 = vpop.f32.mrf.mxu0
        %v6990 = vadd.f32 0.0, %v6989
        %v6991 = vpop.f32.mrf.mxu0
        %v6992 = vadd.f32 0.0, %v6991
        %6993 = vmatmul.bf16.gmra.mxu0 %v6933
        %v6994 = vpop.f32.mrf.mxu0
        %v6995 = vadd.f32 0.0, %v6994
        %v6996 = vpop.f32.mrf.mxu0
        %v6997 = vadd.f32 0.0, %v6996
        %6998 = vmatmul.bf16.gmra.mxu0 %v6936
        %v6999 = vpop.f32.mrf.mxu0
        %v7000 = vadd.f32 0.0, %v6999
        %v7001 = vpop.f32.mrf.mxu0
        %v7002 = vadd.f32 0.0, %v7001
        %7003 = vmatmul.bf16.gmra.mxu0 %v6939
        %v7004 = vpop.f32.mrf.mxu0
        %v7005 = vadd.f32 0.0, %v7004
        %v7006 = vpop.f32.mrf.mxu0
        %v7007 = vadd.f32 0.0, %v7006
        %7008 = vmatmul.bf16.gmra.mxu0 %v6942
        %v7009 = vpop.f32.mrf.mxu0
        %v7010 = vadd.f32 0.0, %v7009
        %v7011 = vpop.f32.mrf.mxu0
        %v7012 = vadd.f32 0.0, %v7011
        %7013 = vmatmul.bf16.gmra.mxu0 %v6945
        %v7014 = vpop.f32.mrf.mxu0
        %v7015 = vadd.f32 0.0, %v7014
        %v7016 = vpop.f32.mrf.mxu0
        %v7017 = vadd.f32 0.0, %v7016
        %7018 = vmatmul.bf16.gmra.mxu0 %v6948
        %v7019 = vpop.f32.mrf.mxu0
        %v7020 = vadd.f32 0.0, %v7019
        %v7021 = vpop.f32.mrf.mxu0
        %v7022 = vadd.f32 0.0, %v7021
        %7023 = vmatmul.bf16.gmra.mxu0 %v6951
        %v7024 = vpop.f32.mrf.mxu0
        %v7025 = vadd.f32 0.0, %v7024
        %v7026 = vpop.f32.mrf.mxu0
        %v7027 = vadd.f32 0.0, %v7026
        %7028 = vmatmul.bf16.gmra.mxu0 %v6954
        %v7029 = vpop.f32.mrf.mxu0
        %v7030 = vadd.f32 0.0, %v7029
        %v7031 = vpop.f32.mrf.mxu0
        %v7032 = vadd.f32 0.0, %v7031
        %7033 = vmatmul.bf16.gmra.mxu0 %v6957
        %v7034 = vpop.f32.mrf.mxu0
        %v7035 = vadd.f32 0.0, %v7034
        %v7036 = vpop.f32.mrf.mxu0
        %v7037 = vadd.f32 0.0, %v7036
        %7038 = vmatmul.bf16.gmra.mxu0 %v6960
        %v7039 = vpop.f32.mrf.mxu0
        %v7040 = vadd.f32 0.0, %v7039
        %v7041 = vpop.f32.mrf.mxu0
        %v7042 = vadd.f32 0.0, %v7041
        %7043 = vmatmul.bf16.gmra.mxu0 %v6963
        %v7044 = vpop.f32.mrf.mxu0
        %v7045 = vadd.f32 0.0, %v7044
        %v7046 = vpop.f32.mrf.mxu0
        %v7047 = vadd.f32 0.0, %v7046
        %7048 = vmatmul.bf16.gmra.mxu0 %v6966
        %v7049 = vpop.f32.mrf.mxu0
        %v7050 = vadd.f32 0.0, %v7049
        %v7051 = vpop.f32.mrf.mxu0
        %v7052 = vadd.f32 0.0, %v7051
        %7053 = vmatmul.bf16.gmra.mxu0 %v6969
        %v7054 = vpop.f32.mrf.mxu0
        %v7055 = vadd.f32 0.0, %v7054
        %v7056 = vpop.f32.mrf.mxu0
        %v7057 = vadd.f32 0.0, %v7056
        %7058 = vmatmul.bf16.gmra.mxu0 %v6972
        %v7059 = vpop.f32.mrf.mxu0
        %v7060 = vadd.f32 0.0, %v7059
        %v7061 = vpop.f32.mrf.mxu0
        %v7062 = vadd.f32 0.0, %v7061
        %7063 = vmatmul.bf16.gmra.mxu0 %v6975
        %v7064 = vpop.f32.mrf.mxu0
        %v7065 = vadd.f32 0.0, %v7064
        %v7066 = vpop.f32.mrf.mxu0
        %v7067 = vadd.f32 0.0, %v7066
        %7068 = vdwg.mxu0
        %v7071 = vunpack.c.l.b16 %v6807
        %v7072 = vunpack.c.l.b16 %v6808
        %v7073 = vpack.c.b16 %v7072, %v7071
        %v7075 = vsel %vm4038, %v7073, 0
        %v7078 = vsel %vm4087, %v6843, 0
        %7080 = vmatpush.bf16.msra.mxu0 0
        %7081 = vmatpush.bf16.msra.mxu0 0
        %7082 = vmatpush.bf16.msra.mxu0 0
        %7083 = vmatpush.bf16.msra.mxu0 0
        %7084 = vmatpush.bf16.msra.mxu0 0
        %7085 = vmatpush.bf16.msra.mxu0 0
        %7086 = vmatpush.bf16.msra.mxu0 0
        %7087 = vmatpush.bf16.msra.mxu0 %v7078
        %7088 = vmatmul.bf16.gmra.mxu0 %v7075
        %v7089 = vpop.f32.mrf.mxu0
        %v7090 = vadd.f32 %v6990, %v7089
        %v7091 = vpop.f32.mrf.mxu0
        %v7092 = vadd.f32 %v6992, %v7091
        %7093 = vmatmul.bf16.gmra.mxu0 %v6930
        %v7094 = vpop.f32.mrf.mxu0
        %v7095 = vadd.f32 %v6995, %v7094
        %v7096 = vpop.f32.mrf.mxu0
        %v7097 = vadd.f32 %v6997, %v7096
        %7098 = vmatmul.bf16.gmra.mxu0 %v6933
        %v7099 = vpop.f32.mrf.mxu0
        %v7100 = vadd.f32 %v7000, %v7099
        %v7101 = vpop.f32.mrf.mxu0
        %v7102 = vadd.f32 %v7002, %v7101
        %7103 = vmatmul.bf16.gmra.mxu0 %v6936
        %v7104 = vpop.f32.mrf.mxu0
        %v7105 = vadd.f32 %v7005, %v7104
        %v7106 = vpop.f32.mrf.mxu0
        %v7107 = vadd.f32 %v7007, %v7106
        %7108 = vmatmul.bf16.gmra.mxu0 %v6939
        %v7109 = vpop.f32.mrf.mxu0
        %v7110 = vadd.f32 %v7010, %v7109
        %v7111 = vpop.f32.mrf.mxu0
        %v7112 = vadd.f32 %v7012, %v7111
        %7113 = vmatmul.bf16.gmra.mxu0 %v6942
        %v7114 = vpop.f32.mrf.mxu0
        %v7115 = vadd.f32 %v7015, %v7114
        %v7116 = vpop.f32.mrf.mxu0
        %v7117 = vadd.f32 %v7017, %v7116
        %7118 = vmatmul.bf16.gmra.mxu0 %v6945
        %v7119 = vpop.f32.mrf.mxu0
        %v7120 = vadd.f32 %v7020, %v7119
        %v7121 = vpop.f32.mrf.mxu0
        %v7122 = vadd.f32 %v7022, %v7121
        %7123 = vmatmul.bf16.gmra.mxu0 %v6948
        %v7124 = vpop.f32.mrf.mxu0
        %v7125 = vadd.f32 %v7025, %v7124
        %v7126 = vpop.f32.mrf.mxu0
        %v7127 = vadd.f32 %v7027, %v7126
        %7128 = vmatmul.bf16.gmra.mxu0 %v6951
        %v7129 = vpop.f32.mrf.mxu0
        %v7130 = vadd.f32 %v7030, %v7129
        %v7131 = vpop.f32.mrf.mxu0
        %v7132 = vadd.f32 %v7032, %v7131
        %7133 = vmatmul.bf16.gmra.mxu0 %v6954
        %v7134 = vpop.f32.mrf.mxu0
        %v7135 = vadd.f32 %v7035, %v7134
        %v7136 = vpop.f32.mrf.mxu0
        %v7137 = vadd.f32 %v7037, %v7136
        %7138 = vmatmul.bf16.gmra.mxu0 %v6957
        %v7139 = vpop.f32.mrf.mxu0
        %v7140 = vadd.f32 %v7040, %v7139
        %v7141 = vpop.f32.mrf.mxu0
        %v7142 = vadd.f32 %v7042, %v7141
        %7143 = vmatmul.bf16.gmra.mxu0 %v6960
        %v7144 = vpop.f32.mrf.mxu0
        %v7145 = vadd.f32 %v7045, %v7144
        %v7146 = vpop.f32.mrf.mxu0
        %v7147 = vadd.f32 %v7047, %v7146
        %7148 = vmatmul.bf16.gmra.mxu0 %v6963
        %v7149 = vpop.f32.mrf.mxu0
        %v7150 = vadd.f32 %v7050, %v7149
        %v7151 = vpop.f32.mrf.mxu0
        %v7152 = vadd.f32 %v7052, %v7151
        %7153 = vmatmul.bf16.gmra.mxu0 %v6966
        %v7154 = vpop.f32.mrf.mxu0
        %v7155 = vadd.f32 %v7055, %v7154
        %v7156 = vpop.f32.mrf.mxu0
        %v7157 = vadd.f32 %v7057, %v7156
        %7158 = vmatmul.bf16.gmra.mxu0 %v6969
        %v7159 = vpop.f32.mrf.mxu0
        %v7160 = vadd.f32 %v7060, %v7159
        %v7161 = vpop.f32.mrf.mxu0
        %v7162 = vadd.f32 %v7062, %v7161
        %7163 = vmatmul.bf16.gmra.mxu0 %v6972
        %v7164 = vpop.f32.mrf.mxu0
        %v7165 = vadd.f32 %v7065, %v7164
        %v7166 = vpop.f32.mrf.mxu0
        %v7167 = vadd.f32 %v7067, %v7166
        %7168 = vdwg.mxu0
        %v7169 = vld [vmem:[%s9 + $0xc] sm:$0x3]
        %v7172 = vunpack.c.l.b16 %v6841
        %v7173 = vunpack.c.l.b16 %v6842
        %v7174 = vpack.c.b16 %v7173, %v7172
        %v7176 = vsel %vm4038, %v7174, 0
        %v7179 = vsel %vm4087, %v7169, 0
        %7181 = vmatpush.bf16.msra.mxu0 0
        %7182 = vmatpush.bf16.msra.mxu0 0
        %7183 = vmatpush.bf16.msra.mxu0 0
        %7184 = vmatpush.bf16.msra.mxu0 0
        %7185 = vmatpush.bf16.msra.mxu0 0
        %7186 = vmatpush.bf16.msra.mxu0 0
        %7187 = vmatpush.bf16.msra.mxu0 0
        %7188 = vmatpush.bf16.msra.mxu0 %v7179
        %7189 = vmatmul.bf16.gmra.mxu0 %v6933
        %v7190 = vpop.f32.mrf.mxu0
        %v7191 = vadd.f32 0.0, %v7190
        %v7192 = vpop.f32.mrf.mxu0
        %v7193 = vadd.f32 0.0, %v7192
        %7194 = vmatmul.bf16.gmra.mxu0 %v6936
        %v7195 = vpop.f32.mrf.mxu0
        %v7196 = vadd.f32 0.0, %v7195
        %v7197 = vpop.f32.mrf.mxu0
        %v7198 = vadd.f32 0.0, %v7197
        %7199 = vmatmul.bf16.gmra.mxu0 %v6939
        %v7200 = vpop.f32.mrf.mxu0
        %v7201 = vadd.f32 0.0, %v7200
        %v7202 = vpop.f32.mrf.mxu0
        %v7203 = vadd.f32 0.0, %v7202
        %7204 = vmatmul.bf16.gmra.mxu0 %v6942
        %v7205 = vpop.f32.mrf.mxu0
        %v7206 = vadd.f32 0.0, %v7205
        %v7207 = vpop.f32.mrf.mxu0
        %v7208 = vadd.f32 0.0, %v7207
        %7209 = vmatmul.bf16.gmra.mxu0 %v6945
        %v7210 = vpop.f32.mrf.mxu0
        %v7211 = vadd.f32 0.0, %v7210
        %v7212 = vpop.f32.mrf.mxu0
        %v7213 = vadd.f32 0.0, %v7212
        %7214 = vmatmul.bf16.gmra.mxu0 %v6948
        %v7215 = vpop.f32.mrf.mxu0
        %v7216 = vadd.f32 0.0, %v7215
        %v7217 = vpop.f32.mrf.mxu0
        %v7218 = vadd.f32 0.0, %v7217
        %7219 = vmatmul.bf16.gmra.mxu0 %v6951
        %v7220 = vpop.f32.mrf.mxu0
        %v7221 = vadd.f32 0.0, %v7220
        %v7222 = vpop.f32.mrf.mxu0
        %v7223 = vadd.f32 0.0, %v7222
        %7224 = vmatmul.bf16.gmra.mxu0 %v6954
        %v7225 = vpop.f32.mrf.mxu0
        %v7226 = vadd.f32 0.0, %v7225
        %v7227 = vpop.f32.mrf.mxu0
        %v7228 = vadd.f32 0.0, %v7227
        %7229 = vmatmul.bf16.gmra.mxu0 %v6957
        %v7230 = vpop.f32.mrf.mxu0
        %v7231 = vadd.f32 0.0, %v7230
        %v7232 = vpop.f32.mrf.mxu0
        %v7233 = vadd.f32 0.0, %v7232
        %7234 = vmatmul.bf16.gmra.mxu0 %v6960
        %v7235 = vpop.f32.mrf.mxu0
        %v7236 = vadd.f32 0.0, %v7235
        %v7237 = vpop.f32.mrf.mxu0
        %v7238 = vadd.f32 0.0, %v7237
        %7239 = vmatmul.bf16.gmra.mxu0 %v6963
        %v7240 = vpop.f32.mrf.mxu0
        %v7241 = vadd.f32 0.0, %v7240
        %v7242 = vpop.f32.mrf.mxu0
        %v7243 = vadd.f32 0.0, %v7242
        %7244 = vmatmul.bf16.gmra.mxu0 %v6966
        %v7245 = vpop.f32.mrf.mxu0
        %v7246 = vadd.f32 0.0, %v7245
        %v7247 = vpop.f32.mrf.mxu0
        %v7248 = vadd.f32 0.0, %v7247
        %7249 = vmatmul.bf16.gmra.mxu0 %v6969
        %v7250 = vpop.f32.mrf.mxu0
        %v7251 = vadd.f32 0.0, %v7250
        %v7252 = vpop.f32.mrf.mxu0
        %v7253 = vadd.f32 0.0, %v7252
        %7254 = vmatmul.bf16.gmra.mxu0 %v6972
        %v7255 = vpop.f32.mrf.mxu0
        %v7256 = vadd.f32 0.0, %v7255
        %v7257 = vpop.f32.mrf.mxu0
        %v7258 = vadd.f32 0.0, %v7257
        %7259 = vmatmul.bf16.gmra.mxu0 %v6975
        %v7260 = vpop.f32.mrf.mxu0
        %v7261 = vadd.f32 0.0, %v7260
        %v7262 = vpop.f32.mrf.mxu0
        %v7263 = vadd.f32 0.0, %v7262
        %7264 = vmatmul.bf16.gmra.mxu0 %v7176
        %v7265 = vpop.f32.mrf.mxu0
        %v7266 = vadd.f32 0.0, %v7265
        %v7267 = vpop.f32.mrf.mxu0
        %v7268 = vadd.f32 0.0, %v7267
        %7269 = vdwg.mxu0
        %v7270 = vadd.f32 %v7090, %v7191
        %v7271 = vadd.f32 %v7092, %v7193
        %v7272 = vadd.f32 %v7095, %v7196
        %v7273 = vadd.f32 %v7097, %v7198
        %v7274 = vadd.f32 %v7100, %v7201
        %v7275 = vadd.f32 %v7102, %v7203
        %v7276 = vadd.f32 %v7105, %v7206
        %v7277 = vadd.f32 %v7107, %v7208
        %v7278 = vadd.f32 %v7110, %v7211
        %v7279 = vadd.f32 %v7112, %v7213
        %v7280 = vadd.f32 %v7115, %v7216
        %v7281 = vadd.f32 %v7117, %v7218
        %v7282 = vadd.f32 %v7120, %v7221
        %v7283 = vadd.f32 %v7122, %v7223
        %v7284 = vadd.f32 %v7125, %v7226
        %v7285 = vadd.f32 %v7127, %v7228
        %v7286 = vadd.f32 %v7130, %v7231
        %v7287 = vadd.f32 %v7132, %v7233
        %v7288 = vadd.f32 %v7135, %v7236
        %v7289 = vadd.f32 %v7137, %v7238
        %v7290 = vadd.f32 %v7140, %v7241
        %v7291 = vadd.f32 %v7142, %v7243
        %v7292 = vadd.f32 %v7145, %v7246
        %v7293 = vadd.f32 %v7147, %v7248
        %v7294 = vadd.f32 %v7150, %v7251
        %v7295 = vadd.f32 %v7152, %v7253
        %v7296 = vadd.f32 %v7155, %v7256
        %v7297 = vadd.f32 %v7157, %v7258
        %v7298 = vadd.f32 %v7160, %v7261
        %v7299 = vadd.f32 %v7162, %v7263
        %v7300 = vadd.f32 %v7165, %v7266
        %v7301 = vadd.f32 %v7167, %v7268
        %v7302 = vld [vmem:[#allocation3] sm:$0xf]
        %v7303 = vld [vmem:[#allocation3 + $0x4] sm:$0xf]
        %v7304 = vld [vmem:[#allocation3 + $0x8] sm:$0x1]
        %v7305 = vld [vmem:[#allocation3 + $0xc] sm:$0xf]
        %v7306 = vld [vmem:[#allocation3 + $0x10] sm:$0xf]
        %v7307 = vld [vmem:[#allocation3 + $0x14] sm:$0x1]
        %v7308 = vld [vmem:[#allocation3 + $0x18] sm:$0xf]
        %v7309 = vld [vmem:[#allocation3 + $0x1c] sm:$0xf]
        %v7310 = vld [vmem:[#allocation3 + $0x20] sm:$0x1]
        %v7311 = vld [vmem:[#allocation3 + $0x24] sm:$0xf]
        %v7312 = vld [vmem:[#allocation3 + $0x28] sm:$0xf]
        %v7313 = vld [vmem:[#allocation3 + $0x2c] sm:$0x1]
        %v7314 = vld [vmem:[#allocation3 + $0x30] sm:$0xf]
        %v7315 = vld [vmem:[#allocation3 + $0x34] sm:$0xf]
        %v7316 = vld [vmem:[#allocation3 + $0x38] sm:$0x1]
        %v7317 = vld [vmem:[#allocation3 + $0x3c] sm:$0xf]
        %v7318 = vld [vmem:[#allocation3 + $0x40] sm:$0xf]
        %v7319 = vld [vmem:[#allocation3 + $0x44] sm:$0x1]
        %v7320 = vld [vmem:[#allocation3 + $0x48] sm:$0xf]
        %v7321 = vld [vmem:[#allocation3 + $0x4c] sm:$0xf]
        %v7322 = vld [vmem:[#allocation3 + $0x50] sm:$0x1]
        %v7323 = vld [vmem:[#allocation3 + $0x54] sm:$0xf]
        %v7324 = vld [vmem:[#allocation3 + $0x58] sm:$0xf]
        %v7325 = vld [vmem:[#allocation3 + $0x5c] sm:$0x1]
        %v7326 = vld [vmem:[#allocation3 + $0x60] sm:$0xf]
        %v7327 = vld [vmem:[#allocation3 + $0x64] sm:$0xf]
        %v7328 = vld [vmem:[#allocation3 + $0x68] sm:$0x1]
        %v7329 = vld [vmem:[#allocation3 + $0x6c] sm:$0xf]
        %v7330 = vld [vmem:[#allocation3 + $0x70] sm:$0xf]
        %v7331 = vld [vmem:[#allocation3 + $0x74] sm:$0x1]
        %v7332 = vld [vmem:[#allocation3 + $0x78] sm:$0xf]
        %v7333 = vld [vmem:[#allocation3 + $0x7c] sm:$0xf]
        %v7334 = vld [vmem:[#allocation3 + $0x80] sm:$0x1]
        %v7335 = vld [vmem:[#allocation3 + $0x84] sm:$0xf]
        %v7336 = vld [vmem:[#allocation3 + $0x88] sm:$0xf]
        %v7337 = vld [vmem:[#allocation3 + $0x8c] sm:$0x1]
        %v7338 = vld [vmem:[#allocation3 + $0x90] sm:$0xf]
        %v7339 = vld [vmem:[#allocation3 + $0x94] sm:$0xf]
        %v7340 = vld [vmem:[#allocation3 + $0x98] sm:$0x1]
        %v7341 = vld [vmem:[#allocation3 + $0x9c] sm:$0xf]
        %v7342 = vld [vmem:[#allocation3 + $0xa0] sm:$0xf]
        %v7343 = vld [vmem:[#allocation3 + $0xa4] sm:$0x1]
        %v7344 = vld [vmem:[#allocation3 + $0xa8] sm:$0xf]
        %v7345 = vld [vmem:[#allocation3 + $0xac] sm:$0xf]
        %v7346 = vld [vmem:[#allocation3 + $0xb0] sm:$0x1]
        %v7347 = vld [vmem:[#allocation3 + $0xb4] sm:$0xf]
        %v7348 = vld [vmem:[#allocation3 + $0xb8] sm:$0xf]
        %v7349 = vld [vmem:[#allocation3 + $0xbc] sm:$0x1]
        %v7350 = vld [vmem:[#allocation3 + $0xc0] sm:$0xf]
        %v7351 = vld [vmem:[#allocation3 + $0xc4] sm:$0xf]
        %v7352 = vld [vmem:[#allocation3 + $0xc8] sm:$0x1]
        %v7353 = vld [vmem:[#allocation3 + $0xcc] sm:$0xf]
        %v7354 = vld [vmem:[#allocation3 + $0xd0] sm:$0xf]
        %v7355 = vld [vmem:[#allocation3 + $0xd4] sm:$0x1]
        %v7357 = vshrl.u32 %v7302, 16
        %v7359 = vrot.slane %v7357, 4
        %v7360 = vshll.u32 %v7302, 16
        %v7362 = vrot.slane %v7360, 5
        %v7363 = vor.u32 %v7359, %v7362
        %v7364 = vrot.slane %v7363, 4
        %v7366 = vshll.u32 %v7303, 16
        %v7368 = vrot.slane %v7366, 5
        %v7369 = vsel %vm1523, %v7364, %v7368
        %v7370 = vshrl.u32 %v7303, 16
        %v7372 = vrot.slane %v7370, 4
        %v7373 = vor.u32 %v7372, %v7368
        %v7374 = vrot.slane %v7373, 4
        %v7376 = vshll.u32 %v7304, 16
        %v7378 = vrot.slane %v7376, 5
        %v7379 = vsel %vm1523, %v7374, %v7378
        %v7381 = vshrl.u32 %v7305, 16
        %v7383 = vrot.slane %v7381, 4
        %v7384 = vshll.u32 %v7305, 16
        %v7386 = vrot.slane %v7384, 5
        %v7387 = vor.u32 %v7383, %v7386
        %v7388 = vrot.slane %v7387, 4
        %v7390 = vshll.u32 %v7306, 16
        %v7392 = vrot.slane %v7390, 5
        %v7393 = vsel %vm1523, %v7388, %v7392
        %v7394 = vshrl.u32 %v7306, 16
        %v7396 = vrot.slane %v7394, 4
        %v7397 = vor.u32 %v7396, %v7392
        %v7398 = vrot.slane %v7397, 4
        %v7400 = vshll.u32 %v7307, 16
        %v7402 = vrot.slane %v7400, 5
        %v7403 = vsel %vm1523, %v7398, %v7402
        %v7405 = vshrl.u32 %v7308, 16
        %v7407 = vrot.slane %v7405, 4
        %v7408 = vshll.u32 %v7308, 16
        %v7410 = vrot.slane %v7408, 5
        %v7411 = vor.u32 %v7407, %v7410
        %v7412 = vrot.slane %v7411, 4
        %v7414 = vshll.u32 %v7309, 16
        %v7416 = vrot.slane %v7414, 5
        %v7417 = vsel %vm1523, %v7412, %v7416
        %v7418 = vshrl.u32 %v7309, 16
        %v7420 = vrot.slane %v7418, 4
        %v7421 = vor.u32 %v7420, %v7416
        %v7422 = vrot.slane %v7421, 4
        %v7424 = vshll.u32 %v7310, 16
        %v7426 = vrot.slane %v7424, 5
        %v7427 = vsel %vm1523, %v7422, %v7426
        %v7429 = vshrl.u32 %v7311, 16
        %v7431 = vrot.slane %v7429, 4
        %v7432 = vshll.u32 %v7311, 16
        %v7434 = vrot.slane %v7432, 5
        %v7435 = vor.u32 %v7431, %v7434
        %v7436 = vrot.slane %v7435, 4
        %v7438 = vshll.u32 %v7312, 16
        %v7440 = vrot.slane %v7438, 5
        %v7441 = vsel %vm1523, %v7436, %v7440
        %v7442 = vshrl.u32 %v7312, 16
        %v7444 = vrot.slane %v7442, 4
        %v7445 = vor.u32 %v7444, %v7440
        %v7446 = vrot.slane %v7445, 4
        %v7448 = vshll.u32 %v7313, 16
        %v7450 = vrot.slane %v7448, 5
        %v7451 = vsel %vm1523, %v7446, %v7450
        %v7453 = vshrl.u32 %v7314, 16
        %v7455 = vrot.slane %v7453, 4
        %v7456 = vshll.u32 %v7314, 16
        %v7458 = vrot.slane %v7456, 5
        %v7459 = vor.u32 %v7455, %v7458
        %v7460 = vrot.slane %v7459, 4
        %v7462 = vshll.u32 %v7315, 16
        %v7464 = vrot.slane %v7462, 5
        %v7465 = vsel %vm1523, %v7460, %v7464
        %v7466 = vshrl.u32 %v7315, 16
        %v7468 = vrot.slane %v7466, 4
        %v7469 = vor.u32 %v7468, %v7464
        %v7470 = vrot.slane %v7469, 4
        %v7472 = vshll.u32 %v7316, 16
        %v7474 = vrot.slane %v7472, 5
        %v7475 = vsel %vm1523, %v7470, %v7474
        %v7477 = vshrl.u32 %v7317, 16
        %v7479 = vrot.slane %v7477, 4
        %v7480 = vshll.u32 %v7317, 16
        %v7482 = vrot.slane %v7480, 5
        %v7483 = vor.u32 %v7479, %v7482
        %v7484 = vrot.slane %v7483, 4
        %v7486 = vshll.u32 %v7318, 16
        %v7488 = vrot.slane %v7486, 5
        %v7489 = vsel %vm1523, %v7484, %v7488
        %v7490 = vshrl.u32 %v7318, 16
        %v7492 = vrot.slane %v7490, 4
        %v7493 = vor.u32 %v7492, %v7488
        %v7494 = vrot.slane %v7493, 4
        %v7496 = vshll.u32 %v7319, 16
        %v7498 = vrot.slane %v7496, 5
        %v7499 = vsel %vm1523, %v7494, %v7498
        %v7501 = vshrl.u32 %v7320, 16
        %v7503 = vrot.slane %v7501, 4
        %v7504 = vshll.u32 %v7320, 16
        %v7506 = vrot.slane %v7504, 5
        %v7507 = vor.u32 %v7503, %v7506
        %v7508 = vrot.slane %v7507, 4
        %v7510 = vshll.u32 %v7321, 16
        %v7512 = vrot.slane %v7510, 5
        %v7513 = vsel %vm1523, %v7508, %v7512
        %v7514 = vshrl.u32 %v7321, 16
        %v7516 = vrot.slane %v7514, 4
        %v7517 = vor.u32 %v7516, %v7512
        %v7518 = vrot.slane %v7517, 4
        %v7520 = vshll.u32 %v7322, 16
        %v7522 = vrot.slane %v7520, 5
        %v7523 = vsel %vm1523, %v7518, %v7522
        %v7525 = vshrl.u32 %v7323, 16
        %v7527 = vrot.slane %v7525, 4
        %v7528 = vshll.u32 %v7323, 16
        %v7530 = vrot.slane %v7528, 5
        %v7531 = vor.u32 %v7527, %v7530
        %v7532 = vrot.slane %v7531, 4
        %v7534 = vshll.u32 %v7324, 16
        %v7536 = vrot.slane %v7534, 5
        %v7537 = vsel %vm1523, %v7532, %v7536
        %v7538 = vshrl.u32 %v7324, 16
        %v7540 = vrot.slane %v7538, 4
        %v7541 = vor.u32 %v7540, %v7536
        %v7542 = vrot.slane %v7541, 4
        %v7544 = vshll.u32 %v7325, 16
        %v7546 = vrot.slane %v7544, 5
        %v7547 = vsel %vm1523, %v7542, %v7546
        %v7549 = vshrl.u32 %v7326, 16
        %v7551 = vrot.slane %v7549, 4
        %v7552 = vshll.u32 %v7326, 16
        %v7554 = vrot.slane %v7552, 5
        %v7555 = vor.u32 %v7551, %v7554
        %v7556 = vrot.slane %v7555, 4
        %v7558 = vshll.u32 %v7327, 16
        %v7560 = vrot.slane %v7558, 5
        %v7561 = vsel %vm1523, %v7556, %v7560
        %v7562 = vshrl.u32 %v7327, 16
        %v7564 = vrot.slane %v7562, 4
        %v7565 = vor.u32 %v7564, %v7560
        %v7566 = vrot.slane %v7565, 4
        %v7568 = vshll.u32 %v7328, 16
        %v7570 = vrot.slane %v7568, 5
        %v7571 = vsel %vm1523, %v7566, %v7570
        %v7573 = vshrl.u32 %v7329, 16
        %v7575 = vrot.slane %v7573, 4
        %v7576 = vshll.u32 %v7329, 16
        %v7578 = vrot.slane %v7576, 5
        %v7579 = vor.u32 %v7575, %v7578
        %v7580 = vrot.slane %v7579, 4
        %v7582 = vshll.u32 %v7330, 16
        %v7584 = vrot.slane %v7582, 5
        %v7585 = vsel %vm1523, %v7580, %v7584
        %v7586 = vshrl.u32 %v7330, 16
        %v7588 = vrot.slane %v7586, 4
        %v7589 = vor.u32 %v7588, %v7584
        %v7590 = vrot.slane %v7589, 4
        %v7592 = vshll.u32 %v7331, 16
        %v7594 = vrot.slane %v7592, 5
        %v7595 = vsel %vm1523, %v7590, %v7594
        %v7597 = vshrl.u32 %v7332, 16
        %v7599 = vrot.slane %v7597, 4
        %v7600 = vshll.u32 %v7332, 16
        %v7602 = vrot.slane %v7600, 5
        %v7603 = vor.u32 %v7599, %v7602
        %v7604 = vrot.slane %v7603, 4
        %v7606 = vshll.u32 %v7333, 16
        %v7608 = vrot.slane %v7606, 5
        %v7609 = vsel %vm1523, %v7604, %v7608
        %v7610 = vshrl.u32 %v7333, 16
        %v7612 = vrot.slane %v7610, 4
        %v7613 = vor.u32 %v7612, %v7608
        %v7614 = vrot.slane %v7613, 4
        %v7616 = vshll.u32 %v7334, 16
        %v7618 = vrot.slane %v7616, 5
        %v7619 = vsel %vm1523, %v7614, %v7618
        %v7621 = vshrl.u32 %v7335, 16
        %v7623 = vrot.slane %v7621, 4
        %v7624 = vshll.u32 %v7335, 16
        %v7626 = vrot.slane %v7624, 5
        %v7627 = vor.u32 %v7623, %v7626
        %v7628 = vrot.slane %v7627, 4
        %v7630 = vshll.u32 %v7336, 16
        %v7632 = vrot.slane %v7630, 5
        %v7633 = vsel %vm1523, %v7628, %v7632
        %v7634 = vshrl.u32 %v7336, 16
        %v7636 = vrot.slane %v7634, 4
        %v7637 = vor.u32 %v7636, %v7632
        %v7638 = vrot.slane %v7637, 4
        %v7640 = vshll.u32 %v7337, 16
        %v7642 = vrot.slane %v7640, 5
        %v7643 = vsel %vm1523, %v7638, %v7642
        %v7645 = vshrl.u32 %v7338, 16
        %v7647 = vrot.slane %v7645, 4
        %v7648 = vshll.u32 %v7338, 16
        %v7650 = vrot.slane %v7648, 5
        %v7651 = vor.u32 %v7647, %v7650
        %v7652 = vrot.slane %v7651, 4
        %v7654 = vshll.u32 %v7339, 16
        %v7656 = vrot.slane %v7654, 5
        %v7657 = vsel %vm1523, %v7652, %v7656
        %v7658 = vshrl.u32 %v7339, 16
        %v7660 = vrot.slane %v7658, 4
        %v7661 = vor.u32 %v7660, %v7656
        %v7662 = vrot.slane %v7661, 4
        %v7664 = vshll.u32 %v7340, 16
        %v7666 = vrot.slane %v7664, 5
        %v7667 = vsel %vm1523, %v7662, %v7666
        %v7669 = vshrl.u32 %v7341, 16
        %v7671 = vrot.slane %v7669, 4
        %v7672 = vshll.u32 %v7341, 16
        %v7674 = vrot.slane %v7672, 5
        %v7675 = vor.u32 %v7671, %v7674
        %v7676 = vrot.slane %v7675, 4
        %v7678 = vshll.u32 %v7342, 16
        %v7680 = vrot.slane %v7678, 5
        %v7681 = vsel %vm1523, %v7676, %v7680
        %v7682 = vshrl.u32 %v7342, 16
        %v7684 = vrot.slane %v7682, 4
        %v7685 = vor.u32 %v7684, %v7680
        %v7686 = vrot.slane %v7685, 4
        %v7688 = vshll.u32 %v7343, 16
        %v7690 = vrot.slane %v7688, 5
        %v7691 = vsel %vm1523, %v7686, %v7690
        %v7693 = vshrl.u32 %v7344, 16
        %v7695 = vrot.slane %v7693, 4
        %v7696 = vshll.u32 %v7344, 16
        %v7698 = vrot.slane %v7696, 5
        %v7699 = vor.u32 %v7695, %v7698
        %v7700 = vrot.slane %v7699, 4
        %v7702 = vshll.u32 %v7345, 16
        %v7704 = vrot.slane %v7702, 5
        %v7705 = vsel %vm1523, %v7700, %v7704
        %v7706 = vshrl.u32 %v7345, 16
        %v7708 = vrot.slane %v7706, 4
        %v7709 = vor.u32 %v7708, %v7704
        %v7710 = vrot.slane %v7709, 4
        %v7712 = vshll.u32 %v7346, 16
        %v7714 = vrot.slane %v7712, 5
        %v7715 = vsel %vm1523, %v7710, %v7714
        %v7717 = vshrl.u32 %v7347, 16
        %v7719 = vrot.slane %v7717, 4
        %v7720 = vshll.u32 %v7347, 16
        %v7722 = vrot.slane %v7720, 5
        %v7723 = vor.u32 %v7719, %v7722
        %v7724 = vrot.slane %v7723, 4
        %v7726 = vshll.u32 %v7348, 16
        %v7728 = vrot.slane %v7726, 5
        %v7729 = vsel %vm1523, %v7724, %v7728
        %v7730 = vshrl.u32 %v7348, 16
        %v7732 = vrot.slane %v7730, 4
        %v7733 = vor.u32 %v7732, %v7728
        %v7734 = vrot.slane %v7733, 4
        %v7736 = vshll.u32 %v7349, 16
        %v7738 = vrot.slane %v7736, 5
        %v7739 = vsel %vm1523, %v7734, %v7738
        %v7740 = vld [vmem:[%s9] sm:$0xc]
        %v7741 = vunpack.c.l.b16 %v7369
        %v7742 = vunpack.c.l.b16 %v7379
        %v7743 = vunpack.c.l.b16 %v7393
        %v7744 = vunpack.c.l.b16 %v7403
        %v7745 = vunpack.c.l.b16 %v7417
        %v7746 = vunpack.c.l.b16 %v7427
        %v7747 = vunpack.c.l.b16 %v7441
        %v7748 = vunpack.c.l.b16 %v7451
        %v7749 = vunpack.c.l.b16 %v7465
        %v7750 = vunpack.c.l.b16 %v7475
        %v7751 = vunpack.c.l.b16 %v7489
        %v7752 = vunpack.c.l.b16 %v7499
        %v7753 = vunpack.c.l.b16 %v7513
        %v7754 = vunpack.c.l.b16 %v7523
        %v7755 = vunpack.c.l.b16 %v7537
        %v7756 = vunpack.c.l.b16 %v7547
        %v7757 = vunpack.c.l.b16 %v7561
        %v7758 = vunpack.c.l.b16 %v7571
        %v7759 = vunpack.c.l.b16 %v7585
        %v7760 = vunpack.c.l.b16 %v7595
        %v7761 = vunpack.c.l.b16 %v7609
        %v7762 = vunpack.c.l.b16 %v7619
        %v7763 = vunpack.c.l.b16 %v7633
        %v7764 = vunpack.c.l.b16 %v7643
        %v7765 = vunpack.c.l.b16 %v7657
        %v7766 = vunpack.c.l.b16 %v7667
        %v7767 = vunpack.c.l.b16 %v7681
        %v7768 = vunpack.c.l.b16 %v7691
        %v7769 = vunpack.c.l.b16 %v7705
        %v7770 = vunpack.c.l.b16 %v7715
        %v7771 = vunpack.c.l.b16 %v7729
        %v7772 = vunpack.c.l.b16 %v7739
        %v7773 = vpack.c.b16 %v7742, %v7741
        %v7774 = vpack.c.b16 %v7744, %v7743
        %v7775 = vpack.c.b16 %v7746, %v7745
        %v7776 = vpack.c.b16 %v7748, %v7747
        %v7777 = vpack.c.b16 %v7750, %v7749
        %v7778 = vpack.c.b16 %v7752, %v7751
        %v7779 = vpack.c.b16 %v7754, %v7753
        %v7780 = vpack.c.b16 %v7756, %v7755
        %v7781 = vpack.c.b16 %v7758, %v7757
        %v7782 = vpack.c.b16 %v7760, %v7759
        %v7783 = vpack.c.b16 %v7762, %v7761
        %v7784 = vpack.c.b16 %v7764, %v7763
        %v7785 = vpack.c.b16 %v7766, %v7765
        %v7786 = vpack.c.b16 %v7768, %v7767
        %v7787 = vpack.c.b16 %v7770, %v7769
        %v7788 = vpack.c.b16 %v7772, %v7771
        %v7790 = vunpack.c.l.b16 %v7740
        %v7791 = vpack.c.b16 %v7790, %v7790
        %v7792 = vrot.slane %v7791, 2
        %v7794 = vsel %vm4038, %v7773, 0
        %v7797 = vsel %vm4038, %v7774, 0
        %v7800 = vsel %vm4038, %v7775, 0
        %v7803 = vsel %vm4038, %v7776, 0
        %v7806 = vsel %vm4038, %v7777, 0
        %v7809 = vsel %vm4038, %v7778, 0
        %v7812 = vsel %vm4038, %v7779, 0
        %v7815 = vsel %vm4038, %v7780, 0
        %v7818 = vsel %vm4038, %v7781, 0
        %v7821 = vsel %vm4038, %v7782, 0
        %v7824 = vsel %vm4038, %v7783, 0
        %v7827 = vsel %vm4038, %v7784, 0
        %v7830 = vsel %vm4038, %v7785, 0
        %v7833 = vsel %vm4038, %v7786, 0
        %v7836 = vsel %vm4038, %v7787, 0
        %v7839 = vsel %vm4038, %v7788, 0
        %v7842 = vsel %vm4087, %v7792, 0
        %7844 = vmatpush.bf16.msra.mxu0 0
        %7845 = vmatpush.bf16.msra.mxu0 0
        %7846 = vmatpush.bf16.msra.mxu0 0
        %7847 = vmatpush.bf16.msra.mxu0 0
        %7848 = vmatpush.bf16.msra.mxu0 0
        %7849 = vmatpush.bf16.msra.mxu0 0
        %7850 = vmatpush.bf16.msra.mxu0 0
        %7851 = vmatpush.bf16.msra.mxu0 %v7842
        %7852 = vmatmul.bf16.gmra.mxu0 %v7794
        %v7853 = vpop.f32.mrf.mxu0
        %v7854 = vadd.f32 0.0, %v7853
        %v7855 = vpop.f32.mrf.mxu0
        %v7856 = vadd.f32 0.0, %v7855
        %7857 = vmatmul.bf16.gmra.mxu0 %v7797
        %v7858 = vpop.f32.mrf.mxu0
        %v7859 = vadd.f32 0.0, %v7858
        %v7860 = vpop.f32.mrf.mxu0
        %v7861 = vadd.f32 0.0, %v7860
        %7862 = vmatmul.bf16.gmra.mxu0 %v7800
        %v7863 = vpop.f32.mrf.mxu0
        %v7864 = vadd.f32 0.0, %v7863
        %v7865 = vpop.f32.mrf.mxu0
        %v7866 = vadd.f32 0.0, %v7865
        %7867 = vmatmul.bf16.gmra.mxu0 %v7803
        %v7868 = vpop.f32.mrf.mxu0
        %v7869 = vadd.f32 0.0, %v7868
        %v7870 = vpop.f32.mrf.mxu0
        %v7871 = vadd.f32 0.0, %v7870
        %7872 = vmatmul.bf16.gmra.mxu0 %v7806
        %v7873 = vpop.f32.mrf.mxu0
        %v7874 = vadd.f32 0.0, %v7873
        %v7875 = vpop.f32.mrf.mxu0
        %v7876 = vadd.f32 0.0, %v7875
        %7877 = vmatmul.bf16.gmra.mxu0 %v7809
        %v7878 = vpop.f32.mrf.mxu0
        %v7879 = vadd.f32 0.0, %v7878
        %v7880 = vpop.f32.mrf.mxu0
        %v7881 = vadd.f32 0.0, %v7880
        %7882 = vmatmul.bf16.gmra.mxu0 %v7812
        %v7883 = vpop.f32.mrf.mxu0
        %v7884 = vadd.f32 0.0, %v7883
        %v7885 = vpop.f32.mrf.mxu0
        %v7886 = vadd.f32 0.0, %v7885
        %7887 = vmatmul.bf16.gmra.mxu0 %v7815
        %v7888 = vpop.f32.mrf.mxu0
        %v7889 = vadd.f32 0.0, %v7888
        %v7890 = vpop.f32.mrf.mxu0
        %v7891 = vadd.f32 0.0, %v7890
        %7892 = vmatmul.bf16.gmra.mxu0 %v7818
        %v7893 = vpop.f32.mrf.mxu0
        %v7894 = vadd.f32 0.0, %v7893
        %v7895 = vpop.f32.mrf.mxu0
        %v7896 = vadd.f32 0.0, %v7895
        %7897 = vmatmul.bf16.gmra.mxu0 %v7821
        %v7898 = vpop.f32.mrf.mxu0
        %v7899 = vadd.f32 0.0, %v7898
        %v7900 = vpop.f32.mrf.mxu0
        %v7901 = vadd.f32 0.0, %v7900
        %7902 = vmatmul.bf16.gmra.mxu0 %v7824
        %v7903 = vpop.f32.mrf.mxu0
        %v7904 = vadd.f32 0.0, %v7903
        %v7905 = vpop.f32.mrf.mxu0
        %v7906 = vadd.f32 0.0, %v7905
        %7907 = vmatmul.bf16.gmra.mxu0 %v7827
        %v7908 = vpop.f32.mrf.mxu0
        %v7909 = vadd.f32 0.0, %v7908
        %v7910 = vpop.f32.mrf.mxu0
        %v7911 = vadd.f32 0.0, %v7910
        %7912 = vmatmul.bf16.gmra.mxu0 %v7830
        %v7913 = vpop.f32.mrf.mxu0
        %v7914 = vadd.f32 0.0, %v7913
        %v7915 = vpop.f32.mrf.mxu0
        %v7916 = vadd.f32 0.0, %v7915
        %7917 = vmatmul.bf16.gmra.mxu0 %v7833
        %v7918 = vpop.f32.mrf.mxu0
        %v7919 = vadd.f32 0.0, %v7918
        %v7920 = vpop.f32.mrf.mxu0
        %v7921 = vadd.f32 0.0, %v7920
        %7922 = vmatmul.bf16.gmra.mxu0 %v7836
        %v7923 = vpop.f32.mrf.mxu0
        %v7924 = vadd.f32 0.0, %v7923
        %v7925 = vpop.f32.mrf.mxu0
        %v7926 = vadd.f32 0.0, %v7925
        %7927 = vmatmul.bf16.gmra.mxu0 %v7839
        %v7928 = vpop.f32.mrf.mxu0
        %v7929 = vadd.f32 0.0, %v7928
        %v7930 = vpop.f32.mrf.mxu0
        %v7931 = vadd.f32 0.0, %v7930
        %7932 = vdwg.mxu0
        %v7933 = vadd.f32 %v7270, %v7854
        %v7934 = vadd.f32 %v7271, %v7856
        %v7935 = vadd.f32 %v7272, %v7859
        %v7936 = vadd.f32 %v7273, %v7861
        %v7937 = vadd.f32 %v7274, %v7864
        %v7938 = vadd.f32 %v7275, %v7866
        %v7939 = vadd.f32 %v7276, %v7869
        %v7940 = vadd.f32 %v7277, %v7871
        %v7941 = vadd.f32 %v7278, %v7874
        %v7942 = vadd.f32 %v7279, %v7876
        %v7943 = vadd.f32 %v7280, %v7879
        %v7944 = vadd.f32 %v7281, %v7881
        %v7945 = vadd.f32 %v7282, %v7884
        %v7946 = vadd.f32 %v7283, %v7886
        %v7947 = vadd.f32 %v7284, %v7889
        %v7948 = vadd.f32 %v7285, %v7891
        %v7949 = vadd.f32 %v7286, %v7894
        %v7950 = vadd.f32 %v7287, %v7896
        %v7951 = vadd.f32 %v7288, %v7899
        %v7952 = vadd.f32 %v7289, %v7901
        %v7953 = vadd.f32 %v7290, %v7904
        %v7954 = vadd.f32 %v7291, %v7906
        %v7955 = vadd.f32 %v7292, %v7909
        %v7956 = vadd.f32 %v7293, %v7911
        %v7957 = vadd.f32 %v7294, %v7914
        %v7958 = vadd.f32 %v7295, %v7916
        %v7959 = vadd.f32 %v7296, %v7919
        %v7960 = vadd.f32 %v7297, %v7921
        %v7961 = vadd.f32 %v7298, %v7924
        %v7962 = vadd.f32 %v7299, %v7926
        %v7963 = vadd.f32 %v7300, %v7929
        %v7964 = vadd.f32 %v7301, %v7931
        %v7966 = vshrl.u32 %v7350, 16
        %v7968 = vrot.slane %v7966, 4
        %v7969 = vshll.u32 %v7350, 16
        %v7971 = vrot.slane %v7969, 5
        %v7972 = vor.u32 %v7968, %v7971
        %v7973 = vrot.slane %v7972, 4
        %v7975 = vshll.u32 %v7351, 16
        %v7977 = vrot.slane %v7975, 5
        %v7978 = vsel %vm1523, %v7973, %v7977
        %v7979 = vshrl.u32 %v7351, 16
        %v7981 = vrot.slane %v7979, 4
        %v7982 = vor.u32 %v7981, %v7977
        %v7983 = vrot.slane %v7982, 4
        %v7985 = vshll.u32 %v7352, 16
        %v7987 = vrot.slane %v7985, 5
        %v7988 = vsel %vm1523, %v7983, %v7987
        %v7989 = vld [vmem:[%s9 + $0x8] sm:$0x3]
        %v7990 = vunpack.c.l.b16 %v7978
        %v7991 = vunpack.c.l.b16 %v7988
        %v7992 = vpack.c.b16 %v7991, %v7990
        %v7994 = vsel %vm4038, %v7992, 0
        %v7997 = vsel %vm4087, %v7989, 0
        %7999 = vmatpush.bf16.msra.mxu0 0
        %8000 = vmatpush.bf16.msra.mxu0 0
        %8001 = vmatpush.bf16.msra.mxu0 0
        %8002 = vmatpush.bf16.msra.mxu0 0
        %8003 = vmatpush.bf16.msra.mxu0 0
        %8004 = vmatpush.bf16.msra.mxu0 0
        %8005 = vmatpush.bf16.msra.mxu0 0
        %8006 = vmatpush.bf16.msra.mxu0 %v7997
        %8007 = vmatmul.bf16.gmra.mxu0 %v7797
        %v8008 = vpop.f32.mrf.mxu0
        %v8009 = vadd.f32 0.0, %v8008
        %v8010 = vpop.f32.mrf.mxu0
        %v8011 = vadd.f32 0.0, %v8010
        %8012 = vmatmul.bf16.gmra.mxu0 %v7800
        %v8013 = vpop.f32.mrf.mxu0
        %v8014 = vadd.f32 0.0, %v8013
        %v8015 = vpop.f32.mrf.mxu0
        %v8016 = vadd.f32 0.0, %v8015
        %8017 = vmatmul.bf16.gmra.mxu0 %v7803
        %v8018 = vpop.f32.mrf.mxu0
        %v8019 = vadd.f32 0.0, %v8018
        %v8020 = vpop.f32.mrf.mxu0
        %v8021 = vadd.f32 0.0, %v8020
        %8022 = vmatmul.bf16.gmra.mxu0 %v7806
        %v8023 = vpop.f32.mrf.mxu0
        %v8024 = vadd.f32 0.0, %v8023
        %v8025 = vpop.f32.mrf.mxu0
        %v8026 = vadd.f32 0.0, %v8025
        %8027 = vmatmul.bf16.gmra.mxu0 %v7809
        %v8028 = vpop.f32.mrf.mxu0
        %v8029 = vadd.f32 0.0, %v8028
        %v8030 = vpop.f32.mrf.mxu0
        %v8031 = vadd.f32 0.0, %v8030
        %8032 = vmatmul.bf16.gmra.mxu0 %v7812
        %v8033 = vpop.f32.mrf.mxu0
        %v8034 = vadd.f32 0.0, %v8033
        %v8035 = vpop.f32.mrf.mxu0
        %v8036 = vadd.f32 0.0, %v8035
        %8037 = vmatmul.bf16.gmra.mxu0 %v7815
        %v8038 = vpop.f32.mrf.mxu0
        %v8039 = vadd.f32 0.0, %v8038
        %v8040 = vpop.f32.mrf.mxu0
        %v8041 = vadd.f32 0.0, %v8040
        %8042 = vmatmul.bf16.gmra.mxu0 %v7818
        %v8043 = vpop.f32.mrf.mxu0
        %v8044 = vadd.f32 0.0, %v8043
        %v8045 = vpop.f32.mrf.mxu0
        %v8046 = vadd.f32 0.0, %v8045
        %8047 = vmatmul.bf16.gmra.mxu0 %v7821
        %v8048 = vpop.f32.mrf.mxu0
        %v8049 = vadd.f32 0.0, %v8048
        %v8050 = vpop.f32.mrf.mxu0
        %v8051 = vadd.f32 0.0, %v8050
        %8052 = vmatmul.bf16.gmra.mxu0 %v7824
        %v8053 = vpop.f32.mrf.mxu0
        %v8054 = vadd.f32 0.0, %v8053
        %v8055 = vpop.f32.mrf.mxu0
        %v8056 = vadd.f32 0.0, %v8055
        %8057 = vmatmul.bf16.gmra.mxu0 %v7827
        %v8058 = vpop.f32.mrf.mxu0
        %v8059 = vadd.f32 0.0, %v8058
        %v8060 = vpop.f32.mrf.mxu0
        %v8061 = vadd.f32 0.0, %v8060
        %8062 = vmatmul.bf16.gmra.mxu0 %v7830
        %v8063 = vpop.f32.mrf.mxu0
        %v8064 = vadd.f32 0.0, %v8063
        %v8065 = vpop.f32.mrf.mxu0
        %v8066 = vadd.f32 0.0, %v8065
        %8067 = vmatmul.bf16.gmra.mxu0 %v7833
        %v8068 = vpop.f32.mrf.mxu0
        %v8069 = vadd.f32 0.0, %v8068
        %v8070 = vpop.f32.mrf.mxu0
        %v8071 = vadd.f32 0.0, %v8070
        %8072 = vmatmul.bf16.gmra.mxu0 %v7836
        %v8073 = vpop.f32.mrf.mxu0
        %v8074 = vadd.f32 0.0, %v8073
        %v8075 = vpop.f32.mrf.mxu0
        %v8076 = vadd.f32 0.0, %v8075
        %8077 = vmatmul.bf16.gmra.mxu0 %v7839
        %v8078 = vpop.f32.mrf.mxu0
        %v8079 = vadd.f32 0.0, %v8078
        %v8080 = vpop.f32.mrf.mxu0
        %v8081 = vadd.f32 0.0, %v8080
        %8082 = vmatmul.bf16.gmra.mxu0 %v7994
        %v8083 = vpop.f32.mrf.mxu0
        %v8084 = vadd.f32 0.0, %v8083
        %v8085 = vpop.f32.mrf.mxu0
        %v8086 = vadd.f32 0.0, %v8085
        %8087 = vdwg.mxu0
        %v8088 = vadd.f32 %v7933, %v8009
        %v8089 = vadd.f32 %v7934, %v8011
        %v8090 = vadd.f32 %v7935, %v8014
        %v8091 = vadd.f32 %v7936, %v8016
        %v8092 = vadd.f32 %v7937, %v8019
        %v8093 = vadd.f32 %v7938, %v8021
        %v8094 = vadd.f32 %v7939, %v8024
        %v8095 = vadd.f32 %v7940, %v8026
        %v8096 = vadd.f32 %v7941, %v8029
        %v8097 = vadd.f32 %v7942, %v8031
        %v8098 = vadd.f32 %v7943, %v8034
        %v8099 = vadd.f32 %v7944, %v8036
        %v8100 = vadd.f32 %v7945, %v8039
        %v8101 = vadd.f32 %v7946, %v8041
        %v8102 = vadd.f32 %v7947, %v8044
        %v8103 = vadd.f32 %v7948, %v8046
        %v8104 = vadd.f32 %v7949, %v8049
        %v8105 = vadd.f32 %v7950, %v8051
        %v8106 = vadd.f32 %v7951, %v8054
        %v8107 = vadd.f32 %v7952, %v8056
        %v8108 = vadd.f32 %v7953, %v8059
        %v8109 = vadd.f32 %v7954, %v8061
        %v8110 = vadd.f32 %v7955, %v8064
        %v8111 = vadd.f32 %v7956, %v8066
        %v8112 = vadd.f32 %v7957, %v8069
        %v8113 = vadd.f32 %v7958, %v8071
        %v8114 = vadd.f32 %v7959, %v8074
        %v8115 = vadd.f32 %v7960, %v8076
        %v8116 = vadd.f32 %v7961, %v8079
        %v8117 = vadd.f32 %v7962, %v8081
        %v8118 = vadd.f32 %v7963, %v8084
        %v8119 = vadd.f32 %v7964, %v8086
        %v8121 = vshrl.u32 %v7353, 16
        %v8123 = vrot.slane %v8121, 4
        %v8124 = vshll.u32 %v7353, 16
        %v8126 = vrot.slane %v8124, 5
        %v8127 = vor.u32 %v8123, %v8126
        %v8128 = vrot.slane %v8127, 4
        %v8130 = vshll.u32 %v7354, 16
        %v8132 = vrot.slane %v8130, 5
        %v8133 = vsel %vm1523, %v8128, %v8132
        %v8134 = vshrl.u32 %v7354, 16
        %v8136 = vrot.slane %v8134, 4
        %v8137 = vor.u32 %v8136, %v8132
        %v8138 = vrot.slane %v8137, 4
        %v8140 = vshll.u32 %v7355, 16
        %v8142 = vrot.slane %v8140, 5
        %v8143 = vsel %vm1523, %v8138, %v8142
        %v8144 = vld [vmem:[%s9 + $0xc] sm:$0xc]
        %v8145 = vunpack.c.l.b16 %v8133
        %v8146 = vunpack.c.l.b16 %v8143
        %v8147 = vpack.c.b16 %v8146, %v8145
        %v8149 = vunpack.c.l.b16 %v8144
        %v8150 = vpack.c.b16 %v8149, %v8149
        %v8151 = vrot.slane %v8150, 2
        %v8153 = vsel %vm4038, %v8147, 0
        %v8156 = vsel %vm4087, %v8151, 0
        %8158 = vmatpush.bf16.msra.mxu0 0
        %8159 = vmatpush.bf16.msra.mxu0 0
        %8160 = vmatpush.bf16.msra.mxu0 0
        %8161 = vmatpush.bf16.msra.mxu0 0
        %8162 = vmatpush.bf16.msra.mxu0 0
        %8163 = vmatpush.bf16.msra.mxu0 0
        %8164 = vmatpush.bf16.msra.mxu0 0
        %8165 = vmatpush.bf16.msra.mxu0 %v8156
        %8166 = vmatmul.bf16.gmra.mxu0 %v7800
        %v8167 = vpop.f32.mrf.mxu0
        %v8168 = vadd.f32 0.0, %v8167
        %v8169 = vpop.f32.mrf.mxu0
        %v8170 = vadd.f32 0.0, %v8169
        %8171 = vmatmul.bf16.gmra.mxu0 %v7803
        %v8172 = vpop.f32.mrf.mxu0
        %v8173 = vadd.f32 0.0, %v8172
        %v8174 = vpop.f32.mrf.mxu0
        %v8175 = vadd.f32 0.0, %v8174
        %8176 = vmatmul.bf16.gmra.mxu0 %v7806
        %v8177 = vpop.f32.mrf.mxu0
        %v8178 = vadd.f32 0.0, %v8177
        %v8179 = vpop.f32.mrf.mxu0
        %v8180 = vadd.f32 0.0, %v8179
        %8181 = vmatmul.bf16.gmra.mxu0 %v7809
        %v8182 = vpop.f32.mrf.mxu0
        %v8183 = vadd.f32 0.0, %v8182
        %v8184 = vpop.f32.mrf.mxu0
        %v8185 = vadd.f32 0.0, %v8184
        %8186 = vmatmul.bf16.gmra.mxu0 %v7812
        %v8187 = vpop.f32.mrf.mxu0
        %v8188 = vadd.f32 0.0, %v8187
        %v8189 = vpop.f32.mrf.mxu0
        %v8190 = vadd.f32 0.0, %v8189
        %8191 = vmatmul.bf16.gmra.mxu0 %v7815
        %v8192 = vpop.f32.mrf.mxu0
        %v8193 = vadd.f32 0.0, %v8192
        %v8194 = vpop.f32.mrf.mxu0
        %v8195 = vadd.f32 0.0, %v8194
        %8196 = vmatmul.bf16.gmra.mxu0 %v7818
        %v8197 = vpop.f32.mrf.mxu0
        %v8198 = vadd.f32 0.0, %v8197
        %v8199 = vpop.f32.mrf.mxu0
        %v8200 = vadd.f32 0.0, %v8199
        %8201 = vmatmul.bf16.gmra.mxu0 %v7821
        %v8202 = vpop.f32.mrf.mxu0
        %v8203 = vadd.f32 0.0, %v8202
        %v8204 = vpop.f32.mrf.mxu0
        %v8205 = vadd.f32 0.0, %v8204
        %8206 = vmatmul.bf16.gmra.mxu0 %v7824
        %v8207 = vpop.f32.mrf.mxu0
        %v8208 = vadd.f32 0.0, %v8207
        %v8209 = vpop.f32.mrf.mxu0
        %v8210 = vadd.f32 0.0, %v8209
        %8211 = vmatmul.bf16.gmra.mxu0 %v7827
        %v8212 = vpop.f32.mrf.mxu0
        %v8213 = vadd.f32 0.0, %v8212
        %v8214 = vpop.f32.mrf.mxu0
        %v8215 = vadd.f32 0.0, %v8214
        %8216 = vmatmul.bf16.gmra.mxu0 %v7830
        %v8217 = vpop.f32.mrf.mxu0
        %v8218 = vadd.f32 0.0, %v8217
        %v8219 = vpop.f32.mrf.mxu0
        %v8220 = vadd.f32 0.0, %v8219
        %8221 = vmatmul.bf16.gmra.mxu0 %v7833
        %v8222 = vpop.f32.mrf.mxu0
        %v8223 = vadd.f32 0.0, %v8222
        %v8224 = vpop.f32.mrf.mxu0
        %v8225 = vadd.f32 0.0, %v8224
        %8226 = vmatmul.bf16.gmra.mxu0 %v7836
        %v8227 = vpop.f32.mrf.mxu0
        %v8228 = vadd.f32 0.0, %v8227
        %v8229 = vpop.f32.mrf.mxu0
        %v8230 = vadd.f32 0.0, %v8229
        %8231 = vmatmul.bf16.gmra.mxu0 %v7839
        %v8232 = vpop.f32.mrf.mxu0
        %v8233 = vadd.f32 0.0, %v8232
        %v8234 = vpop.f32.mrf.mxu0
        %v8235 = vadd.f32 0.0, %v8234
        %8236 = vmatmul.bf16.gmra.mxu0 %v7994
        %v8237 = vpop.f32.mrf.mxu0
        %v8238 = vadd.f32 0.0, %v8237
        %v8239 = vpop.f32.mrf.mxu0
        %v8240 = vadd.f32 0.0, %v8239
        %8241 = vmatmul.bf16.gmra.mxu0 %v8153
        %v8242 = vpop.f32.mrf.mxu0
        %v8243 = vadd.f32 0.0, %v8242
        %v8244 = vpop.f32.mrf.mxu0
        %v8245 = vadd.f32 0.0, %v8244
        %8246 = vdwg.mxu0
        %v8247 = vadd.f32 %v8088, %v8168
        %v8248 = vadd.f32 %v8089, %v8170
        %v8249 = vadd.f32 %v8090, %v8173
        %v8250 = vadd.f32 %v8091, %v8175
        %v8251 = vadd.f32 %v8092, %v8178
        %v8252 = vadd.f32 %v8093, %v8180
        %v8253 = vadd.f32 %v8094, %v8183
        %v8254 = vadd.f32 %v8095, %v8185
        %v8255 = vadd.f32 %v8096, %v8188
        %v8256 = vadd.f32 %v8097, %v8190
        %v8257 = vadd.f32 %v8098, %v8193
        %v8258 = vadd.f32 %v8099, %v8195
        %v8259 = vadd.f32 %v8100, %v8198
        %v8260 = vadd.f32 %v8101, %v8200
        %v8261 = vadd.f32 %v8102, %v8203
        %v8262 = vadd.f32 %v8103, %v8205
        %v8263 = vadd.f32 %v8104, %v8208
        %v8264 = vadd.f32 %v8105, %v8210
        %v8265 = vadd.f32 %v8106, %v8213
        %v8266 = vadd.f32 %v8107, %v8215
        %v8267 = vadd.f32 %v8108, %v8218
        %v8268 = vadd.f32 %v8109, %v8220
        %v8269 = vadd.f32 %v8110, %v8223
        %v8270 = vadd.f32 %v8111, %v8225
        %v8271 = vadd.f32 %v8112, %v8228
        %v8272 = vadd.f32 %v8113, %v8230
        %v8273 = vadd.f32 %v8114, %v8233
        %v8274 = vadd.f32 %v8115, %v8235
        %v8275 = vadd.f32 %v8116, %v8238
        %v8276 = vadd.f32 %v8117, %v8240
        %v8277 = vadd.f32 %v8118, %v8243
        %v8278 = vadd.f32 %v8119, %v8245
        %v8279 = vld [vmem:[#allocation3] sm:$0xe]
        %v8280 = vld [vmem:[#allocation3 + $0xc] sm:$0xe]
        %v8281 = vld [vmem:[#allocation3 + $0x18] sm:$0xe]
        %v8282 = vld [vmem:[#allocation3 + $0x24] sm:$0xe]
        %v8283 = vld [vmem:[#allocation3 + $0x30] sm:$0xe]
        %v8284 = vld [vmem:[#allocation3 + $0x3c] sm:$0xe]
        %v8285 = vld [vmem:[#allocation3 + $0x48] sm:$0xe]
        %v8286 = vld [vmem:[#allocation3 + $0x54] sm:$0xe]
        %v8287 = vld [vmem:[#allocation3 + $0x60] sm:$0xe]
        %v8288 = vld [vmem:[#allocation3 + $0x6c] sm:$0xe]
        %v8289 = vld [vmem:[#allocation3 + $0x78] sm:$0xe]
        %v8290 = vld [vmem:[#allocation3 + $0x84] sm:$0xe]
        %v8291 = vld [vmem:[#allocation3 + $0x90] sm:$0xe]
        %v8292 = vld [vmem:[#allocation3 + $0x9c] sm:$0xe]
        %v8293 = vld [vmem:[#allocation3 + $0xa8] sm:$0xe]
        %v8294 = vld [vmem:[#allocation3 + $0xb4] sm:$0xe]
        %v8295 = vld [vmem:[#allocation3 + $0xc0] sm:$0xe]
        %v8296 = vld [vmem:[#allocation3 + $0xcc] sm:$0xe]
        %v8345 = vrot.slane %v8279, 5
        %v8346 = vrot.slane %v8345, 4
        %v8347 = vrot.slane %v7303, 5
        %v8348 = vsel %vm2507, %v8346, %v8347
        %v8349 = vrot.slane %v8347, 4
        %v8350 = vrot.slane %v7304, 5
        %v8351 = vsel %vm2507, %v8349, %v8350
        %v8352 = vrot.slane %v8280, 5
        %v8353 = vrot.slane %v8352, 4
        %v8354 = vrot.slane %v7306, 5
        %v8355 = vsel %vm2507, %v8353, %v8354
        %v8356 = vrot.slane %v8354, 4
        %v8357 = vrot.slane %v7307, 5
        %v8358 = vsel %vm2507, %v8356, %v8357
        %v8359 = vrot.slane %v8281, 5
        %v8360 = vrot.slane %v8359, 4
        %v8361 = vrot.slane %v7309, 5
        %v8362 = vsel %vm2507, %v8360, %v8361
        %v8363 = vrot.slane %v8361, 4
        %v8364 = vrot.slane %v7310, 5
        %v8365 = vsel %vm2507, %v8363, %v8364
        %v8366 = vrot.slane %v8282, 5
        %v8367 = vrot.slane %v8366, 4
        %v8368 = vrot.slane %v7312, 5
        %v8369 = vsel %vm2507, %v8367, %v8368
        %v8370 = vrot.slane %v8368, 4
        %v8371 = vrot.slane %v7313, 5
        %v8372 = vsel %vm2507, %v8370, %v8371
        %v8373 = vrot.slane %v8283, 5
        %v8374 = vrot.slane %v8373, 4
        %v8375 = vrot.slane %v7315, 5
        %v8376 = vsel %vm2507, %v8374, %v8375
        %v8377 = vrot.slane %v8375, 4
        %v8378 = vrot.slane %v7316, 5
        %v8379 = vsel %vm2507, %v8377, %v8378
        %v8380 = vrot.slane %v8284, 5
        %v8381 = vrot.slane %v8380, 4
        %v8382 = vrot.slane %v7318, 5
        %v8383 = vsel %vm2507, %v8381, %v8382
        %v8384 = vrot.slane %v8382, 4
        %v8385 = vrot.slane %v7319, 5
        %v8386 = vsel %vm2507, %v8384, %v8385
        %v8387 = vrot.slane %v8285, 5
        %v8388 = vrot.slane %v8387, 4
        %v8389 = vrot.slane %v7321, 5
        %v8390 = vsel %vm2507, %v8388, %v8389
        %v8391 = vrot.slane %v8389, 4
        %v8392 = vrot.slane %v7322, 5
        %v8393 = vsel %vm2507, %v8391, %v8392
        %v8394 = vrot.slane %v8286, 5
        %v8395 = vrot.slane %v8394, 4
        %v8396 = vrot.slane %v7324, 5
        %v8397 = vsel %vm2507, %v8395, %v8396
        %v8398 = vrot.slane %v8396, 4
        %v8399 = vrot.slane %v7325, 5
        %v8400 = vsel %vm2507, %v8398, %v8399
        %v8401 = vrot.slane %v8287, 5
        %v8402 = vrot.slane %v8401, 4
        %v8403 = vrot.slane %v7327, 5
        %v8404 = vsel %vm2507, %v8402, %v8403
        %v8405 = vrot.slane %v8403, 4
        %v8406 = vrot.slane %v7328, 5
        %v8407 = vsel %vm2507, %v8405, %v8406
        %v8408 = vrot.slane %v8288, 5
        %v8409 = vrot.slane %v8408, 4
        %v8410 = vrot.slane %v7330, 5
        %v8411 = vsel %vm2507, %v8409, %v8410
        %v8412 = vrot.slane %v8410, 4
        %v8413 = vrot.slane %v7331, 5
        %v8414 = vsel %vm2507, %v8412, %v8413
        %v8415 = vrot.slane %v8289, 5
        %v8416 = vrot.slane %v8415, 4
        %v8417 = vrot.slane %v7333, 5
        %v8418 = vsel %vm2507, %v8416, %v8417
        %v8419 = vrot.slane %v8417, 4
        %v8420 = vrot.slane %v7334, 5
        %v8421 = vsel %vm2507, %v8419, %v8420
        %v8422 = vrot.slane %v8290, 5
        %v8423 = vrot.slane %v8422, 4
        %v8424 = vrot.slane %v7336, 5
        %v8425 = vsel %vm2507, %v8423, %v8424
        %v8426 = vrot.slane %v8424, 4
        %v8427 = vrot.slane %v7337, 5
        %v8428 = vsel %vm2507, %v8426, %v8427
        %v8429 = vrot.slane %v8291, 5
        %v8430 = vrot.slane %v8429, 4
        %v8431 = vrot.slane %v7339, 5
        %v8432 = vsel %vm2507, %v8430, %v8431
        %v8433 = vrot.slane %v8431, 4
        %v8434 = vrot.slane %v7340, 5
        %v8435 = vsel %vm2507, %v8433, %v8434
        %v8436 = vrot.slane %v8292, 5
        %v8437 = vrot.slane %v8436, 4
        %v8438 = vrot.slane %v7342, 5
        %v8439 = vsel %vm2507, %v8437, %v8438
        %v8440 = vrot.slane %v8438, 4
        %v8441 = vrot.slane %v7343, 5
        %v8442 = vsel %vm2507, %v8440, %v8441
        %v8443 = vrot.slane %v8293, 5
        %v8444 = vrot.slane %v8443, 4
        %v8445 = vrot.slane %v7345, 5
        %v8446 = vsel %vm2507, %v8444, %v8445
        %v8447 = vrot.slane %v8445, 4
        %v8448 = vrot.slane %v7346, 5
        %v8449 = vsel %vm2507, %v8447, %v8448
        %v8450 = vrot.slane %v8294, 5
        %v8451 = vrot.slane %v8450, 4
        %v8452 = vrot.slane %v7348, 5
        %v8453 = vsel %vm2507, %v8451, %v8452
        %v8454 = vrot.slane %v8452, 4
        %v8455 = vrot.slane %v7349, 5
        %v8456 = vsel %vm2507, %v8454, %v8455
        %v8457 = vld [vmem:[%s9 + $0x4] sm:$0x3]
        %v8458 = vunpack.c.l.b16 %v8348
        %v8459 = vunpack.c.l.b16 %v8351
        %v8460 = vunpack.c.l.b16 %v8355
        %v8461 = vunpack.c.l.b16 %v8358
        %v8462 = vunpack.c.l.b16 %v8362
        %v8463 = vunpack.c.l.b16 %v8365
        %v8464 = vunpack.c.l.b16 %v8369
        %v8465 = vunpack.c.l.b16 %v8372
        %v8466 = vunpack.c.l.b16 %v8376
        %v8467 = vunpack.c.l.b16 %v8379
        %v8468 = vunpack.c.l.b16 %v8383
        %v8469 = vunpack.c.l.b16 %v8386
        %v8470 = vunpack.c.l.b16 %v8390
        %v8471 = vunpack.c.l.b16 %v8393
        %v8472 = vunpack.c.l.b16 %v8397
        %v8473 = vunpack.c.l.b16 %v8400
        %v8474 = vunpack.c.l.b16 %v8404
        %v8475 = vunpack.c.l.b16 %v8407
        %v8476 = vunpack.c.l.b16 %v8411
        %v8477 = vunpack.c.l.b16 %v8414
        %v8478 = vunpack.c.l.b16 %v8418
        %v8479 = vunpack.c.l.b16 %v8421
        %v8480 = vunpack.c.l.b16 %v8425
        %v8481 = vunpack.c.l.b16 %v8428
        %v8482 = vunpack.c.l.b16 %v8432
        %v8483 = vunpack.c.l.b16 %v8435
        %v8484 = vunpack.c.l.b16 %v8439
        %v8485 = vunpack.c.l.b16 %v8442
        %v8486 = vunpack.c.l.b16 %v8446
        %v8487 = vunpack.c.l.b16 %v8449
        %v8488 = vunpack.c.l.b16 %v8453
        %v8489 = vunpack.c.l.b16 %v8456
        %v8490 = vpack.c.b16 %v8459, %v8458
        %v8491 = vpack.c.b16 %v8461, %v8460
        %v8492 = vpack.c.b16 %v8463, %v8462
        %v8493 = vpack.c.b16 %v8465, %v8464
        %v8494 = vpack.c.b16 %v8467, %v8466
        %v8495 = vpack.c.b16 %v8469, %v8468
        %v8496 = vpack.c.b16 %v8471, %v8470
        %v8497 = vpack.c.b16 %v8473, %v8472
        %v8498 = vpack.c.b16 %v8475, %v8474
        %v8499 = vpack.c.b16 %v8477, %v8476
        %v8500 = vpack.c.b16 %v8479, %v8478
        %v8501 = vpack.c.b16 %v8481, %v8480
        %v8502 = vpack.c.b16 %v8483, %v8482
        %v8503 = vpack.c.b16 %v8485, %v8484
        %v8504 = vpack.c.b16 %v8487, %v8486
        %v8505 = vpack.c.b16 %v8489, %v8488
        %v8507 = vsel %vm4038, %v8490, 0
        %v8510 = vsel %vm4038, %v8491, 0
        %v8513 = vsel %vm4038, %v8492, 0
        %v8516 = vsel %vm4038, %v8493, 0
        %v8519 = vsel %vm4038, %v8494, 0
        %v8522 = vsel %vm4038, %v8495, 0
        %v8525 = vsel %vm4038, %v8496, 0
        %v8528 = vsel %vm4038, %v8497, 0
        %v8531 = vsel %vm4038, %v8498, 0
        %v8534 = vsel %vm4038, %v8499, 0
        %v8537 = vsel %vm4038, %v8500, 0
        %v8540 = vsel %vm4038, %v8501, 0
        %v8543 = vsel %vm4038, %v8502, 0
        %v8546 = vsel %vm4038, %v8503, 0
        %v8549 = vsel %vm4038, %v8504, 0
        %v8552 = vsel %vm4038, %v8505, 0
        %v8555 = vsel %vm4087, %v8457, 0
        %8557 = vmatpush.bf16.msra.mxu0 0
        %8558 = vmatpush.bf16.msra.mxu0 0
        %8559 = vmatpush.bf16.msra.mxu0 0
        %8560 = vmatpush.bf16.msra.mxu0 0
        %8561 = vmatpush.bf16.msra.mxu0 0
        %8562 = vmatpush.bf16.msra.mxu0 0
        %8563 = vmatpush.bf16.msra.mxu0 0
        %8564 = vmatpush.bf16.msra.mxu0 %v8555
        %8565 = vmatmul.bf16.gmra.mxu0 %v8507
        %v8566 = vpop.f32.mrf.mxu0
        %v8567 = vadd.f32 0.0, %v8566
        %v8568 = vpop.f32.mrf.mxu0
        %v8569 = vadd.f32 0.0, %v8568
        %8570 = vmatmul.bf16.gmra.mxu0 %v8510
        %v8571 = vpop.f32.mrf.mxu0
        %v8572 = vadd.f32 0.0, %v8571
        %v8573 = vpop.f32.mrf.mxu0
        %v8574 = vadd.f32 0.0, %v8573
        %8575 = vmatmul.bf16.gmra.mxu0 %v8513
        %v8576 = vpop.f32.mrf.mxu0
        %v8577 = vadd.f32 0.0, %v8576
        %v8578 = vpop.f32.mrf.mxu0
        %v8579 = vadd.f32 0.0, %v8578
        %8580 = vmatmul.bf16.gmra.mxu0 %v8516
        %v8581 = vpop.f32.mrf.mxu0
        %v8582 = vadd.f32 0.0, %v8581
        %v8583 = vpop.f32.mrf.mxu0
        %v8584 = vadd.f32 0.0, %v8583
        %8585 = vmatmul.bf16.gmra.mxu0 %v8519
        %v8586 = vpop.f32.mrf.mxu0
        %v8587 = vadd.f32 0.0, %v8586
        %v8588 = vpop.f32.mrf.mxu0
        %v8589 = vadd.f32 0.0, %v8588
        %8590 = vmatmul.bf16.gmra.mxu0 %v8522
        %v8591 = vpop.f32.mrf.mxu0
        %v8592 = vadd.f32 0.0, %v8591
        %v8593 = vpop.f32.mrf.mxu0
        %v8594 = vadd.f32 0.0, %v8593
        %8595 = vmatmul.bf16.gmra.mxu0 %v8525
        %v8596 = vpop.f32.mrf.mxu0
        %v8597 = vadd.f32 0.0, %v8596
        %v8598 = vpop.f32.mrf.mxu0
        %v8599 = vadd.f32 0.0, %v8598
        %8600 = vmatmul.bf16.gmra.mxu0 %v8528
        %v8601 = vpop.f32.mrf.mxu0
        %v8602 = vadd.f32 0.0, %v8601
        %v8603 = vpop.f32.mrf.mxu0
        %v8604 = vadd.f32 0.0, %v8603
        %8605 = vmatmul.bf16.gmra.mxu0 %v8531
        %v8606 = vpop.f32.mrf.mxu0
        %v8607 = vadd.f32 0.0, %v8606
        %v8608 = vpop.f32.mrf.mxu0
        %v8609 = vadd.f32 0.0, %v8608
        %8610 = vmatmul.bf16.gmra.mxu0 %v8534
        %v8611 = vpop.f32.mrf.mxu0
        %v8612 = vadd.f32 0.0, %v8611
        %v8613 = vpop.f32.mrf.mxu0
        %v8614 = vadd.f32 0.0, %v8613
        %8615 = vmatmul.bf16.gmra.mxu0 %v8537
        %v8616 = vpop.f32.mrf.mxu0
        %v8617 = vadd.f32 0.0, %v8616
        %v8618 = vpop.f32.mrf.mxu0
        %v8619 = vadd.f32 0.0, %v8618
        %8620 = vmatmul.bf16.gmra.mxu0 %v8540
        %v8621 = vpop.f32.mrf.mxu0
        %v8622 = vadd.f32 0.0, %v8621
        %v8623 = vpop.f32.mrf.mxu0
        %v8624 = vadd.f32 0.0, %v8623
        %8625 = vmatmul.bf16.gmra.mxu0 %v8543
        %v8626 = vpop.f32.mrf.mxu0
        %v8627 = vadd.f32 0.0, %v8626
        %v8628 = vpop.f32.mrf.mxu0
        %v8629 = vadd.f32 0.0, %v8628
        %8630 = vmatmul.bf16.gmra.mxu0 %v8546
        %v8631 = vpop.f32.mrf.mxu0
        %v8632 = vadd.f32 0.0, %v8631
        %v8633 = vpop.f32.mrf.mxu0
        %v8634 = vadd.f32 0.0, %v8633
        %8635 = vmatmul.bf16.gmra.mxu0 %v8549
        %v8636 = vpop.f32.mrf.mxu0
        %v8637 = vadd.f32 0.0, %v8636
        %v8638 = vpop.f32.mrf.mxu0
        %v8639 = vadd.f32 0.0, %v8638
        %8640 = vmatmul.bf16.gmra.mxu0 %v8552
        %v8641 = vpop.f32.mrf.mxu0
        %v8642 = vadd.f32 0.0, %v8641
        %v8643 = vpop.f32.mrf.mxu0
        %v8644 = vadd.f32 0.0, %v8643
        %8645 = vdwg.mxu0
        %v8646 = vadd.f32 %v8247, %v8567
        %v8647 = vadd.f32 %v8248, %v8569
        %v8648 = vadd.f32 %v8249, %v8572
        %v8649 = vadd.f32 %v8250, %v8574
        %v8650 = vadd.f32 %v8251, %v8577
        %v8651 = vadd.f32 %v8252, %v8579
        %v8652 = vadd.f32 %v8253, %v8582
        %v8653 = vadd.f32 %v8254, %v8584
        %v8654 = vadd.f32 %v8255, %v8587
        %v8655 = vadd.f32 %v8256, %v8589
        %v8656 = vadd.f32 %v8257, %v8592
        %v8657 = vadd.f32 %v8258, %v8594
        %v8658 = vadd.f32 %v8259, %v8597
        %v8659 = vadd.f32 %v8260, %v8599
        %v8660 = vadd.f32 %v8261, %v8602
        %v8661 = vadd.f32 %v8262, %v8604
        %v8662 = vadd.f32 %v8263, %v8607
        %v8663 = vadd.f32 %v8264, %v8609
        %v8664 = vadd.f32 %v8265, %v8612
        %v8665 = vadd.f32 %v8266, %v8614
        %v8666 = vadd.f32 %v8267, %v8617
        %v8667 = vadd.f32 %v8268, %v8619
        %v8668 = vadd.f32 %v8269, %v8622
        %v8669 = vadd.f32 %v8270, %v8624
        %v8670 = vadd.f32 %v8271, %v8627
        %v8671 = vadd.f32 %v8272, %v8629
        %v8672 = vadd.f32 %v8273, %v8632
        %v8673 = vadd.f32 %v8274, %v8634
        %v8674 = vadd.f32 %v8275, %v8637
        %v8675 = vadd.f32 %v8276, %v8639
        %v8676 = vadd.f32 %v8277, %v8642
        %v8677 = vadd.f32 %v8278, %v8644
        %v8681 = vrot.slane %v8295, 5
        %v8682 = vrot.slane %v8681, 4
        %v8683 = vrot.slane %v7351, 5
        %v8684 = vsel %vm2507, %v8682, %v8683
        %v8685 = vrot.slane %v8683, 4
        %v8686 = vrot.slane %v7352, 5
        %v8687 = vsel %vm2507, %v8685, %v8686
        %v8688 = vld [vmem:[%s9 + $0x8] sm:$0xc]
        %v8689 = vunpack.c.l.b16 %v8684
        %v8690 = vunpack.c.l.b16 %v8687
        %v8691 = vpack.c.b16 %v8690, %v8689
        %v8693 = vunpack.c.l.b16 %v8688
        %v8694 = vpack.c.b16 %v8693, %v8693
        %v8695 = vrot.slane %v8694, 2
        %v8697 = vsel %vm4038, %v8691, 0
        %v8700 = vsel %vm4087, %v8695, 0
        %8702 = vmatpush.bf16.msra.mxu0 0
        %8703 = vmatpush.bf16.msra.mxu0 0
        %8704 = vmatpush.bf16.msra.mxu0 0
        %8705 = vmatpush.bf16.msra.mxu0 0
        %8706 = vmatpush.bf16.msra.mxu0 0
        %8707 = vmatpush.bf16.msra.mxu0 0
        %8708 = vmatpush.bf16.msra.mxu0 0
        %8709 = vmatpush.bf16.msra.mxu0 %v8700
        %8710 = vmatmul.bf16.gmra.mxu0 %v8510
        %v8711 = vpop.f32.mrf.mxu0
        %v8712 = vadd.f32 0.0, %v8711
        %v8713 = vpop.f32.mrf.mxu0
        %v8714 = vadd.f32 0.0, %v8713
        %8715 = vmatmul.bf16.gmra.mxu0 %v8513
        %v8716 = vpop.f32.mrf.mxu0
        %v8717 = vadd.f32 0.0, %v8716
        %v8718 = vpop.f32.mrf.mxu0
        %v8719 = vadd.f32 0.0, %v8718
        %8720 = vmatmul.bf16.gmra.mxu0 %v8516
        %v8721 = vpop.f32.mrf.mxu0
        %v8722 = vadd.f32 0.0, %v8721
        %v8723 = vpop.f32.mrf.mxu0
        %v8724 = vadd.f32 0.0, %v8723
        %8725 = vmatmul.bf16.gmra.mxu0 %v8519
        %v8726 = vpop.f32.mrf.mxu0
        %v8727 = vadd.f32 0.0, %v8726
        %v8728 = vpop.f32.mrf.mxu0
        %v8729 = vadd.f32 0.0, %v8728
        %8730 = vmatmul.bf16.gmra.mxu0 %v8522
        %v8731 = vpop.f32.mrf.mxu0
        %v8732 = vadd.f32 0.0, %v8731
        %v8733 = vpop.f32.mrf.mxu0
        %v8734 = vadd.f32 0.0, %v8733
        %8735 = vmatmul.bf16.gmra.mxu0 %v8525
        %v8736 = vpop.f32.mrf.mxu0
        %v8737 = vadd.f32 0.0, %v8736
        %v8738 = vpop.f32.mrf.mxu0
        %v8739 = vadd.f32 0.0, %v8738
        %8740 = vmatmul.bf16.gmra.mxu0 %v8528
        %v8741 = vpop.f32.mrf.mxu0
        %v8742 = vadd.f32 0.0, %v8741
        %v8743 = vpop.f32.mrf.mxu0
        %v8744 = vadd.f32 0.0, %v8743
        %8745 = vmatmul.bf16.gmra.mxu0 %v8531
        %v8746 = vpop.f32.mrf.mxu0
        %v8747 = vadd.f32 0.0, %v8746
        %v8748 = vpop.f32.mrf.mxu0
        %v8749 = vadd.f32 0.0, %v8748
        %8750 = vmatmul.bf16.gmra.mxu0 %v8534
        %v8751 = vpop.f32.mrf.mxu0
        %v8752 = vadd.f32 0.0, %v8751
        %v8753 = vpop.f32.mrf.mxu0
        %v8754 = vadd.f32 0.0, %v8753
        %8755 = vmatmul.bf16.gmra.mxu0 %v8537
        %v8756 = vpop.f32.mrf.mxu0
        %v8757 = vadd.f32 0.0, %v8756
        %v8758 = vpop.f32.mrf.mxu0
        %v8759 = vadd.f32 0.0, %v8758
        %8760 = vmatmul.bf16.gmra.mxu0 %v8540
        %v8761 = vpop.f32.mrf.mxu0
        %v8762 = vadd.f32 0.0, %v8761
        %v8763 = vpop.f32.mrf.mxu0
        %v8764 = vadd.f32 0.0, %v8763
        %8765 = vmatmul.bf16.gmra.mxu0 %v8543
        %v8766 = vpop.f32.mrf.mxu0
        %v8767 = vadd.f32 0.0, %v8766
        %v8768 = vpop.f32.mrf.mxu0
        %v8769 = vadd.f32 0.0, %v8768
        %8770 = vmatmul.bf16.gmra.mxu0 %v8546
        %v8771 = vpop.f32.mrf.mxu0
        %v8772 = vadd.f32 0.0, %v8771
        %v8773 = vpop.f32.mrf.mxu0
        %v8774 = vadd.f32 0.0, %v8773
        %8775 = vmatmul.bf16.gmra.mxu0 %v8549
        %v8776 = vpop.f32.mrf.mxu0
        %v8777 = vadd.f32 0.0, %v8776
        %v8778 = vpop.f32.mrf.mxu0
        %v8779 = vadd.f32 0.0, %v8778
        %8780 = vmatmul.bf16.gmra.mxu0 %v8552
        %v8781 = vpop.f32.mrf.mxu0
        %v8782 = vadd.f32 0.0, %v8781
        %v8783 = vpop.f32.mrf.mxu0
        %v8784 = vadd.f32 0.0, %v8783
        %8785 = vmatmul.bf16.gmra.mxu0 %v8697
        %v8786 = vpop.f32.mrf.mxu0
        %v8787 = vadd.f32 0.0, %v8786
        %v8788 = vpop.f32.mrf.mxu0
        %v8789 = vadd.f32 0.0, %v8788
        %8790 = vdwg.mxu0
        %v8791 = vadd.f32 %v8646, %v8712
        %v8792 = vadd.f32 %v8647, %v8714
        %v8793 = vadd.f32 %v8648, %v8717
        %v8794 = vadd.f32 %v8649, %v8719
        %v8795 = vadd.f32 %v8650, %v8722
        %v8796 = vadd.f32 %v8651, %v8724
        %v8797 = vadd.f32 %v8652, %v8727
        %v8798 = vadd.f32 %v8653, %v8729
        %v8799 = vadd.f32 %v8654, %v8732
        %v8800 = vadd.f32 %v8655, %v8734
        %v8801 = vadd.f32 %v8656, %v8737
        %v8802 = vadd.f32 %v8657, %v8739
        %v8803 = vadd.f32 %v8658, %v8742
        %v8804 = vadd.f32 %v8659, %v8744
        %v8805 = vadd.f32 %v8660, %v8747
        %v8806 = vadd.f32 %v8661, %v8749
        %v8807 = vadd.f32 %v8662, %v8752
        %v8808 = vadd.f32 %v8663, %v8754
        %v8809 = vadd.f32 %v8664, %v8757
        %v8810 = vadd.f32 %v8665, %v8759
        %v8811 = vadd.f32 %v8666, %v8762
        %v8812 = vadd.f32 %v8667, %v8764
        %v8813 = vadd.f32 %v8668, %v8767
        %v8814 = vadd.f32 %v8669, %v8769
        %v8815 = vadd.f32 %v8670, %v8772
        %v8816 = vadd.f32 %v8671, %v8774
        %v8817 = vadd.f32 %v8672, %v8777
        %v8818 = vadd.f32 %v8673, %v8779
        %v8819 = vadd.f32 %v8674, %v8782
        %v8820 = vadd.f32 %v8675, %v8784
        %v8821 = vadd.f32 %v8676, %v8787
        %v8822 = vadd.f32 %v8677, %v8789
        %v8826 = vrot.slane %v8296, 5
        %v8827 = vrot.slane %v8826, 4
        %v8828 = vrot.slane %v7354, 5
        %v8829 = vsel %vm2507, %v8827, %v8828
        %v8830 = vrot.slane %v8828, 4
        %v8831 = vrot.slane %v7355, 5
        %v8832 = vsel %vm2507, %v8830, %v8831
        %v8833 = vld [vmem:[%s9 + $0x10] sm:$0x3]
        %v8834 = vunpack.c.l.b16 %v8829
        %v8835 = vunpack.c.l.b16 %v8832
        %v8836 = vpack.c.b16 %v8835, %v8834
        %v8838 = vsel %vm4038, %v8836, 0
        %v8841 = vsel %vm4087, %v8833, 0
        %8843 = vmatpush.bf16.msra.mxu0 0
        %8844 = vmatpush.bf16.msra.mxu0 0
        %8845 = vmatpush.bf16.msra.mxu0 0
        %8846 = vmatpush.bf16.msra.mxu0 0
        %8847 = vmatpush.bf16.msra.mxu0 0
        %8848 = vmatpush.bf16.msra.mxu0 0
        %8849 = vmatpush.bf16.msra.mxu0 0
        %8850 = vmatpush.bf16.msra.mxu0 %v8841
        %8851 = vmatmul.bf16.gmra.mxu0 %v8513
        %v8852 = vpop.f32.mrf.mxu0
        %v8853 = vadd.f32 0.0, %v8852
        %v8854 = vpop.f32.mrf.mxu0
        %v8855 = vadd.f32 0.0, %v8854
        %8856 = vmatmul.bf16.gmra.mxu0 %v8516
        %v8857 = vpop.f32.mrf.mxu0
        %v8858 = vadd.f32 0.0, %v8857
        %v8859 = vpop.f32.mrf.mxu0
        %v8860 = vadd.f32 0.0, %v8859
        %8861 = vmatmul.bf16.gmra.mxu0 %v8519
        %v8862 = vpop.f32.mrf.mxu0
        %v8863 = vadd.f32 0.0, %v8862
        %v8864 = vpop.f32.mrf.mxu0
        %v8865 = vadd.f32 0.0, %v8864
        %8866 = vmatmul.bf16.gmra.mxu0 %v8522
        %v8867 = vpop.f32.mrf.mxu0
        %v8868 = vadd.f32 0.0, %v8867
        %v8869 = vpop.f32.mrf.mxu0
        %v8870 = vadd.f32 0.0, %v8869
        %8871 = vmatmul.bf16.gmra.mxu0 %v8525
        %v8872 = vpop.f32.mrf.mxu0
        %v8873 = vadd.f32 0.0, %v8872
        %v8874 = vpop.f32.mrf.mxu0
        %v8875 = vadd.f32 0.0, %v8874
        %8876 = vmatmul.bf16.gmra.mxu0 %v8528
        %v8877 = vpop.f32.mrf.mxu0
        %v8878 = vadd.f32 0.0, %v8877
        %v8879 = vpop.f32.mrf.mxu0
        %v8880 = vadd.f32 0.0, %v8879
        %8881 = vmatmul.bf16.gmra.mxu0 %v8531
        %v8882 = vpop.f32.mrf.mxu0
        %v8883 = vadd.f32 0.0, %v8882
        %v8884 = vpop.f32.mrf.mxu0
        %v8885 = vadd.f32 0.0, %v8884
        %8886 = vmatmul.bf16.gmra.mxu0 %v8534
        %v8887 = vpop.f32.mrf.mxu0
        %v8888 = vadd.f32 0.0, %v8887
        %v8889 = vpop.f32.mrf.mxu0
        %v8890 = vadd.f32 0.0, %v8889
        %8891 = vmatmul.bf16.gmra.mxu0 %v8537
        %v8892 = vpop.f32.mrf.mxu0
        %v8893 = vadd.f32 0.0, %v8892
        %v8894 = vpop.f32.mrf.mxu0
        %v8895 = vadd.f32 0.0, %v8894
        %8896 = vmatmul.bf16.gmra.mxu0 %v8540
        %v8897 = vpop.f32.mrf.mxu0
        %v8898 = vadd.f32 0.0, %v8897
        %v8899 = vpop.f32.mrf.mxu0
        %v8900 = vadd.f32 0.0, %v8899
        %8901 = vmatmul.bf16.gmra.mxu0 %v8543
        %v8902 = vpop.f32.mrf.mxu0
        %v8903 = vadd.f32 0.0, %v8902
        %v8904 = vpop.f32.mrf.mxu0
        %v8905 = vadd.f32 0.0, %v8904
        %8906 = vmatmul.bf16.gmra.mxu0 %v8546
        %v8907 = vpop.f32.mrf.mxu0
        %v8908 = vadd.f32 0.0, %v8907
        %v8909 = vpop.f32.mrf.mxu0
        %v8910 = vadd.f32 0.0, %v8909
        %8911 = vmatmul.bf16.gmra.mxu0 %v8549
        %v8912 = vpop.f32.mrf.mxu0
        %v8913 = vadd.f32 0.0, %v8912
        %v8914 = vpop.f32.mrf.mxu0
        %v8915 = vadd.f32 0.0, %v8914
        %8916 = vmatmul.bf16.gmra.mxu0 %v8552
        %v8917 = vpop.f32.mrf.mxu0
        %v8918 = vadd.f32 0.0, %v8917
        %v8919 = vpop.f32.mrf.mxu0
        %v8920 = vadd.f32 0.0, %v8919
        %8921 = vmatmul.bf16.gmra.mxu0 %v8697
        %v8922 = vpop.f32.mrf.mxu0
        %v8923 = vadd.f32 0.0, %v8922
        %v8924 = vpop.f32.mrf.mxu0
        %v8925 = vadd.f32 0.0, %v8924
        %8926 = vmatmul.bf16.gmra.mxu0 %v8838
        %v8927 = vpop.f32.mrf.mxu0
        %v8928 = vadd.f32 0.0, %v8927
        %v8929 = vpop.f32.mrf.mxu0
        %v8930 = vadd.f32 0.0, %v8929
        %8931 = vdwg.mxu0
        %v8932 = vadd.f32 %v8791, %v8853
        %v8933 = vadd.f32 %v8792, %v8855
        %v8934 = vadd.f32 %v8793, %v8858
        %v8935 = vadd.f32 %v8794, %v8860
        %v8936 = vadd.f32 %v8795, %v8863
        %v8937 = vadd.f32 %v8796, %v8865
        %v8938 = vadd.f32 %v8797, %v8868
        %v8939 = vadd.f32 %v8798, %v8870
        %v8940 = vadd.f32 %v8799, %v8873
        %v8941 = vadd.f32 %v8800, %v8875
        %v8942 = vadd.f32 %v8801, %v8878
        %v8943 = vadd.f32 %v8802, %v8880
        %v8944 = vadd.f32 %v8803, %v8883
        %v8945 = vadd.f32 %v8804, %v8885
        %v8946 = vadd.f32 %v8805, %v8888
        %v8947 = vadd.f32 %v8806, %v8890
        %v8948 = vadd.f32 %v8807, %v8893
        %v8949 = vadd.f32 %v8808, %v8895
        %v8950 = vadd.f32 %v8809, %v8898
        %v8951 = vadd.f32 %v8810, %v8900
        %v8952 = vadd.f32 %v8811, %v8903
        %v8953 = vadd.f32 %v8812, %v8905
        %v8954 = vadd.f32 %v8813, %v8908
        %v8955 = vadd.f32 %v8814, %v8910
        %v8956 = vadd.f32 %v8815, %v8913
        %v8957 = vadd.f32 %v8816, %v8915
        %v8958 = vadd.f32 %v8817, %v8918
        %v8959 = vadd.f32 %v8818, %v8920
        %v8960 = vadd.f32 %v8819, %v8923
        %v8961 = vadd.f32 %v8820, %v8925
        %v8962 = vadd.f32 %v8821, %v8928
        %v8963 = vadd.f32 %v8822, %v8930
        %v8964 = vld [vmem:[%s10] sm:$0x1]
        %v8966 = vperm.slane %v8964, 0
        %v8968 = vmul.f32 %v8932, %v8966
        %v8969 = vmul.f32 %v8933, %v8966
        %v8970 = vmul.f32 %v8934, %v8966
        %v8971 = vmul.f32 %v8935, %v8966
        %v8972 = vmul.f32 %v8936, %v8966
        %v8973 = vmul.f32 %v8937, %v8966
        %v8974 = vmul.f32 %v8938, %v8966
        %v8975 = vmul.f32 %v8939, %v8966
        %v8976 = vmul.f32 %v8940, %v8966
        %v8977 = vmul.f32 %v8941, %v8966
        %v8978 = vmul.f32 %v8942, %v8966
        %v8979 = vmul.f32 %v8943, %v8966
        %v8980 = vmul.f32 %v8944, %v8966
        %v8981 = vmul.f32 %v8945, %v8966
        %v8982 = vmul.f32 %v8946, %v8966
        %v8983 = vmul.f32 %v8947, %v8966
        %v8984 = vmul.f32 %v8948, %v8966
        %v8985 = vmul.f32 %v8949, %v8966
        %v8986 = vmul.f32 %v8950, %v8966
        %v8987 = vmul.f32 %v8951, %v8966
        %v8988 = vmul.f32 %v8952, %v8966
        %v8989 = vmul.f32 %v8953, %v8966
        %v8990 = vmul.f32 %v8954, %v8966
        %v8991 = vmul.f32 %v8955, %v8966
        %v8992 = vmul.f32 %v8956, %v8966
        %v8993 = vmul.f32 %v8957, %v8966
        %v8994 = vmul.f32 %v8958, %v8966
        %v8995 = vmul.f32 %v8959, %v8966
        %v8996 = vmul.f32 %v8960, %v8966
        %v8997 = vmul.f32 %v8961, %v8966
        %v8998 = vmul.f32 %v8962, %v8966
        %v8999 = vmul.f32 %v8963, %v8966
        %v9000 = vld [vmem:[%s11] sm:$0x1]
        %v9002 = vperm.slane %v9000, 0
        %v9004 = vadd.f32 %v8968, %v9002
        %v9005 = vadd.f32 %v8969, %v9002
        %v9006 = vadd.f32 %v8970, %v9002
        %v9007 = vadd.f32 %v8971, %v9002
        %v9008 = vadd.f32 %v8972, %v9002
        %v9009 = vadd.f32 %v8973, %v9002
        %v9010 = vadd.f32 %v8974, %v9002
        %v9011 = vadd.f32 %v8975, %v9002
        %v9012 = vadd.f32 %v8976, %v9002
        %v9013 = vadd.f32 %v8977, %v9002
        %v9014 = vadd.f32 %v8978, %v9002
        %v9015 = vadd.f32 %v8979, %v9002
        %v9016 = vadd.f32 %v8980, %v9002
        %v9017 = vadd.f32 %v8981, %v9002
        %v9018 = vadd.f32 %v8982, %v9002
        %v9019 = vadd.f32 %v8983, %v9002
        %v9020 = vadd.f32 %v8984, %v9002
        %v9021 = vadd.f32 %v8985, %v9002
        %v9022 = vadd.f32 %v8986, %v9002
        %v9023 = vadd.f32 %v8987, %v9002
        %v9024 = vadd.f32 %v8988, %v9002
        %v9025 = vadd.f32 %v8989, %v9002
        %v9026 = vadd.f32 %v8990, %v9002
        %v9027 = vadd.f32 %v8991, %v9002
        %v9028 = vadd.f32 %v8992, %v9002
        %v9029 = vadd.f32 %v8993, %v9002
        %v9030 = vadd.f32 %v8994, %v9002
        %v9031 = vadd.f32 %v8995, %v9002
        %v9032 = vadd.f32 %v8996, %v9002
        %v9033 = vadd.f32 %v8997, %v9002
        %v9034 = vadd.f32 %v8998, %v9002
        %v9035 = vadd.f32 %v8999, %v9002
        %v9036 = vmax.f32 %v9004, 0.0
        %v9037 = vmax.f32 %v9005, 0.0
        %v9038 = vmax.f32 %v9006, 0.0
        %v9039 = vmax.f32 %v9007, 0.0
        %v9040 = vmax.f32 %v9008, 0.0
        %v9041 = vmax.f32 %v9009, 0.0
        %v9042 = vmax.f32 %v9010, 0.0
        %v9043 = vmax.f32 %v9011, 0.0
        %v9044 = vmax.f32 %v9012, 0.0
        %v9045 = vmax.f32 %v9013, 0.0
        %v9046 = vmax.f32 %v9014, 0.0
        %v9047 = vmax.f32 %v9015, 0.0
        %v9048 = vmax.f32 %v9016, 0.0
        %v9049 = vmax.f32 %v9017, 0.0
        %v9050 = vmax.f32 %v9018, 0.0
        %v9051 = vmax.f32 %v9019, 0.0
        %v9052 = vmax.f32 %v9020, 0.0
        %v9053 = vmax.f32 %v9021, 0.0
        %v9054 = vmax.f32 %v9022, 0.0
        %v9055 = vmax.f32 %v9023, 0.0
        %v9056 = vmax.f32 %v9024, 0.0
        %v9057 = vmax.f32 %v9025, 0.0
        %v9058 = vmax.f32 %v9026, 0.0
        %v9059 = vmax.f32 %v9027, 0.0
        %v9060 = vmax.f32 %v9028, 0.0
        %v9061 = vmax.f32 %v9029, 0.0
        %v9062 = vmax.f32 %v9030, 0.0
        %v9063 = vmax.f32 %v9031, 0.0
        %v9064 = vmax.f32 %v9032, 0.0
        %v9065 = vmax.f32 %v9033, 0.0
        %v9066 = vmax.f32 %v9034, 0.0
        %v9067 = vmax.f32 %v9035, 0.0
        %9100 = vrot.lane.b32.xlu0 %v6215, 8
        %v9101 = vpop.permute.xlu0 %9100
        %9102 = vrot.lane.b32.xlu0 %v6216, 8
        %v9103 = vpop.permute.xlu0 %9102
        %9104 = vrot.lane.b32.xlu0 %v6217, 8
        %v9105 = vpop.permute.xlu0 %9104
        %9106 = vrot.lane.b32.xlu0 %v6218, 8
        %v9107 = vpop.permute.xlu0 %9106
        %9108 = vrot.lane.b32.xlu0 %v6219, 8
        %v9109 = vpop.permute.xlu0 %9108
        %9110 = vrot.lane.b32.xlu0 %v6220, 8
        %v9111 = vpop.permute.xlu0 %9110
        %9112 = vrot.lane.b32.xlu0 %v6221, 8
        %v9113 = vpop.permute.xlu0 %9112
        %9114 = vrot.lane.b32.xlu0 %v6222, 8
        %v9115 = vpop.permute.xlu0 %9114
        %9116 = vrot.lane.b32.xlu0 %v6223, 8
        %v9117 = vpop.permute.xlu0 %9116
        %9118 = vrot.lane.b32.xlu0 %v6224, 8
        %v9119 = vpop.permute.xlu0 %9118
        %9120 = vrot.lane.b32.xlu0 %v6225, 8
        %v9121 = vpop.permute.xlu0 %9120
        %9122 = vrot.lane.b32.xlu0 %v6226, 8
        %v9123 = vpop.permute.xlu0 %9122
        %9124 = vrot.lane.b32.xlu0 %v6227, 8
        %v9125 = vpop.permute.xlu0 %9124
        %9126 = vrot.lane.b32.xlu0 %v6228, 8
        %v9127 = vpop.permute.xlu0 %9126
        %9128 = vrot.lane.b32.xlu0 %v6229, 8
        %v9129 = vpop.permute.xlu0 %9128
        %9130 = vrot.lane.b32.xlu0 %v6230, 8
        %v9131 = vpop.permute.xlu0 %9130
        %9132 = vrot.lane.b32.xlu0 %v6231, 8
        %v9133 = vpop.permute.xlu0 %9132
        %9134 = vrot.lane.b32.xlu0 %v6232, 8
        %v9135 = vpop.permute.xlu0 %9134
        %9136 = vrot.lane.b32.xlu0 %v6233, 8
        %v9137 = vpop.permute.xlu0 %9136
        %9138 = vrot.lane.b32.xlu0 %v6234, 8
        %v9139 = vpop.permute.xlu0 %9138
        %9140 = vrot.lane.b32.xlu0 %v6235, 8
        %v9141 = vpop.permute.xlu0 %9140
        %9142 = vrot.lane.b32.xlu0 %v6236, 8
        %v9143 = vpop.permute.xlu0 %9142
        %9144 = vrot.lane.b32.xlu0 %v6237, 8
        %v9145 = vpop.permute.xlu0 %9144
        %9146 = vrot.lane.b32.xlu0 %v6238, 8
        %v9147 = vpop.permute.xlu0 %9146
        %9148 = vrot.lane.b32.xlu0 %v6239, 8
        %v9149 = vpop.permute.xlu0 %9148
        %9150 = vrot.lane.b32.xlu0 %v6240, 8
        %v9151 = vpop.permute.xlu0 %9150
        %9152 = vrot.lane.b32.xlu0 %v6241, 8
        %v9153 = vpop.permute.xlu0 %9152
        %9154 = vrot.lane.b32.xlu0 %v6242, 8
        %v9155 = vpop.permute.xlu0 %9154
        %9156 = vrot.lane.b32.xlu0 %v6243, 8
        %v9157 = vpop.permute.xlu0 %9156
        %9158 = vrot.lane.b32.xlu0 %v6244, 8
        %v9159 = vpop.permute.xlu0 %9158
        %9160 = vrot.lane.b32.xlu0 %v6245, 8
        %v9161 = vpop.permute.xlu0 %9160
        %9162 = vrot.lane.b32.xlu0 %v6246, 8
        %v9163 = vpop.permute.xlu0 %9162
        %9228 = vrot.lane.b32.xlu0 %v9036, 12
        %v9229 = vpop.permute.xlu0 %9228
        %9230 = vrot.lane.b32.xlu0 %v9037, 12
        %v9231 = vpop.permute.xlu0 %9230
        %9232 = vrot.lane.b32.xlu0 %v9038, 12
        %v9233 = vpop.permute.xlu0 %9232
        %9234 = vrot.lane.b32.xlu0 %v9039, 12
        %v9235 = vpop.permute.xlu0 %9234
        %9236 = vrot.lane.b32.xlu0 %v9040, 12
        %v9237 = vpop.permute.xlu0 %9236
        %9238 = vrot.lane.b32.xlu0 %v9041, 12
        %v9239 = vpop.permute.xlu0 %9238
        %9240 = vrot.lane.b32.xlu0 %v9042, 12
        %v9241 = vpop.permute.xlu0 %9240
        %9242 = vrot.lane.b32.xlu0 %v9043, 12
        %v9243 = vpop.permute.xlu0 %9242
        %9244 = vrot.lane.b32.xlu0 %v9044, 12
        %v9245 = vpop.permute.xlu0 %9244
        %9246 = vrot.lane.b32.xlu0 %v9045, 12
        %v9247 = vpop.permute.xlu0 %9246
        %9248 = vrot.lane.b32.xlu0 %v9046, 12
        %v9249 = vpop.permute.xlu0 %9248
        %9250 = vrot.lane.b32.xlu0 %v9047, 12
        %v9251 = vpop.permute.xlu0 %9250
        %9252 = vrot.lane.b32.xlu0 %v9048, 12
        %v9253 = vpop.permute.xlu0 %9252
        %9254 = vrot.lane.b32.xlu0 %v9049, 12
        %v9255 = vpop.permute.xlu0 %9254
        %9256 = vrot.lane.b32.xlu0 %v9050, 12
        %v9257 = vpop.permute.xlu0 %9256
        %9258 = vrot.lane.b32.xlu0 %v9051, 12
        %v9259 = vpop.permute.xlu0 %9258
        %9260 = vrot.lane.b32.xlu0 %v9052, 12
        %v9261 = vpop.permute.xlu0 %9260
        %9262 = vrot.lane.b32.xlu0 %v9053, 12
        %v9263 = vpop.permute.xlu0 %9262
        %9264 = vrot.lane.b32.xlu0 %v9054, 12
        %v9265 = vpop.permute.xlu0 %9264
        %9266 = vrot.lane.b32.xlu0 %v9055, 12
        %v9267 = vpop.permute.xlu0 %9266
        %9268 = vrot.lane.b32.xlu0 %v9056, 12
        %v9269 = vpop.permute.xlu0 %9268
        %9270 = vrot.lane.b32.xlu0 %v9057, 12
        %v9271 = vpop.permute.xlu0 %9270
        %9272 = vrot.lane.b32.xlu0 %v9058, 12
        %v9273 = vpop.permute.xlu0 %9272
        %9274 = vrot.lane.b32.xlu0 %v9059, 12
        %v9275 = vpop.permute.xlu0 %9274
        %9276 = vrot.lane.b32.xlu0 %v9060, 12
        %v9277 = vpop.permute.xlu0 %9276
        %9278 = vrot.lane.b32.xlu0 %v9061, 12
        %v9279 = vpop.permute.xlu0 %9278
        %9280 = vrot.lane.b32.xlu0 %v9062, 12
        %v9281 = vpop.permute.xlu0 %9280
        %9282 = vrot.lane.b32.xlu0 %v9063, 12
        %v9283 = vpop.permute.xlu0 %9282
        %9284 = vrot.lane.b32.xlu0 %v9064, 12
        %v9285 = vpop.permute.xlu0 %9284
        %9286 = vrot.lane.b32.xlu0 %v9065, 12
        %v9287 = vpop.permute.xlu0 %9286
        %9288 = vrot.lane.b32.xlu0 %v9066, 12
        %v9289 = vpop.permute.xlu0 %9288
        %9290 = vrot.lane.b32.xlu0 %v9067, 12
        %v9291 = vpop.permute.xlu0 %9290
        %v9324 = vsel %vm1092, %v3263, %v9101
        %v9325 = vsel %vm1092, %v3264, %v9103
        %v9326 = vsel %vm1092, %v3265, %v9105
        %v9327 = vsel %vm1092, %v3266, %v9107
        %v9328 = vsel %vm1092, %v3267, %v9109
        %v9329 = vsel %vm1092, %v3268, %v9111
        %v9330 = vsel %vm1092, %v3269, %v9113
        %v9331 = vsel %vm1092, %v3270, %v9115
        %v9332 = vsel %vm1092, %v3271, %v9117
        %v9333 = vsel %vm1092, %v3272, %v9119
        %v9334 = vsel %vm1092, %v3273, %v9121
        %v9335 = vsel %vm1092, %v3274, %v9123
        %v9336 = vsel %vm1092, %v3275, %v9125
        %v9337 = vsel %vm1092, %v3276, %v9127
        %v9338 = vsel %vm1092, %v3277, %v9129
        %v9339 = vsel %vm1092, %v3278, %v9131
        %v9340 = vsel %vm1092, %v3279, %v9133
        %v9341 = vsel %vm1092, %v3280, %v9135
        %v9342 = vsel %vm1092, %v3281, %v9137
        %v9343 = vsel %vm1092, %v3282, %v9139
        %v9344 = vsel %vm1092, %v3283, %v9141
        %v9345 = vsel %vm1092, %v3284, %v9143
        %v9346 = vsel %vm1092, %v3285, %v9145
        %v9347 = vsel %vm1092, %v3286, %v9147
        %v9348 = vsel %vm1092, %v3287, %v9149
        %v9349 = vsel %vm1092, %v3288, %v9151
        %v9350 = vsel %vm1092, %v3289, %v9153
        %v9351 = vsel %vm1092, %v3290, %v9155
        %v9352 = vsel %vm1092, %v3291, %v9157
        %v9353 = vsel %vm1092, %v3292, %v9159
        %v9354 = vsel %vm1092, %v3293, %v9161
        %v9355 = vsel %vm1092, %v3294, %v9163
        %vm9356 = vcmask 97280
        %v9357 = vsel %vm9356, %v9324, %v9229
        %v9358 = vsel %vm9356, %v9325, %v9231
        %v9359 = vsel %vm9356, %v9326, %v9233
        %v9360 = vsel %vm9356, %v9327, %v9235
        %v9361 = vsel %vm9356, %v9328, %v9237
        %v9362 = vsel %vm9356, %v9329, %v9239
        %v9363 = vsel %vm9356, %v9330, %v9241
        %v9364 = vsel %vm9356, %v9331, %v9243
        %v9365 = vsel %vm9356, %v9332, %v9245
        %v9366 = vsel %vm9356, %v9333, %v9247
        %v9367 = vsel %vm9356, %v9334, %v9249
        %v9368 = vsel %vm9356, %v9335, %v9251
        %v9369 = vsel %vm9356, %v9336, %v9253
        %v9370 = vsel %vm9356, %v9337, %v9255
        %v9371 = vsel %vm9356, %v9338, %v9257
        %v9372 = vsel %vm9356, %v9339, %v9259
        %v9373 = vsel %vm9356, %v9340, %v9261
        %v9374 = vsel %vm9356, %v9341, %v9263
        %v9375 = vsel %vm9356, %v9342, %v9265
        %v9376 = vsel %vm9356, %v9343, %v9267
        %v9377 = vsel %vm9356, %v9344, %v9269
        %v9378 = vsel %vm9356, %v9345, %v9271
        %v9379 = vsel %vm9356, %v9346, %v9273
        %v9380 = vsel %vm9356, %v9347, %v9275
        %v9381 = vsel %vm9356, %v9348, %v9277
        %v9382 = vsel %vm9356, %v9349, %v9279
        %v9383 = vsel %vm9356, %v9350, %v9281
        %v9384 = vsel %vm9356, %v9351, %v9283
        %v9385 = vsel %vm9356, %v9352, %v9285
        %v9386 = vsel %vm9356, %v9353, %v9287
        %v9387 = vsel %vm9356, %v9354, %v9289
        %v9388 = vsel %vm9356, %v9355, %v9291
        %vm9389 = vcmask 130048
        %9390 = vst.msk [vmem:[%s406] sm:$0xff] %vm9389, %v9357
        %9391 = vst.msk [vmem:[%s406 + $0x8] sm:$0xff] %vm9389, %v9358
        %9392 = vst.msk [vmem:[%s406 + $0x10] sm:$0xff] %vm9389, %v9359
        %9393 = vst.msk [vmem:[%s406 + $0x18] sm:$0xff] %vm9389, %v9360
        %9394 = vst.msk [vmem:[%s406 + $0x20] sm:$0xff] %vm9389, %v9361
        %9395 = vst.msk [vmem:[%s406 + $0x28] sm:$0xff] %vm9389, %v9362
        %9396 = vst.msk [vmem:[%s406 + $0x30] sm:$0xff] %vm9389, %v9363
        %9397 = vst.msk [vmem:[%s406 + $0x38] sm:$0xff] %vm9389, %v9364
        %9398 = vst.msk [vmem:[%s406 + $0x40] sm:$0xff] %vm9389, %v9365
        %9399 = vst.msk [vmem:[%s406 + $0x48] sm:$0xff] %vm9389, %v9366
        %9400 = vst.msk [vmem:[%s406 + $0x50] sm:$0xff] %vm9389, %v9367
        %9401 = vst.msk [vmem:[%s406 + $0x58] sm:$0xff] %vm9389, %v9368
        %9402 = vst.msk [vmem:[%s406 + $0x60] sm:$0xff] %vm9389, %v9369
        %9403 = vst.msk [vmem:[%s406 + $0x68] sm:$0xff] %vm9389, %v9370
        %9404 = vst.msk [vmem:[%s406 + $0x70] sm:$0xff] %vm9389, %v9371
        %9405 = vst.msk [vmem:[%s406 + $0x78] sm:$0xff] %vm9389, %v9372
        %9406 = vst.msk [vmem:[%s406 + $0x80] sm:$0xff] %vm9389, %v9373
        %9407 = vst.msk [vmem:[%s406 + $0x88] sm:$0xff] %vm9389, %v9374
        %9408 = vst.msk [vmem:[%s406 + $0x90] sm:$0xff] %vm9389, %v9375
        %9409 = vst.msk [vmem:[%s406 + $0x98] sm:$0xff] %vm9389, %v9376
        %9410 = vst.msk [vmem:[%s406 + $0xa0] sm:$0xff] %vm9389, %v9377
        %9411 = vst.msk [vmem:[%s406 + $0xa8] sm:$0xff] %vm9389, %v9378
        %9412 = vst.msk [vmem:[%s406 + $0xb0] sm:$0xff] %vm9389, %v9379
        %9413 = vst.msk [vmem:[%s406 + $0xb8] sm:$0xff] %vm9389, %v9380
        %9414 = vst.msk [vmem:[%s406 + $0xc0] sm:$0xff] %vm9389, %v9381
        %9415 = vst.msk [vmem:[%s406 + $0xc8] sm:$0xff] %vm9389, %v9382
        %9416 = vst.msk [vmem:[%s406 + $0xd0] sm:$0xff] %vm9389, %v9383
        %9417 = vst.msk [vmem:[%s406 + $0xd8] sm:$0xff] %vm9389, %v9384
        %9418 = vst.msk [vmem:[%s406 + $0xe0] sm:$0xff] %vm9389, %v9385
        %9419 = vst.msk [vmem:[%s406 + $0xe8] sm:$0xff] %vm9389, %v9386
        %9420 = vst.msk [vmem:[%s406 + $0xf0] sm:$0xff] %vm9389, %v9387
        %9421 = vst.msk [vmem:[%s406 + $0xf8] sm:$0xff] %vm9389, %v9388
        %s9422 = sand.u32 %s291, 1
        %s9423 = scalar_lea.sflag [#allocation5], %s9422
        %s9424 = sand.u32 %s291, 1
        %s9425 = smul.addr %s9424, 256
        %s9426 = scalar_lea.vmem [#allocation4], %s9425
        // Predicated region
        $region69: #{tpu_custom_call.1} parent=67 // pred_check
          %p9427 = pneg %p301
        $region70: #{tpu_custom_call.1} parent=67 // pred_check_branch
          %9429 = sbr.rel (%p9427) target = $region72
        $region71: #{tpu_custom_call.1} parent=67 // pred_region
          %9431 = vsyncadd %s9423, 0
          %s9432 = smul.addr %s26, 32
          %s9433 = smul.addr %s9432, 8
          %s9434 = scalar_lea.hbm %s12, %s9433
          %s9435 = sshll.u32 %s9426, 4
          %s9436 = int_to_ptr.vmem [resolvable:$true] %s9435
          %s9437 = sshll.u32 %s9434, 4
          %s9438 = int_to_ptr.hbm [resolvable:$true] %s9437
          %9443 = dma.vmem_to_hbm [thread:$0]  %s9436, 4096, %s9438, %s9423, 128, 128, 8
        $region72: #{tpu_custom_call.1} parent=67 // pred_fallthru
          _
      $region68: #{tpu_custom_call.1} parent=5 // pred_fallthru
        _
      %p9444 = scmp.le.s32.totalorder 2, %s21
      // Predicated region
      $region73: #{tpu_custom_call.1} parent=5 // pred_check
        %p9445 = pneg %p9444
      $region74: #{tpu_custom_call.1} parent=5 // pred_check_branch
        %9447 = sbr.rel (%p9445) target = $region76
      $region75: #{tpu_custom_call.1} parent=5 // pred_region
        %s9448 = ssub.s32 %s21, 2
        // Predicated region
        $region77: #{tpu_custom_call.1} parent=75 // pred_check
          %p9449 = pneg %p307
        $region78: #{tpu_custom_call.1} parent=75 // pred_check_branch
          %9451 = sbr.rel (%p9449) target = $region80
        $region79: #{tpu_custom_call.1} parent=75 // pred_region
          %s9452 = sand.u32 %s292, 1
          %s9453 = scalar_lea.sflag [#allocation5], %s9452
          %s9454 = sand.u32 %s292, 1
          %s9455 = smul.addr %s9454, 256
          %s9456 = scalar_lea.vmem [#allocation4], %s9455
          %9458 = dma.done %s9453, 4096
        $region80: #{tpu_custom_call.1} parent=75 // pred_fallthru
          _
      $region76: #{tpu_custom_call.1} parent=5 // pred_fallthru
        _
    $region6: #{tpu_custom_call.1} parent=1 // loop_footer
      %s25 = sadd.s32 1, %s21
    $region7: #{tpu_custom_call.1} parent=1 // loop_footer_branch
      %20 = sbr.rel target = $region3
    $region8: #{tpu_custom_call.1} parent=1 // loop_exit
      _
    %9459 = vsyncpa [#allocation5], 1
    %s9460 = scalar_lea.sflag [#allocation5], 1
    %9461 = vsyncpa %s9460, 1

</llo_original>
